<compile_context>
chip_gen: v7x
topology: tpu7x:2x2x1
jax: 0.10.0
libtpu: 0.0.40
codegen_flags: <defaults>
</compile_context>

<pallas_src>
import functools
import numpy as np
import jax
import jax.numpy as jnp
from jax.experimental import pallas as pl
from jax.experimental.pallas import tpu as pltpu

# ----------------------------------------------------------------------------
# Model configuration (small, deterministic)
# ----------------------------------------------------------------------------
NZ = 64          # nz  (latent dim)
NGF = 8          # ngf (base feature maps)
NC = 1           # nc  (output channels)
KERNELS = [4, 4, 4, 4, 4, 4]
STRIDES = [1, 2, 2, 2, 2, 2]
PADS    = [0, 1, 1, 1, 1, 1]
CH_OUT  = [NGF * 16, NGF * 8, NGF * 4, NGF * 2, NGF, NC]   # 128,64,32,16,8,1
CH_IN   = [NZ] + CH_OUT[:-1]


# ----------------------------------------------------------------------------
# Fused (patches @ W) * scale + bias -> activation  Pallas kernel
# ----------------------------------------------------------------------------
def _fused_mm_kernel(x_ref, w_ref, sb_ref, o_ref, *, act):
    y = jnp.dot(x_ref[...], w_ref[...], preferred_element_type=jnp.float32)
    y = y * sb_ref[0:1, :] + sb_ref[1:2, :]
    if act == "relu":
        y = jnp.maximum(y, 0.0)
    elif act == "tanh":
        y = jnp.tanh(y)
    o_ref[...] = y.astype(o_ref.dtype)


def _pick_tm(m):
    if m <= 1024:
        return m
    for tm in (1024, 512, 256, 128, 64, 32, 16, 8):
        if m % tm == 0:
            return tm
    return m


def fused_matmul_bn_act(x, w, sb, *, act, out_dtype):
    """x: (M,K) bf16, w: (K,N) bf16, sb: (2,N) f32 [scale; bias]."""
    m, k = x.shape
    k2, n = w.shape
    assert k == k2
    tm = _pick_tm(m)
    return pl.pallas_call(
        functools.partial(_fused_mm_kernel, act=act),
        out_shape=jax.ShapeDtypeStruct((m, n), out_dtype),
        grid=(m // tm,),
        in_specs=[
            pl.BlockSpec((tm, k), lambda i: (i, 0)),
            pl.BlockSpec((k, n), lambda i: (0, 0)),
            pl.BlockSpec((2, n), lambda i: (0, 0)),
        ],
        out_specs=pl.BlockSpec((tm, n), lambda i: (i, 0)),
        compiler_params=pltpu.CompilerParams(
            dimension_semantics=("parallel",)),
    )(x, w, sb)


# ----------------------------------------------------------------------------
# Weight packing (done ONCE at build time)
# ----------------------------------------------------------------------------
# For ConvTranspose2d(k=4, s=2, p=1):  out[2j+r] uses kernel taps
#   r=0: k=3 @ padded-row j+0,  k=1 @ padded-row j+1
#   r=1: k=2 @ padded-row j+1,  k=0 @ padded-row j+2
_KY_OF = {(0, 0): 3, (0, 1): 1, (1, 1): 2, (1, 2): 0}   # (parity, tap-offset)->k


def _pack_upconv_weight(wt, scale, bias):
    """(Cin,Cout,4,4) -> (9*Cin, 4*Cout) bf16 matmul matrix + (2,4*Cout) f32."""
    wt = np.asarray(wt, np.float32)
    cin, cout = wt.shape[0], wt.shape[1]
    wmat = np.zeros((9 * cin, 4 * cout), np.float32)
    for ry in (0, 1):
        for dy in (0, 1, 2):
            if (ry, dy) not in _KY_OF:
                continue
            ky = _KY_OF[(ry, dy)]
            for rx in (0, 1):
                for dx in (0, 1, 2):
                    if (rx, dx) not in _KY_OF:
                        continue
                    kx = _KY_OF[(rx, dx)]
                    tap, par = dy * 3 + dx, ry * 2 + rx
                    wmat[tap * cin:(tap + 1) * cin,
                         par * cout:(par + 1) * cout] = wt[:, :, ky, kx]
    sb = np.stack([np.tile(np.asarray(scale, np.float32), 4),
                   np.tile(np.asarray(bias, np.float32), 4)])
    return jnp.asarray(wmat, jnp.bfloat16), jnp.asarray(sb, jnp.float32)


def _pack_first_weight(wt, scale, bias):
    """ConvTranspose2d(k=4,s=1,p=0) on a 1x1 input is a pure matmul:
       (N,nz) @ (nz, 16*Cout), column = ky*4*Cout + kx*Cout + co."""
    wt = np.asarray(wt, np.float32)
    cin, cout = wt.shape[0], wt.shape[1]
    wmat = np.transpose(wt, (0, 2, 3, 1)).reshape(cin, 16 * cout)
    sb = np.stack([np.tile(np.asarray(scale, np.float32), 16),
                   np.tile(np.asarray(bias, np.float32), 16)])
    return jnp.asarray(wmat, jnp.bfloat16), jnp.asarray(sb, jnp.float32)


def build_params(key):
    layers = []
    keys = jax.random.split(key, 3 * 6)
    for li in range(6):
        cin, cout = CH_IN[li], CH_OUT[li]
        kw, ks, kb = keys[3 * li], keys[3 * li + 1], keys[3 * li + 2]
        wt = jax.random.normal(kw, (cin, cout, 4, 4), jnp.float32) / np.sqrt(cin * 16)
        if li < 5:   # BatchNorm2d (eval mode) folded into scale/bias
            scale = 1.0 + 0.1 * jax.random.normal(ks, (cout,), jnp.float32)
            bias = 0.1 * jax.random.normal(kb, (cout,), jnp.float32)
        else:        # last layer: no BN, Tanh
            scale = jnp.ones((cout,), jnp.float32)
            bias = jnp.zeros((cout,), jnp.float32)
        if li == 0:
            wmat, sb = _pack_first_weight(wt, scale, bias)
        else:
            wmat, sb = _pack_upconv_weight(wt, scale, bias)
        layers.append({"wt": wt, "scale": scale, "bias": bias,
                       "w": wmat, "sb": sb})
    return layers


# ----------------------------------------------------------------------------
# Tiny XLA glue (padding / 3x3 im2col / parity interleave on <=1 MB tensors)
# ----------------------------------------------------------------------------
def _im2col_3x3(xp, h, w):
    n, _, _, c = xp.shape
    cols = [xp[:, dy:dy + h, dx:dx + w, :] for dy in range(3) for dx in range(3)]
    return jnp.concatenate(cols, axis=-1).reshape(n * h * w, 9 * c)


def _interleave(y, n, h, w, cout):
    y = y.reshape(n, h, w, 2, 2, cout)
    y = jnp.transpose(y, (0, 1, 3, 2, 4, 5))
    return y.reshape(n, 2 * h, 2 * w, cout)


def forward(params, z_nchw):
    n = z_nchw.shape[0]
    z = z_nchw.reshape(n, NZ).astype(jnp.bfloat16)
    # layer 0: latent (1x1) -> 4x4, ConvT(k4,s1,p0) == plain matmul
    y = fused_matmul_bn_act(z, params[0]["w"], params[0]["sb"],
                            act="relu", out_dtype=jnp.bfloat16)
    x = y.reshape(n, 4, 4, CH_OUT[0])                       # NHWC
    h = w = 4
    # layers 1..5: ConvT(k4,s2,p1) -> 2x spatial upsample each
    for li in range(1, 6):
        xp = jnp.pad(x, ((0, 0), (1, 1), (1, 1), (0, 0)))
        patches = _im2col_3x3(xp, h, w)                     # (N*h*w, 9*Cin) bf16
        last = (li == 5)
        y = fused_matmul_bn_act(
            patches, params[li]["w"], params[li]["sb"],
            act="tanh" if last else "relu",
            out_dtype=jnp.float32 if last else jnp.bfloat16)  # (N*h*w, 4*Cout)
        x = _interleave(y, n, h, w, CH_OUT[li])
        h, w = 2 * h, 2 * w
    return jnp.transpose(x, (0, 3, 1, 2))                   # NCHW


# ----------------------------------------------------------------------------
# Pure-JAX (f32) reference for correctness
# ----------------------------------------------------------------------------
def ref_forward(params, z_nchw):
    x = z_nchw
    for li in range(6):
        wt = params[li]["wt"]                               # (Cin,Cout,4,4)
        k, s, p = KERNELS[li], STRIDES[li], PADS[li]
        wflip = jnp.transpose(wt[:, :, ::-1, ::-1], (1, 0, 2, 3))   # OIHW
        x = jax.lax.conv_general_dilated(
            x, wflip, window_strides=(1, 1),
            padding=[(k - 1 - p, k - 1 - p)] * 2,
            lhs_dilation=(s, s),
            dimension_numbers=("NCHW", "OIHW", "NCHW"))
        if li < 5:
            x = x * params[li]["scale"][None, :, None, None] \
                + params[li]["bias"][None, :, None, None]
            x = jnp.maximum(x, 0.0)
        else:
            x = jnp.tanh(x)
    return x


if __name__ == "__main__":
    key = jax.random.PRNGKey(0)
    kx, kp = jax.random.split(key)
    z = jax.random.normal(kx, (2, NZ, 1, 1), jnp.float32)   # latent input
    params = build_params(kp)

    out = jax.jit(forward)(params, z)
    out = jax.block_until_ready(out)

    assert out.shape == (2, NC, 128, 128)
    assert bool(jnp.all(jnp.isfinite(out)))
    ref = ref_forward(params, z)
    err = float(jnp.max(jnp.abs(out - ref)))
    assert err < 0.2, f"mismatch vs reference: {err}"
    print("KERNEL_OK")
</pallas_src>

<mosaic_0001>
module attributes {stable_mosaic.version = 11 : i64} {
  func.func @_fused_mm_kernel(%arg0: i32, %arg1: memref<2x64xbf16, #tpu.memory_space<vmem>>, %arg2: memref<64x2048xbf16, #tpu.memory_space<vmem>>, %arg3: memref<2x2048xf32, #tpu.memory_space<vmem>>, %arg4: memref<2x2048xbf16, #tpu.memory_space<vmem>>) attributes {dimension_semantics = [#tpu.dimension_semantics<parallel>], iteration_bounds = array<i64: 1>, scalar_prefetch = 0 : i64, scratch_operands = 0 : i64, tpu.core_type = #tpu.core_type<tc>, window_params = [{transform_indices = @transform_0, window_bounds = array<i64: 2, 64>}, {pipeline_mode = #tpu.pipeline_mode<synchronous>, transform_indices = @transform_1, window_bounds = array<i64: 64, 2048>}, {pipeline_mode = #tpu.pipeline_mode<synchronous>, transform_indices = @transform_2, window_bounds = array<i64: 2, 2048>}, {transform_indices = @transform_3, window_bounds = array<i64: 2, 2048>}]} {
    %c0 = arith.constant 0 : index
    %c0_0 = arith.constant 0 : index
    %0 = vector.load %arg1[%c0, %c0_0] : memref<2x64xbf16, #tpu.memory_space<vmem>>, vector<2x64xbf16>
    %c0_1 = arith.constant 0 : index
    %c0_2 = arith.constant 0 : index
    %1 = vector.load %arg2[%c0_1, %c0_2] : memref<64x2048xbf16, #tpu.memory_space<vmem>>, vector<64x2048xbf16>
    %cst = arith.constant dense<0.000000e+00> : vector<2x2048xf32>
    %2 = tpu.matmul %0, %1, %cst {dimension_numbers = #tpu.dot_dimension_numbers<[1], [0], [0], [1], [0, 0, 1, 1], [], []>} : vector<2x64xbf16>, vector<64x2048xbf16>, vector<2x2048xf32> -> vector<2x2048xf32>
    %c0_3 = arith.constant 0 : index
    %c0_4 = arith.constant 0 : index
    %3 = vector.load %arg3[%c0_3, %c0_4] : memref<2x2048xf32, #tpu.memory_space<vmem>>, vector<1x2048xf32>
    %4 = vector.broadcast %3 : vector<1x2048xf32> to vector<2x2048xf32>
    %5 = arith.mulf %2, %4 : vector<2x2048xf32>
    %c1 = arith.constant 1 : index
    %c0_5 = arith.constant 0 : index
    %6 = vector.load %arg3[%c1, %c0_5] : memref<2x2048xf32, #tpu.memory_space<vmem>>, vector<1x2048xf32>
    %7 = vector.broadcast %6 : vector<1x2048xf32> to vector<2x2048xf32>
    %8 = arith.addf %5, %7 : vector<2x2048xf32>
    %cst_6 = arith.constant 0.000000e+00 : f32
    %9 = vector.broadcast %cst_6 : f32 to vector<2x2048xf32>
    %10 = arith.maximumf %8, %9 : vector<2x2048xf32>
    %11 = arith.truncf %10 : vector<2x2048xf32> to vector<2x2048xbf16>
    %c0_7 = arith.constant 0 : index
    %c0_8 = arith.constant 0 : index
    %12 = vector.load %arg4[%c0_7, %c0_8] : memref<2x2048xbf16, #tpu.memory_space<vmem>>, vector<2x2048xbf16>
    tpu.vector_store %arg4[%c0_7, %c0_8], %11 {strides = array<i32>} : memref<2x2048xbf16, #tpu.memory_space<vmem>>, vector<2x2048xbf16>,
    return
  }
  func.func @transform_0(%arg0: i32) -> (i32, i32) {
    %c0_i32 = arith.constant 0 : i32
    %c0_i32_0 = arith.constant 0 : i32
    return %arg0, %c0_i32 : i32, i32
  }
  func.func @transform_1(%arg0: i32) -> (i32, i32) {
    %c0_i32 = arith.constant 0 : i32
    %c0_i32_0 = arith.constant 0 : i32
    %c0_i32_1 = arith.constant 0 : i32
    return %c0_i32, %c0_i32_0 : i32, i32
  }
  func.func @transform_2(%arg0: i32) -> (i32, i32) {
    %c0_i32 = arith.constant 0 : i32
    %c0_i32_0 = arith.constant 0 : i32
    %c0_i32_1 = arith.constant 0 : i32
    return %c0_i32, %c0_i32_0 : i32, i32
  }
  func.func @transform_3(%arg0: i32) -> (i32, i32) {
    %c0_i32 = arith.constant 0 : i32
    %c0_i32_0 = arith.constant 0 : i32
    return %arg0, %c0_i32 : i32, i32
  }
}

module attributes {stable_mosaic.version = 11 : i64} {
  func.func @_fused_mm_kernel(%arg0: i32, %arg1: memref<32x1152xbf16, #tpu.memory_space<vmem>>, %arg2: memref<1152x256xbf16, #tpu.memory_space<vmem>>, %arg3: memref<2x256xf32, #tpu.memory_space<vmem>>, %arg4: memref<32x256xbf16, #tpu.memory_space<vmem>>) attributes {dimension_semantics = [#tpu.dimension_semantics<parallel>], iteration_bounds = array<i64: 1>, scalar_prefetch = 0 : i64, scratch_operands = 0 : i64, tpu.core_type = #tpu.core_type<tc>, window_params = [{transform_indices = @transform_0, window_bounds = array<i64: 32, 1152>}, {pipeline_mode = #tpu.pipeline_mode<synchronous>, transform_indices = @transform_1, window_bounds = array<i64: 1152, 256>}, {pipeline_mode = #tpu.pipeline_mode<synchronous>, transform_indices = @transform_2, window_bounds = array<i64: 2, 256>}, {transform_indices = @transform_3, window_bounds = array<i64: 32, 256>}]} {
    %c0 = arith.constant 0 : index
    %c0_0 = arith.constant 0 : index
    %0 = vector.load %arg1[%c0, %c0_0] : memref<32x1152xbf16, #tpu.memory_space<vmem>>, vector<32x1152xbf16>
    %c0_1 = arith.constant 0 : index
    %c0_2 = arith.constant 0 : index
    %1 = vector.load %arg2[%c0_1, %c0_2] : memref<1152x256xbf16, #tpu.memory_space<vmem>>, vector<1152x256xbf16>
    %cst = arith.constant dense<0.000000e+00> : vector<32x256xf32>
    %2 = tpu.matmul %0, %1, %cst {dimension_numbers = #tpu.dot_dimension_numbers<[1], [0], [0], [1], [0, 0, 1, 1], [], []>} : vector<32x1152xbf16>, vector<1152x256xbf16>, vector<32x256xf32> -> vector<32x256xf32>
    %c0_3 = arith.constant 0 : index
    %c0_4 = arith.constant 0 : index
    %3 = vector.load %arg3[%c0_3, %c0_4] : memref<2x256xf32, #tpu.memory_space<vmem>>, vector<1x256xf32>
    %4 = vector.broadcast %3 : vector<1x256xf32> to vector<32x256xf32>
    %5 = arith.mulf %2, %4 : vector<32x256xf32>
    %c1 = arith.constant 1 : index
    %c0_5 = arith.constant 0 : index
    %6 = vector.load %arg3[%c1, %c0_5] : memref<2x256xf32, #tpu.memory_space<vmem>>, vector<1x256xf32>
    %7 = vector.broadcast %6 : vector<1x256xf32> to vector<32x256xf32>
    %8 = arith.addf %5, %7 : vector<32x256xf32>
    %cst_6 = arith.constant 0.000000e+00 : f32
    %9 = vector.broadcast %cst_6 : f32 to vector<32x256xf32>
    %10 = arith.maximumf %8, %9 : vector<32x256xf32>
    %11 = arith.truncf %10 : vector<32x256xf32> to vector<32x256xbf16>
    %c0_7 = arith.constant 0 : index
    %c0_8 = arith.constant 0 : index
    %12 = vector.load %arg4[%c0_7, %c0_8] : memref<32x256xbf16, #tpu.memory_space<vmem>>, vector<32x256xbf16>
    tpu.vector_store %arg4[%c0_7, %c0_8], %11 {strides = array<i32>} : memref<32x256xbf16, #tpu.memory_space<vmem>>, vector<32x256xbf16>,
    return
  }
  func.func @transform_0(%arg0: i32) -> (i32, i32) {
    %c0_i32 = arith.constant 0 : i32
    %c0_i32_0 = arith.constant 0 : i32
    return %arg0, %c0_i32 : i32, i32
  }
  func.func @transform_1(%arg0: i32) -> (i32, i32) {
    %c0_i32 = arith.constant 0 : i32
    %c0_i32_0 = arith.constant 0 : i32
    %c0_i32_1 = arith.constant 0 : i32
    return %c0_i32, %c0_i32_0 : i32, i32
  }
  func.func @transform_2(%arg0: i32) -> (i32, i32) {
    %c0_i32 = arith.constant 0 : i32
    %c0_i32_0 = arith.constant 0 : i32
    %c0_i32_1 = arith.constant 0 : i32
    return %c0_i32, %c0_i32_0 : i32, i32
  }
  func.func @transform_3(%arg0: i32) -> (i32, i32) {
    %c0_i32 = arith.constant 0 : i32
    %c0_i32_0 = arith.constant 0 : i32
    return %arg0, %c0_i32 : i32, i32
  }
}

module attributes {stable_mosaic.version = 11 : i64} {
  func.func @_fused_mm_kernel(%arg0: i32, %arg1: memref<128x576xbf16, #tpu.memory_space<vmem>>, %arg2: memref<576x128xbf16, #tpu.memory_space<vmem>>, %arg3: memref<2x128xf32, #tpu.memory_space<vmem>>, %arg4: memref<128x128xbf16, #tpu.memory_space<vmem>>) attributes {dimension_semantics = [#tpu.dimension_semantics<parallel>], iteration_bounds = array<i64: 1>, scalar_prefetch = 0 : i64, scratch_operands = 0 : i64, tpu.core_type = #tpu.core_type<tc>, window_params = [{transform_indices = @transform_0, window_bounds = array<i64: 128, 576>}, {pipeline_mode = #tpu.pipeline_mode<synchronous>, transform_indices = @transform_1, window_bounds = array<i64: 576, 128>}, {pipeline_mode = #tpu.pipeline_mode<synchronous>, transform_indices = @transform_2, window_bounds = array<i64: 2, 128>}, {transform_indices = @transform_3, window_bounds = array<i64: 128, 128>}]} {
    %c0 = arith.constant 0 : index
    %c0_0 = arith.constant 0 : index
    %0 = vector.load %arg1[%c0, %c0_0] : memref<128x576xbf16, #tpu.memory_space<vmem>>, vector<128x576xbf16>
    %c0_1 = arith.constant 0 : index
    %c0_2 = arith.constant 0 : index
    %1 = vector.load %arg2[%c0_1, %c0_2] : memref<576x128xbf16, #tpu.memory_space<vmem>>, vector<576x128xbf16>
    %cst = arith.constant dense<0.000000e+00> : vector<128x128xf32>
    %2 = tpu.matmul %0, %1, %cst {dimension_numbers = #tpu.dot_dimension_numbers<[1], [0], [0], [1], [0, 0, 1, 1], [], []>} : vector<128x576xbf16>, vector<576x128xbf16>, vector<128x128xf32> -> vector<128x128xf32>
    %c0_3 = arith.constant 0 : index
    %c0_4 = arith.constant 0 : index
    %3 = vector.load %arg3[%c0_3, %c0_4] : memref<2x128xf32, #tpu.memory_space<vmem>>, vector<1x128xf32>
    %4 = vector.broadcast %3 : vector<1x128xf32> to vector<128x128xf32>
    %5 = arith.mulf %2, %4 : vector<128x128xf32>
    %c1 = arith.constant 1 : index
    %c0_5 = arith.constant 0 : index
    %6 = vector.load %arg3[%c1, %c0_5] : memref<2x128xf32, #tpu.memory_space<vmem>>, vector<1x128xf32>
    %7 = vector.broadcast %6 : vector<1x128xf32> to vector<128x128xf32>
    %8 = arith.addf %5, %7 : vector<128x128xf32>
    %cst_6 = arith.constant 0.000000e+00 : f32
    %9 = vector.broadcast %cst_6 : f32 to vector<128x128xf32>
    %10 = arith.maximumf %8, %9 : vector<128x128xf32>
    %11 = arith.truncf %10 : vector<128x128xf32> to vector<128x128xbf16>
    %c0_7 = arith.constant 0 : index
    %c0_8 = arith.constant 0 : index
    %12 = vector.load %arg4[%c0_7, %c0_8] : memref<128x128xbf16, #tpu.memory_space<vmem>>, vector<128x128xbf16>
    tpu.vector_store %arg4[%c0_7, %c0_8], %11 {strides = array<i32>} : memref<128x128xbf16, #tpu.memory_space<vmem>>, vector<128x128xbf16>,
    return
  }
  func.func @transform_0(%arg0: i32) -> (i32, i32) {
    %c0_i32 = arith.constant 0 : i32
    %c0_i32_0 = arith.constant 0 : i32
    return %arg0, %c0_i32 : i32, i32
  }
  func.func @transform_1(%arg0: i32) -> (i32, i32) {
    %c0_i32 = arith.constant 0 : i32
    %c0_i32_0 = arith.constant 0 : i32
    %c0_i32_1 = arith.constant 0 : i32
    return %c0_i32, %c0_i32_0 : i32, i32
  }
  func.func @transform_2(%arg0: i32) -> (i32, i32) {
    %c0_i32 = arith.constant 0 : i32
    %c0_i32_0 = arith.constant 0 : i32
    %c0_i32_1 = arith.constant 0 : i32
    return %c0_i32, %c0_i32_0 : i32, i32
  }
  func.func @transform_3(%arg0: i32) -> (i32, i32) {
    %c0_i32 = arith.constant 0 : i32
    %c0_i32_0 = arith.constant 0 : i32
    return %arg0, %c0_i32 : i32, i32
  }
}

module attributes {stable_mosaic.version = 11 : i64} {
  func.func @_fused_mm_kernel(%arg0: i32, %arg1: memref<512x288xbf16, #tpu.memory_space<vmem>>, %arg2: memref<288x64xbf16, #tpu.memory_space<vmem>>, %arg3: memref<2x64xf32, #tpu.memory_space<vmem>>, %arg4: memref<512x64xbf16, #tpu.memory_space<vmem>>) attributes {dimension_semantics = [#tpu.dimension_semantics<parallel>], iteration_bounds = array<i64: 1>, scalar_prefetch = 0 : i64, scratch_operands = 0 : i64, tpu.core_type = #tpu.core_type<tc>, window_params = [{transform_indices = @transform_0, window_bounds = array<i64: 512, 288>}, {pipeline_mode = #tpu.pipeline_mode<synchronous>, transform_indices = @transform_1, window_bounds = array<i64: 288, 64>}, {pipeline_mode = #tpu.pipeline_mode<synchronous>, transform_indices = @transform_2, window_bounds = array<i64: 2, 64>}, {transform_indices = @transform_3, window_bounds = array<i64: 512, 64>}]} {
    %c0 = arith.constant 0 : index
    %c0_0 = arith.constant 0 : index
    %0 = vector.load %arg1[%c0, %c0_0] : memref<512x288xbf16, #tpu.memory_space<vmem>>, vector<512x288xbf16>
    %c0_1 = arith.constant 0 : index
    %c0_2 = arith.constant 0 : index
    %1 = vector.load %arg2[%c0_1, %c0_2] : memref<288x64xbf16, #tpu.memory_space<vmem>>, vector<288x64xbf16>
    %cst = arith.constant dense<0.000000e+00> : vector<512x64xf32>
    %2 = tpu.matmul %0, %1, %cst {dimension_numbers = #tpu.dot_dimension_numbers<[1], [0], [0], [1], [0, 0, 1, 1], [], []>} : vector<512x288xbf16>, vector<288x64xbf16>, vector<512x64xf32> -> vector<512x64xf32>
    %c0_3 = arith.constant 0 : index
    %c0_4 = arith.constant 0 : index
    %3 = vector.load %arg3[%c0_3, %c0_4] : memref<2x64xf32, #tpu.memory_space<vmem>>, vector<1x64xf32>
    %4 = vector.broadcast %3 : vector<1x64xf32> to vector<512x64xf32>
    %5 = arith.mulf %2, %4 : vector<512x64xf32>
    %c1 = arith.constant 1 : index
    %c0_5 = arith.constant 0 : index
    %6 = vector.load %arg3[%c1, %c0_5] : memref<2x64xf32, #tpu.memory_space<vmem>>, vector<1x64xf32>
    %7 = vector.broadcast %6 : vector<1x64xf32> to vector<512x64xf32>
    %8 = arith.addf %5, %7 : vector<512x64xf32>
    %cst_6 = arith.constant 0.000000e+00 : f32
    %9 = vector.broadcast %cst_6 : f32 to vector<512x64xf32>
    %10 = arith.maximumf %8, %9 : vector<512x64xf32>
    %11 = arith.truncf %10 : vector<512x64xf32> to vector<512x64xbf16>
    %c0_7 = arith.constant 0 : index
    %c0_8 = arith.constant 0 : index
    %12 = vector.load %arg4[%c0_7, %c0_8] : memref<512x64xbf16, #tpu.memory_space<vmem>>, vector<512x64xbf16>
    tpu.vector_store %arg4[%c0_7, %c0_8], %11 {strides = array<i32>} : memref<512x64xbf16, #tpu.memory_space<vmem>>, vector<512x64xbf16>,
    return
  }
  func.func @transform_0(%arg0: i32) -> (i32, i32) {
    %c0_i32 = arith.constant 0 : i32
    %c0_i32_0 = arith.constant 0 : i32
    return %arg0, %c0_i32 : i32, i32
  }
  func.func @transform_1(%arg0: i32) -> (i32, i32) {
    %c0_i32 = arith.constant 0 : i32
    %c0_i32_0 = arith.constant 0 : i32
    %c0_i32_1 = arith.constant 0 : i32
    return %c0_i32, %c0_i32_0 : i32, i32
  }
  func.func @transform_2(%arg0: i32) -> (i32, i32) {
    %c0_i32 = arith.constant 0 : i32
    %c0_i32_0 = arith.constant 0 : i32
    %c0_i32_1 = arith.constant 0 : i32
    return %c0_i32, %c0_i32_0 : i32, i32
  }
  func.func @transform_3(%arg0: i32) -> (i32, i32) {
    %c0_i32 = arith.constant 0 : i32
    %c0_i32_0 = arith.constant 0 : i32
    return %arg0, %c0_i32 : i32, i32
  }
}

module attributes {stable_mosaic.version = 11 : i64} {
  func.func @_fused_mm_kernel(%arg0: i32, %arg1: memref<1024x144xbf16, #tpu.memory_space<vmem>>, %arg2: memref<144x32xbf16, #tpu.memory_space<vmem>>, %arg3: memref<2x32xf32, #tpu.memory_space<vmem>>, %arg4: memref<1024x32xbf16, #tpu.memory_space<vmem>>) attributes {dimension_semantics = [#tpu.dimension_semantics<parallel>], iteration_bounds = array<i64: 2>, scalar_prefetch = 0 : i64, scratch_operands = 0 : i64, tpu.core_type = #tpu.core_type<tc>, window_params = [{transform_indices = @transform_0, window_bounds = array<i64: 1024, 144>}, {pipeline_mode = #tpu.pipeline_mode<synchronous>, transform_indices = @transform_1, window_bounds = array<i64: 144, 32>}, {pipeline_mode = #tpu.pipeline_mode<synchronous>, transform_indices = @transform_2, window_bounds = array<i64: 2, 32>}, {transform_indices = @transform_3, window_bounds = array<i64: 1024, 32>}]} {
    %c0 = arith.constant 0 : index
    %c0_0 = arith.constant 0 : index
    %0 = vector.load %arg1[%c0, %c0_0] : memref<1024x144xbf16, #tpu.memory_space<vmem>>, vector<1024x144xbf16>
    %c0_1 = arith.constant 0 : index
    %c0_2 = arith.constant 0 : index
    %1 = vector.load %arg2[%c0_1, %c0_2] : memref<144x32xbf16, #tpu.memory_space<vmem>>, vector<144x32xbf16>
    %cst = arith.constant dense<0.000000e+00> : vector<1024x32xf32>
    %2 = tpu.matmul %0, %1, %cst {dimension_numbers = #tpu.dot_dimension_numbers<[1], [0], [0], [1], [0, 0, 1, 1], [], []>} : vector<1024x144xbf16>, vector<144x32xbf16>, vector<1024x32xf32> -> vector<1024x32xf32>
    %c0_3 = arith.constant 0 : index
    %c0_4 = arith.constant 0 : index
    %3 = vector.load %arg3[%c0_3, %c0_4] : memref<2x32xf32, #tpu.memory_space<vmem>>, vector<1x32xf32>
    %4 = vector.broadcast %3 : vector<1x32xf32> to vector<1024x32xf32>
    %5 = arith.mulf %2, %4 : vector<1024x32xf32>
    %c1 = arith.constant 1 : index
    %c0_5 = arith.constant 0 : index
    %6 = vector.load %arg3[%c1, %c0_5] : memref<2x32xf32, #tpu.memory_space<vmem>>, vector<1x32xf32>
    %7 = vector.broadcast %6 : vector<1x32xf32> to vector<1024x32xf32>
    %8 = arith.addf %5, %7 : vector<1024x32xf32>
    %cst_6 = arith.constant 0.000000e+00 : f32
    %9 = vector.broadcast %cst_6 : f32 to vector<1024x32xf32>
    %10 = arith.maximumf %8, %9 : vector<1024x32xf32>
    %11 = arith.truncf %10 : vector<1024x32xf32> to vector<1024x32xbf16>
    %c0_7 = arith.constant 0 : index
    %c0_8 = arith.constant 0 : index
    %12 = vector.load %arg4[%c0_7, %c0_8] : memref<1024x32xbf16, #tpu.memory_space<vmem>>, vector<1024x32xbf16>
    tpu.vector_store %arg4[%c0_7, %c0_8], %11 {strides = array<i32>} : memref<1024x32xbf16, #tpu.memory_space<vmem>>, vector<1024x32xbf16>,
    return
  }
  func.func @transform_0(%arg0: i32) -> (i32, i32) {
    %c0_i32 = arith.constant 0 : i32
    %c0_i32_0 = arith.constant 0 : i32
    return %arg0, %c0_i32 : i32, i32
  }
  func.func @transform_1(%arg0: i32) -> (i32, i32) {
    %c0_i32 = arith.constant 0 : i32
    %c0_i32_0 = arith.constant 0 : i32
    %c0_i32_1 = arith.constant 0 : i32
    return %c0_i32, %c0_i32_0 : i32, i32
  }
  func.func @transform_2(%arg0: i32) -> (i32, i32) {
    %c0_i32 = arith.constant 0 : i32
    %c0_i32_0 = arith.constant 0 : i32
    %c0_i32_1 = arith.constant 0 : i32
    return %c0_i32, %c0_i32_0 : i32, i32
  }
  func.func @transform_3(%arg0: i32) -> (i32, i32) {
    %c0_i32 = arith.constant 0 : i32
    %c0_i32_0 = arith.constant 0 : i32
    return %arg0, %c0_i32 : i32, i32
  }
}

module attributes {stable_mosaic.version = 11 : i64} {
  func.func @_fused_mm_kernel(%arg0: i32, %arg1: memref<1024x72xbf16, #tpu.memory_space<vmem>>, %arg2: memref<72x4xbf16, #tpu.memory_space<vmem>>, %arg3: memref<2x4xf32, #tpu.memory_space<vmem>>, %arg4: memref<1024x4xf32, #tpu.memory_space<vmem>>) attributes {dimension_semantics = [#tpu.dimension_semantics<parallel>], iteration_bounds = array<i64: 8>, scalar_prefetch = 0 : i64, scratch_operands = 0 : i64, tpu.core_type = #tpu.core_type<tc>, window_params = [{transform_indices = @transform_0, window_bounds = array<i64: 1024, 72>}, {pipeline_mode = #tpu.pipeline_mode<synchronous>, transform_indices = @transform_1, window_bounds = array<i64: 72, 4>}, {pipeline_mode = #tpu.pipeline_mode<synchronous>, transform_indices = @transform_2, window_bounds = array<i64: 2, 4>}, {transform_indices = @transform_3, window_bounds = array<i64: 1024, 4>}]} {
    %c0 = arith.constant 0 : index
    %c0_0 = arith.constant 0 : index
    %0 = vector.load %arg1[%c0, %c0_0] : memref<1024x72xbf16, #tpu.memory_space<vmem>>, vector<1024x72xbf16>
    %c0_1 = arith.constant 0 : index
    %c0_2 = arith.constant 0 : index
    %1 = vector.load %arg2[%c0_1, %c0_2] : memref<72x4xbf16, #tpu.memory_space<vmem>>, vector<72x4xbf16>
    %cst = arith.constant dense<0.000000e+00> : vector<1024x4xf32>
    %2 = tpu.matmul %0, %1, %cst {dimension_numbers = #tpu.dot_dimension_numbers<[1], [0], [0], [1], [0, 0, 1, 1], [], []>} : vector<1024x72xbf16>, vector<72x4xbf16>, vector<1024x4xf32> -> vector<1024x4xf32>
    %c0_3 = arith.constant 0 : index
    %c0_4 = arith.constant 0 : index
    %3 = vector.load %arg3[%c0_3, %c0_4] : memref<2x4xf32, #tpu.memory_space<vmem>>, vector<1x4xf32>
    %4 = vector.broadcast %3 : vector<1x4xf32> to vector<1024x4xf32>
    %5 = arith.mulf %2, %4 : vector<1024x4xf32>
    %c1 = arith.constant 1 : index
    %c0_5 = arith.constant 0 : index
    %6 = vector.load %arg3[%c1, %c0_5] : memref<2x4xf32, #tpu.memory_space<vmem>>, vector<1x4xf32>
    %7 = vector.broadcast %6 : vector<1x4xf32> to vector<1024x4xf32>
    %8 = arith.addf %5, %7 : vector<1024x4xf32>
    %9 = math.tanh %8 : vector<1024x4xf32>
    %c0_6 = arith.constant 0 : index
    %c0_7 = arith.constant 0 : index
    %10 = vector.load %arg4[%c0_6, %c0_7] : memref<1024x4xf32, #tpu.memory_space<vmem>>, vector<1024x4xf32>
    tpu.vector_store %arg4[%c0_6, %c0_7], %9 {strides = array<i32>} : memref<1024x4xf32, #tpu.memory_space<vmem>>, vector<1024x4xf32>,
    return
  }
  func.func @transform_0(%arg0: i32) -> (i32, i32) {
    %c0_i32 = arith.constant 0 : i32
    %c0_i32_0 = arith.constant 0 : i32
    return %arg0, %c0_i32 : i32, i32
  }
  func.func @transform_1(%arg0: i32) -> (i32, i32) {
    %c0_i32 = arith.constant 0 : i32
    %c0_i32_0 = arith.constant 0 : i32
    %c0_i32_1 = arith.constant 0 : i32
    return %c0_i32, %c0_i32_0 : i32, i32
  }
  func.func @transform_2(%arg0: i32) -> (i32, i32) {
    %c0_i32 = arith.constant 0 : i32
    %c0_i32_0 = arith.constant 0 : i32
    %c0_i32_1 = arith.constant 0 : i32
    return %c0_i32, %c0_i32_0 : i32, i32
  }
  func.func @transform_3(%arg0: i32) -> (i32, i32) {
    %c0_i32 = arith.constant 0 : i32
    %c0_i32_0 = arith.constant 0 : i32
    return %arg0, %c0_i32 : i32, i32
  }
}

</mosaic_0001>

<llo_original>
// kernel: forward.6
$region0: #{forward.6}
  #allocation0 [shape = 'u32[]', space=smem, size = 0x4, offset = 0x4, fixed_abs, tag = 'smem constant byte address 0x4 - core index']
  #allocation1 [shape = 'u32[144,128]{1,0:T(1,128)}', space=vmem, size = 0x12000, scoped, tag = 'internal scratch']
  %s0 = inlined_call_operand.vmem [shape: bf16[2,64], index: 0, kind: input, shape index: {}]
  %s1 = inlined_call_operand.hbm [shape: bf16[64,2048], index: 1, kind: input, shape index: {}]
  %s2 = inlined_call_operand.hbm [shape: f32[2,2048], index: 2, kind: input, shape index: {}]
  %s3 = inlined_call_operand.vmem [shape: bf16[2,2048], index: 3, kind: output, shape index: {}]
  %s4 = sld [smem:[#allocation0]]
  $region30: #{forward.6} parent=0
    _
  %s6 = ssub.s32 1, %s4
  %s7 = scalar_select 0, %s6, %s4
  $region1: #{forward.6} parent=0
    #allocation2 [shape = 'u8[262144]{0}', space=vmem, size = 0x40000, scoped, tag = 'input window, operand 1, single buffered']
    #allocation3 [shape = 's32[1]{0}', space=sflag, size = 0x4, scoped, tag = 'scoped memory for forward.6']
    #allocation4 [shape = 'u8[16384]{0}', space=vmem, size = 0x4000, scoped, tag = 'input window, operand 2, single buffered']
    #allocation5 [shape = 's32[1]{0}', space=sflag, size = 0x4, scoped, tag = 'scoped memory for forward.6']
    %8 = vsyncpa [#allocation3], 0
    %9 = vsyncpa [#allocation5], 0
    // Predicated region
    $region2: #{forward.6} parent=1 // pred_check
      _
    $region3: #{forward.6} parent=1 // pred_check_branch
      %11 = sbr.rel (0) target = $region5
    $region4: #{forward.6} parent=1 // pred_region
      _
    $region5: #{forward.6} parent=1 // pred_fallthru
      _
    // Predicated region
    $region6: #{forward.6} parent=1 // pred_check
      _
    $region7: #{forward.6} parent=1 // pred_check_branch
      %13 = sbr.rel (0) target = $region9
    $region8: #{forward.6} parent=1 // pred_region
      %s15 = ssub.s32 8192, 8192
      %16 = vsyncadd [#allocation3], %s15
      %s17 = sshll.u32 [#allocation2], 4
      %s18 = int_to_ptr.vmem [resolvable:$true] %s17
      %23 = dma.hbm_to_vmem [thread:$0]  %s1, 8192, %s18, [#allocation3], 1024, 1024, 64
    $region9: #{forward.6} parent=1 // pred_fallthru
      _
    // Predicated region
    $region10: #{forward.6} parent=1 // pred_check
      _
    $region11: #{forward.6} parent=1 // pred_check_branch
      %25 = sbr.rel (0) target = $region13
    $region12: #{forward.6} parent=1 // pred_region
      %s27 = ssub.s32 512, 512
      %28 = vsyncadd [#allocation5], %s27
      %s30 = sshll.u32 [#allocation4], 4
      %s31 = int_to_ptr.vmem [resolvable:$true] %s30
      %33 = dma.hbm_to_vmem [thread:$0]  %s2, 512, %s31, [#allocation5]
    $region13: #{forward.6} parent=1 // pred_fallthru
      _
    // Predicated region
    $region14: #{forward.6} parent=1 // pred_check
      _
    $region15: #{forward.6} parent=1 // pred_check_branch
      %35 = sbr.rel (0) target = $region17
    $region16: #{forward.6} parent=1 // pred_region
      %36 = dma.done [#allocation3], 8192
    $region17: #{forward.6} parent=1 // pred_fallthru
      _
    // Predicated region
    $region18: #{forward.6} parent=1 // pred_check
      _
    $region19: #{forward.6} parent=1 // pred_check_branch
      %38 = sbr.rel (0) target = $region21
    $region20: #{forward.6} parent=1 // pred_region
      %39 = dma.done [#allocation5], 512
    $region21: #{forward.6} parent=1 // pred_fallthru
      _
    %v41 = vld [vmem:[%s0] sm:$0x1]
    %v42 = vld [vmem:[#allocation2] sm:$0xff]
    %v43 = vld [vmem:[#allocation2 + $0x8] sm:$0xff]
    %v44 = vld [vmem:[#allocation2 + $0x10] sm:$0xff]
    %v45 = vld [vmem:[#allocation2 + $0x18] sm:$0xff]
    %v46 = vld [vmem:[#allocation2 + $0x20] sm:$0xff]
    %v47 = vld [vmem:[#allocation2 + $0x28] sm:$0xff]
    %v48 = vld [vmem:[#allocation2 + $0x30] sm:$0xff]
    %v49 = vld [vmem:[#allocation2 + $0x38] sm:$0xff]
    %v50 = vld [vmem:[#allocation2 + $0x40] sm:$0xff]
    %v51 = vld [vmem:[#allocation2 + $0x48] sm:$0xff]
    %v52 = vld [vmem:[#allocation2 + $0x50] sm:$0xff]
    %v53 = vld [vmem:[#allocation2 + $0x58] sm:$0xff]
    %v54 = vld [vmem:[#allocation2 + $0x60] sm:$0xff]
    %v55 = vld [vmem:[#allocation2 + $0x68] sm:$0xff]
    %v56 = vld [vmem:[#allocation2 + $0x70] sm:$0xff]
    %v57 = vld [vmem:[#allocation2 + $0x78] sm:$0xff]
    %v58 = vld [vmem:[#allocation2 + $0x80] sm:$0xff]
    %v59 = vld [vmem:[#allocation2 + $0x88] sm:$0xff]
    %v60 = vld [vmem:[#allocation2 + $0x90] sm:$0xff]
    %v61 = vld [vmem:[#allocation2 + $0x98] sm:$0xff]
    %v62 = vld [vmem:[#allocation2 + $0xa0] sm:$0xff]
    %v63 = vld [vmem:[#allocation2 + $0xa8] sm:$0xff]
    %v64 = vld [vmem:[#allocation2 + $0xb0] sm:$0xff]
    %v65 = vld [vmem:[#allocation2 + $0xb8] sm:$0xff]
    %v66 = vld [vmem:[#allocation2 + $0xc0] sm:$0xff]
    %v67 = vld [vmem:[#allocation2 + $0xc8] sm:$0xff]
    %v68 = vld [vmem:[#allocation2 + $0xd0] sm:$0xff]
    %v69 = vld [vmem:[#allocation2 + $0xd8] sm:$0xff]
    %v70 = vld [vmem:[#allocation2 + $0xe0] sm:$0xff]
    %v71 = vld [vmem:[#allocation2 + $0xe8] sm:$0xff]
    %v72 = vld [vmem:[#allocation2 + $0xf0] sm:$0xff]
    %v73 = vld [vmem:[#allocation2 + $0xf8] sm:$0xff]
    %v74 = vld [vmem:[#allocation2 + $0x100] sm:$0xff]
    %v75 = vld [vmem:[#allocation2 + $0x108] sm:$0xff]
    %v76 = vld [vmem:[#allocation2 + $0x110] sm:$0xff]
    %v77 = vld [vmem:[#allocation2 + $0x118] sm:$0xff]
    %v78 = vld [vmem:[#allocation2 + $0x120] sm:$0xff]
    %v79 = vld [vmem:[#allocation2 + $0x128] sm:$0xff]
    %v80 = vld [vmem:[#allocation2 + $0x130] sm:$0xff]
    %v81 = vld [vmem:[#allocation2 + $0x138] sm:$0xff]
    %v82 = vld [vmem:[#allocation2 + $0x140] sm:$0xff]
    %v83 = vld [vmem:[#allocation2 + $0x148] sm:$0xff]
    %v84 = vld [vmem:[#allocation2 + $0x150] sm:$0xff]
    %v85 = vld [vmem:[#allocation2 + $0x158] sm:$0xff]
    %v86 = vld [vmem:[#allocation2 + $0x160] sm:$0xff]
    %v87 = vld [vmem:[#allocation2 + $0x168] sm:$0xff]
    %v88 = vld [vmem:[#allocation2 + $0x170] sm:$0xff]
    %v89 = vld [vmem:[#allocation2 + $0x178] sm:$0xff]
    %v90 = vld [vmem:[#allocation2 + $0x180] sm:$0xff]
    %v91 = vld [vmem:[#allocation2 + $0x188] sm:$0xff]
    %v92 = vld [vmem:[#allocation2 + $0x190] sm:$0xff]
    %v93 = vld [vmem:[#allocation2 + $0x198] sm:$0xff]
    %v94 = vld [vmem:[#allocation2 + $0x1a0] sm:$0xff]
    %v95 = vld [vmem:[#allocation2 + $0x1a8] sm:$0xff]
    %v96 = vld [vmem:[#allocation2 + $0x1b0] sm:$0xff]
    %v97 = vld [vmem:[#allocation2 + $0x1b8] sm:$0xff]
    %v98 = vld [vmem:[#allocation2 + $0x1c0] sm:$0xff]
    %v99 = vld [vmem:[#allocation2 + $0x1c8] sm:$0xff]
    %v100 = vld [vmem:[#allocation2 + $0x1d0] sm:$0xff]
    %v101 = vld [vmem:[#allocation2 + $0x1d8] sm:$0xff]
    %v102 = vld [vmem:[#allocation2 + $0x1e0] sm:$0xff]
    %v103 = vld [vmem:[#allocation2 + $0x1e8] sm:$0xff]
    %v104 = vld [vmem:[#allocation2 + $0x1f0] sm:$0xff]
    %v105 = vld [vmem:[#allocation2 + $0x1f8] sm:$0xff]
    %v170 = vunpack.c.l.b16 %v42
    %v171 = vunpack.c.h.b16 %v42
    %v172 = vunpack.c.l.b16 %v43
    %v173 = vunpack.c.h.b16 %v43
    %v174 = vunpack.c.l.b16 %v44
    %v175 = vunpack.c.h.b16 %v44
    %v176 = vunpack.c.l.b16 %v45
    %v177 = vunpack.c.h.b16 %v45
    %v178 = vunpack.c.l.b16 %v46
    %v179 = vunpack.c.h.b16 %v46
    %v180 = vunpack.c.l.b16 %v47
    %v181 = vunpack.c.h.b16 %v47
    %v182 = vunpack.c.l.b16 %v48
    %v183 = vunpack.c.h.b16 %v48
    %v184 = vunpack.c.l.b16 %v49
    %v185 = vunpack.c.h.b16 %v49
    %v186 = vunpack.c.l.b16 %v50
    %v187 = vunpack.c.h.b16 %v50
    %v188 = vunpack.c.l.b16 %v51
    %v189 = vunpack.c.h.b16 %v51
    %v190 = vunpack.c.l.b16 %v52
    %v191 = vunpack.c.h.b16 %v52
    %v192 = vunpack.c.l.b16 %v53
    %v193 = vunpack.c.h.b16 %v53
    %v194 = vunpack.c.l.b16 %v54
    %v195 = vunpack.c.h.b16 %v54
    %v196 = vunpack.c.l.b16 %v55
    %v197 = vunpack.c.h.b16 %v55
    %v198 = vunpack.c.l.b16 %v56
    %v199 = vunpack.c.h.b16 %v56
    %v200 = vunpack.c.l.b16 %v57
    %v201 = vunpack.c.h.b16 %v57
    %v202 = vunpack.c.l.b16 %v58
    %v203 = vunpack.c.h.b16 %v58
    %v204 = vunpack.c.l.b16 %v59
    %v205 = vunpack.c.h.b16 %v59
    %v206 = vunpack.c.l.b16 %v60
    %v207 = vunpack.c.h.b16 %v60
    %v208 = vunpack.c.l.b16 %v61
    %v209 = vunpack.c.h.b16 %v61
    %v210 = vunpack.c.l.b16 %v62
    %v211 = vunpack.c.h.b16 %v62
    %v212 = vunpack.c.l.b16 %v63
    %v213 = vunpack.c.h.b16 %v63
    %v214 = vunpack.c.l.b16 %v64
    %v215 = vunpack.c.h.b16 %v64
    %v216 = vunpack.c.l.b16 %v65
    %v217 = vunpack.c.h.b16 %v65
    %v218 = vunpack.c.l.b16 %v66
    %v219 = vunpack.c.h.b16 %v66
    %v220 = vunpack.c.l.b16 %v67
    %v221 = vunpack.c.h.b16 %v67
    %v222 = vunpack.c.l.b16 %v68
    %v223 = vunpack.c.h.b16 %v68
    %v224 = vunpack.c.l.b16 %v69
    %v225 = vunpack.c.h.b16 %v69
    %v226 = vunpack.c.l.b16 %v70
    %v227 = vunpack.c.h.b16 %v70
    %v228 = vunpack.c.l.b16 %v71
    %v229 = vunpack.c.h.b16 %v71
    %v230 = vunpack.c.l.b16 %v72
    %v231 = vunpack.c.h.b16 %v72
    %v232 = vunpack.c.l.b16 %v73
    %v233 = vunpack.c.h.b16 %v73
    %v234 = vunpack.c.l.b16 %v74
    %v235 = vunpack.c.h.b16 %v74
    %v236 = vunpack.c.l.b16 %v75
    %v237 = vunpack.c.h.b16 %v75
    %v238 = vunpack.c.l.b16 %v76
    %v239 = vunpack.c.h.b16 %v76
    %v240 = vunpack.c.l.b16 %v77
    %v241 = vunpack.c.h.b16 %v77
    %v242 = vunpack.c.l.b16 %v78
    %v243 = vunpack.c.h.b16 %v78
    %v244 = vunpack.c.l.b16 %v79
    %v245 = vunpack.c.h.b16 %v79
    %v246 = vunpack.c.l.b16 %v80
    %v247 = vunpack.c.h.b16 %v80
    %v248 = vunpack.c.l.b16 %v81
    %v249 = vunpack.c.h.b16 %v81
    %v250 = vunpack.c.l.b16 %v82
    %v251 = vunpack.c.h.b16 %v82
    %v252 = vunpack.c.l.b16 %v83
    %v253 = vunpack.c.h.b16 %v83
    %v254 = vunpack.c.l.b16 %v84
    %v255 = vunpack.c.h.b16 %v84
    %v256 = vunpack.c.l.b16 %v85
    %v257 = vunpack.c.h.b16 %v85
    %v258 = vunpack.c.l.b16 %v86
    %v259 = vunpack.c.h.b16 %v86
    %v260 = vunpack.c.l.b16 %v87
    %v261 = vunpack.c.h.b16 %v87
    %v262 = vunpack.c.l.b16 %v88
    %v263 = vunpack.c.h.b16 %v88
    %v264 = vunpack.c.l.b16 %v89
    %v265 = vunpack.c.h.b16 %v89
    %v266 = vunpack.c.l.b16 %v90
    %v267 = vunpack.c.h.b16 %v90
    %v268 = vunpack.c.l.b16 %v91
    %v269 = vunpack.c.h.b16 %v91
    %v270 = vunpack.c.l.b16 %v92
    %v271 = vunpack.c.h.b16 %v92
    %v272 = vunpack.c.l.b16 %v93
    %v273 = vunpack.c.h.b16 %v93
    %v274 = vunpack.c.l.b16 %v94
    %v275 = vunpack.c.h.b16 %v94
    %v276 = vunpack.c.l.b16 %v95
    %v277 = vunpack.c.h.b16 %v95
    %v278 = vunpack.c.l.b16 %v96
    %v279 = vunpack.c.h.b16 %v96
    %v280 = vunpack.c.l.b16 %v97
    %v281 = vunpack.c.h.b16 %v97
    %v282 = vunpack.c.l.b16 %v98
    %v283 = vunpack.c.h.b16 %v98
    %v284 = vunpack.c.l.b16 %v99
    %v285 = vunpack.c.h.b16 %v99
    %v286 = vunpack.c.l.b16 %v100
    %v287 = vunpack.c.h.b16 %v100
    %v288 = vunpack.c.l.b16 %v101
    %v289 = vunpack.c.h.b16 %v101
    %v290 = vunpack.c.l.b16 %v102
    %v291 = vunpack.c.h.b16 %v102
    %v292 = vunpack.c.l.b16 %v103
    %v293 = vunpack.c.h.b16 %v103
    %v294 = vunpack.c.l.b16 %v104
    %v295 = vunpack.c.h.b16 %v104
    %v296 = vunpack.c.l.b16 %v105
    %v297 = vunpack.c.h.b16 %v105
    %v298 = vpack.c.b16 %v186, %v170
    %v299 = vpack.c.b16 %v187, %v171
    %v300 = vpack.c.b16 %v188, %v172
    %v301 = vpack.c.b16 %v189, %v173
    %v302 = vpack.c.b16 %v190, %v174
    %v303 = vpack.c.b16 %v191, %v175
    %v304 = vpack.c.b16 %v192, %v176
    %v305 = vpack.c.b16 %v193, %v177
    %v306 = vpack.c.b16 %v194, %v178
    %v307 = vpack.c.b16 %v195, %v179
    %v308 = vpack.c.b16 %v196, %v180
    %v309 = vpack.c.b16 %v197, %v181
    %v310 = vpack.c.b16 %v198, %v182
    %v311 = vpack.c.b16 %v199, %v183
    %v312 = vpack.c.b16 %v200, %v184
    %v313 = vpack.c.b16 %v201, %v185
    %v314 = vpack.c.b16 %v218, %v202
    %v315 = vpack.c.b16 %v219, %v203
    %v316 = vpack.c.b16 %v220, %v204
    %v317 = vpack.c.b16 %v221, %v205
    %v318 = vpack.c.b16 %v222, %v206
    %v319 = vpack.c.b16 %v223, %v207
    %v320 = vpack.c.b16 %v224, %v208
    %v321 = vpack.c.b16 %v225, %v209
    %v322 = vpack.c.b16 %v226, %v210
    %v323 = vpack.c.b16 %v227, %v211
    %v324 = vpack.c.b16 %v228, %v212
    %v325 = vpack.c.b16 %v229, %v213
    %v326 = vpack.c.b16 %v230, %v214
    %v327 = vpack.c.b16 %v231, %v215
    %v328 = vpack.c.b16 %v232, %v216
    %v329 = vpack.c.b16 %v233, %v217
    %v330 = vpack.c.b16 %v250, %v234
    %v331 = vpack.c.b16 %v251, %v235
    %v332 = vpack.c.b16 %v252, %v236
    %v333 = vpack.c.b16 %v253, %v237
    %v334 = vpack.c.b16 %v254, %v238
    %v335 = vpack.c.b16 %v255, %v239
    %v336 = vpack.c.b16 %v256, %v240
    %v337 = vpack.c.b16 %v257, %v241
    %v338 = vpack.c.b16 %v258, %v242
    %v339 = vpack.c.b16 %v259, %v243
    %v340 = vpack.c.b16 %v260, %v244
    %v341 = vpack.c.b16 %v261, %v245
    %v342 = vpack.c.b16 %v262, %v246
    %v343 = vpack.c.b16 %v263, %v247
    %v344 = vpack.c.b16 %v264, %v248
    %v345 = vpack.c.b16 %v265, %v249
    %v346 = vpack.c.b16 %v282, %v266
    %v347 = vpack.c.b16 %v283, %v267
    %v348 = vpack.c.b16 %v284, %v268
    %v349 = vpack.c.b16 %v285, %v269
    %v350 = vpack.c.b16 %v286, %v270
    %v351 = vpack.c.b16 %v287, %v271
    %v352 = vpack.c.b16 %v288, %v272
    %v353 = vpack.c.b16 %v289, %v273
    %v354 = vpack.c.b16 %v290, %v274
    %v355 = vpack.c.b16 %v291, %v275
    %v356 = vpack.c.b16 %v292, %v276
    %v357 = vpack.c.b16 %v293, %v277
    %v358 = vpack.c.b16 %v294, %v278
    %v359 = vpack.c.b16 %v295, %v279
    %v360 = vpack.c.b16 %v296, %v280
    %v361 = vpack.c.b16 %v297, %v281
    %vm426 = vcmask 523264
    %v428 = vsel %vm426, %v41, 0
    %430 = vmatprep.subr.bf16.mxu0 %v299
    %431 = vmatpush1.bf16.msra.mxu0 %v298
    %432 = vmatprep.subr.bf16.mxu0 %v315
    %433 = vmatpush1.bf16.msra.mxu0 %v314
    %434 = vmatprep.subr.bf16.mxu0 %v331
    %435 = vmatpush1.bf16.msra.mxu0 %v330
    %436 = vmatprep.subr.bf16.mxu0 %v347
    %437 = vmatpush1.bf16.msra.mxu0 %v346
    %438 = vmatprep.subr.bf16.mxu0 0
    %439 = vmatpush1.bf16.msra.mxu0 0
    %440 = vmatprep.subr.bf16.mxu0 0
    %441 = vmatpush1.bf16.msra.mxu0 0
    %442 = vmatprep.subr.bf16.mxu0 0
    %443 = vmatpush1.bf16.msra.mxu0 0
    %444 = vmatprep.subr.bf16.mxu0 0
    %445 = vmatpush1.bf16.msra.mxu0 0
    %446 = vmatprep.subr.bf16.mxu0 0
    %447 = vmatpush1.bf16.msra.mxu0 0
    %448 = vmatprep.subr.bf16.mxu0 0
    %449 = vmatpush1.bf16.msra.mxu0 0
    %450 = vmatprep.subr.bf16.mxu0 0
    %451 = vmatpush1.bf16.msra.mxu0 0
    %452 = vmatprep.subr.bf16.mxu0 0
    %453 = vmatpush1.bf16.msra.mxu0 0
    %454 = vmatprep.subr.bf16.mxu0 0
    %455 = vmatpush1.bf16.msra.mxu0 0
    %456 = vmatprep.subr.bf16.mxu0 0
    %457 = vmatpush1.bf16.msra.mxu0 0
    %458 = vmatprep.subr.bf16.mxu0 0
    %459 = vmatpush1.bf16.msra.mxu0 0
    %460 = vmatprep.subr.bf16.mxu0 0
    %461 = vmatpush1.bf16.msra.mxu0 0
    %462 = vmatprep.mubr.bf16.mxu0 0
    %463 = vmatmul.mubr.bf16.gmra.mrb[0].mxu0 %v428
    %v464 = vpop.f32.mrb[0].mxu0
    %v465 = vadd.f32 0.0, %v464
    %v466 = vpop.f32.mrb[0].mxu0
    %v467 = vadd.f32 0.0, %v466
    %v468 = vpop.f32.mrb[0].mxu0
    %v469 = vpop.f32.mrb[0].mxu0
    %470 = vdwg.mxu0
    %471 = vmatprep.subr.bf16.mxu0 %v301
    %472 = vmatpush1.bf16.msra.mxu0 %v300
    %473 = vmatprep.subr.bf16.mxu0 %v317
    %474 = vmatpush1.bf16.msra.mxu0 %v316
    %475 = vmatprep.subr.bf16.mxu0 %v333
    %476 = vmatpush1.bf16.msra.mxu0 %v332
    %477 = vmatprep.subr.bf16.mxu0 %v349
    %478 = vmatpush1.bf16.msra.mxu0 %v348
    %479 = vmatprep.subr.bf16.mxu0 0
    %480 = vmatpush1.bf16.msra.mxu0 0
    %481 = vmatprep.subr.bf16.mxu0 0
    %482 = vmatpush1.bf16.msra.mxu0 0
    %483 = vmatprep.subr.bf16.mxu0 0
    %484 = vmatpush1.bf16.msra.mxu0 0
    %485 = vmatprep.subr.bf16.mxu0 0
    %486 = vmatpush1.bf16.msra.mxu0 0
    %487 = vmatprep.subr.bf16.mxu0 0
    %488 = vmatpush1.bf16.msra.mxu0 0
    %489 = vmatprep.subr.bf16.mxu0 0
    %490 = vmatpush1.bf16.msra.mxu0 0
    %491 = vmatprep.subr.bf16.mxu0 0
    %492 = vmatpush1.bf16.msra.mxu0 0
    %493 = vmatprep.subr.bf16.mxu0 0
    %494 = vmatpush1.bf16.msra.mxu0 0
    %495 = vmatprep.subr.bf16.mxu0 0
    %496 = vmatpush1.bf16.msra.mxu0 0
    %497 = vmatprep.subr.bf16.mxu0 0
    %498 = vmatpush1.bf16.msra.mxu0 0
    %499 = vmatprep.subr.bf16.mxu0 0
    %500 = vmatpush1.bf16.msra.mxu0 0
    %501 = vmatprep.subr.bf16.mxu0 0
    %502 = vmatpush1.bf16.msra.mxu0 0
    %503 = vmatprep.mubr.bf16.mxu0 0
    %504 = vmatmul.mubr.bf16.gmra.mrb[0].mxu0 %v428
    %v505 = vpop.f32.mrb[0].mxu0
    %v506 = vadd.f32 0.0, %v505
    %v507 = vpop.f32.mrb[0].mxu0
    %v508 = vadd.f32 0.0, %v507
    %v509 = vpop.f32.mrb[0].mxu0
    %v510 = vpop.f32.mrb[0].mxu0
    %511 = vdwg.mxu0
    %512 = vmatprep.subr.bf16.mxu0 %v303
    %513 = vmatpush1.bf16.msra.mxu0 %v302
    %514 = vmatprep.subr.bf16.mxu0 %v319
    %515 = vmatpush1.bf16.msra.mxu0 %v318
    %516 = vmatprep.subr.bf16.mxu0 %v335
    %517 = vmatpush1.bf16.msra.mxu0 %v334
    %518 = vmatprep.subr.bf16.mxu0 %v351
    %519 = vmatpush1.bf16.msra.mxu0 %v350
    %520 = vmatprep.subr.bf16.mxu0 0
    %521 = vmatpush1.bf16.msra.mxu0 0
    %522 = vmatprep.subr.bf16.mxu0 0
    %523 = vmatpush1.bf16.msra.mxu0 0
    %524 = vmatprep.subr.bf16.mxu0 0
    %525 = vmatpush1.bf16.msra.mxu0 0
    %526 = vmatprep.subr.bf16.mxu0 0
    %527 = vmatpush1.bf16.msra.mxu0 0
    %528 = vmatprep.subr.bf16.mxu0 0
    %529 = vmatpush1.bf16.msra.mxu0 0
    %530 = vmatprep.subr.bf16.mxu0 0
    %531 = vmatpush1.bf16.msra.mxu0 0
    %532 = vmatprep.subr.bf16.mxu0 0
    %533 = vmatpush1.bf16.msra.mxu0 0
    %534 = vmatprep.subr.bf16.mxu0 0
    %535 = vmatpush1.bf16.msra.mxu0 0
    %536 = vmatprep.subr.bf16.mxu0 0
    %537 = vmatpush1.bf16.msra.mxu0 0
    %538 = vmatprep.subr.bf16.mxu0 0
    %539 = vmatpush1.bf16.msra.mxu0 0
    %540 = vmatprep.subr.bf16.mxu0 0
    %541 = vmatpush1.bf16.msra.mxu0 0
    %542 = vmatprep.subr.bf16.mxu0 0
    %543 = vmatpush1.bf16.msra.mxu0 0
    %544 = vmatprep.mubr.bf16.mxu0 0
    %545 = vmatmul.mubr.bf16.gmra.mrb[0].mxu0 %v428
    %v546 = vpop.f32.mrb[0].mxu0
    %v547 = vadd.f32 0.0, %v546
    %v548 = vpop.f32.mrb[0].mxu0
    %v549 = vadd.f32 0.0, %v548
    %v550 = vpop.f32.mrb[0].mxu0
    %v551 = vpop.f32.mrb[0].mxu0
    %552 = vdwg.mxu0
    %553 = vmatprep.subr.bf16.mxu0 %v305
    %554 = vmatpush1.bf16.msra.mxu0 %v304
    %555 = vmatprep.subr.bf16.mxu0 %v321
    %556 = vmatpush1.bf16.msra.mxu0 %v320
    %557 = vmatprep.subr.bf16.mxu0 %v337
    %558 = vmatpush1.bf16.msra.mxu0 %v336
    %559 = vmatprep.subr.bf16.mxu0 %v353
    %560 = vmatpush1.bf16.msra.mxu0 %v352
    %561 = vmatprep.subr.bf16.mxu0 0
    %562 = vmatpush1.bf16.msra.mxu0 0
    %563 = vmatprep.subr.bf16.mxu0 0
    %564 = vmatpush1.bf16.msra.mxu0 0
    %565 = vmatprep.subr.bf16.mxu0 0
    %566 = vmatpush1.bf16.msra.mxu0 0
    %567 = vmatprep.subr.bf16.mxu0 0
    %568 = vmatpush1.bf16.msra.mxu0 0
    %569 = vmatprep.subr.bf16.mxu0 0
    %570 = vmatpush1.bf16.msra.mxu0 0
    %571 = vmatprep.subr.bf16.mxu0 0
    %572 = vmatpush1.bf16.msra.mxu0 0
    %573 = vmatprep.subr.bf16.mxu0 0
    %574 = vmatpush1.bf16.msra.mxu0 0
    %575 = vmatprep.subr.bf16.mxu0 0
    %576 = vmatpush1.bf16.msra.mxu0 0
    %577 = vmatprep.subr.bf16.mxu0 0
    %578 = vmatpush1.bf16.msra.mxu0 0
    %579 = vmatprep.subr.bf16.mxu0 0
    %580 = vmatpush1.bf16.msra.mxu0 0
    %581 = vmatprep.subr.bf16.mxu0 0
    %582 = vmatpush1.bf16.msra.mxu0 0
    %583 = vmatprep.subr.bf16.mxu0 0
    %584 = vmatpush1.bf16.msra.mxu0 0
    %585 = vmatprep.mubr.bf16.mxu0 0
    %586 = vmatmul.mubr.bf16.gmra.mrb[0].mxu0 %v428
    %v587 = vpop.f32.mrb[0].mxu0
    %v588 = vadd.f32 0.0, %v587
    %v589 = vpop.f32.mrb[0].mxu0
    %v590 = vadd.f32 0.0, %v589
    %v591 = vpop.f32.mrb[0].mxu0
    %v592 = vpop.f32.mrb[0].mxu0
    %593 = vdwg.mxu0
    %594 = vmatprep.subr.bf16.mxu0 %v307
    %595 = vmatpush1.bf16.msra.mxu0 %v306
    %596 = vmatprep.subr.bf16.mxu0 %v323
    %597 = vmatpush1.bf16.msra.mxu0 %v322
    %598 = vmatprep.subr.bf16.mxu0 %v339
    %599 = vmatpush1.bf16.msra.mxu0 %v338
    %600 = vmatprep.subr.bf16.mxu0 %v355
    %601 = vmatpush1.bf16.msra.mxu0 %v354
    %602 = vmatprep.subr.bf16.mxu0 0
    %603 = vmatpush1.bf16.msra.mxu0 0
    %604 = vmatprep.subr.bf16.mxu0 0
    %605 = vmatpush1.bf16.msra.mxu0 0
    %606 = vmatprep.subr.bf16.mxu0 0
    %607 = vmatpush1.bf16.msra.mxu0 0
    %608 = vmatprep.subr.bf16.mxu0 0
    %609 = vmatpush1.bf16.msra.mxu0 0
    %610 = vmatprep.subr.bf16.mxu0 0
    %611 = vmatpush1.bf16.msra.mxu0 0
    %612 = vmatprep.subr.bf16.mxu0 0
    %613 = vmatpush1.bf16.msra.mxu0 0
    %614 = vmatprep.subr.bf16.mxu0 0
    %615 = vmatpush1.bf16.msra.mxu0 0
    %616 = vmatprep.subr.bf16.mxu0 0
    %617 = vmatpush1.bf16.msra.mxu0 0
    %618 = vmatprep.subr.bf16.mxu0 0
    %619 = vmatpush1.bf16.msra.mxu0 0
    %620 = vmatprep.subr.bf16.mxu0 0
    %621 = vmatpush1.bf16.msra.mxu0 0
    %622 = vmatprep.subr.bf16.mxu0 0
    %623 = vmatpush1.bf16.msra.mxu0 0
    %624 = vmatprep.subr.bf16.mxu0 0
    %625 = vmatpush1.bf16.msra.mxu0 0
    %626 = vmatprep.mubr.bf16.mxu0 0
    %627 = vmatmul.mubr.bf16.gmra.mrb[0].mxu0 %v428
    %v628 = vpop.f32.mrb[0].mxu0
    %v629 = vadd.f32 0.0, %v628
    %v630 = vpop.f32.mrb[0].mxu0
    %v631 = vadd.f32 0.0, %v630
    %v632 = vpop.f32.mrb[0].mxu0
    %v633 = vpop.f32.mrb[0].mxu0
    %634 = vdwg.mxu0
    %635 = vmatprep.subr.bf16.mxu0 %v309
    %636 = vmatpush1.bf16.msra.mxu0 %v308
    %637 = vmatprep.subr.bf16.mxu0 %v325
    %638 = vmatpush1.bf16.msra.mxu0 %v324
    %639 = vmatprep.subr.bf16.mxu0 %v341
    %640 = vmatpush1.bf16.msra.mxu0 %v340
    %641 = vmatprep.subr.bf16.mxu0 %v357
    %642 = vmatpush1.bf16.msra.mxu0 %v356
    %643 = vmatprep.subr.bf16.mxu0 0
    %644 = vmatpush1.bf16.msra.mxu0 0
    %645 = vmatprep.subr.bf16.mxu0 0
    %646 = vmatpush1.bf16.msra.mxu0 0
    %647 = vmatprep.subr.bf16.mxu0 0
    %648 = vmatpush1.bf16.msra.mxu0 0
    %649 = vmatprep.subr.bf16.mxu0 0
    %650 = vmatpush1.bf16.msra.mxu0 0
    %651 = vmatprep.subr.bf16.mxu0 0
    %652 = vmatpush1.bf16.msra.mxu0 0
    %653 = vmatprep.subr.bf16.mxu0 0
    %654 = vmatpush1.bf16.msra.mxu0 0
    %655 = vmatprep.subr.bf16.mxu0 0
    %656 = vmatpush1.bf16.msra.mxu0 0
    %657 = vmatprep.subr.bf16.mxu0 0
    %658 = vmatpush1.bf16.msra.mxu0 0
    %659 = vmatprep.subr.bf16.mxu0 0
    %660 = vmatpush1.bf16.msra.mxu0 0
    %661 = vmatprep.subr.bf16.mxu0 0
    %662 = vmatpush1.bf16.msra.mxu0 0
    %663 = vmatprep.subr.bf16.mxu0 0
    %664 = vmatpush1.bf16.msra.mxu0 0
    %665 = vmatprep.subr.bf16.mxu0 0
    %666 = vmatpush1.bf16.msra.mxu0 0
    %667 = vmatprep.mubr.bf16.mxu0 0
    %668 = vmatmul.mubr.bf16.gmra.mrb[0].mxu0 %v428
    %v669 = vpop.f32.mrb[0].mxu0
    %v670 = vadd.f32 0.0, %v669
    %v671 = vpop.f32.mrb[0].mxu0
    %v672 = vadd.f32 0.0, %v671
    %v673 = vpop.f32.mrb[0].mxu0
    %v674 = vpop.f32.mrb[0].mxu0
    %675 = vdwg.mxu0
    %676 = vmatprep.subr.bf16.mxu0 %v311
    %677 = vmatpush1.bf16.msra.mxu0 %v310
    %678 = vmatprep.subr.bf16.mxu0 %v327
    %679 = vmatpush1.bf16.msra.mxu0 %v326
    %680 = vmatprep.subr.bf16.mxu0 %v343
    %681 = vmatpush1.bf16.msra.mxu0 %v342
    %682 = vmatprep.subr.bf16.mxu0 %v359
    %683 = vmatpush1.bf16.msra.mxu0 %v358
    %684 = vmatprep.subr.bf16.mxu0 0
    %685 = vmatpush1.bf16.msra.mxu0 0
    %686 = vmatprep.subr.bf16.mxu0 0
    %687 = vmatpush1.bf16.msra.mxu0 0
    %688 = vmatprep.subr.bf16.mxu0 0
    %689 = vmatpush1.bf16.msra.mxu0 0
    %690 = vmatprep.subr.bf16.mxu0 0
    %691 = vmatpush1.bf16.msra.mxu0 0
    %692 = vmatprep.subr.bf16.mxu0 0
    %693 = vmatpush1.bf16.msra.mxu0 0
    %694 = vmatprep.subr.bf16.mxu0 0
    %695 = vmatpush1.bf16.msra.mxu0 0
    %696 = vmatprep.subr.bf16.mxu0 0
    %697 = vmatpush1.bf16.msra.mxu0 0
    %698 = vmatprep.subr.bf16.mxu0 0
    %699 = vmatpush1.bf16.msra.mxu0 0
    %700 = vmatprep.subr.bf16.mxu0 0
    %701 = vmatpush1.bf16.msra.mxu0 0
    %702 = vmatprep.subr.bf16.mxu0 0
    %703 = vmatpush1.bf16.msra.mxu0 0
    %704 = vmatprep.subr.bf16.mxu0 0
    %705 = vmatpush1.bf16.msra.mxu0 0
    %706 = vmatprep.subr.bf16.mxu0 0
    %707 = vmatpush1.bf16.msra.mxu0 0
    %708 = vmatprep.mubr.bf16.mxu0 0
    %709 = vmatmul.mubr.bf16.gmra.mrb[0].mxu0 %v428
    %v710 = vpop.f32.mrb[0].mxu0
    %v711 = vadd.f32 0.0, %v710
    %v712 = vpop.f32.mrb[0].mxu0
    %v713 = vadd.f32 0.0, %v712
    %v714 = vpop.f32.mrb[0].mxu0
    %v715 = vpop.f32.mrb[0].mxu0
    %716 = vdwg.mxu0
    %717 = vmatprep.subr.bf16.mxu0 %v313
    %718 = vmatpush1.bf16.msra.mxu0 %v312
    %719 = vmatprep.subr.bf16.mxu0 %v329
    %720 = vmatpush1.bf16.msra.mxu0 %v328
    %721 = vmatprep.subr.bf16.mxu0 %v345
    %722 = vmatpush1.bf16.msra.mxu0 %v344
    %723 = vmatprep.subr.bf16.mxu0 %v361
    %724 = vmatpush1.bf16.msra.mxu0 %v360
    %725 = vmatprep.subr.bf16.mxu0 0
    %726 = vmatpush1.bf16.msra.mxu0 0
    %727 = vmatprep.subr.bf16.mxu0 0
    %728 = vmatpush1.bf16.msra.mxu0 0
    %729 = vmatprep.subr.bf16.mxu0 0
    %730 = vmatpush1.bf16.msra.mxu0 0
    %731 = vmatprep.subr.bf16.mxu0 0
    %732 = vmatpush1.bf16.msra.mxu0 0
    %733 = vmatprep.subr.bf16.mxu0 0
    %734 = vmatpush1.bf16.msra.mxu0 0
    %735 = vmatprep.subr.bf16.mxu0 0
    %736 = vmatpush1.bf16.msra.mxu0 0
    %737 = vmatprep.subr.bf16.mxu0 0
    %738 = vmatpush1.bf16.msra.mxu0 0
    %739 = vmatprep.subr.bf16.mxu0 0
    %740 = vmatpush1.bf16.msra.mxu0 0
    %741 = vmatprep.subr.bf16.mxu0 0
    %742 = vmatpush1.bf16.msra.mxu0 0
    %743 = vmatprep.subr.bf16.mxu0 0
    %744 = vmatpush1.bf16.msra.mxu0 0
    %745 = vmatprep.subr.bf16.mxu0 0
    %746 = vmatpush1.bf16.msra.mxu0 0
    %747 = vmatprep.subr.bf16.mxu0 0
    %748 = vmatpush1.bf16.msra.mxu0 0
    %749 = vmatprep.mubr.bf16.mxu0 0
    %750 = vmatmul.mubr.bf16.gmra.mrb[0].mxu0 %v428
    %v751 = vpop.f32.mrb[0].mxu0
    %v752 = vadd.f32 0.0, %v751
    %v753 = vpop.f32.mrb[0].mxu0
    %v754 = vadd.f32 0.0, %v753
    %v755 = vpop.f32.mrb[0].mxu0
    %v756 = vpop.f32.mrb[0].mxu0
    %757 = vdwg.mxu0
    %v758 = vld [vmem:[#allocation4] ss:$2 sm:$0xff]
    %s759 = scalar_lea.vmem [#allocation4], 16
    %v760 = vld [vmem:[%s759] ss:$2 sm:$0xff]
    %v763 = vlaneseq
    %v764 = vshrl.u32 %v763, 7
    %v765 = vsub.s32 0, %v764
    %v766 = vrot.slane %v758, %v765
    %v767 = vlaneseq
    %v768 = vshrl.u32 %v767, 7
    %v769 = vsub.s32 1, %v768
    %v770 = vrot.slane %v758, %v769
    %v771 = vlaneseq
    %v772 = vshrl.u32 %v771, 7
    %v773 = vsub.s32 2, %v772
    %v774 = vrot.slane %v758, %v773
    %v775 = vlaneseq
    %v776 = vshrl.u32 %v775, 7
    %v777 = vsub.s32 3, %v776
    %v778 = vrot.slane %v758, %v777
    %v779 = vlaneseq
    %v780 = vshrl.u32 %v779, 7
    %v781 = vsub.s32 4, %v780
    %v782 = vrot.slane %v758, %v781
    %v783 = vlaneseq
    %v784 = vshrl.u32 %v783, 7
    %v785 = vsub.s32 5, %v784
    %v786 = vrot.slane %v758, %v785
    %v787 = vlaneseq
    %v788 = vshrl.u32 %v787, 7
    %v789 = vsub.s32 6, %v788
    %v790 = vrot.slane %v758, %v789
    %v791 = vlaneseq
    %v792 = vshrl.u32 %v791, 7
    %v793 = vsub.s32 7, %v792
    %v794 = vrot.slane %v758, %v793
    %v795 = vlaneseq
    %v796 = vshrl.u32 %v795, 7
    %v797 = vsub.s32 0, %v796
    %v798 = vrot.slane %v760, %v797
    %v799 = vlaneseq
    %v800 = vshrl.u32 %v799, 7
    %v801 = vsub.s32 1, %v800
    %v802 = vrot.slane %v760, %v801
    %v803 = vlaneseq
    %v804 = vshrl.u32 %v803, 7
    %v805 = vsub.s32 2, %v804
    %v806 = vrot.slane %v760, %v805
    %v807 = vlaneseq
    %v808 = vshrl.u32 %v807, 7
    %v809 = vsub.s32 3, %v808
    %v810 = vrot.slane %v760, %v809
    %v811 = vlaneseq
    %v812 = vshrl.u32 %v811, 7
    %v813 = vsub.s32 4, %v812
    %v814 = vrot.slane %v760, %v813
    %v815 = vlaneseq
    %v816 = vshrl.u32 %v815, 7
    %v817 = vsub.s32 5, %v816
    %v818 = vrot.slane %v760, %v817
    %v819 = vlaneseq
    %v820 = vshrl.u32 %v819, 7
    %v821 = vsub.s32 6, %v820
    %v822 = vrot.slane %v760, %v821
    %v823 = vlaneseq
    %v824 = vshrl.u32 %v823, 7
    %v825 = vsub.s32 7, %v824
    %v826 = vrot.slane %v760, %v825
    %v843 = vmul.f32 %v465, %v766
    %v844 = vmul.f32 %v467, %v770
    %v845 = vmul.f32 %v506, %v774
    %v846 = vmul.f32 %v508, %v778
    %v847 = vmul.f32 %v547, %v782
    %v848 = vmul.f32 %v549, %v786
    %v849 = vmul.f32 %v588, %v790
    %v850 = vmul.f32 %v590, %v794
    %v851 = vmul.f32 %v629, %v798
    %v852 = vmul.f32 %v631, %v802
    %v853 = vmul.f32 %v670, %v806
    %v854 = vmul.f32 %v672, %v810
    %v855 = vmul.f32 %v711, %v814
    %v856 = vmul.f32 %v713, %v818
    %v857 = vmul.f32 %v752, %v822
    %v858 = vmul.f32 %v754, %v826
    %s859 = scalar_lea.vmem [#allocation4], 1
    %v860 = vld [vmem:[%s859] ss:$2 sm:$0xff]
    %s861 = scalar_lea.vmem [#allocation4], 17
    %v862 = vld [vmem:[%s861] ss:$2 sm:$0xff]
    %v865 = vlaneseq
    %v866 = vshrl.u32 %v865, 7
    %v867 = vsub.s32 0, %v866
    %v868 = vrot.slane %v860, %v867
    %v869 = vlaneseq
    %v870 = vshrl.u32 %v869, 7
    %v871 = vsub.s32 1, %v870
    %v872 = vrot.slane %v860, %v871
    %v873 = vlaneseq
    %v874 = vshrl.u32 %v873, 7
    %v875 = vsub.s32 2, %v874
    %v876 = vrot.slane %v860, %v875
    %v877 = vlaneseq
    %v878 = vshrl.u32 %v877, 7
    %v879 = vsub.s32 3, %v878
    %v880 = vrot.slane %v860, %v879
    %v881 = vlaneseq
    %v882 = vshrl.u32 %v881, 7
    %v883 = vsub.s32 4, %v882
    %v884 = vrot.slane %v860, %v883
    %v885 = vlaneseq
    %v886 = vshrl.u32 %v885, 7
    %v887 = vsub.s32 5, %v886
    %v888 = vrot.slane %v860, %v887
    %v889 = vlaneseq
    %v890 = vshrl.u32 %v889, 7
    %v891 = vsub.s32 6, %v890
    %v892 = vrot.slane %v860, %v891
    %v893 = vlaneseq
    %v894 = vshrl.u32 %v893, 7
    %v895 = vsub.s32 7, %v894
    %v896 = vrot.slane %v860, %v895
    %v897 = vlaneseq
    %v898 = vshrl.u32 %v897, 7
    %v899 = vsub.s32 0, %v898
    %v900 = vrot.slane %v862, %v899
    %v901 = vlaneseq
    %v902 = vshrl.u32 %v901, 7
    %v903 = vsub.s32 1, %v902
    %v904 = vrot.slane %v862, %v903
    %v905 = vlaneseq
    %v906 = vshrl.u32 %v905, 7
    %v907 = vsub.s32 2, %v906
    %v908 = vrot.slane %v862, %v907
    %v909 = vlaneseq
    %v910 = vshrl.u32 %v909, 7
    %v911 = vsub.s32 3, %v910
    %v912 = vrot.slane %v862, %v911
    %v913 = vlaneseq
    %v914 = vshrl.u32 %v913, 7
    %v915 = vsub.s32 4, %v914
    %v916 = vrot.slane %v862, %v915
    %v917 = vlaneseq
    %v918 = vshrl.u32 %v917, 7
    %v919 = vsub.s32 5, %v918
    %v920 = vrot.slane %v862, %v919
    %v921 = vlaneseq
    %v922 = vshrl.u32 %v921, 7
    %v923 = vsub.s32 6, %v922
    %v924 = vrot.slane %v862, %v923
    %v925 = vlaneseq
    %v926 = vshrl.u32 %v925, 7
    %v927 = vsub.s32 7, %v926
    %v928 = vrot.slane %v862, %v927
    %v945 = vadd.f32 %v843, %v868
    %v946 = vadd.f32 %v844, %v872
    %v947 = vadd.f32 %v845, %v876
    %v948 = vadd.f32 %v846, %v880
    %v949 = vadd.f32 %v847, %v884
    %v950 = vadd.f32 %v848, %v888
    %v951 = vadd.f32 %v849, %v892
    %v952 = vadd.f32 %v850, %v896
    %v953 = vadd.f32 %v851, %v900
    %v954 = vadd.f32 %v852, %v904
    %v955 = vadd.f32 %v853, %v908
    %v956 = vadd.f32 %v854, %v912
    %v957 = vadd.f32 %v855, %v916
    %v958 = vadd.f32 %v856, %v920
    %v959 = vadd.f32 %v857, %v924
    %v960 = vadd.f32 %v858, %v928
    %v961 = vmax.f32 %v945, 0.0
    %v962 = vmax.f32 %v946, 0.0
    %v963 = vmax.f32 %v947, 0.0
    %v964 = vmax.f32 %v948, 0.0
    %v965 = vmax.f32 %v949, 0.0
    %v966 = vmax.f32 %v950, 0.0
    %v967 = vmax.f32 %v951, 0.0
    %v968 = vmax.f32 %v952, 0.0
    %v969 = vmax.f32 %v953, 0.0
    %v970 = vmax.f32 %v954, 0.0
    %v971 = vmax.f32 %v955, 0.0
    %v972 = vmax.f32 %v956, 0.0
    %v973 = vmax.f32 %v957, 0.0
    %v974 = vmax.f32 %v958, 0.0
    %v975 = vmax.f32 %v959, 0.0
    %v976 = vmax.f32 %v960, 0.0
    %v977 = vpack.c.bf16 %v961, %v961
    %v978 = vpack.c.bf16 %v962, %v962
    %v979 = vpack.c.bf16 %v963, %v963
    %v980 = vpack.c.bf16 %v964, %v964
    %v981 = vpack.c.bf16 %v965, %v965
    %v982 = vpack.c.bf16 %v966, %v966
    %v983 = vpack.c.bf16 %v967, %v967
    %v984 = vpack.c.bf16 %v968, %v968
    %v985 = vpack.c.bf16 %v969, %v969
    %v986 = vpack.c.bf16 %v970, %v970
    %v987 = vpack.c.bf16 %v971, %v971
    %v988 = vpack.c.bf16 %v972, %v972
    %v989 = vpack.c.bf16 %v973, %v973
    %v990 = vpack.c.bf16 %v974, %v974
    %v991 = vpack.c.bf16 %v975, %v975
    %v992 = vpack.c.bf16 %v976, %v976
    %v1009 = vcombine.low %v977, %v978
    %v1010 = vcombine.low %v979, %v980
    %v1011 = vcombine.low %v981, %v982
    %v1012 = vcombine.low %v983, %v984
    %v1014 = vunpack.c.l.s4 1966171168
    %v1015 = vunpack.c.0.s8 %v1014
    %v1016 = vlaneseq
    %v1017 = vshrl.u32 %v1016, 7
    %v1018 = vsub.s32 %v1015, %v1017
    %v1019 = vrot.slane %v1009, %v1018
    %v1021 = vunpack.c.l.s4 1966171168
    %v1022 = vunpack.c.0.s8 %v1021
    %v1023 = vlaneseq
    %v1024 = vshrl.u32 %v1023, 7
    %v1025 = vsub.s32 %v1022, %v1024
    %v1026 = vrot.slane %v1010, %v1025
    %v1028 = vunpack.c.l.s4 1966171168
    %v1029 = vunpack.c.0.s8 %v1028
    %v1030 = vlaneseq
    %v1031 = vshrl.u32 %v1030, 7
    %v1032 = vsub.s32 %v1029, %v1031
    %v1033 = vrot.slane %v1011, %v1032
    %v1035 = vunpack.c.l.s4 1966171168
    %v1036 = vunpack.c.0.s8 %v1035
    %v1037 = vlaneseq
    %v1038 = vshrl.u32 %v1037, 7
    %v1039 = vsub.s32 %v1036, %v1038
    %v1040 = vrot.slane %v1012, %v1039
    %v1041 = vcombine.low %v1019, %v1026
    %v1042 = vcombine.low %v1033, %v1040
    %v1044 = vunpack.c.l.s4 1966171168
    %v1045 = vunpack.c.0.s8 %v1044
    %v1046 = vlaneseq
    %v1047 = vshrl.u32 %v1046, 7
    %v1048 = vsub.s32 %v1045, %v1047
    %v1049 = vrot.slane %v1041, %v1048
    %v1051 = vunpack.c.l.s4 1966171168
    %v1052 = vunpack.c.0.s8 %v1051
    %v1053 = vlaneseq
    %v1054 = vshrl.u32 %v1053, 7
    %v1055 = vsub.s32 %v1052, %v1054
    %v1056 = vrot.slane %v1042, %v1055
    %v1057 = vcombine.low %v1049, %v1056
    %v1058 = vcombine.low %v985, %v986
    %v1059 = vcombine.low %v987, %v988
    %v1060 = vcombine.low %v989, %v990
    %v1061 = vcombine.low %v991, %v992
    %v1063 = vunpack.c.l.s4 1966171168
    %v1064 = vunpack.c.0.s8 %v1063
    %v1065 = vlaneseq
    %v1066 = vshrl.u32 %v1065, 7
    %v1067 = vsub.s32 %v1064, %v1066
    %v1068 = vrot.slane %v1058, %v1067
    %v1070 = vunpack.c.l.s4 1966171168
    %v1071 = vunpack.c.0.s8 %v1070
    %v1072 = vlaneseq
    %v1073 = vshrl.u32 %v1072, 7
    %v1074 = vsub.s32 %v1071, %v1073
    %v1075 = vrot.slane %v1059, %v1074
    %v1077 = vunpack.c.l.s4 1966171168
    %v1078 = vunpack.c.0.s8 %v1077
    %v1079 = vlaneseq
    %v1080 = vshrl.u32 %v1079, 7
    %v1081 = vsub.s32 %v1078, %v1080
    %v1082 = vrot.slane %v1060, %v1081
    %v1084 = vunpack.c.l.s4 1966171168
    %v1085 = vunpack.c.0.s8 %v1084
    %v1086 = vlaneseq
    %v1087 = vshrl.u32 %v1086, 7
    %v1088 = vsub.s32 %v1085, %v1087
    %v1089 = vrot.slane %v1061, %v1088
    %v1090 = vcombine.low %v1068, %v1075
    %v1091 = vcombine.low %v1082, %v1089
    %v1093 = vunpack.c.l.s4 1966171168
    %v1094 = vunpack.c.0.s8 %v1093
    %v1095 = vlaneseq
    %v1096 = vshrl.u32 %v1095, 7
    %v1097 = vsub.s32 %v1094, %v1096
    %v1098 = vrot.slane %v1090, %v1097
    %v1100 = vunpack.c.l.s4 1966171168
    %v1101 = vunpack.c.0.s8 %v1100
    %v1102 = vlaneseq
    %v1103 = vshrl.u32 %v1102, 7
    %v1104 = vsub.s32 %v1101, %v1103
    %v1105 = vrot.slane %v1091, %v1104
    %v1106 = vcombine.low %v1098, %v1105
    %1109 = vst [vmem:[%s3] sm:$0xff] %v1057
    %1110 = vst [vmem:[%s3 + $0x8] sm:$0xff] %v1106
    // Predicated region
    $region22: #{forward.6} parent=1 // pred_check
      _
    $region23: #{forward.6} parent=1 // pred_check_branch
      %1112 = sbr.rel (0) target = $region25
    $region24: #{forward.6} parent=1 // pred_region
      _
    $region25: #{forward.6} parent=1 // pred_fallthru
      _
    // Predicated region
    $region26: #{forward.6} parent=1 // pred_check
      _
    $region27: #{forward.6} parent=1 // pred_check_branch
      %1114 = sbr.rel (0) target = $region29
    $region28: #{forward.6} parent=1 // pred_region
      _
    $region29: #{forward.6} parent=1 // pred_fallthru
      _
    %1115 = vsyncpa [#allocation3], 1
    %1116 = vsyncpa [#allocation5], 1

// kernel: forward.7
$region0: #{forward.7}
  #allocation0 [shape = 'u32[]', space=smem, size = 0x4, offset = 0x4, fixed_abs, tag = 'smem constant byte address 0x4 - core index']
  #allocation1 [shape = 'u32[144,128]{1,0:T(1,128)}', space=vmem, size = 0x12000, scoped, tag = 'internal scratch']
  %s0 = inlined_call_operand.vmem [shape: bf16[32,1152], index: 0, kind: input, shape index: {}]
  %s1 = inlined_call_operand.hbm [shape: bf16[1152,256], index: 1, kind: input, shape index: {}]
  %s2 = inlined_call_operand.hbm [shape: f32[2,256], index: 2, kind: input, shape index: {}]
  %s3 = inlined_call_operand.vmem [shape: bf16[32,256], index: 3, kind: output, shape index: {}]
  %s4 = sld [smem:[#allocation0]]
  $region30: #{forward.7} parent=0
    _
  %s6 = ssub.s32 1, %s4
  %s7 = scalar_select 0, %s6, %s4
  $region1: #{forward.7} parent=0
    #allocation2 [shape = 'u8[589824]{0}', space=vmem, size = 0x90000, scoped, tag = 'input window, operand 1, single buffered']
    #allocation3 [shape = 's32[1]{0}', space=sflag, size = 0x4, scoped, tag = 'scoped memory for forward.7']
    #allocation4 [shape = 'u8[2048]{0}', space=vmem, size = 0x800, scoped, tag = 'input window, operand 2, single buffered']
    #allocation5 [shape = 's32[1]{0}', space=sflag, size = 0x4, scoped, tag = 'scoped memory for forward.7']
    %8 = vsyncpa [#allocation3], 0
    %9 = vsyncpa [#allocation5], 0
    // Predicated region
    $region2: #{forward.7} parent=1 // pred_check
      _
    $region3: #{forward.7} parent=1 // pred_check_branch
      %11 = sbr.rel (0) target = $region5
    $region4: #{forward.7} parent=1 // pred_region
      _
    $region5: #{forward.7} parent=1 // pred_fallthru
      _
    // Predicated region
    $region6: #{forward.7} parent=1 // pred_check
      _
    $region7: #{forward.7} parent=1 // pred_check_branch
      %13 = sbr.rel (0) target = $region9
    $region8: #{forward.7} parent=1 // pred_region
      %s15 = ssub.s32 18432, 18432
      %16 = vsyncadd [#allocation3], %s15
      %s17 = sshll.u32 [#allocation2], 4
      %s18 = int_to_ptr.vmem [resolvable:$true] %s17
      %23 = dma.hbm_to_vmem [thread:$0]  %s1, 18432, %s18, [#allocation3], 128, 128, 8
    $region9: #{forward.7} parent=1 // pred_fallthru
      _
    // Predicated region
    $region10: #{forward.7} parent=1 // pred_check
      _
    $region11: #{forward.7} parent=1 // pred_check_branch
      %25 = sbr.rel (0) target = $region13
    $region12: #{forward.7} parent=1 // pred_region
      %s27 = ssub.s32 64, 64
      %28 = vsyncadd [#allocation5], %s27
      %s30 = sshll.u32 [#allocation4], 4
      %s31 = int_to_ptr.vmem [resolvable:$true] %s30
      %33 = dma.hbm_to_vmem [thread:$0]  %s2, 64, %s31, [#allocation5]
    $region13: #{forward.7} parent=1 // pred_fallthru
      _
    // Predicated region
    $region14: #{forward.7} parent=1 // pred_check
      _
    $region15: #{forward.7} parent=1 // pred_check_branch
      %35 = sbr.rel (0) target = $region17
    $region16: #{forward.7} parent=1 // pred_region
      %36 = dma.done [#allocation3], 18432
    $region17: #{forward.7} parent=1 // pred_fallthru
      _
    // Predicated region
    $region18: #{forward.7} parent=1 // pred_check
      _
    $region19: #{forward.7} parent=1 // pred_check_branch
      %38 = sbr.rel (0) target = $region21
    $region20: #{forward.7} parent=1 // pred_region
      %39 = dma.done [#allocation5], 64
    $region21: #{forward.7} parent=1 // pred_fallthru
      _
    %v41 = vld [vmem:[%s0] sm:$0xff]
    %v42 = vld [vmem:[%s0 + $0x8] sm:$0xff]
    %v43 = vld [vmem:[%s0 + $0x10] sm:$0xff]
    %v44 = vld [vmem:[%s0 + $0x18] sm:$0xff]
    %v45 = vld [vmem:[%s0 + $0x20] sm:$0xf]
    %v46 = vld [vmem:[%s0 + $0x24] sm:$0xff]
    %v47 = vld [vmem:[%s0 + $0x2c] sm:$0xff]
    %v48 = vld [vmem:[%s0 + $0x34] sm:$0xff]
    %v49 = vld [vmem:[%s0 + $0x3c] sm:$0xff]
    %v50 = vld [vmem:[%s0 + $0x44] sm:$0xf]
    %v51 = vld [vmem:[%s0 + $0x48] sm:$0xff]
    %v52 = vld [vmem:[%s0 + $0x50] sm:$0xff]
    %v53 = vld [vmem:[%s0 + $0x58] sm:$0xff]
    %v54 = vld [vmem:[%s0 + $0x60] sm:$0xff]
    %v55 = vld [vmem:[%s0 + $0x68] sm:$0xf]
    %v56 = vld [vmem:[%s0 + $0x6c] sm:$0xff]
    %v57 = vld [vmem:[%s0 + $0x74] sm:$0xff]
    %v58 = vld [vmem:[%s0 + $0x7c] sm:$0xff]
    %v59 = vld [vmem:[%s0 + $0x84] sm:$0xff]
    %v60 = vld [vmem:[%s0 + $0x8c] sm:$0xf]
    %v61 = vld [vmem:[#allocation2] sm:$0xff]
    %v62 = vld [vmem:[#allocation2 + $0x8] sm:$0xff]
    %v63 = vld [vmem:[#allocation2 + $0x10] sm:$0xff]
    %v64 = vld [vmem:[#allocation2 + $0x18] sm:$0xff]
    %v65 = vld [vmem:[#allocation2 + $0x20] sm:$0xff]
    %v66 = vld [vmem:[#allocation2 + $0x28] sm:$0xff]
    %v67 = vld [vmem:[#allocation2 + $0x30] sm:$0xff]
    %v68 = vld [vmem:[#allocation2 + $0x38] sm:$0xff]
    %v69 = vld [vmem:[#allocation2 + $0x40] sm:$0xff]
    %v70 = vld [vmem:[#allocation2 + $0x48] sm:$0xff]
    %v71 = vld [vmem:[#allocation2 + $0x50] sm:$0xff]
    %v72 = vld [vmem:[#allocation2 + $0x58] sm:$0xff]
    %v73 = vld [vmem:[#allocation2 + $0x60] sm:$0xff]
    %v74 = vld [vmem:[#allocation2 + $0x68] sm:$0xff]
    %v75 = vld [vmem:[#allocation2 + $0x70] sm:$0xff]
    %v76 = vld [vmem:[#allocation2 + $0x78] sm:$0xff]
    %v77 = vld [vmem:[#allocation2 + $0x80] sm:$0xff]
    %v78 = vld [vmem:[#allocation2 + $0x88] sm:$0xff]
    %v79 = vld [vmem:[#allocation2 + $0x90] sm:$0xff]
    %v80 = vld [vmem:[#allocation2 + $0x98] sm:$0xff]
    %v81 = vld [vmem:[#allocation2 + $0xa0] sm:$0xff]
    %v82 = vld [vmem:[#allocation2 + $0xa8] sm:$0xff]
    %v83 = vld [vmem:[#allocation2 + $0xb0] sm:$0xff]
    %v84 = vld [vmem:[#allocation2 + $0xb8] sm:$0xff]
    %v85 = vld [vmem:[#allocation2 + $0xc0] sm:$0xff]
    %v86 = vld [vmem:[#allocation2 + $0xc8] sm:$0xff]
    %v87 = vld [vmem:[#allocation2 + $0xd0] sm:$0xff]
    %v88 = vld [vmem:[#allocation2 + $0xd8] sm:$0xff]
    %v89 = vld [vmem:[#allocation2 + $0xe0] sm:$0xff]
    %v90 = vld [vmem:[#allocation2 + $0xe8] sm:$0xff]
    %v91 = vld [vmem:[#allocation2 + $0xf0] sm:$0xff]
    %v92 = vld [vmem:[#allocation2 + $0xf8] sm:$0xff]
    %v93 = vld [vmem:[#allocation2 + $0x100] sm:$0xff]
    %v94 = vld [vmem:[#allocation2 + $0x108] sm:$0xff]
    %v95 = vld [vmem:[#allocation2 + $0x110] sm:$0xff]
    %v96 = vld [vmem:[#allocation2 + $0x118] sm:$0xff]
    %v97 = vld [vmem:[#allocation2 + $0x120] sm:$0xff]
    %v98 = vld [vmem:[#allocation2 + $0x128] sm:$0xff]
    %v99 = vld [vmem:[#allocation2 + $0x130] sm:$0xff]
    %v100 = vld [vmem:[#allocation2 + $0x138] sm:$0xff]
    %v101 = vld [vmem:[#allocation2 + $0x140] sm:$0xff]
    %v102 = vld [vmem:[#allocation2 + $0x148] sm:$0xff]
    %v103 = vld [vmem:[#allocation2 + $0x150] sm:$0xff]
    %v104 = vld [vmem:[#allocation2 + $0x158] sm:$0xff]
    %v105 = vld [vmem:[#allocation2 + $0x160] sm:$0xff]
    %v106 = vld [vmem:[#allocation2 + $0x168] sm:$0xff]
    %v107 = vld [vmem:[#allocation2 + $0x170] sm:$0xff]
    %v108 = vld [vmem:[#allocation2 + $0x178] sm:$0xff]
    %v109 = vld [vmem:[#allocation2 + $0x180] sm:$0xff]
    %v110 = vld [vmem:[#allocation2 + $0x188] sm:$0xff]
    %v111 = vld [vmem:[#allocation2 + $0x190] sm:$0xff]
    %v112 = vld [vmem:[#allocation2 + $0x198] sm:$0xff]
    %v113 = vld [vmem:[#allocation2 + $0x1a0] sm:$0xff]
    %v114 = vld [vmem:[#allocation2 + $0x1a8] sm:$0xff]
    %v115 = vld [vmem:[#allocation2 + $0x1b0] sm:$0xff]
    %v116 = vld [vmem:[#allocation2 + $0x1b8] sm:$0xff]
    %v117 = vld [vmem:[#allocation2 + $0x1c0] sm:$0xff]
    %v118 = vld [vmem:[#allocation2 + $0x1c8] sm:$0xff]
    %v119 = vld [vmem:[#allocation2 + $0x1d0] sm:$0xff]
    %v120 = vld [vmem:[#allocation2 + $0x1d8] sm:$0xff]
    %v121 = vld [vmem:[#allocation2 + $0x1e0] sm:$0xff]
    %v122 = vld [vmem:[#allocation2 + $0x1e8] sm:$0xff]
    %v123 = vld [vmem:[#allocation2 + $0x1f0] sm:$0xff]
    %v124 = vld [vmem:[#allocation2 + $0x1f8] sm:$0xff]
    %v125 = vld [vmem:[#allocation2 + $0x200] sm:$0xff]
    %v126 = vld [vmem:[#allocation2 + $0x208] sm:$0xff]
    %v127 = vld [vmem:[#allocation2 + $0x210] sm:$0xff]
    %v128 = vld [vmem:[#allocation2 + $0x218] sm:$0xff]
    %v129 = vld [vmem:[#allocation2 + $0x220] sm:$0xff]
    %v130 = vld [vmem:[#allocation2 + $0x228] sm:$0xff]
    %v131 = vld [vmem:[#allocation2 + $0x230] sm:$0xff]
    %v132 = vld [vmem:[#allocation2 + $0x238] sm:$0xff]
    %v133 = vld [vmem:[#allocation2 + $0x240] sm:$0xff]
    %v134 = vld [vmem:[#allocation2 + $0x248] sm:$0xff]
    %v135 = vld [vmem:[#allocation2 + $0x250] sm:$0xff]
    %v136 = vld [vmem:[#allocation2 + $0x258] sm:$0xff]
    %v137 = vld [vmem:[#allocation2 + $0x260] sm:$0xff]
    %v138 = vld [vmem:[#allocation2 + $0x268] sm:$0xff]
    %v139 = vld [vmem:[#allocation2 + $0x270] sm:$0xff]
    %v140 = vld [vmem:[#allocation2 + $0x278] sm:$0xff]
    %v141 = vld [vmem:[#allocation2 + $0x280] sm:$0xff]
    %v142 = vld [vmem:[#allocation2 + $0x288] sm:$0xff]
    %v143 = vld [vmem:[#allocation2 + $0x290] sm:$0xff]
    %v144 = vld [vmem:[#allocation2 + $0x298] sm:$0xff]
    %v145 = vld [vmem:[#allocation2 + $0x2a0] sm:$0xff]
    %v146 = vld [vmem:[#allocation2 + $0x2a8] sm:$0xff]
    %v147 = vld [vmem:[#allocation2 + $0x2b0] sm:$0xff]
    %v148 = vld [vmem:[#allocation2 + $0x2b8] sm:$0xff]
    %v149 = vld [vmem:[#allocation2 + $0x2c0] sm:$0xff]
    %v150 = vld [vmem:[#allocation2 + $0x2c8] sm:$0xff]
    %v151 = vld [vmem:[#allocation2 + $0x2d0] sm:$0xff]
    %v152 = vld [vmem:[#allocation2 + $0x2d8] sm:$0xff]
    %v153 = vld [vmem:[#allocation2 + $0x2e0] sm:$0xff]
    %v154 = vld [vmem:[#allocation2 + $0x2e8] sm:$0xff]
    %v155 = vld [vmem:[#allocation2 + $0x2f0] sm:$0xff]
    %v156 = vld [vmem:[#allocation2 + $0x2f8] sm:$0xff]
    %v157 = vld [vmem:[#allocation2 + $0x300] sm:$0xff]
    %v158 = vld [vmem:[#allocation2 + $0x308] sm:$0xff]
    %v159 = vld [vmem:[#allocation2 + $0x310] sm:$0xff]
    %v160 = vld [vmem:[#allocation2 + $0x318] sm:$0xff]
    %v161 = vld [vmem:[#allocation2 + $0x320] sm:$0xff]
    %v162 = vld [vmem:[#allocation2 + $0x328] sm:$0xff]
    %v163 = vld [vmem:[#allocation2 + $0x330] sm:$0xff]
    %v164 = vld [vmem:[#allocation2 + $0x338] sm:$0xff]
    %v165 = vld [vmem:[#allocation2 + $0x340] sm:$0xff]
    %v166 = vld [vmem:[#allocation2 + $0x348] sm:$0xff]
    %v167 = vld [vmem:[#allocation2 + $0x350] sm:$0xff]
    %v168 = vld [vmem:[#allocation2 + $0x358] sm:$0xff]
    %v169 = vld [vmem:[#allocation2 + $0x360] sm:$0xff]
    %v170 = vld [vmem:[#allocation2 + $0x368] sm:$0xff]
    %v171 = vld [vmem:[#allocation2 + $0x370] sm:$0xff]
    %v172 = vld [vmem:[#allocation2 + $0x378] sm:$0xff]
    %v173 = vld [vmem:[#allocation2 + $0x380] sm:$0xff]
    %v174 = vld [vmem:[#allocation2 + $0x388] sm:$0xff]
    %v175 = vld [vmem:[#allocation2 + $0x390] sm:$0xff]
    %v176 = vld [vmem:[#allocation2 + $0x398] sm:$0xff]
    %v177 = vld [vmem:[#allocation2 + $0x3a0] sm:$0xff]
    %v178 = vld [vmem:[#allocation2 + $0x3a8] sm:$0xff]
    %v179 = vld [vmem:[#allocation2 + $0x3b0] sm:$0xff]
    %v180 = vld [vmem:[#allocation2 + $0x3b8] sm:$0xff]
    %v181 = vld [vmem:[#allocation2 + $0x3c0] sm:$0xff]
    %v182 = vld [vmem:[#allocation2 + $0x3c8] sm:$0xff]
    %v183 = vld [vmem:[#allocation2 + $0x3d0] sm:$0xff]
    %v184 = vld [vmem:[#allocation2 + $0x3d8] sm:$0xff]
    %v185 = vld [vmem:[#allocation2 + $0x3e0] sm:$0xff]
    %v186 = vld [vmem:[#allocation2 + $0x3e8] sm:$0xff]
    %v187 = vld [vmem:[#allocation2 + $0x3f0] sm:$0xff]
    %v188 = vld [vmem:[#allocation2 + $0x3f8] sm:$0xff]
    %v189 = vld [vmem:[#allocation2 + $0x400] sm:$0xff]
    %v190 = vld [vmem:[#allocation2 + $0x408] sm:$0xff]
    %v191 = vld [vmem:[#allocation2 + $0x410] sm:$0xff]
    %v192 = vld [vmem:[#allocation2 + $0x418] sm:$0xff]
    %v193 = vld [vmem:[#allocation2 + $0x420] sm:$0xff]
    %v194 = vld [vmem:[#allocation2 + $0x428] sm:$0xff]
    %v195 = vld [vmem:[#allocation2 + $0x430] sm:$0xff]
    %v196 = vld [vmem:[#allocation2 + $0x438] sm:$0xff]
    %v197 = vld [vmem:[#allocation2 + $0x440] sm:$0xff]
    %v198 = vld [vmem:[#allocation2 + $0x448] sm:$0xff]
    %v199 = vld [vmem:[#allocation2 + $0x450] sm:$0xff]
    %v200 = vld [vmem:[#allocation2 + $0x458] sm:$0xff]
    %v201 = vld [vmem:[#allocation2 + $0x460] sm:$0xff]
    %v202 = vld [vmem:[#allocation2 + $0x468] sm:$0xff]
    %v203 = vld [vmem:[#allocation2 + $0x470] sm:$0xff]
    %v204 = vld [vmem:[#allocation2 + $0x478] sm:$0xff]
    %v225 = vunpack.c.l.b16 %v41
    %v226 = vunpack.c.h.b16 %v41
    %v227 = vunpack.c.l.b16 %v42
    %v228 = vunpack.c.h.b16 %v42
    %v229 = vunpack.c.l.b16 %v43
    %v230 = vunpack.c.h.b16 %v43
    %v231 = vunpack.c.l.b16 %v44
    %v232 = vunpack.c.h.b16 %v44
    %v233 = vunpack.c.l.b16 %v45
    %v234 = vunpack.c.l.b16 %v46
    %v235 = vunpack.c.h.b16 %v46
    %v236 = vunpack.c.l.b16 %v47
    %v237 = vunpack.c.h.b16 %v47
    %v238 = vunpack.c.l.b16 %v48
    %v239 = vunpack.c.h.b16 %v48
    %v240 = vunpack.c.l.b16 %v49
    %v241 = vunpack.c.h.b16 %v49
    %v242 = vunpack.c.l.b16 %v50
    %v243 = vunpack.c.l.b16 %v51
    %v244 = vunpack.c.h.b16 %v51
    %v245 = vunpack.c.l.b16 %v52
    %v246 = vunpack.c.h.b16 %v52
    %v247 = vunpack.c.l.b16 %v53
    %v248 = vunpack.c.h.b16 %v53
    %v249 = vunpack.c.l.b16 %v54
    %v250 = vunpack.c.h.b16 %v54
    %v251 = vunpack.c.l.b16 %v55
    %v252 = vunpack.c.l.b16 %v56
    %v253 = vunpack.c.h.b16 %v56
    %v254 = vunpack.c.l.b16 %v57
    %v255 = vunpack.c.h.b16 %v57
    %v256 = vunpack.c.l.b16 %v58
    %v257 = vunpack.c.h.b16 %v58
    %v258 = vunpack.c.l.b16 %v59
    %v259 = vunpack.c.h.b16 %v59
    %v260 = vunpack.c.l.b16 %v60
    %v261 = vpack.c.b16 %v234, %v225
    %v262 = vpack.c.b16 %v235, %v226
    %v263 = vpack.c.b16 %v236, %v227
    %v264 = vpack.c.b16 %v237, %v228
    %v265 = vpack.c.b16 %v238, %v229
    %v266 = vpack.c.b16 %v239, %v230
    %v267 = vpack.c.b16 %v240, %v231
    %v268 = vpack.c.b16 %v241, %v232
    %v269 = vpack.c.b16 %v242, %v233
    %v270 = vpack.c.b16 %v252, %v243
    %v271 = vpack.c.b16 %v253, %v244
    %v272 = vpack.c.b16 %v254, %v245
    %v273 = vpack.c.b16 %v255, %v246
    %v274 = vpack.c.b16 %v256, %v247
    %v275 = vpack.c.b16 %v257, %v248
    %v276 = vpack.c.b16 %v258, %v249
    %v277 = vpack.c.b16 %v259, %v250
    %v278 = vpack.c.b16 %v260, %v251
    %v441 = vunpack.c.l.b16 %v61
    %v442 = vunpack.c.h.b16 %v61
    %v443 = vunpack.c.l.b16 %v62
    %v444 = vunpack.c.h.b16 %v62
    %v445 = vunpack.c.l.b16 %v63
    %v446 = vunpack.c.h.b16 %v63
    %v447 = vunpack.c.l.b16 %v64
    %v448 = vunpack.c.h.b16 %v64
    %v449 = vunpack.c.l.b16 %v65
    %v450 = vunpack.c.h.b16 %v65
    %v451 = vunpack.c.l.b16 %v66
    %v452 = vunpack.c.h.b16 %v66
    %v453 = vunpack.c.l.b16 %v67
    %v454 = vunpack.c.h.b16 %v67
    %v455 = vunpack.c.l.b16 %v68
    %v456 = vunpack.c.h.b16 %v68
    %v457 = vunpack.c.l.b16 %v69
    %v458 = vunpack.c.h.b16 %v69
    %v459 = vunpack.c.l.b16 %v70
    %v460 = vunpack.c.h.b16 %v70
    %v461 = vunpack.c.l.b16 %v71
    %v462 = vunpack.c.h.b16 %v71
    %v463 = vunpack.c.l.b16 %v72
    %v464 = vunpack.c.h.b16 %v72
    %v465 = vunpack.c.l.b16 %v73
    %v466 = vunpack.c.h.b16 %v73
    %v467 = vunpack.c.l.b16 %v74
    %v468 = vunpack.c.h.b16 %v74
    %v469 = vunpack.c.l.b16 %v75
    %v470 = vunpack.c.h.b16 %v75
    %v471 = vunpack.c.l.b16 %v76
    %v472 = vunpack.c.h.b16 %v76
    %v473 = vunpack.c.l.b16 %v77
    %v474 = vunpack.c.h.b16 %v77
    %v475 = vunpack.c.l.b16 %v78
    %v476 = vunpack.c.h.b16 %v78
    %v477 = vunpack.c.l.b16 %v79
    %v478 = vunpack.c.h.b16 %v79
    %v479 = vunpack.c.l.b16 %v80
    %v480 = vunpack.c.h.b16 %v80
    %v481 = vunpack.c.l.b16 %v81
    %v482 = vunpack.c.h.b16 %v81
    %v483 = vunpack.c.l.b16 %v82
    %v484 = vunpack.c.h.b16 %v82
    %v485 = vunpack.c.l.b16 %v83
    %v486 = vunpack.c.h.b16 %v83
    %v487 = vunpack.c.l.b16 %v84
    %v488 = vunpack.c.h.b16 %v84
    %v489 = vunpack.c.l.b16 %v85
    %v490 = vunpack.c.h.b16 %v85
    %v491 = vunpack.c.l.b16 %v86
    %v492 = vunpack.c.h.b16 %v86
    %v493 = vunpack.c.l.b16 %v87
    %v494 = vunpack.c.h.b16 %v87
    %v495 = vunpack.c.l.b16 %v88
    %v496 = vunpack.c.h.b16 %v88
    %v497 = vunpack.c.l.b16 %v89
    %v498 = vunpack.c.h.b16 %v89
    %v499 = vunpack.c.l.b16 %v90
    %v500 = vunpack.c.h.b16 %v90
    %v501 = vunpack.c.l.b16 %v91
    %v502 = vunpack.c.h.b16 %v91
    %v503 = vunpack.c.l.b16 %v92
    %v504 = vunpack.c.h.b16 %v92
    %v505 = vunpack.c.l.b16 %v93
    %v506 = vunpack.c.h.b16 %v93
    %v507 = vunpack.c.l.b16 %v94
    %v508 = vunpack.c.h.b16 %v94
    %v509 = vunpack.c.l.b16 %v95
    %v510 = vunpack.c.h.b16 %v95
    %v511 = vunpack.c.l.b16 %v96
    %v512 = vunpack.c.h.b16 %v96
    %v513 = vunpack.c.l.b16 %v97
    %v514 = vunpack.c.h.b16 %v97
    %v515 = vunpack.c.l.b16 %v98
    %v516 = vunpack.c.h.b16 %v98
    %v517 = vunpack.c.l.b16 %v99
    %v518 = vunpack.c.h.b16 %v99
    %v519 = vunpack.c.l.b16 %v100
    %v520 = vunpack.c.h.b16 %v100
    %v521 = vunpack.c.l.b16 %v101
    %v522 = vunpack.c.h.b16 %v101
    %v523 = vunpack.c.l.b16 %v102
    %v524 = vunpack.c.h.b16 %v102
    %v525 = vunpack.c.l.b16 %v103
    %v526 = vunpack.c.h.b16 %v103
    %v527 = vunpack.c.l.b16 %v104
    %v528 = vunpack.c.h.b16 %v104
    %v529 = vunpack.c.l.b16 %v105
    %v530 = vunpack.c.h.b16 %v105
    %v531 = vunpack.c.l.b16 %v106
    %v532 = vunpack.c.h.b16 %v106
    %v533 = vunpack.c.l.b16 %v107
    %v534 = vunpack.c.h.b16 %v107
    %v535 = vunpack.c.l.b16 %v108
    %v536 = vunpack.c.h.b16 %v108
    %v537 = vunpack.c.l.b16 %v109
    %v538 = vunpack.c.h.b16 %v109
    %v539 = vunpack.c.l.b16 %v110
    %v540 = vunpack.c.h.b16 %v110
    %v541 = vunpack.c.l.b16 %v111
    %v542 = vunpack.c.h.b16 %v111
    %v543 = vunpack.c.l.b16 %v112
    %v544 = vunpack.c.h.b16 %v112
    %v545 = vunpack.c.l.b16 %v113
    %v546 = vunpack.c.h.b16 %v113
    %v547 = vunpack.c.l.b16 %v114
    %v548 = vunpack.c.h.b16 %v114
    %v549 = vunpack.c.l.b16 %v115
    %v550 = vunpack.c.h.b16 %v115
    %v551 = vunpack.c.l.b16 %v116
    %v552 = vunpack.c.h.b16 %v116
    %v553 = vunpack.c.l.b16 %v117
    %v554 = vunpack.c.h.b16 %v117
    %v555 = vunpack.c.l.b16 %v118
    %v556 = vunpack.c.h.b16 %v118
    %v557 = vunpack.c.l.b16 %v119
    %v558 = vunpack.c.h.b16 %v119
    %v559 = vunpack.c.l.b16 %v120
    %v560 = vunpack.c.h.b16 %v120
    %v561 = vunpack.c.l.b16 %v121
    %v562 = vunpack.c.h.b16 %v121
    %v563 = vunpack.c.l.b16 %v122
    %v564 = vunpack.c.h.b16 %v122
    %v565 = vunpack.c.l.b16 %v123
    %v566 = vunpack.c.h.b16 %v123
    %v567 = vunpack.c.l.b16 %v124
    %v568 = vunpack.c.h.b16 %v124
    %v569 = vunpack.c.l.b16 %v125
    %v570 = vunpack.c.h.b16 %v125
    %v571 = vunpack.c.l.b16 %v126
    %v572 = vunpack.c.h.b16 %v126
    %v573 = vunpack.c.l.b16 %v127
    %v574 = vunpack.c.h.b16 %v127
    %v575 = vunpack.c.l.b16 %v128
    %v576 = vunpack.c.h.b16 %v128
    %v577 = vunpack.c.l.b16 %v129
    %v578 = vunpack.c.h.b16 %v129
    %v579 = vunpack.c.l.b16 %v130
    %v580 = vunpack.c.h.b16 %v130
    %v581 = vunpack.c.l.b16 %v131
    %v582 = vunpack.c.h.b16 %v131
    %v583 = vunpack.c.l.b16 %v132
    %v584 = vunpack.c.h.b16 %v132
    %v585 = vunpack.c.l.b16 %v133
    %v586 = vunpack.c.h.b16 %v133
    %v587 = vunpack.c.l.b16 %v134
    %v588 = vunpack.c.h.b16 %v134
    %v589 = vunpack.c.l.b16 %v135
    %v590 = vunpack.c.h.b16 %v135
    %v591 = vunpack.c.l.b16 %v136
    %v592 = vunpack.c.h.b16 %v136
    %v593 = vunpack.c.l.b16 %v137
    %v594 = vunpack.c.h.b16 %v137
    %v595 = vunpack.c.l.b16 %v138
    %v596 = vunpack.c.h.b16 %v138
    %v597 = vunpack.c.l.b16 %v139
    %v598 = vunpack.c.h.b16 %v139
    %v599 = vunpack.c.l.b16 %v140
    %v600 = vunpack.c.h.b16 %v140
    %v601 = vunpack.c.l.b16 %v141
    %v602 = vunpack.c.h.b16 %v141
    %v603 = vunpack.c.l.b16 %v142
    %v604 = vunpack.c.h.b16 %v142
    %v605 = vunpack.c.l.b16 %v143
    %v606 = vunpack.c.h.b16 %v143
    %v607 = vunpack.c.l.b16 %v144
    %v608 = vunpack.c.h.b16 %v144
    %v609 = vunpack.c.l.b16 %v145
    %v610 = vunpack.c.h.b16 %v145
    %v611 = vunpack.c.l.b16 %v146
    %v612 = vunpack.c.h.b16 %v146
    %v613 = vunpack.c.l.b16 %v147
    %v614 = vunpack.c.h.b16 %v147
    %v615 = vunpack.c.l.b16 %v148
    %v616 = vunpack.c.h.b16 %v148
    %v617 = vunpack.c.l.b16 %v149
    %v618 = vunpack.c.h.b16 %v149
    %v619 = vunpack.c.l.b16 %v150
    %v620 = vunpack.c.h.b16 %v150
    %v621 = vunpack.c.l.b16 %v151
    %v622 = vunpack.c.h.b16 %v151
    %v623 = vunpack.c.l.b16 %v152
    %v624 = vunpack.c.h.b16 %v152
    %v625 = vunpack.c.l.b16 %v153
    %v626 = vunpack.c.h.b16 %v153
    %v627 = vunpack.c.l.b16 %v154
    %v628 = vunpack.c.h.b16 %v154
    %v629 = vunpack.c.l.b16 %v155
    %v630 = vunpack.c.h.b16 %v155
    %v631 = vunpack.c.l.b16 %v156
    %v632 = vunpack.c.h.b16 %v156
    %v633 = vunpack.c.l.b16 %v157
    %v634 = vunpack.c.h.b16 %v157
    %v635 = vunpack.c.l.b16 %v158
    %v636 = vunpack.c.h.b16 %v158
    %v637 = vunpack.c.l.b16 %v159
    %v638 = vunpack.c.h.b16 %v159
    %v639 = vunpack.c.l.b16 %v160
    %v640 = vunpack.c.h.b16 %v160
    %v641 = vunpack.c.l.b16 %v161
    %v642 = vunpack.c.h.b16 %v161
    %v643 = vunpack.c.l.b16 %v162
    %v644 = vunpack.c.h.b16 %v162
    %v645 = vunpack.c.l.b16 %v163
    %v646 = vunpack.c.h.b16 %v163
    %v647 = vunpack.c.l.b16 %v164
    %v648 = vunpack.c.h.b16 %v164
    %v649 = vunpack.c.l.b16 %v165
    %v650 = vunpack.c.h.b16 %v165
    %v651 = vunpack.c.l.b16 %v166
    %v652 = vunpack.c.h.b16 %v166
    %v653 = vunpack.c.l.b16 %v167
    %v654 = vunpack.c.h.b16 %v167
    %v655 = vunpack.c.l.b16 %v168
    %v656 = vunpack.c.h.b16 %v168
    %v657 = vunpack.c.l.b16 %v169
    %v658 = vunpack.c.h.b16 %v169
    %v659 = vunpack.c.l.b16 %v170
    %v660 = vunpack.c.h.b16 %v170
    %v661 = vunpack.c.l.b16 %v171
    %v662 = vunpack.c.h.b16 %v171
    %v663 = vunpack.c.l.b16 %v172
    %v664 = vunpack.c.h.b16 %v172
    %v665 = vunpack.c.l.b16 %v173
    %v666 = vunpack.c.h.b16 %v173
    %v667 = vunpack.c.l.b16 %v174
    %v668 = vunpack.c.h.b16 %v174
    %v669 = vunpack.c.l.b16 %v175
    %v670 = vunpack.c.h.b16 %v175
    %v671 = vunpack.c.l.b16 %v176
    %v672 = vunpack.c.h.b16 %v176
    %v673 = vunpack.c.l.b16 %v177
    %v674 = vunpack.c.h.b16 %v177
    %v675 = vunpack.c.l.b16 %v178
    %v676 = vunpack.c.h.b16 %v178
    %v677 = vunpack.c.l.b16 %v179
    %v678 = vunpack.c.h.b16 %v179
    %v679 = vunpack.c.l.b16 %v180
    %v680 = vunpack.c.h.b16 %v180
    %v681 = vunpack.c.l.b16 %v181
    %v682 = vunpack.c.h.b16 %v181
    %v683 = vunpack.c.l.b16 %v182
    %v684 = vunpack.c.h.b16 %v182
    %v685 = vunpack.c.l.b16 %v183
    %v686 = vunpack.c.h.b16 %v183
    %v687 = vunpack.c.l.b16 %v184
    %v688 = vunpack.c.h.b16 %v184
    %v689 = vunpack.c.l.b16 %v185
    %v690 = vunpack.c.h.b16 %v185
    %v691 = vunpack.c.l.b16 %v186
    %v692 = vunpack.c.h.b16 %v186
    %v693 = vunpack.c.l.b16 %v187
    %v694 = vunpack.c.h.b16 %v187
    %v695 = vunpack.c.l.b16 %v188
    %v696 = vunpack.c.h.b16 %v188
    %v697 = vunpack.c.l.b16 %v189
    %v698 = vunpack.c.h.b16 %v189
    %v699 = vunpack.c.l.b16 %v190
    %v700 = vunpack.c.h.b16 %v190
    %v701 = vunpack.c.l.b16 %v191
    %v702 = vunpack.c.h.b16 %v191
    %v703 = vunpack.c.l.b16 %v192
    %v704 = vunpack.c.h.b16 %v192
    %v705 = vunpack.c.l.b16 %v193
    %v706 = vunpack.c.h.b16 %v193
    %v707 = vunpack.c.l.b16 %v194
    %v708 = vunpack.c.h.b16 %v194
    %v709 = vunpack.c.l.b16 %v195
    %v710 = vunpack.c.h.b16 %v195
    %v711 = vunpack.c.l.b16 %v196
    %v712 = vunpack.c.h.b16 %v196
    %v713 = vunpack.c.l.b16 %v197
    %v714 = vunpack.c.h.b16 %v197
    %v715 = vunpack.c.l.b16 %v198
    %v716 = vunpack.c.h.b16 %v198
    %v717 = vunpack.c.l.b16 %v199
    %v718 = vunpack.c.h.b16 %v199
    %v719 = vunpack.c.l.b16 %v200
    %v720 = vunpack.c.h.b16 %v200
    %v721 = vunpack.c.l.b16 %v201
    %v722 = vunpack.c.h.b16 %v201
    %v723 = vunpack.c.l.b16 %v202
    %v724 = vunpack.c.h.b16 %v202
    %v725 = vunpack.c.l.b16 %v203
    %v726 = vunpack.c.h.b16 %v203
    %v727 = vunpack.c.l.b16 %v204
    %v728 = vunpack.c.h.b16 %v204
    %v729 = vpack.c.b16 %v443, %v441
    %v730 = vpack.c.b16 %v444, %v442
    %v731 = vpack.c.b16 %v447, %v445
    %v732 = vpack.c.b16 %v448, %v446
    %v733 = vpack.c.b16 %v451, %v449
    %v734 = vpack.c.b16 %v452, %v450
    %v735 = vpack.c.b16 %v455, %v453
    %v736 = vpack.c.b16 %v456, %v454
    %v737 = vpack.c.b16 %v459, %v457
    %v738 = vpack.c.b16 %v460, %v458
    %v739 = vpack.c.b16 %v463, %v461
    %v740 = vpack.c.b16 %v464, %v462
    %v741 = vpack.c.b16 %v467, %v465
    %v742 = vpack.c.b16 %v468, %v466
    %v743 = vpack.c.b16 %v471, %v469
    %v744 = vpack.c.b16 %v472, %v470
    %v745 = vpack.c.b16 %v475, %v473
    %v746 = vpack.c.b16 %v476, %v474
    %v747 = vpack.c.b16 %v479, %v477
    %v748 = vpack.c.b16 %v480, %v478
    %v749 = vpack.c.b16 %v483, %v481
    %v750 = vpack.c.b16 %v484, %v482
    %v751 = vpack.c.b16 %v487, %v485
    %v752 = vpack.c.b16 %v488, %v486
    %v753 = vpack.c.b16 %v491, %v489
    %v754 = vpack.c.b16 %v492, %v490
    %v755 = vpack.c.b16 %v495, %v493
    %v756 = vpack.c.b16 %v496, %v494
    %v757 = vpack.c.b16 %v499, %v497
    %v758 = vpack.c.b16 %v500, %v498
    %v759 = vpack.c.b16 %v503, %v501
    %v760 = vpack.c.b16 %v504, %v502
    %v761 = vpack.c.b16 %v507, %v505
    %v762 = vpack.c.b16 %v508, %v506
    %v763 = vpack.c.b16 %v511, %v509
    %v764 = vpack.c.b16 %v512, %v510
    %v765 = vpack.c.b16 %v515, %v513
    %v766 = vpack.c.b16 %v516, %v514
    %v767 = vpack.c.b16 %v519, %v517
    %v768 = vpack.c.b16 %v520, %v518
    %v769 = vpack.c.b16 %v523, %v521
    %v770 = vpack.c.b16 %v524, %v522
    %v771 = vpack.c.b16 %v527, %v525
    %v772 = vpack.c.b16 %v528, %v526
    %v773 = vpack.c.b16 %v531, %v529
    %v774 = vpack.c.b16 %v532, %v530
    %v775 = vpack.c.b16 %v535, %v533
    %v776 = vpack.c.b16 %v536, %v534
    %v777 = vpack.c.b16 %v539, %v537
    %v778 = vpack.c.b16 %v540, %v538
    %v779 = vpack.c.b16 %v543, %v541
    %v780 = vpack.c.b16 %v544, %v542
    %v781 = vpack.c.b16 %v547, %v545
    %v782 = vpack.c.b16 %v548, %v546
    %v783 = vpack.c.b16 %v551, %v549
    %v784 = vpack.c.b16 %v552, %v550
    %v785 = vpack.c.b16 %v555, %v553
    %v786 = vpack.c.b16 %v556, %v554
    %v787 = vpack.c.b16 %v559, %v557
    %v788 = vpack.c.b16 %v560, %v558
    %v789 = vpack.c.b16 %v563, %v561
    %v790 = vpack.c.b16 %v564, %v562
    %v791 = vpack.c.b16 %v567, %v565
    %v792 = vpack.c.b16 %v568, %v566
    %v793 = vpack.c.b16 %v571, %v569
    %v794 = vpack.c.b16 %v572, %v570
    %v795 = vpack.c.b16 %v575, %v573
    %v796 = vpack.c.b16 %v576, %v574
    %v797 = vpack.c.b16 %v579, %v577
    %v798 = vpack.c.b16 %v580, %v578
    %v799 = vpack.c.b16 %v583, %v581
    %v800 = vpack.c.b16 %v584, %v582
    %v801 = vpack.c.b16 %v587, %v585
    %v802 = vpack.c.b16 %v588, %v586
    %v803 = vpack.c.b16 %v591, %v589
    %v804 = vpack.c.b16 %v592, %v590
    %v805 = vpack.c.b16 %v595, %v593
    %v806 = vpack.c.b16 %v596, %v594
    %v807 = vpack.c.b16 %v599, %v597
    %v808 = vpack.c.b16 %v600, %v598
    %v809 = vpack.c.b16 %v603, %v601
    %v810 = vpack.c.b16 %v604, %v602
    %v811 = vpack.c.b16 %v607, %v605
    %v812 = vpack.c.b16 %v608, %v606
    %v813 = vpack.c.b16 %v611, %v609
    %v814 = vpack.c.b16 %v612, %v610
    %v815 = vpack.c.b16 %v615, %v613
    %v816 = vpack.c.b16 %v616, %v614
    %v817 = vpack.c.b16 %v619, %v617
    %v818 = vpack.c.b16 %v620, %v618
    %v819 = vpack.c.b16 %v623, %v621
    %v820 = vpack.c.b16 %v624, %v622
    %v821 = vpack.c.b16 %v627, %v625
    %v822 = vpack.c.b16 %v628, %v626
    %v823 = vpack.c.b16 %v631, %v629
    %v824 = vpack.c.b16 %v632, %v630
    %v825 = vpack.c.b16 %v635, %v633
    %v826 = vpack.c.b16 %v636, %v634
    %v827 = vpack.c.b16 %v639, %v637
    %v828 = vpack.c.b16 %v640, %v638
    %v829 = vpack.c.b16 %v643, %v641
    %v830 = vpack.c.b16 %v644, %v642
    %v831 = vpack.c.b16 %v647, %v645
    %v832 = vpack.c.b16 %v648, %v646
    %v833 = vpack.c.b16 %v651, %v649
    %v834 = vpack.c.b16 %v652, %v650
    %v835 = vpack.c.b16 %v655, %v653
    %v836 = vpack.c.b16 %v656, %v654
    %v837 = vpack.c.b16 %v659, %v657
    %v838 = vpack.c.b16 %v660, %v658
    %v839 = vpack.c.b16 %v663, %v661
    %v840 = vpack.c.b16 %v664, %v662
    %v841 = vpack.c.b16 %v667, %v665
    %v842 = vpack.c.b16 %v668, %v666
    %v843 = vpack.c.b16 %v671, %v669
    %v844 = vpack.c.b16 %v672, %v670
    %v845 = vpack.c.b16 %v675, %v673
    %v846 = vpack.c.b16 %v676, %v674
    %v847 = vpack.c.b16 %v679, %v677
    %v848 = vpack.c.b16 %v680, %v678
    %v849 = vpack.c.b16 %v683, %v681
    %v850 = vpack.c.b16 %v684, %v682
    %v851 = vpack.c.b16 %v687, %v685
    %v852 = vpack.c.b16 %v688, %v686
    %v853 = vpack.c.b16 %v691, %v689
    %v854 = vpack.c.b16 %v692, %v690
    %v855 = vpack.c.b16 %v695, %v693
    %v856 = vpack.c.b16 %v696, %v694
    %v857 = vpack.c.b16 %v699, %v697
    %v858 = vpack.c.b16 %v700, %v698
    %v859 = vpack.c.b16 %v703, %v701
    %v860 = vpack.c.b16 %v704, %v702
    %v861 = vpack.c.b16 %v707, %v705
    %v862 = vpack.c.b16 %v708, %v706
    %v863 = vpack.c.b16 %v711, %v709
    %v864 = vpack.c.b16 %v712, %v710
    %v865 = vpack.c.b16 %v715, %v713
    %v866 = vpack.c.b16 %v716, %v714
    %v867 = vpack.c.b16 %v719, %v717
    %v868 = vpack.c.b16 %v720, %v718
    %v869 = vpack.c.b16 %v723, %v721
    %v870 = vpack.c.b16 %v724, %v722
    %v871 = vpack.c.b16 %v727, %v725
    %v872 = vpack.c.b16 %v728, %v726
    %1017 = vmatprep.subr.bf16.mxu0 %v730
    %1018 = vmatpush1.bf16.msra.mxu0 %v729
    %1019 = vmatprep.subr.bf16.mxu0 %v732
    %1020 = vmatpush1.bf16.msra.mxu0 %v731
    %1021 = vmatprep.subr.bf16.mxu0 %v734
    %1022 = vmatpush1.bf16.msra.mxu0 %v733
    %1023 = vmatprep.subr.bf16.mxu0 %v736
    %1024 = vmatpush1.bf16.msra.mxu0 %v735
    %1025 = vmatprep.subr.bf16.mxu0 %v738
    %1026 = vmatpush1.bf16.msra.mxu0 %v737
    %1027 = vmatprep.subr.bf16.mxu0 %v740
    %1028 = vmatpush1.bf16.msra.mxu0 %v739
    %1029 = vmatprep.subr.bf16.mxu0 %v742
    %1030 = vmatpush1.bf16.msra.mxu0 %v741
    %1031 = vmatprep.subr.bf16.mxu0 %v744
    %1032 = vmatpush1.bf16.msra.mxu0 %v743
    %1033 = vmatprep.subr.bf16.mxu0 %v746
    %1034 = vmatpush1.bf16.msra.mxu0 %v745
    %1035 = vmatprep.subr.bf16.mxu0 %v748
    %1036 = vmatpush1.bf16.msra.mxu0 %v747
    %1037 = vmatprep.subr.bf16.mxu0 %v750
    %1038 = vmatpush1.bf16.msra.mxu0 %v749
    %1039 = vmatprep.subr.bf16.mxu0 %v752
    %1040 = vmatpush1.bf16.msra.mxu0 %v751
    %1041 = vmatprep.subr.bf16.mxu0 %v754
    %1042 = vmatpush1.bf16.msra.mxu0 %v753
    %1043 = vmatprep.subr.bf16.mxu0 %v756
    %1044 = vmatpush1.bf16.msra.mxu0 %v755
    %1045 = vmatprep.subr.bf16.mxu0 %v758
    %1046 = vmatpush1.bf16.msra.mxu0 %v757
    %1047 = vmatprep.subr.bf16.mxu0 %v760
    %1048 = vmatpush1.bf16.msra.mxu0 %v759
    %1049 = vmatprep.mubr.bf16.mxu0 %v262
    %1050 = vmatmul.mubr.bf16.gmra.mrb[0].mxu0 %v261
    %v1051 = vpop.f32.mrb[0].mxu0
    %v1052 = vadd.f32 0.0, %v1051
    %v1053 = vpop.f32.mrb[0].mxu0
    %v1054 = vadd.f32 0.0, %v1053
    %v1055 = vpop.f32.mrb[0].mxu0
    %v1056 = vadd.f32 0.0, %v1055
    %v1057 = vpop.f32.mrb[0].mxu0
    %v1058 = vadd.f32 0.0, %v1057
    %1059 = vmatprep.mubr.bf16.mxu0 %v271
    %1060 = vmatmul.mubr.bf16.gmra.mrb[0].mxu0 %v270
    %v1061 = vpop.f32.mrb[0].mxu0
    %v1062 = vadd.f32 0.0, %v1061
    %v1063 = vpop.f32.mrb[0].mxu0
    %v1064 = vadd.f32 0.0, %v1063
    %v1065 = vpop.f32.mrb[0].mxu0
    %v1066 = vadd.f32 0.0, %v1065
    %v1067 = vpop.f32.mrb[0].mxu0
    %v1068 = vadd.f32 0.0, %v1067
    %1069 = vdwg.mxu0
    %1070 = vmatprep.subr.bf16.mxu0 %v762
    %1071 = vmatpush1.bf16.msra.mxu0 %v761
    %1072 = vmatprep.subr.bf16.mxu0 %v764
    %1073 = vmatpush1.bf16.msra.mxu0 %v763
    %1074 = vmatprep.subr.bf16.mxu0 %v766
    %1075 = vmatpush1.bf16.msra.mxu0 %v765
    %1076 = vmatprep.subr.bf16.mxu0 %v768
    %1077 = vmatpush1.bf16.msra.mxu0 %v767
    %1078 = vmatprep.subr.bf16.mxu0 %v770
    %1079 = vmatpush1.bf16.msra.mxu0 %v769
    %1080 = vmatprep.subr.bf16.mxu0 %v772
    %1081 = vmatpush1.bf16.msra.mxu0 %v771
    %1082 = vmatprep.subr.bf16.mxu0 %v774
    %1083 = vmatpush1.bf16.msra.mxu0 %v773
    %1084 = vmatprep.subr.bf16.mxu0 %v776
    %1085 = vmatpush1.bf16.msra.mxu0 %v775
    %1086 = vmatprep.subr.bf16.mxu0 %v778
    %1087 = vmatpush1.bf16.msra.mxu0 %v777
    %1088 = vmatprep.subr.bf16.mxu0 %v780
    %1089 = vmatpush1.bf16.msra.mxu0 %v779
    %1090 = vmatprep.subr.bf16.mxu0 %v782
    %1091 = vmatpush1.bf16.msra.mxu0 %v781
    %1092 = vmatprep.subr.bf16.mxu0 %v784
    %1093 = vmatpush1.bf16.msra.mxu0 %v783
    %1094 = vmatprep.subr.bf16.mxu0 %v786
    %1095 = vmatpush1.bf16.msra.mxu0 %v785
    %1096 = vmatprep.subr.bf16.mxu0 %v788
    %1097 = vmatpush1.bf16.msra.mxu0 %v787
    %1098 = vmatprep.subr.bf16.mxu0 %v790
    %1099 = vmatpush1.bf16.msra.mxu0 %v789
    %1100 = vmatprep.subr.bf16.mxu0 %v792
    %1101 = vmatpush1.bf16.msra.mxu0 %v791
    %1102 = vmatprep.mubr.bf16.mxu0 %v264
    %1103 = vmatmul.mubr.bf16.gmra.mrb[0].mxu0 %v263
    %v1104 = vpop.f32.mrb[0].mxu0
    %v1105 = vadd.f32 %v1052, %v1104
    %v1106 = vpop.f32.mrb[0].mxu0
    %v1107 = vadd.f32 %v1054, %v1106
    %v1108 = vpop.f32.mrb[0].mxu0
    %v1109 = vadd.f32 %v1056, %v1108
    %v1110 = vpop.f32.mrb[0].mxu0
    %v1111 = vadd.f32 %v1058, %v1110
    %1112 = vmatprep.mubr.bf16.mxu0 %v273
    %1113 = vmatmul.mubr.bf16.gmra.mrb[0].mxu0 %v272
    %v1114 = vpop.f32.mrb[0].mxu0
    %v1115 = vadd.f32 %v1062, %v1114
    %v1116 = vpop.f32.mrb[0].mxu0
    %v1117 = vadd.f32 %v1064, %v1116
    %v1118 = vpop.f32.mrb[0].mxu0
    %v1119 = vadd.f32 %v1066, %v1118
    %v1120 = vpop.f32.mrb[0].mxu0
    %v1121 = vadd.f32 %v1068, %v1120
    %1122 = vdwg.mxu0
    %1123 = vmatprep.subr.bf16.mxu0 %v794
    %1124 = vmatpush1.bf16.msra.mxu0 %v793
    %1125 = vmatprep.subr.bf16.mxu0 %v796
    %1126 = vmatpush1.bf16.msra.mxu0 %v795
    %1127 = vmatprep.subr.bf16.mxu0 %v798
    %1128 = vmatpush1.bf16.msra.mxu0 %v797
    %1129 = vmatprep.subr.bf16.mxu0 %v800
    %1130 = vmatpush1.bf16.msra.mxu0 %v799
    %1131 = vmatprep.subr.bf16.mxu0 %v802
    %1132 = vmatpush1.bf16.msra.mxu0 %v801
    %1133 = vmatprep.subr.bf16.mxu0 %v804
    %1134 = vmatpush1.bf16.msra.mxu0 %v803
    %1135 = vmatprep.subr.bf16.mxu0 %v806
    %1136 = vmatpush1.bf16.msra.mxu0 %v805
    %1137 = vmatprep.subr.bf16.mxu0 %v808
    %1138 = vmatpush1.bf16.msra.mxu0 %v807
    %1139 = vmatprep.subr.bf16.mxu0 %v810
    %1140 = vmatpush1.bf16.msra.mxu0 %v809
    %1141 = vmatprep.subr.bf16.mxu0 %v812
    %1142 = vmatpush1.bf16.msra.mxu0 %v811
    %1143 = vmatprep.subr.bf16.mxu0 %v814
    %1144 = vmatpush1.bf16.msra.mxu0 %v813
    %1145 = vmatprep.subr.bf16.mxu0 %v816
    %1146 = vmatpush1.bf16.msra.mxu0 %v815
    %1147 = vmatprep.subr.bf16.mxu0 %v818
    %1148 = vmatpush1.bf16.msra.mxu0 %v817
    %1149 = vmatprep.subr.bf16.mxu0 %v820
    %1150 = vmatpush1.bf16.msra.mxu0 %v819
    %1151 = vmatprep.subr.bf16.mxu0 %v822
    %1152 = vmatpush1.bf16.msra.mxu0 %v821
    %1153 = vmatprep.subr.bf16.mxu0 %v824
    %1154 = vmatpush1.bf16.msra.mxu0 %v823
    %1155 = vmatprep.mubr.bf16.mxu0 %v266
    %1156 = vmatmul.mubr.bf16.gmra.mrb[0].mxu0 %v265
    %v1157 = vpop.f32.mrb[0].mxu0
    %v1158 = vadd.f32 %v1105, %v1157
    %v1159 = vpop.f32.mrb[0].mxu0
    %v1160 = vadd.f32 %v1107, %v1159
    %v1161 = vpop.f32.mrb[0].mxu0
    %v1162 = vadd.f32 %v1109, %v1161
    %v1163 = vpop.f32.mrb[0].mxu0
    %v1164 = vadd.f32 %v1111, %v1163
    %1165 = vmatprep.mubr.bf16.mxu0 %v275
    %1166 = vmatmul.mubr.bf16.gmra.mrb[0].mxu0 %v274
    %v1167 = vpop.f32.mrb[0].mxu0
    %v1168 = vadd.f32 %v1115, %v1167
    %v1169 = vpop.f32.mrb[0].mxu0
    %v1170 = vadd.f32 %v1117, %v1169
    %v1171 = vpop.f32.mrb[0].mxu0
    %v1172 = vadd.f32 %v1119, %v1171
    %v1173 = vpop.f32.mrb[0].mxu0
    %v1174 = vadd.f32 %v1121, %v1173
    %1175 = vdwg.mxu0
    %1176 = vmatprep.subr.bf16.mxu0 %v826
    %1177 = vmatpush1.bf16.msra.mxu0 %v825
    %1178 = vmatprep.subr.bf16.mxu0 %v828
    %1179 = vmatpush1.bf16.msra.mxu0 %v827
    %1180 = vmatprep.subr.bf16.mxu0 %v830
    %1181 = vmatpush1.bf16.msra.mxu0 %v829
    %1182 = vmatprep.subr.bf16.mxu0 %v832
    %1183 = vmatpush1.bf16.msra.mxu0 %v831
    %1184 = vmatprep.subr.bf16.mxu0 %v834
    %1185 = vmatpush1.bf16.msra.mxu0 %v833
    %1186 = vmatprep.subr.bf16.mxu0 %v836
    %1187 = vmatpush1.bf16.msra.mxu0 %v835
    %1188 = vmatprep.subr.bf16.mxu0 %v838
    %1189 = vmatpush1.bf16.msra.mxu0 %v837
    %1190 = vmatprep.subr.bf16.mxu0 %v840
    %1191 = vmatpush1.bf16.msra.mxu0 %v839
    %1192 = vmatprep.subr.bf16.mxu0 %v842
    %1193 = vmatpush1.bf16.msra.mxu0 %v841
    %1194 = vmatprep.subr.bf16.mxu0 %v844
    %1195 = vmatpush1.bf16.msra.mxu0 %v843
    %1196 = vmatprep.subr.bf16.mxu0 %v846
    %1197 = vmatpush1.bf16.msra.mxu0 %v845
    %1198 = vmatprep.subr.bf16.mxu0 %v848
    %1199 = vmatpush1.bf16.msra.mxu0 %v847
    %1200 = vmatprep.subr.bf16.mxu0 %v850
    %1201 = vmatpush1.bf16.msra.mxu0 %v849
    %1202 = vmatprep.subr.bf16.mxu0 %v852
    %1203 = vmatpush1.bf16.msra.mxu0 %v851
    %1204 = vmatprep.subr.bf16.mxu0 %v854
    %1205 = vmatpush1.bf16.msra.mxu0 %v853
    %1206 = vmatprep.subr.bf16.mxu0 %v856
    %1207 = vmatpush1.bf16.msra.mxu0 %v855
    %1208 = vmatprep.mubr.bf16.mxu0 %v268
    %1209 = vmatmul.mubr.bf16.gmra.mrb[0].mxu0 %v267
    %v1210 = vpop.f32.mrb[0].mxu0
    %v1211 = vadd.f32 %v1158, %v1210
    %v1212 = vpop.f32.mrb[0].mxu0
    %v1213 = vadd.f32 %v1160, %v1212
    %v1214 = vpop.f32.mrb[0].mxu0
    %v1215 = vadd.f32 %v1162, %v1214
    %v1216 = vpop.f32.mrb[0].mxu0
    %v1217 = vadd.f32 %v1164, %v1216
    %1218 = vmatprep.mubr.bf16.mxu0 %v277
    %1219 = vmatmul.mubr.bf16.gmra.mrb[0].mxu0 %v276
    %v1220 = vpop.f32.mrb[0].mxu0
    %v1221 = vadd.f32 %v1168, %v1220
    %v1222 = vpop.f32.mrb[0].mxu0
    %v1223 = vadd.f32 %v1170, %v1222
    %v1224 = vpop.f32.mrb[0].mxu0
    %v1225 = vadd.f32 %v1172, %v1224
    %v1226 = vpop.f32.mrb[0].mxu0
    %v1227 = vadd.f32 %v1174, %v1226
    %1228 = vdwg.mxu0
    %1229 = vmatprep.subr.bf16.mxu0 %v858
    %1230 = vmatpush1.bf16.msra.mxu0 %v857
    %1231 = vmatprep.subr.bf16.mxu0 %v860
    %1232 = vmatpush1.bf16.msra.mxu0 %v859
    %1233 = vmatprep.subr.bf16.mxu0 %v862
    %1234 = vmatpush1.bf16.msra.mxu0 %v861
    %1235 = vmatprep.subr.bf16.mxu0 %v864
    %1236 = vmatpush1.bf16.msra.mxu0 %v863
    %1237 = vmatprep.subr.bf16.mxu0 %v866
    %1238 = vmatpush1.bf16.msra.mxu0 %v865
    %1239 = vmatprep.subr.bf16.mxu0 %v868
    %1240 = vmatpush1.bf16.msra.mxu0 %v867
    %1241 = vmatprep.subr.bf16.mxu0 %v870
    %1242 = vmatpush1.bf16.msra.mxu0 %v869
    %1243 = vmatprep.subr.bf16.mxu0 %v872
    %1244 = vmatpush1.bf16.msra.mxu0 %v871
    %1245 = vmatprep.subr.bf16.mxu0 0
    %1246 = vmatpush1.bf16.msra.mxu0 0
    %1247 = vmatprep.subr.bf16.mxu0 0
    %1248 = vmatpush1.bf16.msra.mxu0 0
    %1249 = vmatprep.subr.bf16.mxu0 0
    %1250 = vmatpush1.bf16.msra.mxu0 0
    %1251 = vmatprep.subr.bf16.mxu0 0
    %1252 = vmatpush1.bf16.msra.mxu0 0
    %1253 = vmatprep.subr.bf16.mxu0 0
    %1254 = vmatpush1.bf16.msra.mxu0 0
    %1255 = vmatprep.subr.bf16.mxu0 0
    %1256 = vmatpush1.bf16.msra.mxu0 0
    %1257 = vmatprep.subr.bf16.mxu0 0
    %1258 = vmatpush1.bf16.msra.mxu0 0
    %1259 = vmatprep.subr.bf16.mxu0 0
    %1260 = vmatpush1.bf16.msra.mxu0 0
    %1261 = vmatprep.mubr.bf16.mxu0 0
    %1262 = vmatmul.mubr.bf16.gmra.mrb[0].mxu0 %v269
    %v1263 = vpop.f32.mrb[0].mxu0
    %v1264 = vadd.f32 %v1211, %v1263
    %v1265 = vpop.f32.mrb[0].mxu0
    %v1266 = vadd.f32 %v1213, %v1265
    %v1267 = vpop.f32.mrb[0].mxu0
    %v1268 = vadd.f32 %v1215, %v1267
    %v1269 = vpop.f32.mrb[0].mxu0
    %v1270 = vadd.f32 %v1217, %v1269
    %1271 = vmatprep.mubr.bf16.mxu0 0
    %1272 = vmatmul.mubr.bf16.gmra.mrb[0].mxu0 %v278
    %v1273 = vpop.f32.mrb[0].mxu0
    %v1274 = vadd.f32 %v1221, %v1273
    %v1275 = vpop.f32.mrb[0].mxu0
    %v1276 = vadd.f32 %v1223, %v1275
    %v1277 = vpop.f32.mrb[0].mxu0
    %v1278 = vadd.f32 %v1225, %v1277
    %v1279 = vpop.f32.mrb[0].mxu0
    %v1280 = vadd.f32 %v1227, %v1279
    %1281 = vdwg.mxu0
    %v1282 = vld [vmem:[#allocation4] ss:$2 sm:$0x3]
    %v1284 = vlaneseq
    %v1285 = vshrl.u32 %v1284, 7
    %v1286 = vsub.s32 0, %v1285
    %v1287 = vrot.slane %v1282, %v1286
    %v1288 = vlaneseq
    %v1289 = vshrl.u32 %v1288, 7
    %v1290 = vsub.s32 1, %v1289
    %v1291 = vrot.slane %v1282, %v1290
    %v1294 = vmul.f32 %v1264, %v1287
    %v1295 = vmul.f32 %v1266, %v1291
    %v1296 = vmul.f32 %v1268, %v1287
    %v1297 = vmul.f32 %v1270, %v1291
    %v1298 = vmul.f32 %v1274, %v1287
    %v1299 = vmul.f32 %v1276, %v1291
    %v1300 = vmul.f32 %v1278, %v1287
    %v1301 = vmul.f32 %v1280, %v1291
    %s1302 = scalar_lea.vmem [#allocation4], 1
    %v1303 = vld [vmem:[%s1302] ss:$2 sm:$0x3]
    %v1305 = vlaneseq
    %v1306 = vshrl.u32 %v1305, 7
    %v1307 = vsub.s32 0, %v1306
    %v1308 = vrot.slane %v1303, %v1307
    %v1309 = vlaneseq
    %v1310 = vshrl.u32 %v1309, 7
    %v1311 = vsub.s32 1, %v1310
    %v1312 = vrot.slane %v1303, %v1311
    %v1315 = vadd.f32 %v1294, %v1308
    %v1316 = vadd.f32 %v1295, %v1312
    %v1317 = vadd.f32 %v1296, %v1308
    %v1318 = vadd.f32 %v1297, %v1312
    %v1319 = vadd.f32 %v1298, %v1308
    %v1320 = vadd.f32 %v1299, %v1312
    %v1321 = vadd.f32 %v1300, %v1308
    %v1322 = vadd.f32 %v1301, %v1312
    %v1323 = vmax.f32 %v1315, 0.0
    %v1324 = vmax.f32 %v1316, 0.0
    %v1325 = vmax.f32 %v1317, 0.0
    %v1326 = vmax.f32 %v1318, 0.0
    %v1327 = vmax.f32 %v1319, 0.0
    %v1328 = vmax.f32 %v1320, 0.0
    %v1329 = vmax.f32 %v1321, 0.0
    %v1330 = vmax.f32 %v1322, 0.0
    %v1331 = vpack.c.bf16 %v1325, %v1323
    %v1332 = vpack.c.bf16 %v1326, %v1324
    %v1333 = vpack.c.bf16 %v1329, %v1327
    %v1334 = vpack.c.bf16 %v1330, %v1328
    %v1339 = vunpack.c.l.b16 %v1331
    %v1340 = vunpack.c.l.b16 %v1332
    %v1341 = vunpack.c.h.b16 %v1331
    %v1342 = vunpack.c.h.b16 %v1332
    %v1343 = vunpack.c.l.b16 %v1333
    %v1344 = vunpack.c.l.b16 %v1334
    %v1345 = vunpack.c.h.b16 %v1333
    %v1346 = vunpack.c.h.b16 %v1334
    %v1347 = vpack.c.b16 %v1340, %v1339
    %v1348 = vpack.c.b16 %v1342, %v1341
    %v1349 = vpack.c.b16 %v1344, %v1343
    %v1350 = vpack.c.b16 %v1346, %v1345
    %1355 = vst [vmem:[%s3] sm:$0xff] %v1347
    %1356 = vst [vmem:[%s3 + $0x8] sm:$0xff] %v1348
    %1357 = vst [vmem:[%s3 + $0x10] sm:$0xff] %v1349
    %1358 = vst [vmem:[%s3 + $0x18] sm:$0xff] %v1350
    // Predicated region
    $region22: #{forward.7} parent=1 // pred_check
      _
    $region23: #{forward.7} parent=1 // pred_check_branch
      %1360 = sbr.rel (0) target = $region25
    $region24: #{forward.7} parent=1 // pred_region
      _
    $region25: #{forward.7} parent=1 // pred_fallthru
      _
    // Predicated region
    $region26: #{forward.7} parent=1 // pred_check
      _
    $region27: #{forward.7} parent=1 // pred_check_branch
      %1362 = sbr.rel (0) target = $region29
    $region28: #{forward.7} parent=1 // pred_region
      _
    $region29: #{forward.7} parent=1 // pred_fallthru
      _
    %1363 = vsyncpa [#allocation3], 1
    %1364 = vsyncpa [#allocation5], 1

// kernel: forward.8
$region0: #{forward.8}
  #allocation0 [shape = 'u32[]', space=smem, size = 0x4, offset = 0x4, fixed_abs, tag = 'smem constant byte address 0x4 - core index']
  #allocation1 [shape = 'u32[144,128]{1,0:T(1,128)}', space=vmem, size = 0x12000, scoped, tag = 'internal scratch']
  %s0 = inlined_call_operand.vmem [shape: bf16[128,576], index: 0, kind: input, shape index: {}]
  %s1 = inlined_call_operand.vmem [shape: bf16[576,128], index: 1, kind: input, shape index: {}]
  %s2 = inlined_call_operand.vmem [shape: f32[2,128], index: 2, kind: input, shape index: {}]
  %s3 = inlined_call_operand.vmem [shape: bf16[128,128], index: 3, kind: output, shape index: {}]
  %s4 = sld [smem:[#allocation0]]
  $region22: #{forward.8} parent=0
    _
  %s6 = ssub.s32 1, %s4
  %s7 = scalar_select 0, %s6, %s4
  // Predicated region
  $region2: #{forward.8} parent=0 // pred_check
    _
  $region3: #{forward.8} parent=0 // pred_check_branch
    %9 = sbr.rel (0) target = $region5
  $region4: #{forward.8} parent=0 // pred_region
    _
  $region5: #{forward.8} parent=0 // pred_fallthru
    _
  // Predicated region
  $region6: #{forward.8} parent=0 // pred_check
    _
  $region7: #{forward.8} parent=0 // pred_check_branch
    %11 = sbr.rel (0) target = $region9
  $region8: #{forward.8} parent=0 // pred_region
    _
  $region9: #{forward.8} parent=0 // pred_fallthru
    _
  // Predicated region
  $region10: #{forward.8} parent=0 // pred_check
    _
  $region11: #{forward.8} parent=0 // pred_check_branch
    %13 = sbr.rel (0) target = $region13
  $region12: #{forward.8} parent=0 // pred_region
    _
  $region13: #{forward.8} parent=0 // pred_fallthru
    _
  %v15 = vld [vmem:[%s0] sm:$0xff]
  %v16 = vld [vmem:[%s0 + $0x8] sm:$0xff]
  %v17 = vld [vmem:[%s0 + $0x10] sm:$0xf]
  %v18 = vld [vmem:[%s0 + $0x14] sm:$0xff]
  %v19 = vld [vmem:[%s0 + $0x1c] sm:$0xff]
  %v20 = vld [vmem:[%s0 + $0x24] sm:$0xf]
  %v21 = vld [vmem:[%s0 + $0x28] sm:$0xff]
  %v22 = vld [vmem:[%s0 + $0x30] sm:$0xff]
  %v23 = vld [vmem:[%s0 + $0x38] sm:$0xf]
  %v24 = vld [vmem:[%s0 + $0x3c] sm:$0xff]
  %v25 = vld [vmem:[%s0 + $0x44] sm:$0xff]
  %v26 = vld [vmem:[%s0 + $0x4c] sm:$0xf]
  %v27 = vld [vmem:[%s0 + $0x50] sm:$0xff]
  %v28 = vld [vmem:[%s0 + $0x58] sm:$0xff]
  %v29 = vld [vmem:[%s0 + $0x60] sm:$0xf]
  %v30 = vld [vmem:[%s0 + $0x64] sm:$0xff]
  %v31 = vld [vmem:[%s0 + $0x6c] sm:$0xff]
  %v32 = vld [vmem:[%s0 + $0x74] sm:$0xf]
  %v33 = vld [vmem:[%s0 + $0x78] sm:$0xff]
  %v34 = vld [vmem:[%s0 + $0x80] sm:$0xff]
  %v35 = vld [vmem:[%s0 + $0x88] sm:$0xf]
  %v36 = vld [vmem:[%s0 + $0x8c] sm:$0xff]
  %v37 = vld [vmem:[%s0 + $0x94] sm:$0xff]
  %v38 = vld [vmem:[%s0 + $0x9c] sm:$0xf]
  %v39 = vld [vmem:[%s0 + $0xa0] sm:$0xff]
  %v40 = vld [vmem:[%s0 + $0xa8] sm:$0xff]
  %v41 = vld [vmem:[%s0 + $0xb0] sm:$0xf]
  %v42 = vld [vmem:[%s0 + $0xb4] sm:$0xff]
  %v43 = vld [vmem:[%s0 + $0xbc] sm:$0xff]
  %v44 = vld [vmem:[%s0 + $0xc4] sm:$0xf]
  %v45 = vld [vmem:[%s0 + $0xc8] sm:$0xff]
  %v46 = vld [vmem:[%s0 + $0xd0] sm:$0xff]
  %v47 = vld [vmem:[%s0 + $0xd8] sm:$0xf]
  %v48 = vld [vmem:[%s0 + $0xdc] sm:$0xff]
  %v49 = vld [vmem:[%s0 + $0xe4] sm:$0xff]
  %v50 = vld [vmem:[%s0 + $0xec] sm:$0xf]
  %v51 = vld [vmem:[%s0 + $0xf0] sm:$0xff]
  %v52 = vld [vmem:[%s0 + $0xf8] sm:$0xff]
  %v53 = vld [vmem:[%s0 + $0x100] sm:$0xf]
  %v54 = vld [vmem:[%s0 + $0x104] sm:$0xff]
  %v55 = vld [vmem:[%s0 + $0x10c] sm:$0xff]
  %v56 = vld [vmem:[%s0 + $0x114] sm:$0xf]
  %v57 = vld [vmem:[%s0 + $0x118] sm:$0xff]
  %v58 = vld [vmem:[%s0 + $0x120] sm:$0xff]
  %v59 = vld [vmem:[%s0 + $0x128] sm:$0xf]
  %v60 = vld [vmem:[%s0 + $0x12c] sm:$0xff]
  %v61 = vld [vmem:[%s0 + $0x134] sm:$0xff]
  %v62 = vld [vmem:[%s0 + $0x13c] sm:$0xf]
  %v63 = vld [vmem:[%s1] sm:$0xf]
  %v64 = vld [vmem:[%s1 + $0x4] sm:$0xf]
  %v65 = vld [vmem:[%s1 + $0x8] sm:$0xf]
  %v66 = vld [vmem:[%s1 + $0xc] sm:$0xf]
  %v67 = vld [vmem:[%s1 + $0x10] sm:$0xf]
  %v68 = vld [vmem:[%s1 + $0x14] sm:$0xf]
  %v69 = vld [vmem:[%s1 + $0x18] sm:$0xf]
  %v70 = vld [vmem:[%s1 + $0x1c] sm:$0xf]
  %v71 = vld [vmem:[%s1 + $0x20] sm:$0xf]
  %v72 = vld [vmem:[%s1 + $0x24] sm:$0xf]
  %v73 = vld [vmem:[%s1 + $0x28] sm:$0xf]
  %v74 = vld [vmem:[%s1 + $0x2c] sm:$0xf]
  %v75 = vld [vmem:[%s1 + $0x30] sm:$0xf]
  %v76 = vld [vmem:[%s1 + $0x34] sm:$0xf]
  %v77 = vld [vmem:[%s1 + $0x38] sm:$0xf]
  %v78 = vld [vmem:[%s1 + $0x3c] sm:$0xf]
  %v79 = vld [vmem:[%s1 + $0x40] sm:$0xf]
  %v80 = vld [vmem:[%s1 + $0x44] sm:$0xf]
  %v81 = vld [vmem:[%s1 + $0x48] sm:$0xf]
  %v82 = vld [vmem:[%s1 + $0x4c] sm:$0xf]
  %v83 = vld [vmem:[%s1 + $0x50] sm:$0xf]
  %v84 = vld [vmem:[%s1 + $0x54] sm:$0xf]
  %v85 = vld [vmem:[%s1 + $0x58] sm:$0xf]
  %v86 = vld [vmem:[%s1 + $0x5c] sm:$0xf]
  %v87 = vld [vmem:[%s1 + $0x60] sm:$0xf]
  %v88 = vld [vmem:[%s1 + $0x64] sm:$0xf]
  %v89 = vld [vmem:[%s1 + $0x68] sm:$0xf]
  %v90 = vld [vmem:[%s1 + $0x6c] sm:$0xf]
  %v91 = vld [vmem:[%s1 + $0x70] sm:$0xf]
  %v92 = vld [vmem:[%s1 + $0x74] sm:$0xf]
  %v93 = vld [vmem:[%s1 + $0x78] sm:$0xf]
  %v94 = vld [vmem:[%s1 + $0x7c] sm:$0xf]
  %v95 = vld [vmem:[%s1 + $0x80] sm:$0xf]
  %v96 = vld [vmem:[%s1 + $0x84] sm:$0xf]
  %v97 = vld [vmem:[%s1 + $0x88] sm:$0xf]
  %v98 = vld [vmem:[%s1 + $0x8c] sm:$0xf]
  %v99 = vld [vmem:[%s1 + $0x90] sm:$0xf]
  %v100 = vld [vmem:[%s1 + $0x94] sm:$0xf]
  %v101 = vld [vmem:[%s1 + $0x98] sm:$0xf]
  %v102 = vld [vmem:[%s1 + $0x9c] sm:$0xf]
  %v103 = vld [vmem:[%s1 + $0xa0] sm:$0xf]
  %v104 = vld [vmem:[%s1 + $0xa4] sm:$0xf]
  %v105 = vld [vmem:[%s1 + $0xa8] sm:$0xf]
  %v106 = vld [vmem:[%s1 + $0xac] sm:$0xf]
  %v107 = vld [vmem:[%s1 + $0xb0] sm:$0xf]
  %v108 = vld [vmem:[%s1 + $0xb4] sm:$0xf]
  %v109 = vld [vmem:[%s1 + $0xb8] sm:$0xf]
  %v110 = vld [vmem:[%s1 + $0xbc] sm:$0xf]
  %v111 = vld [vmem:[%s1 + $0xc0] sm:$0xf]
  %v112 = vld [vmem:[%s1 + $0xc4] sm:$0xf]
  %v113 = vld [vmem:[%s1 + $0xc8] sm:$0xf]
  %v114 = vld [vmem:[%s1 + $0xcc] sm:$0xf]
  %v115 = vld [vmem:[%s1 + $0xd0] sm:$0xf]
  %v116 = vld [vmem:[%s1 + $0xd4] sm:$0xf]
  %v117 = vld [vmem:[%s1 + $0xd8] sm:$0xf]
  %v118 = vld [vmem:[%s1 + $0xdc] sm:$0xf]
  %v119 = vld [vmem:[%s1 + $0xe0] sm:$0xf]
  %v120 = vld [vmem:[%s1 + $0xe4] sm:$0xf]
  %v121 = vld [vmem:[%s1 + $0xe8] sm:$0xf]
  %v122 = vld [vmem:[%s1 + $0xec] sm:$0xf]
  %v123 = vld [vmem:[%s1 + $0xf0] sm:$0xf]
  %v124 = vld [vmem:[%s1 + $0xf4] sm:$0xf]
  %v125 = vld [vmem:[%s1 + $0xf8] sm:$0xf]
  %v126 = vld [vmem:[%s1 + $0xfc] sm:$0xf]
  %v127 = vld [vmem:[%s1 + $0x100] sm:$0xf]
  %v128 = vld [vmem:[%s1 + $0x104] sm:$0xf]
  %v129 = vld [vmem:[%s1 + $0x108] sm:$0xf]
  %v130 = vld [vmem:[%s1 + $0x10c] sm:$0xf]
  %v131 = vld [vmem:[%s1 + $0x110] sm:$0xf]
  %v132 = vld [vmem:[%s1 + $0x114] sm:$0xf]
  %v133 = vld [vmem:[%s1 + $0x118] sm:$0xf]
  %v134 = vld [vmem:[%s1 + $0x11c] sm:$0xf]
  %v183 = vunpack.c.l.b16 %v15
  %v184 = vunpack.c.h.b16 %v15
  %v185 = vunpack.c.l.b16 %v16
  %v186 = vunpack.c.h.b16 %v16
  %v187 = vunpack.c.l.b16 %v17
  %v188 = vunpack.c.l.b16 %v18
  %v189 = vunpack.c.h.b16 %v18
  %v190 = vunpack.c.l.b16 %v19
  %v191 = vunpack.c.h.b16 %v19
  %v192 = vunpack.c.l.b16 %v20
  %v193 = vunpack.c.l.b16 %v21
  %v194 = vunpack.c.h.b16 %v21
  %v195 = vunpack.c.l.b16 %v22
  %v196 = vunpack.c.h.b16 %v22
  %v197 = vunpack.c.l.b16 %v23
  %v198 = vunpack.c.l.b16 %v24
  %v199 = vunpack.c.h.b16 %v24
  %v200 = vunpack.c.l.b16 %v25
  %v201 = vunpack.c.h.b16 %v25
  %v202 = vunpack.c.l.b16 %v26
  %v203 = vunpack.c.l.b16 %v27
  %v204 = vunpack.c.h.b16 %v27
  %v205 = vunpack.c.l.b16 %v28
  %v206 = vunpack.c.h.b16 %v28
  %v207 = vunpack.c.l.b16 %v29
  %v208 = vunpack.c.l.b16 %v30
  %v209 = vunpack.c.h.b16 %v30
  %v210 = vunpack.c.l.b16 %v31
  %v211 = vunpack.c.h.b16 %v31
  %v212 = vunpack.c.l.b16 %v32
  %v213 = vunpack.c.l.b16 %v33
  %v214 = vunpack.c.h.b16 %v33
  %v215 = vunpack.c.l.b16 %v34
  %v216 = vunpack.c.h.b16 %v34
  %v217 = vunpack.c.l.b16 %v35
  %v218 = vunpack.c.l.b16 %v36
  %v219 = vunpack.c.h.b16 %v36
  %v220 = vunpack.c.l.b16 %v37
  %v221 = vunpack.c.h.b16 %v37
  %v222 = vunpack.c.l.b16 %v38
  %v223 = vunpack.c.l.b16 %v39
  %v224 = vunpack.c.h.b16 %v39
  %v225 = vunpack.c.l.b16 %v40
  %v226 = vunpack.c.h.b16 %v40
  %v227 = vunpack.c.l.b16 %v41
  %v228 = vunpack.c.l.b16 %v42
  %v229 = vunpack.c.h.b16 %v42
  %v230 = vunpack.c.l.b16 %v43
  %v231 = vunpack.c.h.b16 %v43
  %v232 = vunpack.c.l.b16 %v44
  %v233 = vunpack.c.l.b16 %v45
  %v234 = vunpack.c.h.b16 %v45
  %v235 = vunpack.c.l.b16 %v46
  %v236 = vunpack.c.h.b16 %v46
  %v237 = vunpack.c.l.b16 %v47
  %v238 = vunpack.c.l.b16 %v48
  %v239 = vunpack.c.h.b16 %v48
  %v240 = vunpack.c.l.b16 %v49
  %v241 = vunpack.c.h.b16 %v49
  %v242 = vunpack.c.l.b16 %v50
  %v243 = vunpack.c.l.b16 %v51
  %v244 = vunpack.c.h.b16 %v51
  %v245 = vunpack.c.l.b16 %v52
  %v246 = vunpack.c.h.b16 %v52
  %v247 = vunpack.c.l.b16 %v53
  %v248 = vunpack.c.l.b16 %v54
  %v249 = vunpack.c.h.b16 %v54
  %v250 = vunpack.c.l.b16 %v55
  %v251 = vunpack.c.h.b16 %v55
  %v252 = vunpack.c.l.b16 %v56
  %v253 = vunpack.c.l.b16 %v57
  %v254 = vunpack.c.h.b16 %v57
  %v255 = vunpack.c.l.b16 %v58
  %v256 = vunpack.c.h.b16 %v58
  %v257 = vunpack.c.l.b16 %v59
  %v258 = vunpack.c.l.b16 %v60
  %v259 = vunpack.c.h.b16 %v60
  %v260 = vunpack.c.l.b16 %v61
  %v261 = vunpack.c.h.b16 %v61
  %v262 = vunpack.c.l.b16 %v62
  %v263 = vpack.c.b16 %v188, %v183
  %v264 = vpack.c.b16 %v189, %v184
  %v265 = vpack.c.b16 %v190, %v185
  %v266 = vpack.c.b16 %v191, %v186
  %v267 = vpack.c.b16 %v192, %v187
  %v268 = vpack.c.b16 %v198, %v193
  %v269 = vpack.c.b16 %v199, %v194
  %v270 = vpack.c.b16 %v200, %v195
  %v271 = vpack.c.b16 %v201, %v196
  %v272 = vpack.c.b16 %v202, %v197
  %v273 = vpack.c.b16 %v208, %v203
  %v274 = vpack.c.b16 %v209, %v204
  %v275 = vpack.c.b16 %v210, %v205
  %v276 = vpack.c.b16 %v211, %v206
  %v277 = vpack.c.b16 %v212, %v207
  %v278 = vpack.c.b16 %v218, %v213
  %v279 = vpack.c.b16 %v219, %v214
  %v280 = vpack.c.b16 %v220, %v215
  %v281 = vpack.c.b16 %v221, %v216
  %v282 = vpack.c.b16 %v222, %v217
  %v283 = vpack.c.b16 %v228, %v223
  %v284 = vpack.c.b16 %v229, %v224
  %v285 = vpack.c.b16 %v230, %v225
  %v286 = vpack.c.b16 %v231, %v226
  %v287 = vpack.c.b16 %v232, %v227
  %v288 = vpack.c.b16 %v238, %v233
  %v289 = vpack.c.b16 %v239, %v234
  %v290 = vpack.c.b16 %v240, %v235
  %v291 = vpack.c.b16 %v241, %v236
  %v292 = vpack.c.b16 %v242, %v237
  %v293 = vpack.c.b16 %v248, %v243
  %v294 = vpack.c.b16 %v249, %v244
  %v295 = vpack.c.b16 %v250, %v245
  %v296 = vpack.c.b16 %v251, %v246
  %v297 = vpack.c.b16 %v252, %v247
  %v298 = vpack.c.b16 %v258, %v253
  %v299 = vpack.c.b16 %v259, %v254
  %v300 = vpack.c.b16 %v260, %v255
  %v301 = vpack.c.b16 %v261, %v256
  %v302 = vpack.c.b16 %v262, %v257
  %v407 = vunpack.c.l.b16 %v63
  %v408 = vunpack.c.l.b16 %v64
  %v409 = vunpack.c.l.b16 %v65
  %v410 = vunpack.c.l.b16 %v66
  %v411 = vunpack.c.l.b16 %v67
  %v412 = vunpack.c.l.b16 %v68
  %v413 = vunpack.c.l.b16 %v69
  %v414 = vunpack.c.l.b16 %v70
  %v415 = vunpack.c.l.b16 %v71
  %v416 = vunpack.c.l.b16 %v72
  %v417 = vunpack.c.l.b16 %v73
  %v418 = vunpack.c.l.b16 %v74
  %v419 = vunpack.c.l.b16 %v75
  %v420 = vunpack.c.l.b16 %v76
  %v421 = vunpack.c.l.b16 %v77
  %v422 = vunpack.c.l.b16 %v78
  %v423 = vunpack.c.l.b16 %v79
  %v424 = vunpack.c.l.b16 %v80
  %v425 = vunpack.c.l.b16 %v81
  %v426 = vunpack.c.l.b16 %v82
  %v427 = vunpack.c.l.b16 %v83
  %v428 = vunpack.c.l.b16 %v84
  %v429 = vunpack.c.l.b16 %v85
  %v430 = vunpack.c.l.b16 %v86
  %v431 = vunpack.c.l.b16 %v87
  %v432 = vunpack.c.l.b16 %v88
  %v433 = vunpack.c.l.b16 %v89
  %v434 = vunpack.c.l.b16 %v90
  %v435 = vunpack.c.l.b16 %v91
  %v436 = vunpack.c.l.b16 %v92
  %v437 = vunpack.c.l.b16 %v93
  %v438 = vunpack.c.l.b16 %v94
  %v439 = vunpack.c.l.b16 %v95
  %v440 = vunpack.c.l.b16 %v96
  %v441 = vunpack.c.l.b16 %v97
  %v442 = vunpack.c.l.b16 %v98
  %v443 = vunpack.c.l.b16 %v99
  %v444 = vunpack.c.l.b16 %v100
  %v445 = vunpack.c.l.b16 %v101
  %v446 = vunpack.c.l.b16 %v102
  %v447 = vunpack.c.l.b16 %v103
  %v448 = vunpack.c.l.b16 %v104
  %v449 = vunpack.c.l.b16 %v105
  %v450 = vunpack.c.l.b16 %v106
  %v451 = vunpack.c.l.b16 %v107
  %v452 = vunpack.c.l.b16 %v108
  %v453 = vunpack.c.l.b16 %v109
  %v454 = vunpack.c.l.b16 %v110
  %v455 = vunpack.c.l.b16 %v111
  %v456 = vunpack.c.l.b16 %v112
  %v457 = vunpack.c.l.b16 %v113
  %v458 = vunpack.c.l.b16 %v114
  %v459 = vunpack.c.l.b16 %v115
  %v460 = vunpack.c.l.b16 %v116
  %v461 = vunpack.c.l.b16 %v117
  %v462 = vunpack.c.l.b16 %v118
  %v463 = vunpack.c.l.b16 %v119
  %v464 = vunpack.c.l.b16 %v120
  %v465 = vunpack.c.l.b16 %v121
  %v466 = vunpack.c.l.b16 %v122
  %v467 = vunpack.c.l.b16 %v123
  %v468 = vunpack.c.l.b16 %v124
  %v469 = vunpack.c.l.b16 %v125
  %v470 = vunpack.c.l.b16 %v126
  %v471 = vunpack.c.l.b16 %v127
  %v472 = vunpack.c.l.b16 %v128
  %v473 = vunpack.c.l.b16 %v129
  %v474 = vunpack.c.l.b16 %v130
  %v475 = vunpack.c.l.b16 %v131
  %v476 = vunpack.c.l.b16 %v132
  %v477 = vunpack.c.l.b16 %v133
  %v478 = vunpack.c.l.b16 %v134
  %v479 = vpack.c.b16 %v408, %v407
  %v480 = vpack.c.b16 %v410, %v409
  %v481 = vpack.c.b16 %v412, %v411
  %v482 = vpack.c.b16 %v414, %v413
  %v483 = vpack.c.b16 %v416, %v415
  %v484 = vpack.c.b16 %v418, %v417
  %v485 = vpack.c.b16 %v420, %v419
  %v486 = vpack.c.b16 %v422, %v421
  %v487 = vpack.c.b16 %v424, %v423
  %v488 = vpack.c.b16 %v426, %v425
  %v489 = vpack.c.b16 %v428, %v427
  %v490 = vpack.c.b16 %v430, %v429
  %v491 = vpack.c.b16 %v432, %v431
  %v492 = vpack.c.b16 %v434, %v433
  %v493 = vpack.c.b16 %v436, %v435
  %v494 = vpack.c.b16 %v438, %v437
  %v495 = vpack.c.b16 %v440, %v439
  %v496 = vpack.c.b16 %v442, %v441
  %v497 = vpack.c.b16 %v444, %v443
  %v498 = vpack.c.b16 %v446, %v445
  %v499 = vpack.c.b16 %v448, %v447
  %v500 = vpack.c.b16 %v450, %v449
  %v501 = vpack.c.b16 %v452, %v451
  %v502 = vpack.c.b16 %v454, %v453
  %v503 = vpack.c.b16 %v456, %v455
  %v504 = vpack.c.b16 %v458, %v457
  %v505 = vpack.c.b16 %v460, %v459
  %v506 = vpack.c.b16 %v462, %v461
  %v507 = vpack.c.b16 %v464, %v463
  %v508 = vpack.c.b16 %v466, %v465
  %v509 = vpack.c.b16 %v468, %v467
  %v510 = vpack.c.b16 %v470, %v469
  %v511 = vpack.c.b16 %v472, %v471
  %v512 = vpack.c.b16 %v474, %v473
  %v513 = vpack.c.b16 %v476, %v475
  %v514 = vpack.c.b16 %v478, %v477
  %vm551 = vcmask 523264
  %v553 = vsel %vm551, %v267, 0
  %v556 = vsel %vm551, %v272, 0
  %v559 = vsel %vm551, %v277, 0
  %v562 = vsel %vm551, %v282, 0
  %v565 = vsel %vm551, %v287, 0
  %v568 = vsel %vm551, %v292, 0
  %v571 = vsel %vm551, %v297, 0
  %v574 = vsel %vm551, %v302, 0
  %576 = vmatprep.subr.bf16.mxu0 0
  %577 = vmatpush1.bf16.msra.mxu0 %v479
  %578 = vmatprep.subr.bf16.mxu0 0
  %579 = vmatpush1.bf16.msra.mxu0 %v480
  %580 = vmatprep.subr.bf16.mxu0 0
  %581 = vmatpush1.bf16.msra.mxu0 %v481
  %582 = vmatprep.subr.bf16.mxu0 0
  %583 = vmatpush1.bf16.msra.mxu0 %v482
  %584 = vmatprep.subr.bf16.mxu0 0
  %585 = vmatpush1.bf16.msra.mxu0 %v483
  %586 = vmatprep.subr.bf16.mxu0 0
  %587 = vmatpush1.bf16.msra.mxu0 %v484
  %588 = vmatprep.subr.bf16.mxu0 0
  %589 = vmatpush1.bf16.msra.mxu0 %v485
  %590 = vmatprep.subr.bf16.mxu0 0
  %591 = vmatpush1.bf16.msra.mxu0 %v486
  %592 = vmatprep.subr.bf16.mxu0 0
  %593 = vmatpush1.bf16.msra.mxu0 %v487
  %594 = vmatprep.subr.bf16.mxu0 0
  %595 = vmatpush1.bf16.msra.mxu0 %v488
  %596 = vmatprep.subr.bf16.mxu0 0
  %597 = vmatpush1.bf16.msra.mxu0 %v489
  %598 = vmatprep.subr.bf16.mxu0 0
  %599 = vmatpush1.bf16.msra.mxu0 %v490
  %600 = vmatprep.subr.bf16.mxu0 0
  %601 = vmatpush1.bf16.msra.mxu0 %v491
  %602 = vmatprep.subr.bf16.mxu0 0
  %603 = vmatpush1.bf16.msra.mxu0 %v492
  %604 = vmatprep.subr.bf16.mxu0 0
  %605 = vmatpush1.bf16.msra.mxu0 %v493
  %606 = vmatprep.subr.bf16.mxu0 0
  %607 = vmatpush1.bf16.msra.mxu0 %v494
  %608 = vmatprep.mubr.bf16.mxu0 %v264
  %609 = vmatmul.mubr.bf16.gmra.mrb[0].mxu0 %v263
  %v610 = vpop.f32.mrb[0].mxu0
  %v611 = vadd.f32 0.0, %v610
  %v612 = vpop.f32.mrb[0].mxu0
  %v613 = vpop.f32.mrb[0].mxu0
  %v614 = vadd.f32 0.0, %v613
  %v615 = vpop.f32.mrb[0].mxu0
  %616 = vmatprep.mubr.bf16.mxu0 %v269
  %617 = vmatmul.mubr.bf16.gmra.mrb[0].mxu0 %v268
  %v618 = vpop.f32.mrb[0].mxu0
  %v619 = vadd.f32 0.0, %v618
  %v620 = vpop.f32.mrb[0].mxu0
  %v621 = vpop.f32.mrb[0].mxu0
  %v622 = vadd.f32 0.0, %v621
  %v623 = vpop.f32.mrb[0].mxu0
  %624 = vmatprep.mubr.bf16.mxu0 %v274
  %625 = vmatmul.mubr.bf16.gmra.mrb[0].mxu0 %v273
  %v626 = vpop.f32.mrb[0].mxu0
  %v627 = vadd.f32 0.0, %v626
  %v628 = vpop.f32.mrb[0].mxu0
  %v629 = vpop.f32.mrb[0].mxu0
  %v630 = vadd.f32 0.0, %v629
  %v631 = vpop.f32.mrb[0].mxu0
  %632 = vmatprep.mubr.bf16.mxu0 %v279
  %633 = vmatmul.mubr.bf16.gmra.mrb[0].mxu0 %v278
  %v634 = vpop.f32.mrb[0].mxu0
  %v635 = vadd.f32 0.0, %v634
  %v636 = vpop.f32.mrb[0].mxu0
  %v637 = vpop.f32.mrb[0].mxu0
  %v638 = vadd.f32 0.0, %v637
  %v639 = vpop.f32.mrb[0].mxu0
  %640 = vmatprep.mubr.bf16.mxu0 %v284
  %641 = vmatmul.mubr.bf16.gmra.mrb[0].mxu0 %v283
  %v642 = vpop.f32.mrb[0].mxu0
  %v643 = vadd.f32 0.0, %v642
  %v644 = vpop.f32.mrb[0].mxu0
  %v645 = vpop.f32.mrb[0].mxu0
  %v646 = vadd.f32 0.0, %v645
  %v647 = vpop.f32.mrb[0].mxu0
  %648 = vmatprep.mubr.bf16.mxu0 %v289
  %649 = vmatmul.mubr.bf16.gmra.mrb[0].mxu0 %v288
  %v650 = vpop.f32.mrb[0].mxu0
  %v651 = vadd.f32 0.0, %v650
  %v652 = vpop.f32.mrb[0].mxu0
  %v653 = vpop.f32.mrb[0].mxu0
  %v654 = vadd.f32 0.0, %v653
  %v655 = vpop.f32.mrb[0].mxu0
  %656 = vmatprep.mubr.bf16.mxu0 %v294
  %657 = vmatmul.mubr.bf16.gmra.mrb[0].mxu0 %v293
  %v658 = vpop.f32.mrb[0].mxu0
  %v659 = vadd.f32 0.0, %v658
  %v660 = vpop.f32.mrb[0].mxu0
  %v661 = vpop.f32.mrb[0].mxu0
  %v662 = vadd.f32 0.0, %v661
  %v663 = vpop.f32.mrb[0].mxu0
  %664 = vmatprep.mubr.bf16.mxu0 %v299
  %665 = vmatmul.mubr.bf16.gmra.mrb[0].mxu0 %v298
  %v666 = vpop.f32.mrb[0].mxu0
  %v667 = vadd.f32 0.0, %v666
  %v668 = vpop.f32.mrb[0].mxu0
  %v669 = vpop.f32.mrb[0].mxu0
  %v670 = vadd.f32 0.0, %v669
  %v671 = vpop.f32.mrb[0].mxu0
  %672 = vdwg.mxu0
  %673 = vmatprep.subr.bf16.mxu0 0
  %674 = vmatpush1.bf16.msra.mxu0 %v495
  %675 = vmatprep.subr.bf16.mxu0 0
  %676 = vmatpush1.bf16.msra.mxu0 %v496
  %677 = vmatprep.subr.bf16.mxu0 0
  %678 = vmatpush1.bf16.msra.mxu0 %v497
  %679 = vmatprep.subr.bf16.mxu0 0
  %680 = vmatpush1.bf16.msra.mxu0 %v498
  %681 = vmatprep.subr.bf16.mxu0 0
  %682 = vmatpush1.bf16.msra.mxu0 %v499
  %683 = vmatprep.subr.bf16.mxu0 0
  %684 = vmatpush1.bf16.msra.mxu0 %v500
  %685 = vmatprep.subr.bf16.mxu0 0
  %686 = vmatpush1.bf16.msra.mxu0 %v501
  %687 = vmatprep.subr.bf16.mxu0 0
  %688 = vmatpush1.bf16.msra.mxu0 %v502
  %689 = vmatprep.subr.bf16.mxu0 0
  %690 = vmatpush1.bf16.msra.mxu0 %v503
  %691 = vmatprep.subr.bf16.mxu0 0
  %692 = vmatpush1.bf16.msra.mxu0 %v504
  %693 = vmatprep.subr.bf16.mxu0 0
  %694 = vmatpush1.bf16.msra.mxu0 %v505
  %695 = vmatprep.subr.bf16.mxu0 0
  %696 = vmatpush1.bf16.msra.mxu0 %v506
  %697 = vmatprep.subr.bf16.mxu0 0
  %698 = vmatpush1.bf16.msra.mxu0 %v507
  %699 = vmatprep.subr.bf16.mxu0 0
  %700 = vmatpush1.bf16.msra.mxu0 %v508
  %701 = vmatprep.subr.bf16.mxu0 0
  %702 = vmatpush1.bf16.msra.mxu0 %v509
  %703 = vmatprep.subr.bf16.mxu0 0
  %704 = vmatpush1.bf16.msra.mxu0 %v510
  %705 = vmatprep.mubr.bf16.mxu0 %v266
  %706 = vmatmul.mubr.bf16.gmra.mrb[0].mxu0 %v265
  %v707 = vpop.f32.mrb[0].mxu0
  %v708 = vadd.f32 %v611, %v707
  %v709 = vpop.f32.mrb[0].mxu0
  %v710 = vpop.f32.mrb[0].mxu0
  %v711 = vadd.f32 %v614, %v710
  %v712 = vpop.f32.mrb[0].mxu0
  %713 = vmatprep.mubr.bf16.mxu0 %v271
  %714 = vmatmul.mubr.bf16.gmra.mrb[0].mxu0 %v270
  %v715 = vpop.f32.mrb[0].mxu0
  %v716 = vadd.f32 %v619, %v715
  %v717 = vpop.f32.mrb[0].mxu0
  %v718 = vpop.f32.mrb[0].mxu0
  %v719 = vadd.f32 %v622, %v718
  %v720 = vpop.f32.mrb[0].mxu0
  %721 = vmatprep.mubr.bf16.mxu0 %v276
  %722 = vmatmul.mubr.bf16.gmra.mrb[0].mxu0 %v275
  %v723 = vpop.f32.mrb[0].mxu0
  %v724 = vadd.f32 %v627, %v723
  %v725 = vpop.f32.mrb[0].mxu0
  %v726 = vpop.f32.mrb[0].mxu0
  %v727 = vadd.f32 %v630, %v726
  %v728 = vpop.f32.mrb[0].mxu0
  %729 = vmatprep.mubr.bf16.mxu0 %v281
  %730 = vmatmul.mubr.bf16.gmra.mrb[0].mxu0 %v280
  %v731 = vpop.f32.mrb[0].mxu0
  %v732 = vadd.f32 %v635, %v731
  %v733 = vpop.f32.mrb[0].mxu0
  %v734 = vpop.f32.mrb[0].mxu0
  %v735 = vadd.f32 %v638, %v734
  %v736 = vpop.f32.mrb[0].mxu0
  %737 = vmatprep.mubr.bf16.mxu0 %v286
  %738 = vmatmul.mubr.bf16.gmra.mrb[0].mxu0 %v285
  %v739 = vpop.f32.mrb[0].mxu0
  %v740 = vadd.f32 %v643, %v739
  %v741 = vpop.f32.mrb[0].mxu0
  %v742 = vpop.f32.mrb[0].mxu0
  %v743 = vadd.f32 %v646, %v742
  %v744 = vpop.f32.mrb[0].mxu0
  %745 = vmatprep.mubr.bf16.mxu0 %v291
  %746 = vmatmul.mubr.bf16.gmra.mrb[0].mxu0 %v290
  %v747 = vpop.f32.mrb[0].mxu0
  %v748 = vadd.f32 %v651, %v747
  %v749 = vpop.f32.mrb[0].mxu0
  %v750 = vpop.f32.mrb[0].mxu0
  %v751 = vadd.f32 %v654, %v750
  %v752 = vpop.f32.mrb[0].mxu0
  %753 = vmatprep.mubr.bf16.mxu0 %v296
  %754 = vmatmul.mubr.bf16.gmra.mrb[0].mxu0 %v295
  %v755 = vpop.f32.mrb[0].mxu0
  %v756 = vadd.f32 %v659, %v755
  %v757 = vpop.f32.mrb[0].mxu0
  %v758 = vpop.f32.mrb[0].mxu0
  %v759 = vadd.f32 %v662, %v758
  %v760 = vpop.f32.mrb[0].mxu0
  %761 = vmatprep.mubr.bf16.mxu0 %v301
  %762 = vmatmul.mubr.bf16.gmra.mrb[0].mxu0 %v300
  %v763 = vpop.f32.mrb[0].mxu0
  %v764 = vadd.f32 %v667, %v763
  %v765 = vpop.f32.mrb[0].mxu0
  %v766 = vpop.f32.mrb[0].mxu0
  %v767 = vadd.f32 %v670, %v766
  %v768 = vpop.f32.mrb[0].mxu0
  %769 = vdwg.mxu0
  %770 = vmatprep.subr.bf16.mxu0 0
  %771 = vmatpush1.bf16.msra.mxu0 %v511
  %772 = vmatprep.subr.bf16.mxu0 0
  %773 = vmatpush1.bf16.msra.mxu0 %v512
  %774 = vmatprep.subr.bf16.mxu0 0
  %775 = vmatpush1.bf16.msra.mxu0 %v513
  %776 = vmatprep.subr.bf16.mxu0 0
  %777 = vmatpush1.bf16.msra.mxu0 %v514
  %778 = vmatprep.subr.bf16.mxu0 0
  %779 = vmatpush1.bf16.msra.mxu0 0
  %780 = vmatprep.subr.bf16.mxu0 0
  %781 = vmatpush1.bf16.msra.mxu0 0
  %782 = vmatprep.subr.bf16.mxu0 0
  %783 = vmatpush1.bf16.msra.mxu0 0
  %784 = vmatprep.subr.bf16.mxu0 0
  %785 = vmatpush1.bf16.msra.mxu0 0
  %786 = vmatprep.subr.bf16.mxu0 0
  %787 = vmatpush1.bf16.msra.mxu0 0
  %788 = vmatprep.subr.bf16.mxu0 0
  %789 = vmatpush1.bf16.msra.mxu0 0
  %790 = vmatprep.subr.bf16.mxu0 0
  %791 = vmatpush1.bf16.msra.mxu0 0
  %792 = vmatprep.subr.bf16.mxu0 0
  %793 = vmatpush1.bf16.msra.mxu0 0
  %794 = vmatprep.subr.bf16.mxu0 0
  %795 = vmatpush1.bf16.msra.mxu0 0
  %796 = vmatprep.subr.bf16.mxu0 0
  %797 = vmatpush1.bf16.msra.mxu0 0
  %798 = vmatprep.subr.bf16.mxu0 0
  %799 = vmatpush1.bf16.msra.mxu0 0
  %800 = vmatprep.subr.bf16.mxu0 0
  %801 = vmatpush1.bf16.msra.mxu0 0
  %802 = vmatprep.mubr.bf16.mxu0 0
  %803 = vmatmul.mubr.bf16.gmra.mrb[0].mxu0 %v553
  %v804 = vpop.f32.mrb[0].mxu0
  %v805 = vadd.f32 %v708, %v804
  %v806 = vpop.f32.mrb[0].mxu0
  %v807 = vpop.f32.mrb[0].mxu0
  %v808 = vadd.f32 %v711, %v807
  %v809 = vpop.f32.mrb[0].mxu0
  %810 = vmatprep.mubr.bf16.mxu0 0
  %811 = vmatmul.mubr.bf16.gmra.mrb[0].mxu0 %v556
  %v812 = vpop.f32.mrb[0].mxu0
  %v813 = vadd.f32 %v716, %v812
  %v814 = vpop.f32.mrb[0].mxu0
  %v815 = vpop.f32.mrb[0].mxu0
  %v816 = vadd.f32 %v719, %v815
  %v817 = vpop.f32.mrb[0].mxu0
  %818 = vmatprep.mubr.bf16.mxu0 0
  %819 = vmatmul.mubr.bf16.gmra.mrb[0].mxu0 %v559
  %v820 = vpop.f32.mrb[0].mxu0
  %v821 = vadd.f32 %v724, %v820
  %v822 = vpop.f32.mrb[0].mxu0
  %v823 = vpop.f32.mrb[0].mxu0
  %v824 = vadd.f32 %v727, %v823
  %v825 = vpop.f32.mrb[0].mxu0
  %826 = vmatprep.mubr.bf16.mxu0 0
  %827 = vmatmul.mubr.bf16.gmra.mrb[0].mxu0 %v562
  %v828 = vpop.f32.mrb[0].mxu0
  %v829 = vadd.f32 %v732, %v828
  %v830 = vpop.f32.mrb[0].mxu0
  %v831 = vpop.f32.mrb[0].mxu0
  %v832 = vadd.f32 %v735, %v831
  %v833 = vpop.f32.mrb[0].mxu0
  %834 = vmatprep.mubr.bf16.mxu0 0
  %835 = vmatmul.mubr.bf16.gmra.mrb[0].mxu0 %v565
  %v836 = vpop.f32.mrb[0].mxu0
  %v837 = vadd.f32 %v740, %v836
  %v838 = vpop.f32.mrb[0].mxu0
  %v839 = vpop.f32.mrb[0].mxu0
  %v840 = vadd.f32 %v743, %v839
  %v841 = vpop.f32.mrb[0].mxu0
  %842 = vmatprep.mubr.bf16.mxu0 0
  %843 = vmatmul.mubr.bf16.gmra.mrb[0].mxu0 %v568
  %v844 = vpop.f32.mrb[0].mxu0
  %v845 = vadd.f32 %v748, %v844
  %v846 = vpop.f32.mrb[0].mxu0
  %v847 = vpop.f32.mrb[0].mxu0
  %v848 = vadd.f32 %v751, %v847
  %v849 = vpop.f32.mrb[0].mxu0
  %850 = vmatprep.mubr.bf16.mxu0 0
  %851 = vmatmul.mubr.bf16.gmra.mrb[0].mxu0 %v571
  %v852 = vpop.f32.mrb[0].mxu0
  %v853 = vadd.f32 %v756, %v852
  %v854 = vpop.f32.mrb[0].mxu0
  %v855 = vpop.f32.mrb[0].mxu0
  %v856 = vadd.f32 %v759, %v855
  %v857 = vpop.f32.mrb[0].mxu0
  %858 = vmatprep.mubr.bf16.mxu0 0
  %859 = vmatmul.mubr.bf16.gmra.mrb[0].mxu0 %v574
  %v860 = vpop.f32.mrb[0].mxu0
  %v861 = vadd.f32 %v764, %v860
  %v862 = vpop.f32.mrb[0].mxu0
  %v863 = vpop.f32.mrb[0].mxu0
  %v864 = vadd.f32 %v767, %v863
  %v865 = vpop.f32.mrb[0].mxu0
  %866 = vdwg.mxu0
  %v867 = vld [vmem:[%s2] sm:$0x1]
  %v868 = vlaneseq
  %v869 = vshrl.u32 %v868, 7
  %v870 = vsub.s32 0, %v869
  %v871 = vrot.slane %v867, %v870
  %v872 = vmul.f32 %v805, %v871
  %v873 = vmul.f32 %v808, %v871
  %v874 = vmul.f32 %v813, %v871
  %v875 = vmul.f32 %v816, %v871
  %v876 = vmul.f32 %v821, %v871
  %v877 = vmul.f32 %v824, %v871
  %v878 = vmul.f32 %v829, %v871
  %v879 = vmul.f32 %v832, %v871
  %v880 = vmul.f32 %v837, %v871
  %v881 = vmul.f32 %v840, %v871
  %v882 = vmul.f32 %v845, %v871
  %v883 = vmul.f32 %v848, %v871
  %v884 = vmul.f32 %v853, %v871
  %v885 = vmul.f32 %v856, %v871
  %v886 = vmul.f32 %v861, %v871
  %v887 = vmul.f32 %v864, %v871
  %v888 = vld [vmem:[%s2 + $0x1] sm:$0x1]
  %v889 = vlaneseq
  %v890 = vshrl.u32 %v889, 7
  %v891 = vsub.s32 0, %v890
  %v892 = vrot.slane %v888, %v891
  %v893 = vadd.f32 %v872, %v892
  %v894 = vadd.f32 %v873, %v892
  %v895 = vadd.f32 %v874, %v892
  %v896 = vadd.f32 %v875, %v892
  %v897 = vadd.f32 %v876, %v892
  %v898 = vadd.f32 %v877, %v892
  %v899 = vadd.f32 %v878, %v892
  %v900 = vadd.f32 %v879, %v892
  %v901 = vadd.f32 %v880, %v892
  %v902 = vadd.f32 %v881, %v892
  %v903 = vadd.f32 %v882, %v892
  %v904 = vadd.f32 %v883, %v892
  %v905 = vadd.f32 %v884, %v892
  %v906 = vadd.f32 %v885, %v892
  %v907 = vadd.f32 %v886, %v892
  %v908 = vadd.f32 %v887, %v892
  %v909 = vmax.f32 %v893, 0.0
  %v910 = vmax.f32 %v894, 0.0
  %v911 = vmax.f32 %v895, 0.0
  %v912 = vmax.f32 %v896, 0.0
  %v913 = vmax.f32 %v897, 0.0
  %v914 = vmax.f32 %v898, 0.0
  %v915 = vmax.f32 %v899, 0.0
  %v916 = vmax.f32 %v900, 0.0
  %v917 = vmax.f32 %v901, 0.0
  %v918 = vmax.f32 %v902, 0.0
  %v919 = vmax.f32 %v903, 0.0
  %v920 = vmax.f32 %v904, 0.0
  %v921 = vmax.f32 %v905, 0.0
  %v922 = vmax.f32 %v906, 0.0
  %v923 = vmax.f32 %v907, 0.0
  %v924 = vmax.f32 %v908, 0.0
  %v925 = vpack.c.bf16 %v910, %v909
  %v926 = vpack.c.bf16 %v912, %v911
  %v927 = vpack.c.bf16 %v914, %v913
  %v928 = vpack.c.bf16 %v916, %v915
  %v929 = vpack.c.bf16 %v918, %v917
  %v930 = vpack.c.bf16 %v920, %v919
  %v931 = vpack.c.bf16 %v922, %v921
  %v932 = vpack.c.bf16 %v924, %v923
  %v941 = vunpack.c.l.b16 %v925
  %v942 = vunpack.c.h.b16 %v925
  %v943 = vunpack.c.l.b16 %v926
  %v944 = vunpack.c.h.b16 %v926
  %v945 = vunpack.c.l.b16 %v927
  %v946 = vunpack.c.h.b16 %v927
  %v947 = vunpack.c.l.b16 %v928
  %v948 = vunpack.c.h.b16 %v928
  %v949 = vunpack.c.l.b16 %v929
  %v950 = vunpack.c.h.b16 %v929
  %v951 = vunpack.c.l.b16 %v930
  %v952 = vunpack.c.h.b16 %v930
  %v953 = vunpack.c.l.b16 %v931
  %v954 = vunpack.c.h.b16 %v931
  %v955 = vunpack.c.l.b16 %v932
  %v956 = vunpack.c.h.b16 %v932
  %v957 = vpack.c.b16 %v941, %v941
  %v958 = vpack.c.b16 %v942, %v942
  %v959 = vpack.c.b16 %v943, %v943
  %v960 = vpack.c.b16 %v944, %v944
  %v961 = vpack.c.b16 %v945, %v945
  %v962 = vpack.c.b16 %v946, %v946
  %v963 = vpack.c.b16 %v947, %v947
  %v964 = vpack.c.b16 %v948, %v948
  %v965 = vpack.c.b16 %v949, %v949
  %v966 = vpack.c.b16 %v950, %v950
  %v967 = vpack.c.b16 %v951, %v951
  %v968 = vpack.c.b16 %v952, %v952
  %v969 = vpack.c.b16 %v953, %v953
  %v970 = vpack.c.b16 %v954, %v954
  %v971 = vpack.c.b16 %v955, %v955
  %v972 = vpack.c.b16 %v956, %v956
  %989 = vst [vmem:[%s3] sm:$0xf] %v957
  %990 = vst [vmem:[%s3 + $0x4] sm:$0xf] %v958
  %991 = vst [vmem:[%s3 + $0x8] sm:$0xf] %v959
  %992 = vst [vmem:[%s3 + $0xc] sm:$0xf] %v960
  %993 = vst [vmem:[%s3 + $0x10] sm:$0xf] %v961
  %994 = vst [vmem:[%s3 + $0x14] sm:$0xf] %v962
  %995 = vst [vmem:[%s3 + $0x18] sm:$0xf] %v963
  %996 = vst [vmem:[%s3 + $0x1c] sm:$0xf] %v964
  %997 = vst [vmem:[%s3 + $0x20] sm:$0xf] %v965
  %998 = vst [vmem:[%s3 + $0x24] sm:$0xf] %v966
  %999 = vst [vmem:[%s3 + $0x28] sm:$0xf] %v967
  %1000 = vst [vmem:[%s3 + $0x2c] sm:$0xf] %v968
  %1001 = vst [vmem:[%s3 + $0x30] sm:$0xf] %v969
  %1002 = vst [vmem:[%s3 + $0x34] sm:$0xf] %v970
  %1003 = vst [vmem:[%s3 + $0x38] sm:$0xf] %v971
  %1004 = vst [vmem:[%s3 + $0x3c] sm:$0xf] %v972
  // Predicated region
  $region14: #{forward.8} parent=0 // pred_check
    _
  $region15: #{forward.8} parent=0 // pred_check_branch
    %1006 = sbr.rel (0) target = $region17
  $region16: #{forward.8} parent=0 // pred_region
    _
  $region17: #{forward.8} parent=0 // pred_fallthru
    _
  // Predicated region
  $region18: #{forward.8} parent=0 // pred_check
    _
  $region19: #{forward.8} parent=0 // pred_check_branch
    %1008 = sbr.rel (0) target = $region21
  $region20: #{forward.8} parent=0 // pred_region
    _
  $region21: #{forward.8} parent=0 // pred_fallthru
    _

// kernel: forward.9
$region0: #{forward.9}
  #allocation0 [shape = 'u32[]', space=smem, size = 0x4, offset = 0x4, fixed_abs, tag = 'smem constant byte address 0x4 - core index']
  #allocation1 [shape = 'u32[144,128]{1,0:T(1,128)}', space=vmem, size = 0x12000, scoped, tag = 'internal scratch']
  %s0 = inlined_call_operand.vmem [shape: bf16[512,288], index: 0, kind: input, shape index: {}]
  %s1 = inlined_call_operand.vmem [shape: bf16[288,64], index: 1, kind: input, shape index: {}]
  %s2 = inlined_call_operand.vmem [shape: f32[2,64], index: 2, kind: input, shape index: {}]
  %s3 = inlined_call_operand.vmem [shape: bf16[512,64], index: 3, kind: output, shape index: {}]
  %s4 = sld [smem:[#allocation0]]
  $region22: #{forward.9} parent=0
    _
  %s6 = ssub.s32 1, %s4
  %s7 = scalar_select 0, %s6, %s4
  // Predicated region
  $region2: #{forward.9} parent=0 // pred_check
    _
  $region3: #{forward.9} parent=0 // pred_check_branch
    %9 = sbr.rel (0) target = $region5
  $region4: #{forward.9} parent=0 // pred_region
    _
  $region5: #{forward.9} parent=0 // pred_fallthru
    _
  // Predicated region
  $region6: #{forward.9} parent=0 // pred_check
    _
  $region7: #{forward.9} parent=0 // pred_check_branch
    %11 = sbr.rel (0) target = $region9
  $region8: #{forward.9} parent=0 // pred_region
    _
  $region9: #{forward.9} parent=0 // pred_fallthru
    _
  // Predicated region
  $region10: #{forward.9} parent=0 // pred_check
    _
  $region11: #{forward.9} parent=0 // pred_check_branch
    %13 = sbr.rel (0) target = $region13
  $region12: #{forward.9} parent=0 // pred_region
    _
  $region13: #{forward.9} parent=0 // pred_fallthru
    _
  %v15 = vld [vmem:[%s0] sm:$0xff]
  %v16 = vld [vmem:[%s0 + $0x8] sm:$0xf]
  %v17 = vld [vmem:[%s0 + $0xc] sm:$0xff]
  %v18 = vld [vmem:[%s0 + $0x14] sm:$0xf]
  %v19 = vld [vmem:[%s0 + $0x18] sm:$0xff]
  %v20 = vld [vmem:[%s0 + $0x20] sm:$0xf]
  %v21 = vld [vmem:[%s0 + $0x24] sm:$0xff]
  %v22 = vld [vmem:[%s0 + $0x2c] sm:$0xf]
  %v23 = vld [vmem:[%s0 + $0x30] sm:$0xff]
  %v24 = vld [vmem:[%s0 + $0x38] sm:$0xf]
  %v25 = vld [vmem:[%s0 + $0x3c] sm:$0xff]
  %v26 = vld [vmem:[%s0 + $0x44] sm:$0xf]
  %v27 = vld [vmem:[%s0 + $0x48] sm:$0xff]
  %v28 = vld [vmem:[%s0 + $0x50] sm:$0xf]
  %v29 = vld [vmem:[%s0 + $0x54] sm:$0xff]
  %v30 = vld [vmem:[%s0 + $0x5c] sm:$0xf]
  %v31 = vld [vmem:[%s0 + $0x60] sm:$0xff]
  %v32 = vld [vmem:[%s0 + $0x68] sm:$0xf]
  %v33 = vld [vmem:[%s0 + $0x6c] sm:$0xff]
  %v34 = vld [vmem:[%s0 + $0x74] sm:$0xf]
  %v35 = vld [vmem:[%s0 + $0x78] sm:$0xff]
  %v36 = vld [vmem:[%s0 + $0x80] sm:$0xf]
  %v37 = vld [vmem:[%s0 + $0x84] sm:$0xff]
  %v38 = vld [vmem:[%s0 + $0x8c] sm:$0xf]
  %v39 = vld [vmem:[%s0 + $0x90] sm:$0xff]
  %v40 = vld [vmem:[%s0 + $0x98] sm:$0xf]
  %v41 = vld [vmem:[%s0 + $0x9c] sm:$0xff]
  %v42 = vld [vmem:[%s0 + $0xa4] sm:$0xf]
  %v43 = vld [vmem:[%s0 + $0xa8] sm:$0xff]
  %v44 = vld [vmem:[%s0 + $0xb0] sm:$0xf]
  %v45 = vld [vmem:[%s0 + $0xb4] sm:$0xff]
  %v46 = vld [vmem:[%s0 + $0xbc] sm:$0xf]
  %v47 = vld [vmem:[%s0 + $0xc0] sm:$0xff]
  %v48 = vld [vmem:[%s0 + $0xc8] sm:$0xf]
  %v49 = vld [vmem:[%s0 + $0xcc] sm:$0xff]
  %v50 = vld [vmem:[%s0 + $0xd4] sm:$0xf]
  %v51 = vld [vmem:[%s0 + $0xd8] sm:$0xff]
  %v52 = vld [vmem:[%s0 + $0xe0] sm:$0xf]
  %v53 = vld [vmem:[%s0 + $0xe4] sm:$0xff]
  %v54 = vld [vmem:[%s0 + $0xec] sm:$0xf]
  %v55 = vld [vmem:[%s0 + $0xf0] sm:$0xff]
  %v56 = vld [vmem:[%s0 + $0xf8] sm:$0xf]
  %v57 = vld [vmem:[%s0 + $0xfc] sm:$0xff]
  %v58 = vld [vmem:[%s0 + $0x104] sm:$0xf]
  %v59 = vld [vmem:[%s0 + $0x108] sm:$0xff]
  %v60 = vld [vmem:[%s0 + $0x110] sm:$0xf]
  %v61 = vld [vmem:[%s0 + $0x114] sm:$0xff]
  %v62 = vld [vmem:[%s0 + $0x11c] sm:$0xf]
  %v63 = vld [vmem:[%s0 + $0x120] sm:$0xff]
  %v64 = vld [vmem:[%s0 + $0x128] sm:$0xf]
  %v65 = vld [vmem:[%s0 + $0x12c] sm:$0xff]
  %v66 = vld [vmem:[%s0 + $0x134] sm:$0xf]
  %v67 = vld [vmem:[%s0 + $0x138] sm:$0xff]
  %v68 = vld [vmem:[%s0 + $0x140] sm:$0xf]
  %v69 = vld [vmem:[%s0 + $0x144] sm:$0xff]
  %v70 = vld [vmem:[%s0 + $0x14c] sm:$0xf]
  %v71 = vld [vmem:[%s0 + $0x150] sm:$0xff]
  %v72 = vld [vmem:[%s0 + $0x158] sm:$0xf]
  %v73 = vld [vmem:[%s0 + $0x15c] sm:$0xff]
  %v74 = vld [vmem:[%s0 + $0x164] sm:$0xf]
  %v75 = vld [vmem:[%s0 + $0x168] sm:$0xff]
  %v76 = vld [vmem:[%s0 + $0x170] sm:$0xf]
  %v77 = vld [vmem:[%s0 + $0x174] sm:$0xff]
  %v78 = vld [vmem:[%s0 + $0x17c] sm:$0xf]
  %v79 = vld [vmem:[%s0 + $0x180] sm:$0xff]
  %v80 = vld [vmem:[%s0 + $0x188] sm:$0xf]
  %v81 = vld [vmem:[%s0 + $0x18c] sm:$0xff]
  %v82 = vld [vmem:[%s0 + $0x194] sm:$0xf]
  %v83 = vld [vmem:[%s0 + $0x198] sm:$0xff]
  %v84 = vld [vmem:[%s0 + $0x1a0] sm:$0xf]
  %v85 = vld [vmem:[%s0 + $0x1a4] sm:$0xff]
  %v86 = vld [vmem:[%s0 + $0x1ac] sm:$0xf]
  %v87 = vld [vmem:[%s0 + $0x1b0] sm:$0xff]
  %v88 = vld [vmem:[%s0 + $0x1b8] sm:$0xf]
  %v89 = vld [vmem:[%s0 + $0x1bc] sm:$0xff]
  %v90 = vld [vmem:[%s0 + $0x1c4] sm:$0xf]
  %v91 = vld [vmem:[%s0 + $0x1c8] sm:$0xff]
  %v92 = vld [vmem:[%s0 + $0x1d0] sm:$0xf]
  %v93 = vld [vmem:[%s0 + $0x1d4] sm:$0xff]
  %v94 = vld [vmem:[%s0 + $0x1dc] sm:$0xf]
  %v95 = vld [vmem:[%s0 + $0x1e0] sm:$0xff]
  %v96 = vld [vmem:[%s0 + $0x1e8] sm:$0xf]
  %v97 = vld [vmem:[%s0 + $0x1ec] sm:$0xff]
  %v98 = vld [vmem:[%s0 + $0x1f4] sm:$0xf]
  %v99 = vld [vmem:[%s0 + $0x1f8] sm:$0xff]
  %v100 = vld [vmem:[%s0 + $0x200] sm:$0xf]
  %v101 = vld [vmem:[%s0 + $0x204] sm:$0xff]
  %v102 = vld [vmem:[%s0 + $0x20c] sm:$0xf]
  %v103 = vld [vmem:[%s0 + $0x210] sm:$0xff]
  %v104 = vld [vmem:[%s0 + $0x218] sm:$0xf]
  %v105 = vld [vmem:[%s0 + $0x21c] sm:$0xff]
  %v106 = vld [vmem:[%s0 + $0x224] sm:$0xf]
  %v107 = vld [vmem:[%s0 + $0x228] sm:$0xff]
  %v108 = vld [vmem:[%s0 + $0x230] sm:$0xf]
  %v109 = vld [vmem:[%s0 + $0x234] sm:$0xff]
  %v110 = vld [vmem:[%s0 + $0x23c] sm:$0xf]
  %v111 = vld [vmem:[%s0 + $0x240] sm:$0xff]
  %v112 = vld [vmem:[%s0 + $0x248] sm:$0xf]
  %v113 = vld [vmem:[%s0 + $0x24c] sm:$0xff]
  %v114 = vld [vmem:[%s0 + $0x254] sm:$0xf]
  %v115 = vld [vmem:[%s0 + $0x258] sm:$0xff]
  %v116 = vld [vmem:[%s0 + $0x260] sm:$0xf]
  %v117 = vld [vmem:[%s0 + $0x264] sm:$0xff]
  %v118 = vld [vmem:[%s0 + $0x26c] sm:$0xf]
  %v119 = vld [vmem:[%s0 + $0x270] sm:$0xff]
  %v120 = vld [vmem:[%s0 + $0x278] sm:$0xf]
  %v121 = vld [vmem:[%s0 + $0x27c] sm:$0xff]
  %v122 = vld [vmem:[%s0 + $0x284] sm:$0xf]
  %v123 = vld [vmem:[%s0 + $0x288] sm:$0xff]
  %v124 = vld [vmem:[%s0 + $0x290] sm:$0xf]
  %v125 = vld [vmem:[%s0 + $0x294] sm:$0xff]
  %v126 = vld [vmem:[%s0 + $0x29c] sm:$0xf]
  %v127 = vld [vmem:[%s0 + $0x2a0] sm:$0xff]
  %v128 = vld [vmem:[%s0 + $0x2a8] sm:$0xf]
  %v129 = vld [vmem:[%s0 + $0x2ac] sm:$0xff]
  %v130 = vld [vmem:[%s0 + $0x2b4] sm:$0xf]
  %v131 = vld [vmem:[%s0 + $0x2b8] sm:$0xff]
  %v132 = vld [vmem:[%s0 + $0x2c0] sm:$0xf]
  %v133 = vld [vmem:[%s0 + $0x2c4] sm:$0xff]
  %v134 = vld [vmem:[%s0 + $0x2cc] sm:$0xf]
  %v135 = vld [vmem:[%s0 + $0x2d0] sm:$0xff]
  %v136 = vld [vmem:[%s0 + $0x2d8] sm:$0xf]
  %v137 = vld [vmem:[%s0 + $0x2dc] sm:$0xff]
  %v138 = vld [vmem:[%s0 + $0x2e4] sm:$0xf]
  %v139 = vld [vmem:[%s0 + $0x2e8] sm:$0xff]
  %v140 = vld [vmem:[%s0 + $0x2f0] sm:$0xf]
  %v141 = vld [vmem:[%s0 + $0x2f4] sm:$0xff]
  %v142 = vld [vmem:[%s0 + $0x2fc] sm:$0xf]
  %v143 = vld [vmem:[%s1] sm:$0xf]
  %v144 = vld [vmem:[%s1 + $0x4] sm:$0xf]
  %v145 = vld [vmem:[%s1 + $0x8] sm:$0xf]
  %v146 = vld [vmem:[%s1 + $0xc] sm:$0xf]
  %v147 = vld [vmem:[%s1 + $0x10] sm:$0xf]
  %v148 = vld [vmem:[%s1 + $0x14] sm:$0xf]
  %v149 = vld [vmem:[%s1 + $0x18] sm:$0xf]
  %v150 = vld [vmem:[%s1 + $0x1c] sm:$0xf]
  %v151 = vld [vmem:[%s1 + $0x20] sm:$0xf]
  %v152 = vld [vmem:[%s1 + $0x24] sm:$0xf]
  %v153 = vld [vmem:[%s1 + $0x28] sm:$0xf]
  %v154 = vld [vmem:[%s1 + $0x2c] sm:$0xf]
  %v155 = vld [vmem:[%s1 + $0x30] sm:$0xf]
  %v156 = vld [vmem:[%s1 + $0x34] sm:$0xf]
  %v157 = vld [vmem:[%s1 + $0x38] sm:$0xf]
  %v158 = vld [vmem:[%s1 + $0x3c] sm:$0xf]
  %v159 = vld [vmem:[%s1 + $0x40] sm:$0xf]
  %v160 = vld [vmem:[%s1 + $0x44] sm:$0xf]
  %v161 = vld [vmem:[%s1 + $0x48] sm:$0xf]
  %v162 = vld [vmem:[%s1 + $0x4c] sm:$0xf]
  %v163 = vld [vmem:[%s1 + $0x50] sm:$0xf]
  %v164 = vld [vmem:[%s1 + $0x54] sm:$0xf]
  %v165 = vld [vmem:[%s1 + $0x58] sm:$0xf]
  %v166 = vld [vmem:[%s1 + $0x5c] sm:$0xf]
  %v167 = vld [vmem:[%s1 + $0x60] sm:$0xf]
  %v168 = vld [vmem:[%s1 + $0x64] sm:$0xf]
  %v169 = vld [vmem:[%s1 + $0x68] sm:$0xf]
  %v170 = vld [vmem:[%s1 + $0x6c] sm:$0xf]
  %v171 = vld [vmem:[%s1 + $0x70] sm:$0xf]
  %v172 = vld [vmem:[%s1 + $0x74] sm:$0xf]
  %v173 = vld [vmem:[%s1 + $0x78] sm:$0xf]
  %v174 = vld [vmem:[%s1 + $0x7c] sm:$0xf]
  %v175 = vld [vmem:[%s1 + $0x80] sm:$0xf]
  %v176 = vld [vmem:[%s1 + $0x84] sm:$0xf]
  %v177 = vld [vmem:[%s1 + $0x88] sm:$0xf]
  %v178 = vld [vmem:[%s1 + $0x8c] sm:$0xf]
  %v307 = vunpack.c.l.b16 %v15
  %v308 = vunpack.c.h.b16 %v15
  %v309 = vunpack.c.l.b16 %v16
  %v310 = vunpack.c.l.b16 %v17
  %v311 = vunpack.c.h.b16 %v17
  %v312 = vunpack.c.l.b16 %v18
  %v313 = vunpack.c.l.b16 %v19
  %v314 = vunpack.c.h.b16 %v19
  %v315 = vunpack.c.l.b16 %v20
  %v316 = vunpack.c.l.b16 %v21
  %v317 = vunpack.c.h.b16 %v21
  %v318 = vunpack.c.l.b16 %v22
  %v319 = vunpack.c.l.b16 %v23
  %v320 = vunpack.c.h.b16 %v23
  %v321 = vunpack.c.l.b16 %v24
  %v322 = vunpack.c.l.b16 %v25
  %v323 = vunpack.c.h.b16 %v25
  %v324 = vunpack.c.l.b16 %v26
  %v325 = vunpack.c.l.b16 %v27
  %v326 = vunpack.c.h.b16 %v27
  %v327 = vunpack.c.l.b16 %v28
  %v328 = vunpack.c.l.b16 %v29
  %v329 = vunpack.c.h.b16 %v29
  %v330 = vunpack.c.l.b16 %v30
  %v331 = vunpack.c.l.b16 %v31
  %v332 = vunpack.c.h.b16 %v31
  %v333 = vunpack.c.l.b16 %v32
  %v334 = vunpack.c.l.b16 %v33
  %v335 = vunpack.c.h.b16 %v33
  %v336 = vunpack.c.l.b16 %v34
  %v337 = vunpack.c.l.b16 %v35
  %v338 = vunpack.c.h.b16 %v35
  %v339 = vunpack.c.l.b16 %v36
  %v340 = vunpack.c.l.b16 %v37
  %v341 = vunpack.c.h.b16 %v37
  %v342 = vunpack.c.l.b16 %v38
  %v343 = vunpack.c.l.b16 %v39
  %v344 = vunpack.c.h.b16 %v39
  %v345 = vunpack.c.l.b16 %v40
  %v346 = vunpack.c.l.b16 %v41
  %v347 = vunpack.c.h.b16 %v41
  %v348 = vunpack.c.l.b16 %v42
  %v349 = vunpack.c.l.b16 %v43
  %v350 = vunpack.c.h.b16 %v43
  %v351 = vunpack.c.l.b16 %v44
  %v352 = vunpack.c.l.b16 %v45
  %v353 = vunpack.c.h.b16 %v45
  %v354 = vunpack.c.l.b16 %v46
  %v355 = vunpack.c.l.b16 %v47
  %v356 = vunpack.c.h.b16 %v47
  %v357 = vunpack.c.l.b16 %v48
  %v358 = vunpack.c.l.b16 %v49
  %v359 = vunpack.c.h.b16 %v49
  %v360 = vunpack.c.l.b16 %v50
  %v361 = vunpack.c.l.b16 %v51
  %v362 = vunpack.c.h.b16 %v51
  %v363 = vunpack.c.l.b16 %v52
  %v364 = vunpack.c.l.b16 %v53
  %v365 = vunpack.c.h.b16 %v53
  %v366 = vunpack.c.l.b16 %v54
  %v367 = vunpack.c.l.b16 %v55
  %v368 = vunpack.c.h.b16 %v55
  %v369 = vunpack.c.l.b16 %v56
  %v370 = vunpack.c.l.b16 %v57
  %v371 = vunpack.c.h.b16 %v57
  %v372 = vunpack.c.l.b16 %v58
  %v373 = vunpack.c.l.b16 %v59
  %v374 = vunpack.c.h.b16 %v59
  %v375 = vunpack.c.l.b16 %v60
  %v376 = vunpack.c.l.b16 %v61
  %v377 = vunpack.c.h.b16 %v61
  %v378 = vunpack.c.l.b16 %v62
  %v379 = vunpack.c.l.b16 %v63
  %v380 = vunpack.c.h.b16 %v63
  %v381 = vunpack.c.l.b16 %v64
  %v382 = vunpack.c.l.b16 %v65
  %v383 = vunpack.c.h.b16 %v65
  %v384 = vunpack.c.l.b16 %v66
  %v385 = vunpack.c.l.b16 %v67
  %v386 = vunpack.c.h.b16 %v67
  %v387 = vunpack.c.l.b16 %v68
  %v388 = vunpack.c.l.b16 %v69
  %v389 = vunpack.c.h.b16 %v69
  %v390 = vunpack.c.l.b16 %v70
  %v391 = vunpack.c.l.b16 %v71
  %v392 = vunpack.c.h.b16 %v71
  %v393 = vunpack.c.l.b16 %v72
  %v394 = vunpack.c.l.b16 %v73
  %v395 = vunpack.c.h.b16 %v73
  %v396 = vunpack.c.l.b16 %v74
  %v397 = vunpack.c.l.b16 %v75
  %v398 = vunpack.c.h.b16 %v75
  %v399 = vunpack.c.l.b16 %v76
  %v400 = vunpack.c.l.b16 %v77
  %v401 = vunpack.c.h.b16 %v77
  %v402 = vunpack.c.l.b16 %v78
  %v403 = vunpack.c.l.b16 %v79
  %v404 = vunpack.c.h.b16 %v79
  %v405 = vunpack.c.l.b16 %v80
  %v406 = vunpack.c.l.b16 %v81
  %v407 = vunpack.c.h.b16 %v81
  %v408 = vunpack.c.l.b16 %v82
  %v409 = vunpack.c.l.b16 %v83
  %v410 = vunpack.c.h.b16 %v83
  %v411 = vunpack.c.l.b16 %v84
  %v412 = vunpack.c.l.b16 %v85
  %v413 = vunpack.c.h.b16 %v85
  %v414 = vunpack.c.l.b16 %v86
  %v415 = vunpack.c.l.b16 %v87
  %v416 = vunpack.c.h.b16 %v87
  %v417 = vunpack.c.l.b16 %v88
  %v418 = vunpack.c.l.b16 %v89
  %v419 = vunpack.c.h.b16 %v89
  %v420 = vunpack.c.l.b16 %v90
  %v421 = vunpack.c.l.b16 %v91
  %v422 = vunpack.c.h.b16 %v91
  %v423 = vunpack.c.l.b16 %v92
  %v424 = vunpack.c.l.b16 %v93
  %v425 = vunpack.c.h.b16 %v93
  %v426 = vunpack.c.l.b16 %v94
  %v427 = vunpack.c.l.b16 %v95
  %v428 = vunpack.c.h.b16 %v95
  %v429 = vunpack.c.l.b16 %v96
  %v430 = vunpack.c.l.b16 %v97
  %v431 = vunpack.c.h.b16 %v97
  %v432 = vunpack.c.l.b16 %v98
  %v433 = vunpack.c.l.b16 %v99
  %v434 = vunpack.c.h.b16 %v99
  %v435 = vunpack.c.l.b16 %v100
  %v436 = vunpack.c.l.b16 %v101
  %v437 = vunpack.c.h.b16 %v101
  %v438 = vunpack.c.l.b16 %v102
  %v439 = vunpack.c.l.b16 %v103
  %v440 = vunpack.c.h.b16 %v103
  %v441 = vunpack.c.l.b16 %v104
  %v442 = vunpack.c.l.b16 %v105
  %v443 = vunpack.c.h.b16 %v105
  %v444 = vunpack.c.l.b16 %v106
  %v445 = vunpack.c.l.b16 %v107
  %v446 = vunpack.c.h.b16 %v107
  %v447 = vunpack.c.l.b16 %v108
  %v448 = vunpack.c.l.b16 %v109
  %v449 = vunpack.c.h.b16 %v109
  %v450 = vunpack.c.l.b16 %v110
  %v451 = vunpack.c.l.b16 %v111
  %v452 = vunpack.c.h.b16 %v111
  %v453 = vunpack.c.l.b16 %v112
  %v454 = vunpack.c.l.b16 %v113
  %v455 = vunpack.c.h.b16 %v113
  %v456 = vunpack.c.l.b16 %v114
  %v457 = vunpack.c.l.b16 %v115
  %v458 = vunpack.c.h.b16 %v115
  %v459 = vunpack.c.l.b16 %v116
  %v460 = vunpack.c.l.b16 %v117
  %v461 = vunpack.c.h.b16 %v117
  %v462 = vunpack.c.l.b16 %v118
  %v463 = vunpack.c.l.b16 %v119
  %v464 = vunpack.c.h.b16 %v119
  %v465 = vunpack.c.l.b16 %v120
  %v466 = vunpack.c.l.b16 %v121
  %v467 = vunpack.c.h.b16 %v121
  %v468 = vunpack.c.l.b16 %v122
  %v469 = vunpack.c.l.b16 %v123
  %v470 = vunpack.c.h.b16 %v123
  %v471 = vunpack.c.l.b16 %v124
  %v472 = vunpack.c.l.b16 %v125
  %v473 = vunpack.c.h.b16 %v125
  %v474 = vunpack.c.l.b16 %v126
  %v475 = vunpack.c.l.b16 %v127
  %v476 = vunpack.c.h.b16 %v127
  %v477 = vunpack.c.l.b16 %v128
  %v478 = vunpack.c.l.b16 %v129
  %v479 = vunpack.c.h.b16 %v129
  %v480 = vunpack.c.l.b16 %v130
  %v481 = vunpack.c.l.b16 %v131
  %v482 = vunpack.c.h.b16 %v131
  %v483 = vunpack.c.l.b16 %v132
  %v484 = vunpack.c.l.b16 %v133
  %v485 = vunpack.c.h.b16 %v133
  %v486 = vunpack.c.l.b16 %v134
  %v487 = vunpack.c.l.b16 %v135
  %v488 = vunpack.c.h.b16 %v135
  %v489 = vunpack.c.l.b16 %v136
  %v490 = vunpack.c.l.b16 %v137
  %v491 = vunpack.c.h.b16 %v137
  %v492 = vunpack.c.l.b16 %v138
  %v493 = vunpack.c.l.b16 %v139
  %v494 = vunpack.c.h.b16 %v139
  %v495 = vunpack.c.l.b16 %v140
  %v496 = vunpack.c.l.b16 %v141
  %v497 = vunpack.c.h.b16 %v141
  %v498 = vunpack.c.l.b16 %v142
  %v499 = vpack.c.b16 %v310, %v307
  %v500 = vpack.c.b16 %v311, %v308
  %v501 = vpack.c.b16 %v312, %v309
  %v502 = vpack.c.b16 %v316, %v313
  %v503 = vpack.c.b16 %v317, %v314
  %v504 = vpack.c.b16 %v318, %v315
  %v505 = vpack.c.b16 %v322, %v319
  %v506 = vpack.c.b16 %v323, %v320
  %v507 = vpack.c.b16 %v324, %v321
  %v508 = vpack.c.b16 %v328, %v325
  %v509 = vpack.c.b16 %v329, %v326
  %v510 = vpack.c.b16 %v330, %v327
  %v511 = vpack.c.b16 %v334, %v331
  %v512 = vpack.c.b16 %v335, %v332
  %v513 = vpack.c.b16 %v336, %v333
  %v514 = vpack.c.b16 %v340, %v337
  %v515 = vpack.c.b16 %v341, %v338
  %v516 = vpack.c.b16 %v342, %v339
  %v517 = vpack.c.b16 %v346, %v343
  %v518 = vpack.c.b16 %v347, %v344
  %v519 = vpack.c.b16 %v348, %v345
  %v520 = vpack.c.b16 %v352, %v349
  %v521 = vpack.c.b16 %v353, %v350
  %v522 = vpack.c.b16 %v354, %v351
  %v523 = vpack.c.b16 %v358, %v355
  %v524 = vpack.c.b16 %v359, %v356
  %v525 = vpack.c.b16 %v360, %v357
  %v526 = vpack.c.b16 %v364, %v361
  %v527 = vpack.c.b16 %v365, %v362
  %v528 = vpack.c.b16 %v366, %v363
  %v529 = vpack.c.b16 %v370, %v367
  %v530 = vpack.c.b16 %v371, %v368
  %v531 = vpack.c.b16 %v372, %v369
  %v532 = vpack.c.b16 %v376, %v373
  %v533 = vpack.c.b16 %v377, %v374
  %v534 = vpack.c.b16 %v378, %v375
  %v535 = vpack.c.b16 %v382, %v379
  %v536 = vpack.c.b16 %v383, %v380
  %v537 = vpack.c.b16 %v384, %v381
  %v538 = vpack.c.b16 %v388, %v385
  %v539 = vpack.c.b16 %v389, %v386
  %v540 = vpack.c.b16 %v390, %v387
  %v541 = vpack.c.b16 %v394, %v391
  %v542 = vpack.c.b16 %v395, %v392
  %v543 = vpack.c.b16 %v396, %v393
  %v544 = vpack.c.b16 %v400, %v397
  %v545 = vpack.c.b16 %v401, %v398
  %v546 = vpack.c.b16 %v402, %v399
  %v547 = vpack.c.b16 %v406, %v403
  %v548 = vpack.c.b16 %v407, %v404
  %v549 = vpack.c.b16 %v408, %v405
  %v550 = vpack.c.b16 %v412, %v409
  %v551 = vpack.c.b16 %v413, %v410
  %v552 = vpack.c.b16 %v414, %v411
  %v553 = vpack.c.b16 %v418, %v415
  %v554 = vpack.c.b16 %v419, %v416
  %v555 = vpack.c.b16 %v420, %v417
  %v556 = vpack.c.b16 %v424, %v421
  %v557 = vpack.c.b16 %v425, %v422
  %v558 = vpack.c.b16 %v426, %v423
  %v559 = vpack.c.b16 %v430, %v427
  %v560 = vpack.c.b16 %v431, %v428
  %v561 = vpack.c.b16 %v432, %v429
  %v562 = vpack.c.b16 %v436, %v433
  %v563 = vpack.c.b16 %v437, %v434
  %v564 = vpack.c.b16 %v438, %v435
  %v565 = vpack.c.b16 %v442, %v439
  %v566 = vpack.c.b16 %v443, %v440
  %v567 = vpack.c.b16 %v444, %v441
  %v568 = vpack.c.b16 %v448, %v445
  %v569 = vpack.c.b16 %v449, %v446
  %v570 = vpack.c.b16 %v450, %v447
  %v571 = vpack.c.b16 %v454, %v451
  %v572 = vpack.c.b16 %v455, %v452
  %v573 = vpack.c.b16 %v456, %v453
  %v574 = vpack.c.b16 %v460, %v457
  %v575 = vpack.c.b16 %v461, %v458
  %v576 = vpack.c.b16 %v462, %v459
  %v577 = vpack.c.b16 %v466, %v463
  %v578 = vpack.c.b16 %v467, %v464
  %v579 = vpack.c.b16 %v468, %v465
  %v580 = vpack.c.b16 %v472, %v469
  %v581 = vpack.c.b16 %v473, %v470
  %v582 = vpack.c.b16 %v474, %v471
  %v583 = vpack.c.b16 %v478, %v475
  %v584 = vpack.c.b16 %v479, %v476
  %v585 = vpack.c.b16 %v480, %v477
  %v586 = vpack.c.b16 %v484, %v481
  %v587 = vpack.c.b16 %v485, %v482
  %v588 = vpack.c.b16 %v486, %v483
  %v589 = vpack.c.b16 %v490, %v487
  %v590 = vpack.c.b16 %v491, %v488
  %v591 = vpack.c.b16 %v492, %v489
  %v592 = vpack.c.b16 %v496, %v493
  %v593 = vpack.c.b16 %v497, %v494
  %v594 = vpack.c.b16 %v498, %v495
  %v695 = vunpack.c.l.b16 %v143
  %v696 = vunpack.c.l.b16 %v144
  %v697 = vunpack.c.l.b16 %v145
  %v698 = vunpack.c.l.b16 %v146
  %v699 = vunpack.c.l.b16 %v147
  %v700 = vunpack.c.l.b16 %v148
  %v701 = vunpack.c.l.b16 %v149
  %v702 = vunpack.c.l.b16 %v150
  %v703 = vunpack.c.l.b16 %v151
  %v704 = vunpack.c.l.b16 %v152
  %v705 = vunpack.c.l.b16 %v153
  %v706 = vunpack.c.l.b16 %v154
  %v707 = vunpack.c.l.b16 %v155
  %v708 = vunpack.c.l.b16 %v156
  %v709 = vunpack.c.l.b16 %v157
  %v710 = vunpack.c.l.b16 %v158
  %v711 = vunpack.c.l.b16 %v159
  %v712 = vunpack.c.l.b16 %v160
  %v713 = vunpack.c.l.b16 %v161
  %v714 = vunpack.c.l.b16 %v162
  %v715 = vunpack.c.l.b16 %v163
  %v716 = vunpack.c.l.b16 %v164
  %v717 = vunpack.c.l.b16 %v165
  %v718 = vunpack.c.l.b16 %v166
  %v719 = vunpack.c.l.b16 %v167
  %v720 = vunpack.c.l.b16 %v168
  %v721 = vunpack.c.l.b16 %v169
  %v722 = vunpack.c.l.b16 %v170
  %v723 = vunpack.c.l.b16 %v171
  %v724 = vunpack.c.l.b16 %v172
  %v725 = vunpack.c.l.b16 %v173
  %v726 = vunpack.c.l.b16 %v174
  %v727 = vunpack.c.l.b16 %v175
  %v728 = vunpack.c.l.b16 %v176
  %v729 = vunpack.c.l.b16 %v177
  %v730 = vunpack.c.l.b16 %v178
  %v731 = vpack.c.b16 %v696, %v695
  %v732 = vpack.c.b16 %v698, %v697
  %v733 = vpack.c.b16 %v700, %v699
  %v734 = vpack.c.b16 %v702, %v701
  %v735 = vpack.c.b16 %v704, %v703
  %v736 = vpack.c.b16 %v706, %v705
  %v737 = vpack.c.b16 %v708, %v707
  %v738 = vpack.c.b16 %v710, %v709
  %v739 = vpack.c.b16 %v712, %v711
  %v740 = vpack.c.b16 %v714, %v713
  %v741 = vpack.c.b16 %v716, %v715
  %v742 = vpack.c.b16 %v718, %v717
  %v743 = vpack.c.b16 %v720, %v719
  %v744 = vpack.c.b16 %v722, %v721
  %v745 = vpack.c.b16 %v724, %v723
  %v746 = vpack.c.b16 %v726, %v725
  %v747 = vpack.c.b16 %v728, %v727
  %v748 = vpack.c.b16 %v730, %v729
  %vm767 = vcmask 261120
  %v769 = vsel %vm767, %v501, 0
  %v772 = vsel %vm767, %v504, 0
  %v775 = vsel %vm767, %v507, 0
  %v778 = vsel %vm767, %v510, 0
  %v781 = vsel %vm767, %v513, 0
  %v784 = vsel %vm767, %v516, 0
  %v787 = vsel %vm767, %v519, 0
  %v790 = vsel %vm767, %v522, 0
  %v793 = vsel %vm767, %v525, 0
  %v796 = vsel %vm767, %v528, 0
  %v799 = vsel %vm767, %v531, 0
  %v802 = vsel %vm767, %v534, 0
  %v805 = vsel %vm767, %v537, 0
  %v808 = vsel %vm767, %v540, 0
  %v811 = vsel %vm767, %v543, 0
  %v814 = vsel %vm767, %v546, 0
  %v817 = vsel %vm767, %v549, 0
  %v820 = vsel %vm767, %v552, 0
  %v823 = vsel %vm767, %v555, 0
  %v826 = vsel %vm767, %v558, 0
  %v829 = vsel %vm767, %v561, 0
  %v832 = vsel %vm767, %v564, 0
  %v835 = vsel %vm767, %v567, 0
  %v838 = vsel %vm767, %v570, 0
  %v841 = vsel %vm767, %v573, 0
  %v844 = vsel %vm767, %v576, 0
  %v847 = vsel %vm767, %v579, 0
  %v850 = vsel %vm767, %v582, 0
  %v853 = vsel %vm767, %v585, 0
  %v856 = vsel %vm767, %v588, 0
  %v859 = vsel %vm767, %v591, 0
  %v862 = vsel %vm767, %v594, 0
  %864 = vmatprep.subr.bf16.mxu0 0
  %865 = vmatpush1.bf16.msra.mxu0 %v731
  %866 = vmatprep.subr.bf16.mxu0 0
  %867 = vmatpush1.bf16.msra.mxu0 %v732
  %868 = vmatprep.subr.bf16.mxu0 0
  %869 = vmatpush1.bf16.msra.mxu0 %v733
  %870 = vmatprep.subr.bf16.mxu0 0
  %871 = vmatpush1.bf16.msra.mxu0 %v734
  %872 = vmatprep.subr.bf16.mxu0 0
  %873 = vmatpush1.bf16.msra.mxu0 %v735
  %874 = vmatprep.subr.bf16.mxu0 0
  %875 = vmatpush1.bf16.msra.mxu0 %v736
  %876 = vmatprep.subr.bf16.mxu0 0
  %877 = vmatpush1.bf16.msra.mxu0 %v737
  %878 = vmatprep.subr.bf16.mxu0 0
  %879 = vmatpush1.bf16.msra.mxu0 %v738
  %880 = vmatprep.subr.bf16.mxu0 0
  %881 = vmatpush1.bf16.msra.mxu0 %v739
  %882 = vmatprep.subr.bf16.mxu0 0
  %883 = vmatpush1.bf16.msra.mxu0 %v740
  %884 = vmatprep.subr.bf16.mxu0 0
  %885 = vmatpush1.bf16.msra.mxu0 %v741
  %886 = vmatprep.subr.bf16.mxu0 0
  %887 = vmatpush1.bf16.msra.mxu0 %v742
  %888 = vmatprep.subr.bf16.mxu0 0
  %889 = vmatpush1.bf16.msra.mxu0 %v743
  %890 = vmatprep.subr.bf16.mxu0 0
  %891 = vmatpush1.bf16.msra.mxu0 %v744
  %892 = vmatprep.subr.bf16.mxu0 0
  %893 = vmatpush1.bf16.msra.mxu0 %v745
  %894 = vmatprep.subr.bf16.mxu0 0
  %895 = vmatpush1.bf16.msra.mxu0 %v746
  %896 = vmatprep.mubr.bf16.mxu0 %v500
  %897 = vmatmul.mubr.bf16.gmra.mrb[0].mxu0 %v499
  %v898 = vpop.f32.mrb[0].mxu0
  %v899 = vadd.f32 0.0, %v898
  %v900 = vpop.f32.mrb[0].mxu0
  %v901 = vpop.f32.mrb[0].mxu0
  %v902 = vadd.f32 0.0, %v901
  %v903 = vpop.f32.mrb[0].mxu0
  %904 = vmatprep.mubr.bf16.mxu0 %v503
  %905 = vmatmul.mubr.bf16.gmra.mrb[0].mxu0 %v502
  %v906 = vpop.f32.mrb[0].mxu0
  %v907 = vadd.f32 0.0, %v906
  %v908 = vpop.f32.mrb[0].mxu0
  %v909 = vpop.f32.mrb[0].mxu0
  %v910 = vadd.f32 0.0, %v909
  %v911 = vpop.f32.mrb[0].mxu0
  %912 = vmatprep.mubr.bf16.mxu0 %v506
  %913 = vmatmul.mubr.bf16.gmra.mrb[0].mxu0 %v505
  %v914 = vpop.f32.mrb[0].mxu0
  %v915 = vadd.f32 0.0, %v914
  %v916 = vpop.f32.mrb[0].mxu0
  %v917 = vpop.f32.mrb[0].mxu0
  %v918 = vadd.f32 0.0, %v917
  %v919 = vpop.f32.mrb[0].mxu0
  %920 = vmatprep.mubr.bf16.mxu0 %v509
  %921 = vmatmul.mubr.bf16.gmra.mrb[0].mxu0 %v508
  %v922 = vpop.f32.mrb[0].mxu0
  %v923 = vadd.f32 0.0, %v922
  %v924 = vpop.f32.mrb[0].mxu0
  %v925 = vpop.f32.mrb[0].mxu0
  %v926 = vadd.f32 0.0, %v925
  %v927 = vpop.f32.mrb[0].mxu0
  %928 = vmatprep.mubr.bf16.mxu0 %v512
  %929 = vmatmul.mubr.bf16.gmra.mrb[0].mxu0 %v511
  %v930 = vpop.f32.mrb[0].mxu0
  %v931 = vadd.f32 0.0, %v930
  %v932 = vpop.f32.mrb[0].mxu0
  %v933 = vpop.f32.mrb[0].mxu0
  %v934 = vadd.f32 0.0, %v933
  %v935 = vpop.f32.mrb[0].mxu0
  %936 = vmatprep.mubr.bf16.mxu0 %v515
  %937 = vmatmul.mubr.bf16.gmra.mrb[0].mxu0 %v514
  %v938 = vpop.f32.mrb[0].mxu0
  %v939 = vadd.f32 0.0, %v938
  %v940 = vpop.f32.mrb[0].mxu0
  %v941 = vpop.f32.mrb[0].mxu0
  %v942 = vadd.f32 0.0, %v941
  %v943 = vpop.f32.mrb[0].mxu0
  %944 = vmatprep.mubr.bf16.mxu0 %v518
  %945 = vmatmul.mubr.bf16.gmra.mrb[0].mxu0 %v517
  %v946 = vpop.f32.mrb[0].mxu0
  %v947 = vadd.f32 0.0, %v946
  %v948 = vpop.f32.mrb[0].mxu0
  %v949 = vpop.f32.mrb[0].mxu0
  %v950 = vadd.f32 0.0, %v949
  %v951 = vpop.f32.mrb[0].mxu0
  %952 = vmatprep.mubr.bf16.mxu0 %v521
  %953 = vmatmul.mubr.bf16.gmra.mrb[0].mxu0 %v520
  %v954 = vpop.f32.mrb[0].mxu0
  %v955 = vadd.f32 0.0, %v954
  %v956 = vpop.f32.mrb[0].mxu0
  %v957 = vpop.f32.mrb[0].mxu0
  %v958 = vadd.f32 0.0, %v957
  %v959 = vpop.f32.mrb[0].mxu0
  %960 = vmatprep.mubr.bf16.mxu0 %v524
  %961 = vmatmul.mubr.bf16.gmra.mrb[0].mxu0 %v523
  %v962 = vpop.f32.mrb[0].mxu0
  %v963 = vadd.f32 0.0, %v962
  %v964 = vpop.f32.mrb[0].mxu0
  %v965 = vpop.f32.mrb[0].mxu0
  %v966 = vadd.f32 0.0, %v965
  %v967 = vpop.f32.mrb[0].mxu0
  %968 = vmatprep.mubr.bf16.mxu0 %v527
  %969 = vmatmul.mubr.bf16.gmra.mrb[0].mxu0 %v526
  %v970 = vpop.f32.mrb[0].mxu0
  %v971 = vadd.f32 0.0, %v970
  %v972 = vpop.f32.mrb[0].mxu0
  %v973 = vpop.f32.mrb[0].mxu0
  %v974 = vadd.f32 0.0, %v973
  %v975 = vpop.f32.mrb[0].mxu0
  %976 = vmatprep.mubr.bf16.mxu0 %v530
  %977 = vmatmul.mubr.bf16.gmra.mrb[0].mxu0 %v529
  %v978 = vpop.f32.mrb[0].mxu0
  %v979 = vadd.f32 0.0, %v978
  %v980 = vpop.f32.mrb[0].mxu0
  %v981 = vpop.f32.mrb[0].mxu0
  %v982 = vadd.f32 0.0, %v981
  %v983 = vpop.f32.mrb[0].mxu0
  %984 = vmatprep.mubr.bf16.mxu0 %v533
  %985 = vmatmul.mubr.bf16.gmra.mrb[0].mxu0 %v532
  %v986 = vpop.f32.mrb[0].mxu0
  %v987 = vadd.f32 0.0, %v986
  %v988 = vpop.f32.mrb[0].mxu0
  %v989 = vpop.f32.mrb[0].mxu0
  %v990 = vadd.f32 0.0, %v989
  %v991 = vpop.f32.mrb[0].mxu0
  %992 = vmatprep.mubr.bf16.mxu0 %v536
  %993 = vmatmul.mubr.bf16.gmra.mrb[0].mxu0 %v535
  %v994 = vpop.f32.mrb[0].mxu0
  %v995 = vadd.f32 0.0, %v994
  %v996 = vpop.f32.mrb[0].mxu0
  %v997 = vpop.f32.mrb[0].mxu0
  %v998 = vadd.f32 0.0, %v997
  %v999 = vpop.f32.mrb[0].mxu0
  %1000 = vmatprep.mubr.bf16.mxu0 %v539
  %1001 = vmatmul.mubr.bf16.gmra.mrb[0].mxu0 %v538
  %v1002 = vpop.f32.mrb[0].mxu0
  %v1003 = vadd.f32 0.0, %v1002
  %v1004 = vpop.f32.mrb[0].mxu0
  %v1005 = vpop.f32.mrb[0].mxu0
  %v1006 = vadd.f32 0.0, %v1005
  %v1007 = vpop.f32.mrb[0].mxu0
  %1008 = vmatprep.mubr.bf16.mxu0 %v542
  %1009 = vmatmul.mubr.bf16.gmra.mrb[0].mxu0 %v541
  %v1010 = vpop.f32.mrb[0].mxu0
  %v1011 = vadd.f32 0.0, %v1010
  %v1012 = vpop.f32.mrb[0].mxu0
  %v1013 = vpop.f32.mrb[0].mxu0
  %v1014 = vadd.f32 0.0, %v1013
  %v1015 = vpop.f32.mrb[0].mxu0
  %1016 = vmatprep.mubr.bf16.mxu0 %v545
  %1017 = vmatmul.mubr.bf16.gmra.mrb[0].mxu0 %v544
  %v1018 = vpop.f32.mrb[0].mxu0
  %v1019 = vadd.f32 0.0, %v1018
  %v1020 = vpop.f32.mrb[0].mxu0
  %v1021 = vpop.f32.mrb[0].mxu0
  %v1022 = vadd.f32 0.0, %v1021
  %v1023 = vpop.f32.mrb[0].mxu0
  %1024 = vmatprep.mubr.bf16.mxu0 %v548
  %1025 = vmatmul.mubr.bf16.gmra.mrb[0].mxu0 %v547
  %v1026 = vpop.f32.mrb[0].mxu0
  %v1027 = vadd.f32 0.0, %v1026
  %v1028 = vpop.f32.mrb[0].mxu0
  %v1029 = vpop.f32.mrb[0].mxu0
  %v1030 = vadd.f32 0.0, %v1029
  %v1031 = vpop.f32.mrb[0].mxu0
  %1032 = vmatprep.mubr.bf16.mxu0 %v551
  %1033 = vmatmul.mubr.bf16.gmra.mrb[0].mxu0 %v550
  %v1034 = vpop.f32.mrb[0].mxu0
  %v1035 = vadd.f32 0.0, %v1034
  %v1036 = vpop.f32.mrb[0].mxu0
  %v1037 = vpop.f32.mrb[0].mxu0
  %v1038 = vadd.f32 0.0, %v1037
  %v1039 = vpop.f32.mrb[0].mxu0
  %1040 = vmatprep.mubr.bf16.mxu0 %v554
  %1041 = vmatmul.mubr.bf16.gmra.mrb[0].mxu0 %v553
  %v1042 = vpop.f32.mrb[0].mxu0
  %v1043 = vadd.f32 0.0, %v1042
  %v1044 = vpop.f32.mrb[0].mxu0
  %v1045 = vpop.f32.mrb[0].mxu0
  %v1046 = vadd.f32 0.0, %v1045
  %v1047 = vpop.f32.mrb[0].mxu0
  %1048 = vmatprep.mubr.bf16.mxu0 %v557
  %1049 = vmatmul.mubr.bf16.gmra.mrb[0].mxu0 %v556
  %v1050 = vpop.f32.mrb[0].mxu0
  %v1051 = vadd.f32 0.0, %v1050
  %v1052 = vpop.f32.mrb[0].mxu0
  %v1053 = vpop.f32.mrb[0].mxu0
  %v1054 = vadd.f32 0.0, %v1053
  %v1055 = vpop.f32.mrb[0].mxu0
  %1056 = vmatprep.mubr.bf16.mxu0 %v560
  %1057 = vmatmul.mubr.bf16.gmra.mrb[0].mxu0 %v559
  %v1058 = vpop.f32.mrb[0].mxu0
  %v1059 = vadd.f32 0.0, %v1058
  %v1060 = vpop.f32.mrb[0].mxu0
  %v1061 = vpop.f32.mrb[0].mxu0
  %v1062 = vadd.f32 0.0, %v1061
  %v1063 = vpop.f32.mrb[0].mxu0
  %1064 = vmatprep.mubr.bf16.mxu0 %v563
  %1065 = vmatmul.mubr.bf16.gmra.mrb[0].mxu0 %v562
  %v1066 = vpop.f32.mrb[0].mxu0
  %v1067 = vadd.f32 0.0, %v1066
  %v1068 = vpop.f32.mrb[0].mxu0
  %v1069 = vpop.f32.mrb[0].mxu0
  %v1070 = vadd.f32 0.0, %v1069
  %v1071 = vpop.f32.mrb[0].mxu0
  %1072 = vmatprep.mubr.bf16.mxu0 %v566
  %1073 = vmatmul.mubr.bf16.gmra.mrb[0].mxu0 %v565
  %v1074 = vpop.f32.mrb[0].mxu0
  %v1075 = vadd.f32 0.0, %v1074
  %v1076 = vpop.f32.mrb[0].mxu0
  %v1077 = vpop.f32.mrb[0].mxu0
  %v1078 = vadd.f32 0.0, %v1077
  %v1079 = vpop.f32.mrb[0].mxu0
  %1080 = vmatprep.mubr.bf16.mxu0 %v569
  %1081 = vmatmul.mubr.bf16.gmra.mrb[0].mxu0 %v568
  %v1082 = vpop.f32.mrb[0].mxu0
  %v1083 = vadd.f32 0.0, %v1082
  %v1084 = vpop.f32.mrb[0].mxu0
  %v1085 = vpop.f32.mrb[0].mxu0
  %v1086 = vadd.f32 0.0, %v1085
  %v1087 = vpop.f32.mrb[0].mxu0
  %1088 = vmatprep.mubr.bf16.mxu0 %v572
  %1089 = vmatmul.mubr.bf16.gmra.mrb[0].mxu0 %v571
  %v1090 = vpop.f32.mrb[0].mxu0
  %v1091 = vadd.f32 0.0, %v1090
  %v1092 = vpop.f32.mrb[0].mxu0
  %v1093 = vpop.f32.mrb[0].mxu0
  %v1094 = vadd.f32 0.0, %v1093
  %v1095 = vpop.f32.mrb[0].mxu0
  %1096 = vmatprep.mubr.bf16.mxu0 %v575
  %1097 = vmatmul.mubr.bf16.gmra.mrb[0].mxu0 %v574
  %v1098 = vpop.f32.mrb[0].mxu0
  %v1099 = vadd.f32 0.0, %v1098
  %v1100 = vpop.f32.mrb[0].mxu0
  %v1101 = vpop.f32.mrb[0].mxu0
  %v1102 = vadd.f32 0.0, %v1101
  %v1103 = vpop.f32.mrb[0].mxu0
  %1104 = vmatprep.mubr.bf16.mxu0 %v578
  %1105 = vmatmul.mubr.bf16.gmra.mrb[0].mxu0 %v577
  %v1106 = vpop.f32.mrb[0].mxu0
  %v1107 = vadd.f32 0.0, %v1106
  %v1108 = vpop.f32.mrb[0].mxu0
  %v1109 = vpop.f32.mrb[0].mxu0
  %v1110 = vadd.f32 0.0, %v1109
  %v1111 = vpop.f32.mrb[0].mxu0
  %1112 = vmatprep.mubr.bf16.mxu0 %v581
  %1113 = vmatmul.mubr.bf16.gmra.mrb[0].mxu0 %v580
  %v1114 = vpop.f32.mrb[0].mxu0
  %v1115 = vadd.f32 0.0, %v1114
  %v1116 = vpop.f32.mrb[0].mxu0
  %v1117 = vpop.f32.mrb[0].mxu0
  %v1118 = vadd.f32 0.0, %v1117
  %v1119 = vpop.f32.mrb[0].mxu0
  %1120 = vmatprep.mubr.bf16.mxu0 %v584
  %1121 = vmatmul.mubr.bf16.gmra.mrb[0].mxu0 %v583
  %v1122 = vpop.f32.mrb[0].mxu0
  %v1123 = vadd.f32 0.0, %v1122
  %v1124 = vpop.f32.mrb[0].mxu0
  %v1125 = vpop.f32.mrb[0].mxu0
  %v1126 = vadd.f32 0.0, %v1125
  %v1127 = vpop.f32.mrb[0].mxu0
  %1128 = vmatprep.mubr.bf16.mxu0 %v587
  %1129 = vmatmul.mubr.bf16.gmra.mrb[0].mxu0 %v586
  %v1130 = vpop.f32.mrb[0].mxu0
  %v1131 = vadd.f32 0.0, %v1130
  %v1132 = vpop.f32.mrb[0].mxu0
  %v1133 = vpop.f32.mrb[0].mxu0
  %v1134 = vadd.f32 0.0, %v1133
  %v1135 = vpop.f32.mrb[0].mxu0
  %1136 = vmatprep.mubr.bf16.mxu0 %v590
  %1137 = vmatmul.mubr.bf16.gmra.mrb[0].mxu0 %v589
  %v1138 = vpop.f32.mrb[0].mxu0
  %v1139 = vadd.f32 0.0, %v1138
  %v1140 = vpop.f32.mrb[0].mxu0
  %v1141 = vpop.f32.mrb[0].mxu0
  %v1142 = vadd.f32 0.0, %v1141
  %v1143 = vpop.f32.mrb[0].mxu0
  %1144 = vmatprep.mubr.bf16.mxu0 %v593
  %1145 = vmatmul.mubr.bf16.gmra.mrb[0].mxu0 %v592
  %v1146 = vpop.f32.mrb[0].mxu0
  %v1147 = vadd.f32 0.0, %v1146
  %v1148 = vpop.f32.mrb[0].mxu0
  %v1149 = vpop.f32.mrb[0].mxu0
  %v1150 = vadd.f32 0.0, %v1149
  %v1151 = vpop.f32.mrb[0].mxu0
  %1152 = vdwg.mxu0
  %1153 = vmatprep.subr.bf16.mxu0 0
  %1154 = vmatpush1.bf16.msra.mxu0 %v747
  %1155 = vmatprep.subr.bf16.mxu0 0
  %1156 = vmatpush1.bf16.msra.mxu0 %v748
  %1157 = vmatprep.subr.bf16.mxu0 0
  %1158 = vmatpush1.bf16.msra.mxu0 0
  %1159 = vmatprep.subr.bf16.mxu0 0
  %1160 = vmatpush1.bf16.msra.mxu0 0
  %1161 = vmatprep.subr.bf16.mxu0 0
  %1162 = vmatpush1.bf16.msra.mxu0 0
  %1163 = vmatprep.subr.bf16.mxu0 0
  %1164 = vmatpush1.bf16.msra.mxu0 0
  %1165 = vmatprep.subr.bf16.mxu0 0
  %1166 = vmatpush1.bf16.msra.mxu0 0
  %1167 = vmatprep.subr.bf16.mxu0 0
  %1168 = vmatpush1.bf16.msra.mxu0 0
  %1169 = vmatprep.subr.bf16.mxu0 0
  %1170 = vmatpush1.bf16.msra.mxu0 0
  %1171 = vmatprep.subr.bf16.mxu0 0
  %1172 = vmatpush1.bf16.msra.mxu0 0
  %1173 = vmatprep.subr.bf16.mxu0 0
  %1174 = vmatpush1.bf16.msra.mxu0 0
  %1175 = vmatprep.subr.bf16.mxu0 0
  %1176 = vmatpush1.bf16.msra.mxu0 0
  %1177 = vmatprep.subr.bf16.mxu0 0
  %1178 = vmatpush1.bf16.msra.mxu0 0
  %1179 = vmatprep.subr.bf16.mxu0 0
  %1180 = vmatpush1.bf16.msra.mxu0 0
  %1181 = vmatprep.subr.bf16.mxu0 0
  %1182 = vmatpush1.bf16.msra.mxu0 0
  %1183 = vmatprep.subr.bf16.mxu0 0
  %1184 = vmatpush1.bf16.msra.mxu0 0
  %1185 = vmatprep.mubr.bf16.mxu0 0
  %1186 = vmatmul.mubr.bf16.gmra.mrb[0].mxu0 %v769
  %v1187 = vpop.f32.mrb[0].mxu0
  %v1188 = vadd.f32 %v899, %v1187
  %v1189 = vpop.f32.mrb[0].mxu0
  %v1190 = vpop.f32.mrb[0].mxu0
  %v1191 = vadd.f32 %v902, %v1190
  %v1192 = vpop.f32.mrb[0].mxu0
  %1193 = vmatprep.mubr.bf16.mxu0 0
  %1194 = vmatmul.mubr.bf16.gmra.mrb[0].mxu0 %v772
  %v1195 = vpop.f32.mrb[0].mxu0
  %v1196 = vadd.f32 %v907, %v1195
  %v1197 = vpop.f32.mrb[0].mxu0
  %v1198 = vpop.f32.mrb[0].mxu0
  %v1199 = vadd.f32 %v910, %v1198
  %v1200 = vpop.f32.mrb[0].mxu0
  %1201 = vmatprep.mubr.bf16.mxu0 0
  %1202 = vmatmul.mubr.bf16.gmra.mrb[0].mxu0 %v775
  %v1203 = vpop.f32.mrb[0].mxu0
  %v1204 = vadd.f32 %v915, %v1203
  %v1205 = vpop.f32.mrb[0].mxu0
  %v1206 = vpop.f32.mrb[0].mxu0
  %v1207 = vadd.f32 %v918, %v1206
  %v1208 = vpop.f32.mrb[0].mxu0
  %1209 = vmatprep.mubr.bf16.mxu0 0
  %1210 = vmatmul.mubr.bf16.gmra.mrb[0].mxu0 %v778
  %v1211 = vpop.f32.mrb[0].mxu0
  %v1212 = vadd.f32 %v923, %v1211
  %v1213 = vpop.f32.mrb[0].mxu0
  %v1214 = vpop.f32.mrb[0].mxu0
  %v1215 = vadd.f32 %v926, %v1214
  %v1216 = vpop.f32.mrb[0].mxu0
  %1217 = vmatprep.mubr.bf16.mxu0 0
  %1218 = vmatmul.mubr.bf16.gmra.mrb[0].mxu0 %v781
  %v1219 = vpop.f32.mrb[0].mxu0
  %v1220 = vadd.f32 %v931, %v1219
  %v1221 = vpop.f32.mrb[0].mxu0
  %v1222 = vpop.f32.mrb[0].mxu0
  %v1223 = vadd.f32 %v934, %v1222
  %v1224 = vpop.f32.mrb[0].mxu0
  %1225 = vmatprep.mubr.bf16.mxu0 0
  %1226 = vmatmul.mubr.bf16.gmra.mrb[0].mxu0 %v784
  %v1227 = vpop.f32.mrb[0].mxu0
  %v1228 = vadd.f32 %v939, %v1227
  %v1229 = vpop.f32.mrb[0].mxu0
  %v1230 = vpop.f32.mrb[0].mxu0
  %v1231 = vadd.f32 %v942, %v1230
  %v1232 = vpop.f32.mrb[0].mxu0
  %1233 = vmatprep.mubr.bf16.mxu0 0
  %1234 = vmatmul.mubr.bf16.gmra.mrb[0].mxu0 %v787
  %v1235 = vpop.f32.mrb[0].mxu0
  %v1236 = vadd.f32 %v947, %v1235
  %v1237 = vpop.f32.mrb[0].mxu0
  %v1238 = vpop.f32.mrb[0].mxu0
  %v1239 = vadd.f32 %v950, %v1238
  %v1240 = vpop.f32.mrb[0].mxu0
  %1241 = vmatprep.mubr.bf16.mxu0 0
  %1242 = vmatmul.mubr.bf16.gmra.mrb[0].mxu0 %v790
  %v1243 = vpop.f32.mrb[0].mxu0
  %v1244 = vadd.f32 %v955, %v1243
  %v1245 = vpop.f32.mrb[0].mxu0
  %v1246 = vpop.f32.mrb[0].mxu0
  %v1247 = vadd.f32 %v958, %v1246
  %v1248 = vpop.f32.mrb[0].mxu0
  %1249 = vmatprep.mubr.bf16.mxu0 0
  %1250 = vmatmul.mubr.bf16.gmra.mrb[0].mxu0 %v793
  %v1251 = vpop.f32.mrb[0].mxu0
  %v1252 = vadd.f32 %v963, %v1251
  %v1253 = vpop.f32.mrb[0].mxu0
  %v1254 = vpop.f32.mrb[0].mxu0
  %v1255 = vadd.f32 %v966, %v1254
  %v1256 = vpop.f32.mrb[0].mxu0
  %1257 = vmatprep.mubr.bf16.mxu0 0
  %1258 = vmatmul.mubr.bf16.gmra.mrb[0].mxu0 %v796
  %v1259 = vpop.f32.mrb[0].mxu0
  %v1260 = vadd.f32 %v971, %v1259
  %v1261 = vpop.f32.mrb[0].mxu0
  %v1262 = vpop.f32.mrb[0].mxu0
  %v1263 = vadd.f32 %v974, %v1262
  %v1264 = vpop.f32.mrb[0].mxu0
  %1265 = vmatprep.mubr.bf16.mxu0 0
  %1266 = vmatmul.mubr.bf16.gmra.mrb[0].mxu0 %v799
  %v1267 = vpop.f32.mrb[0].mxu0
  %v1268 = vadd.f32 %v979, %v1267
  %v1269 = vpop.f32.mrb[0].mxu0
  %v1270 = vpop.f32.mrb[0].mxu0
  %v1271 = vadd.f32 %v982, %v1270
  %v1272 = vpop.f32.mrb[0].mxu0
  %1273 = vmatprep.mubr.bf16.mxu0 0
  %1274 = vmatmul.mubr.bf16.gmra.mrb[0].mxu0 %v802
  %v1275 = vpop.f32.mrb[0].mxu0
  %v1276 = vadd.f32 %v987, %v1275
  %v1277 = vpop.f32.mrb[0].mxu0
  %v1278 = vpop.f32.mrb[0].mxu0
  %v1279 = vadd.f32 %v990, %v1278
  %v1280 = vpop.f32.mrb[0].mxu0
  %1281 = vmatprep.mubr.bf16.mxu0 0
  %1282 = vmatmul.mubr.bf16.gmra.mrb[0].mxu0 %v805
  %v1283 = vpop.f32.mrb[0].mxu0
  %v1284 = vadd.f32 %v995, %v1283
  %v1285 = vpop.f32.mrb[0].mxu0
  %v1286 = vpop.f32.mrb[0].mxu0
  %v1287 = vadd.f32 %v998, %v1286
  %v1288 = vpop.f32.mrb[0].mxu0
  %1289 = vmatprep.mubr.bf16.mxu0 0
  %1290 = vmatmul.mubr.bf16.gmra.mrb[0].mxu0 %v808
  %v1291 = vpop.f32.mrb[0].mxu0
  %v1292 = vadd.f32 %v1003, %v1291
  %v1293 = vpop.f32.mrb[0].mxu0
  %v1294 = vpop.f32.mrb[0].mxu0
  %v1295 = vadd.f32 %v1006, %v1294
  %v1296 = vpop.f32.mrb[0].mxu0
  %1297 = vmatprep.mubr.bf16.mxu0 0
  %1298 = vmatmul.mubr.bf16.gmra.mrb[0].mxu0 %v811
  %v1299 = vpop.f32.mrb[0].mxu0
  %v1300 = vadd.f32 %v1011, %v1299
  %v1301 = vpop.f32.mrb[0].mxu0
  %v1302 = vpop.f32.mrb[0].mxu0
  %v1303 = vadd.f32 %v1014, %v1302
  %v1304 = vpop.f32.mrb[0].mxu0
  %1305 = vmatprep.mubr.bf16.mxu0 0
  %1306 = vmatmul.mubr.bf16.gmra.mrb[0].mxu0 %v814
  %v1307 = vpop.f32.mrb[0].mxu0
  %v1308 = vadd.f32 %v1019, %v1307
  %v1309 = vpop.f32.mrb[0].mxu0
  %v1310 = vpop.f32.mrb[0].mxu0
  %v1311 = vadd.f32 %v1022, %v1310
  %v1312 = vpop.f32.mrb[0].mxu0
  %1313 = vmatprep.mubr.bf16.mxu0 0
  %1314 = vmatmul.mubr.bf16.gmra.mrb[0].mxu0 %v817
  %v1315 = vpop.f32.mrb[0].mxu0
  %v1316 = vadd.f32 %v1027, %v1315
  %v1317 = vpop.f32.mrb[0].mxu0
  %v1318 = vpop.f32.mrb[0].mxu0
  %v1319 = vadd.f32 %v1030, %v1318
  %v1320 = vpop.f32.mrb[0].mxu0
  %1321 = vmatprep.mubr.bf16.mxu0 0
  %1322 = vmatmul.mubr.bf16.gmra.mrb[0].mxu0 %v820
  %v1323 = vpop.f32.mrb[0].mxu0
  %v1324 = vadd.f32 %v1035, %v1323
  %v1325 = vpop.f32.mrb[0].mxu0
  %v1326 = vpop.f32.mrb[0].mxu0
  %v1327 = vadd.f32 %v1038, %v1326
  %v1328 = vpop.f32.mrb[0].mxu0
  %1329 = vmatprep.mubr.bf16.mxu0 0
  %1330 = vmatmul.mubr.bf16.gmra.mrb[0].mxu0 %v823
  %v1331 = vpop.f32.mrb[0].mxu0
  %v1332 = vadd.f32 %v1043, %v1331
  %v1333 = vpop.f32.mrb[0].mxu0
  %v1334 = vpop.f32.mrb[0].mxu0
  %v1335 = vadd.f32 %v1046, %v1334
  %v1336 = vpop.f32.mrb[0].mxu0
  %1337 = vmatprep.mubr.bf16.mxu0 0
  %1338 = vmatmul.mubr.bf16.gmra.mrb[0].mxu0 %v826
  %v1339 = vpop.f32.mrb[0].mxu0
  %v1340 = vadd.f32 %v1051, %v1339
  %v1341 = vpop.f32.mrb[0].mxu0
  %v1342 = vpop.f32.mrb[0].mxu0
  %v1343 = vadd.f32 %v1054, %v1342
  %v1344 = vpop.f32.mrb[0].mxu0
  %1345 = vmatprep.mubr.bf16.mxu0 0
  %1346 = vmatmul.mubr.bf16.gmra.mrb[0].mxu0 %v829
  %v1347 = vpop.f32.mrb[0].mxu0
  %v1348 = vadd.f32 %v1059, %v1347
  %v1349 = vpop.f32.mrb[0].mxu0
  %v1350 = vpop.f32.mrb[0].mxu0
  %v1351 = vadd.f32 %v1062, %v1350
  %v1352 = vpop.f32.mrb[0].mxu0
  %1353 = vmatprep.mubr.bf16.mxu0 0
  %1354 = vmatmul.mubr.bf16.gmra.mrb[0].mxu0 %v832
  %v1355 = vpop.f32.mrb[0].mxu0
  %v1356 = vadd.f32 %v1067, %v1355
  %v1357 = vpop.f32.mrb[0].mxu0
  %v1358 = vpop.f32.mrb[0].mxu0
  %v1359 = vadd.f32 %v1070, %v1358
  %v1360 = vpop.f32.mrb[0].mxu0
  %1361 = vmatprep.mubr.bf16.mxu0 0
  %1362 = vmatmul.mubr.bf16.gmra.mrb[0].mxu0 %v835
  %v1363 = vpop.f32.mrb[0].mxu0
  %v1364 = vadd.f32 %v1075, %v1363
  %v1365 = vpop.f32.mrb[0].mxu0
  %v1366 = vpop.f32.mrb[0].mxu0
  %v1367 = vadd.f32 %v1078, %v1366
  %v1368 = vpop.f32.mrb[0].mxu0
  %1369 = vmatprep.mubr.bf16.mxu0 0
  %1370 = vmatmul.mubr.bf16.gmra.mrb[0].mxu0 %v838
  %v1371 = vpop.f32.mrb[0].mxu0
  %v1372 = vadd.f32 %v1083, %v1371
  %v1373 = vpop.f32.mrb[0].mxu0
  %v1374 = vpop.f32.mrb[0].mxu0
  %v1375 = vadd.f32 %v1086, %v1374
  %v1376 = vpop.f32.mrb[0].mxu0
  %1377 = vmatprep.mubr.bf16.mxu0 0
  %1378 = vmatmul.mubr.bf16.gmra.mrb[0].mxu0 %v841
  %v1379 = vpop.f32.mrb[0].mxu0
  %v1380 = vadd.f32 %v1091, %v1379
  %v1381 = vpop.f32.mrb[0].mxu0
  %v1382 = vpop.f32.mrb[0].mxu0
  %v1383 = vadd.f32 %v1094, %v1382
  %v1384 = vpop.f32.mrb[0].mxu0
  %1385 = vmatprep.mubr.bf16.mxu0 0
  %1386 = vmatmul.mubr.bf16.gmra.mrb[0].mxu0 %v844
  %v1387 = vpop.f32.mrb[0].mxu0
  %v1388 = vadd.f32 %v1099, %v1387
  %v1389 = vpop.f32.mrb[0].mxu0
  %v1390 = vpop.f32.mrb[0].mxu0
  %v1391 = vadd.f32 %v1102, %v1390
  %v1392 = vpop.f32.mrb[0].mxu0
  %1393 = vmatprep.mubr.bf16.mxu0 0
  %1394 = vmatmul.mubr.bf16.gmra.mrb[0].mxu0 %v847
  %v1395 = vpop.f32.mrb[0].mxu0
  %v1396 = vadd.f32 %v1107, %v1395
  %v1397 = vpop.f32.mrb[0].mxu0
  %v1398 = vpop.f32.mrb[0].mxu0
  %v1399 = vadd.f32 %v1110, %v1398
  %v1400 = vpop.f32.mrb[0].mxu0
  %1401 = vmatprep.mubr.bf16.mxu0 0
  %1402 = vmatmul.mubr.bf16.gmra.mrb[0].mxu0 %v850
  %v1403 = vpop.f32.mrb[0].mxu0
  %v1404 = vadd.f32 %v1115, %v1403
  %v1405 = vpop.f32.mrb[0].mxu0
  %v1406 = vpop.f32.mrb[0].mxu0
  %v1407 = vadd.f32 %v1118, %v1406
  %v1408 = vpop.f32.mrb[0].mxu0
  %1409 = vmatprep.mubr.bf16.mxu0 0
  %1410 = vmatmul.mubr.bf16.gmra.mrb[0].mxu0 %v853
  %v1411 = vpop.f32.mrb[0].mxu0
  %v1412 = vadd.f32 %v1123, %v1411
  %v1413 = vpop.f32.mrb[0].mxu0
  %v1414 = vpop.f32.mrb[0].mxu0
  %v1415 = vadd.f32 %v1126, %v1414
  %v1416 = vpop.f32.mrb[0].mxu0
  %1417 = vmatprep.mubr.bf16.mxu0 0
  %1418 = vmatmul.mubr.bf16.gmra.mrb[0].mxu0 %v856
  %v1419 = vpop.f32.mrb[0].mxu0
  %v1420 = vadd.f32 %v1131, %v1419
  %v1421 = vpop.f32.mrb[0].mxu0
  %v1422 = vpop.f32.mrb[0].mxu0
  %v1423 = vadd.f32 %v1134, %v1422
  %v1424 = vpop.f32.mrb[0].mxu0
  %1425 = vmatprep.mubr.bf16.mxu0 0
  %1426 = vmatmul.mubr.bf16.gmra.mrb[0].mxu0 %v859
  %v1427 = vpop.f32.mrb[0].mxu0
  %v1428 = vadd.f32 %v1139, %v1427
  %v1429 = vpop.f32.mrb[0].mxu0
  %v1430 = vpop.f32.mrb[0].mxu0
  %v1431 = vadd.f32 %v1142, %v1430
  %v1432 = vpop.f32.mrb[0].mxu0
  %1433 = vmatprep.mubr.bf16.mxu0 0
  %1434 = vmatmul.mubr.bf16.gmra.mrb[0].mxu0 %v862
  %v1435 = vpop.f32.mrb[0].mxu0
  %v1436 = vadd.f32 %v1147, %v1435
  %v1437 = vpop.f32.mrb[0].mxu0
  %v1438 = vpop.f32.mrb[0].mxu0
  %v1439 = vadd.f32 %v1150, %v1438
  %v1440 = vpop.f32.mrb[0].mxu0
  %1441 = vdwg.mxu0
  %v1442 = vld [vmem:[%s2] sm:$0x1]
  %v1443 = vlaneseq
  %v1444 = vshrl.u32 %v1443, 7
  %v1445 = vsub.s32 0, %v1444
  %v1446 = vrot.slane %v1442, %v1445
  %v1447 = vmul.f32 %v1188, %v1446
  %v1448 = vmul.f32 %v1191, %v1446
  %v1449 = vmul.f32 %v1196, %v1446
  %v1450 = vmul.f32 %v1199, %v1446
  %v1451 = vmul.f32 %v1204, %v1446
  %v1452 = vmul.f32 %v1207, %v1446
  %v1453 = vmul.f32 %v1212, %v1446
  %v1454 = vmul.f32 %v1215, %v1446
  %v1455 = vmul.f32 %v1220, %v1446
  %v1456 = vmul.f32 %v1223, %v1446
  %v1457 = vmul.f32 %v1228, %v1446
  %v1458 = vmul.f32 %v1231, %v1446
  %v1459 = vmul.f32 %v1236, %v1446
  %v1460 = vmul.f32 %v1239, %v1446
  %v1461 = vmul.f32 %v1244, %v1446
  %v1462 = vmul.f32 %v1247, %v1446
  %v1463 = vmul.f32 %v1252, %v1446
  %v1464 = vmul.f32 %v1255, %v1446
  %v1465 = vmul.f32 %v1260, %v1446
  %v1466 = vmul.f32 %v1263, %v1446
  %v1467 = vmul.f32 %v1268, %v1446
  %v1468 = vmul.f32 %v1271, %v1446
  %v1469 = vmul.f32 %v1276, %v1446
  %v1470 = vmul.f32 %v1279, %v1446
  %v1471 = vmul.f32 %v1284, %v1446
  %v1472 = vmul.f32 %v1287, %v1446
  %v1473 = vmul.f32 %v1292, %v1446
  %v1474 = vmul.f32 %v1295, %v1446
  %v1475 = vmul.f32 %v1300, %v1446
  %v1476 = vmul.f32 %v1303, %v1446
  %v1477 = vmul.f32 %v1308, %v1446
  %v1478 = vmul.f32 %v1311, %v1446
  %v1479 = vmul.f32 %v1316, %v1446
  %v1480 = vmul.f32 %v1319, %v1446
  %v1481 = vmul.f32 %v1324, %v1446
  %v1482 = vmul.f32 %v1327, %v1446
  %v1483 = vmul.f32 %v1332, %v1446
  %v1484 = vmul.f32 %v1335, %v1446
  %v1485 = vmul.f32 %v1340, %v1446
  %v1486 = vmul.f32 %v1343, %v1446
  %v1487 = vmul.f32 %v1348, %v1446
  %v1488 = vmul.f32 %v1351, %v1446
  %v1489 = vmul.f32 %v1356, %v1446
  %v1490 = vmul.f32 %v1359, %v1446
  %v1491 = vmul.f32 %v1364, %v1446
  %v1492 = vmul.f32 %v1367, %v1446
  %v1493 = vmul.f32 %v1372, %v1446
  %v1494 = vmul.f32 %v1375, %v1446
  %v1495 = vmul.f32 %v1380, %v1446
  %v1496 = vmul.f32 %v1383, %v1446
  %v1497 = vmul.f32 %v1388, %v1446
  %v1498 = vmul.f32 %v1391, %v1446
  %v1499 = vmul.f32 %v1396, %v1446
  %v1500 = vmul.f32 %v1399, %v1446
  %v1501 = vmul.f32 %v1404, %v1446
  %v1502 = vmul.f32 %v1407, %v1446
  %v1503 = vmul.f32 %v1412, %v1446
  %v1504 = vmul.f32 %v1415, %v1446
  %v1505 = vmul.f32 %v1420, %v1446
  %v1506 = vmul.f32 %v1423, %v1446
  %v1507 = vmul.f32 %v1428, %v1446
  %v1508 = vmul.f32 %v1431, %v1446
  %v1509 = vmul.f32 %v1436, %v1446
  %v1510 = vmul.f32 %v1439, %v1446
  %v1511 = vld [vmem:[%s2 + $0x1] sm:$0x1]
  %v1512 = vlaneseq
  %v1513 = vshrl.u32 %v1512, 7
  %v1514 = vsub.s32 0, %v1513
  %v1515 = vrot.slane %v1511, %v1514
  %v1516 = vadd.f32 %v1447, %v1515
  %v1517 = vadd.f32 %v1448, %v1515
  %v1518 = vadd.f32 %v1449, %v1515
  %v1519 = vadd.f32 %v1450, %v1515
  %v1520 = vadd.f32 %v1451, %v1515
  %v1521 = vadd.f32 %v1452, %v1515
  %v1522 = vadd.f32 %v1453, %v1515
  %v1523 = vadd.f32 %v1454, %v1515
  %v1524 = vadd.f32 %v1455, %v1515
  %v1525 = vadd.f32 %v1456, %v1515
  %v1526 = vadd.f32 %v1457, %v1515
  %v1527 = vadd.f32 %v1458, %v1515
  %v1528 = vadd.f32 %v1459, %v1515
  %v1529 = vadd.f32 %v1460, %v1515
  %v1530 = vadd.f32 %v1461, %v1515
  %v1531 = vadd.f32 %v1462, %v1515
  %v1532 = vadd.f32 %v1463, %v1515
  %v1533 = vadd.f32 %v1464, %v1515
  %v1534 = vadd.f32 %v1465, %v1515
  %v1535 = vadd.f32 %v1466, %v1515
  %v1536 = vadd.f32 %v1467, %v1515
  %v1537 = vadd.f32 %v1468, %v1515
  %v1538 = vadd.f32 %v1469, %v1515
  %v1539 = vadd.f32 %v1470, %v1515
  %v1540 = vadd.f32 %v1471, %v1515
  %v1541 = vadd.f32 %v1472, %v1515
  %v1542 = vadd.f32 %v1473, %v1515
  %v1543 = vadd.f32 %v1474, %v1515
  %v1544 = vadd.f32 %v1475, %v1515
  %v1545 = vadd.f32 %v1476, %v1515
  %v1546 = vadd.f32 %v1477, %v1515
  %v1547 = vadd.f32 %v1478, %v1515
  %v1548 = vadd.f32 %v1479, %v1515
  %v1549 = vadd.f32 %v1480, %v1515
  %v1550 = vadd.f32 %v1481, %v1515
  %v1551 = vadd.f32 %v1482, %v1515
  %v1552 = vadd.f32 %v1483, %v1515
  %v1553 = vadd.f32 %v1484, %v1515
  %v1554 = vadd.f32 %v1485, %v1515
  %v1555 = vadd.f32 %v1486, %v1515
  %v1556 = vadd.f32 %v1487, %v1515
  %v1557 = vadd.f32 %v1488, %v1515
  %v1558 = vadd.f32 %v1489, %v1515
  %v1559 = vadd.f32 %v1490, %v1515
  %v1560 = vadd.f32 %v1491, %v1515
  %v1561 = vadd.f32 %v1492, %v1515
  %v1562 = vadd.f32 %v1493, %v1515
  %v1563 = vadd.f32 %v1494, %v1515
  %v1564 = vadd.f32 %v1495, %v1515
  %v1565 = vadd.f32 %v1496, %v1515
  %v1566 = vadd.f32 %v1497, %v1515
  %v1567 = vadd.f32 %v1498, %v1515
  %v1568 = vadd.f32 %v1499, %v1515
  %v1569 = vadd.f32 %v1500, %v1515
  %v1570 = vadd.f32 %v1501, %v1515
  %v1571 = vadd.f32 %v1502, %v1515
  %v1572 = vadd.f32 %v1503, %v1515
  %v1573 = vadd.f32 %v1504, %v1515
  %v1574 = vadd.f32 %v1505, %v1515
  %v1575 = vadd.f32 %v1506, %v1515
  %v1576 = vadd.f32 %v1507, %v1515
  %v1577 = vadd.f32 %v1508, %v1515
  %v1578 = vadd.f32 %v1509, %v1515
  %v1579 = vadd.f32 %v1510, %v1515
  %v1580 = vmax.f32 %v1516, 0.0
  %v1581 = vmax.f32 %v1517, 0.0
  %v1582 = vmax.f32 %v1518, 0.0
  %v1583 = vmax.f32 %v1519, 0.0
  %v1584 = vmax.f32 %v1520, 0.0
  %v1585 = vmax.f32 %v1521, 0.0
  %v1586 = vmax.f32 %v1522, 0.0
  %v1587 = vmax.f32 %v1523, 0.0
  %v1588 = vmax.f32 %v1524, 0.0
  %v1589 = vmax.f32 %v1525, 0.0
  %v1590 = vmax.f32 %v1526, 0.0
  %v1591 = vmax.f32 %v1527, 0.0
  %v1592 = vmax.f32 %v1528, 0.0
  %v1593 = vmax.f32 %v1529, 0.0
  %v1594 = vmax.f32 %v1530, 0.0
  %v1595 = vmax.f32 %v1531, 0.0
  %v1596 = vmax.f32 %v1532, 0.0
  %v1597 = vmax.f32 %v1533, 0.0
  %v1598 = vmax.f32 %v1534, 0.0
  %v1599 = vmax.f32 %v1535, 0.0
  %v1600 = vmax.f32 %v1536, 0.0
  %v1601 = vmax.f32 %v1537, 0.0
  %v1602 = vmax.f32 %v1538, 0.0
  %v1603 = vmax.f32 %v1539, 0.0
  %v1604 = vmax.f32 %v1540, 0.0
  %v1605 = vmax.f32 %v1541, 0.0
  %v1606 = vmax.f32 %v1542, 0.0
  %v1607 = vmax.f32 %v1543, 0.0
  %v1608 = vmax.f32 %v1544, 0.0
  %v1609 = vmax.f32 %v1545, 0.0
  %v1610 = vmax.f32 %v1546, 0.0
  %v1611 = vmax.f32 %v1547, 0.0
  %v1612 = vmax.f32 %v1548, 0.0
  %v1613 = vmax.f32 %v1549, 0.0
  %v1614 = vmax.f32 %v1550, 0.0
  %v1615 = vmax.f32 %v1551, 0.0
  %v1616 = vmax.f32 %v1552, 0.0
  %v1617 = vmax.f32 %v1553, 0.0
  %v1618 = vmax.f32 %v1554, 0.0
  %v1619 = vmax.f32 %v1555, 0.0
  %v1620 = vmax.f32 %v1556, 0.0
  %v1621 = vmax.f32 %v1557, 0.0
  %v1622 = vmax.f32 %v1558, 0.0
  %v1623 = vmax.f32 %v1559, 0.0
  %v1624 = vmax.f32 %v1560, 0.0
  %v1625 = vmax.f32 %v1561, 0.0
  %v1626 = vmax.f32 %v1562, 0.0
  %v1627 = vmax.f32 %v1563, 0.0
  %v1628 = vmax.f32 %v1564, 0.0
  %v1629 = vmax.f32 %v1565, 0.0
  %v1630 = vmax.f32 %v1566, 0.0
  %v1631 = vmax.f32 %v1567, 0.0
  %v1632 = vmax.f32 %v1568, 0.0
  %v1633 = vmax.f32 %v1569, 0.0
  %v1634 = vmax.f32 %v1570, 0.0
  %v1635 = vmax.f32 %v1571, 0.0
  %v1636 = vmax.f32 %v1572, 0.0
  %v1637 = vmax.f32 %v1573, 0.0
  %v1638 = vmax.f32 %v1574, 0.0
  %v1639 = vmax.f32 %v1575, 0.0
  %v1640 = vmax.f32 %v1576, 0.0
  %v1641 = vmax.f32 %v1577, 0.0
  %v1642 = vmax.f32 %v1578, 0.0
  %v1643 = vmax.f32 %v1579, 0.0
  %v1644 = vpack.c.bf16 %v1581, %v1580
  %v1645 = vpack.c.bf16 %v1583, %v1582
  %v1646 = vpack.c.bf16 %v1585, %v1584
  %v1647 = vpack.c.bf16 %v1587, %v1586
  %v1648 = vpack.c.bf16 %v1589, %v1588
  %v1649 = vpack.c.bf16 %v1591, %v1590
  %v1650 = vpack.c.bf16 %v1593, %v1592
  %v1651 = vpack.c.bf16 %v1595, %v1594
  %v1652 = vpack.c.bf16 %v1597, %v1596
  %v1653 = vpack.c.bf16 %v1599, %v1598
  %v1654 = vpack.c.bf16 %v1601, %v1600
  %v1655 = vpack.c.bf16 %v1603, %v1602
  %v1656 = vpack.c.bf16 %v1605, %v1604
  %v1657 = vpack.c.bf16 %v1607, %v1606
  %v1658 = vpack.c.bf16 %v1609, %v1608
  %v1659 = vpack.c.bf16 %v1611, %v1610
  %v1660 = vpack.c.bf16 %v1613, %v1612
  %v1661 = vpack.c.bf16 %v1615, %v1614
  %v1662 = vpack.c.bf16 %v1617, %v1616
  %v1663 = vpack.c.bf16 %v1619, %v1618
  %v1664 = vpack.c.bf16 %v1621, %v1620
  %v1665 = vpack.c.bf16 %v1623, %v1622
  %v1666 = vpack.c.bf16 %v1625, %v1624
  %v1667 = vpack.c.bf16 %v1627, %v1626
  %v1668 = vpack.c.bf16 %v1629, %v1628
  %v1669 = vpack.c.bf16 %v1631, %v1630
  %v1670 = vpack.c.bf16 %v1633, %v1632
  %v1671 = vpack.c.bf16 %v1635, %v1634
  %v1672 = vpack.c.bf16 %v1637, %v1636
  %v1673 = vpack.c.bf16 %v1639, %v1638
  %v1674 = vpack.c.bf16 %v1641, %v1640
  %v1675 = vpack.c.bf16 %v1643, %v1642
  %v1708 = vunpack.c.l.b16 %v1644
  %v1709 = vunpack.c.h.b16 %v1644
  %v1710 = vunpack.c.l.b16 %v1645
  %v1711 = vunpack.c.h.b16 %v1645
  %v1712 = vunpack.c.l.b16 %v1646
  %v1713 = vunpack.c.h.b16 %v1646
  %v1714 = vunpack.c.l.b16 %v1647
  %v1715 = vunpack.c.h.b16 %v1647
  %v1716 = vunpack.c.l.b16 %v1648
  %v1717 = vunpack.c.h.b16 %v1648
  %v1718 = vunpack.c.l.b16 %v1649
  %v1719 = vunpack.c.h.b16 %v1649
  %v1720 = vunpack.c.l.b16 %v1650
  %v1721 = vunpack.c.h.b16 %v1650
  %v1722 = vunpack.c.l.b16 %v1651
  %v1723 = vunpack.c.h.b16 %v1651
  %v1724 = vunpack.c.l.b16 %v1652
  %v1725 = vunpack.c.h.b16 %v1652
  %v1726 = vunpack.c.l.b16 %v1653
  %v1727 = vunpack.c.h.b16 %v1653
  %v1728 = vunpack.c.l.b16 %v1654
  %v1729 = vunpack.c.h.b16 %v1654
  %v1730 = vunpack.c.l.b16 %v1655
  %v1731 = vunpack.c.h.b16 %v1655
  %v1732 = vunpack.c.l.b16 %v1656
  %v1733 = vunpack.c.h.b16 %v1656
  %v1734 = vunpack.c.l.b16 %v1657
  %v1735 = vunpack.c.h.b16 %v1657
  %v1736 = vunpack.c.l.b16 %v1658
  %v1737 = vunpack.c.h.b16 %v1658
  %v1738 = vunpack.c.l.b16 %v1659
  %v1739 = vunpack.c.h.b16 %v1659
  %v1740 = vunpack.c.l.b16 %v1660
  %v1741 = vunpack.c.h.b16 %v1660
  %v1742 = vunpack.c.l.b16 %v1661
  %v1743 = vunpack.c.h.b16 %v1661
  %v1744 = vunpack.c.l.b16 %v1662
  %v1745 = vunpack.c.h.b16 %v1662
  %v1746 = vunpack.c.l.b16 %v1663
  %v1747 = vunpack.c.h.b16 %v1663
  %v1748 = vunpack.c.l.b16 %v1664
  %v1749 = vunpack.c.h.b16 %v1664
  %v1750 = vunpack.c.l.b16 %v1665
  %v1751 = vunpack.c.h.b16 %v1665
  %v1752 = vunpack.c.l.b16 %v1666
  %v1753 = vunpack.c.h.b16 %v1666
  %v1754 = vunpack.c.l.b16 %v1667
  %v1755 = vunpack.c.h.b16 %v1667
  %v1756 = vunpack.c.l.b16 %v1668
  %v1757 = vunpack.c.h.b16 %v1668
  %v1758 = vunpack.c.l.b16 %v1669
  %v1759 = vunpack.c.h.b16 %v1669
  %v1760 = vunpack.c.l.b16 %v1670
  %v1761 = vunpack.c.h.b16 %v1670
  %v1762 = vunpack.c.l.b16 %v1671
  %v1763 = vunpack.c.h.b16 %v1671
  %v1764 = vunpack.c.l.b16 %v1672
  %v1765 = vunpack.c.h.b16 %v1672
  %v1766 = vunpack.c.l.b16 %v1673
  %v1767 = vunpack.c.h.b16 %v1673
  %v1768 = vunpack.c.l.b16 %v1674
  %v1769 = vunpack.c.h.b16 %v1674
  %v1770 = vunpack.c.l.b16 %v1675
  %v1771 = vunpack.c.h.b16 %v1675
  %v1772 = vpack.c.b16 %v1708, %v1708
  %v1773 = vpack.c.b16 %v1709, %v1709
  %v1774 = vpack.c.b16 %v1710, %v1710
  %v1775 = vpack.c.b16 %v1711, %v1711
  %v1776 = vpack.c.b16 %v1712, %v1712
  %v1777 = vpack.c.b16 %v1713, %v1713
  %v1778 = vpack.c.b16 %v1714, %v1714
  %v1779 = vpack.c.b16 %v1715, %v1715
  %v1780 = vpack.c.b16 %v1716, %v1716
  %v1781 = vpack.c.b16 %v1717, %v1717
  %v1782 = vpack.c.b16 %v1718, %v1718
  %v1783 = vpack.c.b16 %v1719, %v1719
  %v1784 = vpack.c.b16 %v1720, %v1720
  %v1785 = vpack.c.b16 %v1721, %v1721
  %v1786 = vpack.c.b16 %v1722, %v1722
  %v1787 = vpack.c.b16 %v1723, %v1723
  %v1788 = vpack.c.b16 %v1724, %v1724
  %v1789 = vpack.c.b16 %v1725, %v1725
  %v1790 = vpack.c.b16 %v1726, %v1726
  %v1791 = vpack.c.b16 %v1727, %v1727
  %v1792 = vpack.c.b16 %v1728, %v1728
  %v1793 = vpack.c.b16 %v1729, %v1729
  %v1794 = vpack.c.b16 %v1730, %v1730
  %v1795 = vpack.c.b16 %v1731, %v1731
  %v1796 = vpack.c.b16 %v1732, %v1732
  %v1797 = vpack.c.b16 %v1733, %v1733
  %v1798 = vpack.c.b16 %v1734, %v1734
  %v1799 = vpack.c.b16 %v1735, %v1735
  %v1800 = vpack.c.b16 %v1736, %v1736
  %v1801 = vpack.c.b16 %v1737, %v1737
  %v1802 = vpack.c.b16 %v1738, %v1738
  %v1803 = vpack.c.b16 %v1739, %v1739
  %v1804 = vpack.c.b16 %v1740, %v1740
  %v1805 = vpack.c.b16 %v1741, %v1741
  %v1806 = vpack.c.b16 %v1742, %v1742
  %v1807 = vpack.c.b16 %v1743, %v1743
  %v1808 = vpack.c.b16 %v1744, %v1744
  %v1809 = vpack.c.b16 %v1745, %v1745
  %v1810 = vpack.c.b16 %v1746, %v1746
  %v1811 = vpack.c.b16 %v1747, %v1747
  %v1812 = vpack.c.b16 %v1748, %v1748
  %v1813 = vpack.c.b16 %v1749, %v1749
  %v1814 = vpack.c.b16 %v1750, %v1750
  %v1815 = vpack.c.b16 %v1751, %v1751
  %v1816 = vpack.c.b16 %v1752, %v1752
  %v1817 = vpack.c.b16 %v1753, %v1753
  %v1818 = vpack.c.b16 %v1754, %v1754
  %v1819 = vpack.c.b16 %v1755, %v1755
  %v1820 = vpack.c.b16 %v1756, %v1756
  %v1821 = vpack.c.b16 %v1757, %v1757
  %v1822 = vpack.c.b16 %v1758, %v1758
  %v1823 = vpack.c.b16 %v1759, %v1759
  %v1824 = vpack.c.b16 %v1760, %v1760
  %v1825 = vpack.c.b16 %v1761, %v1761
  %v1826 = vpack.c.b16 %v1762, %v1762
  %v1827 = vpack.c.b16 %v1763, %v1763
  %v1828 = vpack.c.b16 %v1764, %v1764
  %v1829 = vpack.c.b16 %v1765, %v1765
  %v1830 = vpack.c.b16 %v1766, %v1766
  %v1831 = vpack.c.b16 %v1767, %v1767
  %v1832 = vpack.c.b16 %v1768, %v1768
  %v1833 = vpack.c.b16 %v1769, %v1769
  %v1834 = vpack.c.b16 %v1770, %v1770
  %v1835 = vpack.c.b16 %v1771, %v1771
  %vm1900 = vcmask 519168
  %1901 = vst.msk [vmem:[%s3] sm:$0xf] %vm1900, %v1772
  %1902 = vst.msk [vmem:[%s3 + $0x4] sm:$0xf] %vm1900, %v1773
  %1903 = vst.msk [vmem:[%s3 + $0x8] sm:$0xf] %vm1900, %v1774
  %1904 = vst.msk [vmem:[%s3 + $0xc] sm:$0xf] %vm1900, %v1775
  %1905 = vst.msk [vmem:[%s3 + $0x10] sm:$0xf] %vm1900, %v1776
  %1906 = vst.msk [vmem:[%s3 + $0x14] sm:$0xf] %vm1900, %v1777
  %1907 = vst.msk [vmem:[%s3 + $0x18] sm:$0xf] %vm1900, %v1778
  %1908 = vst.msk [vmem:[%s3 + $0x1c] sm:$0xf] %vm1900, %v1779
  %1909 = vst.msk [vmem:[%s3 + $0x20] sm:$0xf] %vm1900, %v1780
  %1910 = vst.msk [vmem:[%s3 + $0x24] sm:$0xf] %vm1900, %v1781
  %1911 = vst.msk [vmem:[%s3 + $0x28] sm:$0xf] %vm1900, %v1782
  %1912 = vst.msk [vmem:[%s3 + $0x2c] sm:$0xf] %vm1900, %v1783
  %1913 = vst.msk [vmem:[%s3 + $0x30] sm:$0xf] %vm1900, %v1784
  %1914 = vst.msk [vmem:[%s3 + $0x34] sm:$0xf] %vm1900, %v1785
  %1915 = vst.msk [vmem:[%s3 + $0x38] sm:$0xf] %vm1900, %v1786
  %1916 = vst.msk [vmem:[%s3 + $0x3c] sm:$0xf] %vm1900, %v1787
  %1917 = vst.msk [vmem:[%s3 + $0x40] sm:$0xf] %vm1900, %v1788
  %1918 = vst.msk [vmem:[%s3 + $0x44] sm:$0xf] %vm1900, %v1789
  %1919 = vst.msk [vmem:[%s3 + $0x48] sm:$0xf] %vm1900, %v1790
  %1920 = vst.msk [vmem:[%s3 + $0x4c] sm:$0xf] %vm1900, %v1791
  %1921 = vst.msk [vmem:[%s3 + $0x50] sm:$0xf] %vm1900, %v1792
  %1922 = vst.msk [vmem:[%s3 + $0x54] sm:$0xf] %vm1900, %v1793
  %1923 = vst.msk [vmem:[%s3 + $0x58] sm:$0xf] %vm1900, %v1794
  %1924 = vst.msk [vmem:[%s3 + $0x5c] sm:$0xf] %vm1900, %v1795
  %1925 = vst.msk [vmem:[%s3 + $0x60] sm:$0xf] %vm1900, %v1796
  %1926 = vst.msk [vmem:[%s3 + $0x64] sm:$0xf] %vm1900, %v1797
  %1927 = vst.msk [vmem:[%s3 + $0x68] sm:$0xf] %vm1900, %v1798
  %1928 = vst.msk [vmem:[%s3 + $0x6c] sm:$0xf] %vm1900, %v1799
  %1929 = vst.msk [vmem:[%s3 + $0x70] sm:$0xf] %vm1900, %v1800
  %1930 = vst.msk [vmem:[%s3 + $0x74] sm:$0xf] %vm1900, %v1801
  %1931 = vst.msk [vmem:[%s3 + $0x78] sm:$0xf] %vm1900, %v1802
  %1932 = vst.msk [vmem:[%s3 + $0x7c] sm:$0xf] %vm1900, %v1803
  %1933 = vst.msk [vmem:[%s3 + $0x80] sm:$0xf] %vm1900, %v1804
  %1934 = vst.msk [vmem:[%s3 + $0x84] sm:$0xf] %vm1900, %v1805
  %1935 = vst.msk [vmem:[%s3 + $0x88] sm:$0xf] %vm1900, %v1806
  %1936 = vst.msk [vmem:[%s3 + $0x8c] sm:$0xf] %vm1900, %v1807
  %1937 = vst.msk [vmem:[%s3 + $0x90] sm:$0xf] %vm1900, %v1808
  %1938 = vst.msk [vmem:[%s3 + $0x94] sm:$0xf] %vm1900, %v1809
  %1939 = vst.msk [vmem:[%s3 + $0x98] sm:$0xf] %vm1900, %v1810
  %1940 = vst.msk [vmem:[%s3 + $0x9c] sm:$0xf] %vm1900, %v1811
  %1941 = vst.msk [vmem:[%s3 + $0xa0] sm:$0xf] %vm1900, %v1812
  %1942 = vst.msk [vmem:[%s3 + $0xa4] sm:$0xf] %vm1900, %v1813
  %1943 = vst.msk [vmem:[%s3 + $0xa8] sm:$0xf] %vm1900, %v1814
  %1944 = vst.msk [vmem:[%s3 + $0xac] sm:$0xf] %vm1900, %v1815
  %1945 = vst.msk [vmem:[%s3 + $0xb0] sm:$0xf] %vm1900, %v1816
  %1946 = vst.msk [vmem:[%s3 + $0xb4] sm:$0xf] %vm1900, %v1817
  %1947 = vst.msk [vmem:[%s3 + $0xb8] sm:$0xf] %vm1900, %v1818
  %1948 = vst.msk [vmem:[%s3 + $0xbc] sm:$0xf] %vm1900, %v1819
  %1949 = vst.msk [vmem:[%s3 + $0xc0] sm:$0xf] %vm1900, %v1820
  %1950 = vst.msk [vmem:[%s3 + $0xc4] sm:$0xf] %vm1900, %v1821
  %1951 = vst.msk [vmem:[%s3 + $0xc8] sm:$0xf] %vm1900, %v1822
  %1952 = vst.msk [vmem:[%s3 + $0xcc] sm:$0xf] %vm1900, %v1823
  %1953 = vst.msk [vmem:[%s3 + $0xd0] sm:$0xf] %vm1900, %v1824
  %1954 = vst.msk [vmem:[%s3 + $0xd4] sm:$0xf] %vm1900, %v1825
  %1955 = vst.msk [vmem:[%s3 + $0xd8] sm:$0xf] %vm1900, %v1826
  %1956 = vst.msk [vmem:[%s3 + $0xdc] sm:$0xf] %vm1900, %v1827
  %1957 = vst.msk [vmem:[%s3 + $0xe0] sm:$0xf] %vm1900, %v1828
  %1958 = vst.msk [vmem:[%s3 + $0xe4] sm:$0xf] %vm1900, %v1829
  %1959 = vst.msk [vmem:[%s3 + $0xe8] sm:$0xf] %vm1900, %v1830
  %1960 = vst.msk [vmem:[%s3 + $0xec] sm:$0xf] %vm1900, %v1831
  %1961 = vst.msk [vmem:[%s3 + $0xf0] sm:$0xf] %vm1900, %v1832
  %1962 = vst.msk [vmem:[%s3 + $0xf4] sm:$0xf] %vm1900, %v1833
  %1963 = vst.msk [vmem:[%s3 + $0xf8] sm:$0xf] %vm1900, %v1834
  %1964 = vst.msk [vmem:[%s3 + $0xfc] sm:$0xf] %vm1900, %v1835
  // Predicated region
  $region14: #{forward.9} parent=0 // pred_check
    _
  $region15: #{forward.9} parent=0 // pred_check_branch
    %1966 = sbr.rel (0) target = $region17
  $region16: #{forward.9} parent=0 // pred_region
    _
  $region17: #{forward.9} parent=0 // pred_fallthru
    _
  // Predicated region
  $region18: #{forward.9} parent=0 // pred_check
    _
  $region19: #{forward.9} parent=0 // pred_check_branch
    %1968 = sbr.rel (0) target = $region21
  $region20: #{forward.9} parent=0 // pred_region
    _
  $region21: #{forward.9} parent=0 // pred_fallthru
    _

// kernel: forward.10
$region0: #{forward.10}
  #allocation0 [shape = 'u32[]', space=smem, size = 0x4, offset = 0x4, fixed_abs, tag = 'smem constant byte address 0x4 - core index']
  #allocation1 [shape = 'u32[144,128]{1,0:T(1,128)}', space=vmem, size = 0x12000, scoped, tag = 'internal scratch']
  %s0 = inlined_call_operand.vmem [shape: bf16[2048,144], index: 0, kind: input, shape index: {}]
  %s1 = inlined_call_operand.vmem [shape: bf16[144,32], index: 1, kind: input, shape index: {}]
  %s2 = inlined_call_operand.vmem [shape: f32[2,32], index: 2, kind: input, shape index: {}]
  %s3 = inlined_call_operand.vmem [shape: bf16[2048,32], index: 3, kind: output, shape index: {}]
  %s4 = sld [smem:[#allocation0]]
  $region45: #{forward.10} parent=0
    _
  %s6 = ssub.s32 1, %s4
  %s7 = scalar_select 0, %s6, %s4
  loop: start=0, step=1, limit=4
  $region2: #{forward.10} parent=0 // loop_pre_header
    _
  $region3: #{forward.10} parent=0 // loop_header
    %s9 = sphi 0, %s13
    %p10 = scmp.ge.s32.totalorder %s9, 4
    %s19 = sphi 0, %s21
    %s22 = sphi 0, %s19
    %s23 = sphi 0, %s22
    %s39 = sphi 0, %s23
    %s43 = sphi 0, %s43
    %s45 = sphi 0, %s43
    %s46 = sphi 0, %s45
    %s60 = sphi 0, %s46
    %s64 = sphi 0, %s64
    %s66 = sphi 0, %s64
    %s67 = sphi 0, %s66
    %s81 = sphi 0, %s67
    %s87 = sphi 0, %s89
    %s90 = sphi 0, %s87
    %s91 = sphi 0, %s90
    %s107 = sphi 0, %s91
  $region4: #{forward.10} parent=0 // loop_header_branch
    %12 = sbr.rel (%p10) target = $region8
  $region5: #{forward.10} parent=0 // loop_body
    %s14 = ssub.s32 %s9, 1
    %s15 = ssub.s32 %s9, 2
    %s16 = sadd.s32 %s9, 1
    %s17 = ssub.s32 %s9, %s16
    %p18 = scmp.eq.s32.totalorder %s17, 0
    %s20 = sadd.s32 %s19, 1
    %s21 = scalar_select %p18, %s19, %s20
    %p24 = pneg %p18
    %p25 = scmp.eq.s32.totalorder %s9, 1
    %p26 = por %p24, %p25
    %p27 = scmp.ne.s32.totalorder %s19, %s22
    %p28 = scmp.eq.s32.totalorder %s9, 0
    %p29 = por %p27, %p28
    %p30 = scmp.ne.s32.totalorder %s19, %s22
    %p31 = scmp.eq.s32.totalorder %s14, 1
    %p32 = por %p30, %p31
    %p33 = scmp.ne.s32.totalorder %s22, %s23
    %p34 = scmp.eq.s32.totalorder %s14, 0
    %p35 = por %p33, %p34
    %p36 = scmp.ne.s32.totalorder %s22, %s23
    %p37 = scmp.eq.s32.totalorder %s15, 1
    %p38 = por %p36, %p37
    %p40 = scmp.ne.s32.totalorder %s23, %s39
    %p41 = scmp.eq.s32.totalorder %s15, 0
    %p42 = por %p40, %p41
    %s44 = sadd.s32 %s43, 1
    %p47 = scmp.eq.s32.totalorder %s9, 1
    %p48 = scmp.ne.s32.totalorder %s43, %s45
    %p49 = scmp.eq.s32.totalorder %s9, 0
    %p50 = por %p48, %p49
    %p51 = scmp.ne.s32.totalorder %s43, %s45
    %p52 = scmp.eq.s32.totalorder %s14, 1
    %p53 = por %p51, %p52
    %p54 = scmp.ne.s32.totalorder %s45, %s46
    %p55 = scmp.eq.s32.totalorder %s14, 0
    %p56 = por %p54, %p55
    %p57 = scmp.ne.s32.totalorder %s45, %s46
    %p58 = scmp.eq.s32.totalorder %s15, 1
    %p59 = por %p57, %p58
    %p61 = scmp.ne.s32.totalorder %s46, %s60
    %p62 = scmp.eq.s32.totalorder %s15, 0
    %p63 = por %p61, %p62
    %s65 = sadd.s32 %s64, 1
    %p68 = scmp.eq.s32.totalorder %s9, 1
    %p69 = scmp.ne.s32.totalorder %s64, %s66
    %p70 = scmp.eq.s32.totalorder %s9, 0
    %p71 = por %p69, %p70
    %p72 = scmp.ne.s32.totalorder %s64, %s66
    %p73 = scmp.eq.s32.totalorder %s14, 1
    %p74 = por %p72, %p73
    %p75 = scmp.ne.s32.totalorder %s66, %s67
    %p76 = scmp.eq.s32.totalorder %s14, 0
    %p77 = por %p75, %p76
    %p78 = scmp.ne.s32.totalorder %s66, %s67
    %p79 = scmp.eq.s32.totalorder %s15, 1
    %p80 = por %p78, %p79
    %p82 = scmp.ne.s32.totalorder %s67, %s81
    %p83 = scmp.eq.s32.totalorder %s15, 0
    %p84 = por %p82, %p83
    %s85 = ssub.s32 %s9, %s16
    %p86 = scmp.eq.s32.totalorder %s85, 0
    %s88 = sadd.s32 %s87, 1
    %s89 = scalar_select %p86, %s87, %s88
    %p92 = pneg %p86
    %p93 = scmp.eq.s32.totalorder %s9, 1
    %p94 = por %p92, %p93
    %p95 = scmp.ne.s32.totalorder %s87, %s90
    %p96 = scmp.eq.s32.totalorder %s9, 0
    %p97 = por %p95, %p96
    %p98 = scmp.ne.s32.totalorder %s87, %s90
    %p99 = scmp.eq.s32.totalorder %s14, 1
    %p100 = por %p98, %p99
    %p101 = scmp.ne.s32.totalorder %s90, %s91
    %p102 = scmp.eq.s32.totalorder %s14, 0
    %p103 = por %p101, %p102
    %p104 = scmp.ne.s32.totalorder %s90, %s91
    %p105 = scmp.eq.s32.totalorder %s15, 1
    %p106 = por %p104, %p105
    %p108 = scmp.ne.s32.totalorder %s91, %s107
    %p109 = scmp.eq.s32.totalorder %s15, 0
    %p110 = por %p108, %p109
    %p111 = scmp.le.s32.totalorder 1, %s9
    %p112 = scmp.lt.s32.totalorder %s9, 3
    %p113 = pnand %p111, %p112
    %p114 = pneg %p113
    // Predicated region
    $region9: #{forward.10} parent=5 // pred_check
      _
    $region10: #{forward.10} parent=5 // pred_check_branch
      %116 = sbr.rel (%p113) target = $region12
    $region11: #{forward.10} parent=5 // pred_region
      %s117 = ssub.s32 %s9, 1
      // Predicated region
      $region13: #{forward.10} parent=11 // pred_check
        %p118 = pneg %p56
      $region14: #{forward.10} parent=11 // pred_check_branch
        %120 = sbr.rel (%p118) target = $region16
      $region15: #{forward.10} parent=11 // pred_region
        _
      $region16: #{forward.10} parent=11 // pred_fallthru
        _
      // Predicated region
      $region17: #{forward.10} parent=11 // pred_check
        %p121 = pneg %p77
      $region18: #{forward.10} parent=11 // pred_check_branch
        %123 = sbr.rel (%p121) target = $region20
      $region19: #{forward.10} parent=11 // pred_region
        _
      $region20: #{forward.10} parent=11 // pred_fallthru
        _
    $region12: #{forward.10} parent=5 // pred_fallthru
      _
    %p124 = scmp.lt.s32.totalorder %s9, 2
    // Predicated region
    $region21: #{forward.10} parent=5 // pred_check
      %p125 = pneg %p124
    $region22: #{forward.10} parent=5 // pred_check_branch
      %127 = sbr.rel (%p125) target = $region24
    $region23: #{forward.10} parent=5 // pred_region
      // Predicated region
      $region25: #{forward.10} parent=23 // pred_check
        %p128 = pneg %p29
      $region26: #{forward.10} parent=23 // pred_check_branch
        %130 = sbr.rel (%p128) target = $region28
      $region27: #{forward.10} parent=23 // pred_region
        %s131 = smul.u32 128, %s9
        %p132 = scmp.lt.s32.totalorder %s131, 255
        %s133 = scalar_select %p132, %s131, 255
        %s134 = smul.addr %s133, 2
        %s135 = smul.addr %s134, 4
        %s136 = scalar_lea.vmem %s0, %s135
        %s137 = smul.u32 128, %s9
      $region28: #{forward.10} parent=23 // pred_fallthru
        _
    $region24: #{forward.10} parent=5 // pred_fallthru
      _
    %p138 = scmp.le.s32.totalorder 1, %s9
    %p139 = scmp.lt.s32.totalorder %s9, 3
    %p140 = pnand %p138, %p139
    %p141 = pneg %p140
    // Predicated region
    $region29: #{forward.10} parent=5 // pred_check
      _
    $region30: #{forward.10} parent=5 // pred_check_branch
      %143 = sbr.rel (%p140) target = $region32
    $region31: #{forward.10} parent=5 // pred_region
      %s144 = ssub.s32 %s9, 1
      %s145 = smul.u32 128, %s14
      %p146 = scmp.lt.s32.totalorder %s145, 255
      %s147 = scalar_select %p146, %s145, 255
      %s148 = smul.addr %s147, 2
      %s149 = smul.addr %s148, 4
      %s150 = scalar_lea.vmem %s0, %s149
      %p151 = pneg %p35
      %p152 = pneg %p32
      %p153 = pneg %p56
      %p154 = pneg %p53
      %p155 = pneg %p77
      %p156 = pneg %p74
      %p157 = pneg %p103
      %p158 = pneg %p100
      %s159 = smul.u32 128, %s14
      %p160 = scmp.lt.s32.totalorder %s159, 255
      %s161 = scalar_select %p160, %s159, 255
      %s162 = smul.addr %s161, 4
      %s163 = scalar_lea.vmem %s3, %s162
      %s164 = smul.u32 128, %s14
      %p165 = scmp.lt.s32.totalorder %s164, 255
      %s166 = scalar_select %p165, %s164, 255
      %s167 = smul.addr %s166, 2
      %s168 = smul.addr %s167, 4
      %s169 = scalar_lea.vmem %s0, %s168
      %s170 = smul.u32 128, %s14
      %s171 = smul.u32 128, %s14
      %p172 = scmp.lt.s32.totalorder %s171, 255
      %s173 = scalar_select %p172, %s171, 255
      %s174 = smul.addr %s173, 4
      %s175 = scalar_lea.vmem %s3, %s174
      %s176 = smul.u32 128, %s14
      %v178 = vld [vmem:[%s169] sm:$0xff]
      %v179 = vld [vmem:[%s169 + $0x8] sm:$0xff]
      %v180 = vld [vmem:[%s169 + $0x10] sm:$0xff]
      %v181 = vld [vmem:[%s169 + $0x18] sm:$0xff]
      %v182 = vld [vmem:[%s169 + $0x20] sm:$0xff]
      %v183 = vld [vmem:[%s169 + $0x28] sm:$0xff]
      %v184 = vld [vmem:[%s169 + $0x30] sm:$0xff]
      %v185 = vld [vmem:[%s169 + $0x38] sm:$0xff]
      %v186 = vld [vmem:[%s169 + $0x40] sm:$0xff]
      %v187 = vld [vmem:[%s169 + $0x48] sm:$0xff]
      %v188 = vld [vmem:[%s169 + $0x50] sm:$0xff]
      %v189 = vld [vmem:[%s169 + $0x58] sm:$0xff]
      %v190 = vld [vmem:[%s169 + $0x60] sm:$0xff]
      %v191 = vld [vmem:[%s169 + $0x68] sm:$0xff]
      %v192 = vld [vmem:[%s169 + $0x70] sm:$0xff]
      %v193 = vld [vmem:[%s169 + $0x78] sm:$0xff]
      %v194 = vld [vmem:[%s169 + $0x80] sm:$0xff]
      %v195 = vld [vmem:[%s169 + $0x88] sm:$0xff]
      %v196 = vld [vmem:[%s169 + $0x90] sm:$0xff]
      %v197 = vld [vmem:[%s169 + $0x98] sm:$0xff]
      %v198 = vld [vmem:[%s169 + $0xa0] sm:$0xff]
      %v199 = vld [vmem:[%s169 + $0xa8] sm:$0xff]
      %v200 = vld [vmem:[%s169 + $0xb0] sm:$0xff]
      %v201 = vld [vmem:[%s169 + $0xb8] sm:$0xff]
      %v202 = vld [vmem:[%s169 + $0xc0] sm:$0xff]
      %v203 = vld [vmem:[%s169 + $0xc8] sm:$0xff]
      %v204 = vld [vmem:[%s169 + $0xd0] sm:$0xff]
      %v205 = vld [vmem:[%s169 + $0xd8] sm:$0xff]
      %v206 = vld [vmem:[%s169 + $0xe0] sm:$0xff]
      %v207 = vld [vmem:[%s169 + $0xe8] sm:$0xff]
      %v208 = vld [vmem:[%s169 + $0xf0] sm:$0xff]
      %v209 = vld [vmem:[%s169 + $0xf8] sm:$0xff]
      %v210 = vld [vmem:[%s169 + $0x100] sm:$0xff]
      %v211 = vld [vmem:[%s169 + $0x108] sm:$0xff]
      %v212 = vld [vmem:[%s169 + $0x110] sm:$0xff]
      %v213 = vld [vmem:[%s169 + $0x118] sm:$0xff]
      %v214 = vld [vmem:[%s169 + $0x120] sm:$0xff]
      %v215 = vld [vmem:[%s169 + $0x128] sm:$0xff]
      %v216 = vld [vmem:[%s169 + $0x130] sm:$0xff]
      %v217 = vld [vmem:[%s169 + $0x138] sm:$0xff]
      %v218 = vld [vmem:[%s169 + $0x140] sm:$0xff]
      %v219 = vld [vmem:[%s169 + $0x148] sm:$0xff]
      %v220 = vld [vmem:[%s169 + $0x150] sm:$0xff]
      %v221 = vld [vmem:[%s169 + $0x158] sm:$0xff]
      %v222 = vld [vmem:[%s169 + $0x160] sm:$0xff]
      %v223 = vld [vmem:[%s169 + $0x168] sm:$0xff]
      %v224 = vld [vmem:[%s169 + $0x170] sm:$0xff]
      %v225 = vld [vmem:[%s169 + $0x178] sm:$0xff]
      %v226 = vld [vmem:[%s169 + $0x180] sm:$0xff]
      %v227 = vld [vmem:[%s169 + $0x188] sm:$0xff]
      %v228 = vld [vmem:[%s169 + $0x190] sm:$0xff]
      %v229 = vld [vmem:[%s169 + $0x198] sm:$0xff]
      %v230 = vld [vmem:[%s169 + $0x1a0] sm:$0xff]
      %v231 = vld [vmem:[%s169 + $0x1a8] sm:$0xff]
      %v232 = vld [vmem:[%s169 + $0x1b0] sm:$0xff]
      %v233 = vld [vmem:[%s169 + $0x1b8] sm:$0xff]
      %v234 = vld [vmem:[%s169 + $0x1c0] sm:$0xff]
      %v235 = vld [vmem:[%s169 + $0x1c8] sm:$0xff]
      %v236 = vld [vmem:[%s169 + $0x1d0] sm:$0xff]
      %v237 = vld [vmem:[%s169 + $0x1d8] sm:$0xff]
      %v238 = vld [vmem:[%s169 + $0x1e0] sm:$0xff]
      %v239 = vld [vmem:[%s169 + $0x1e8] sm:$0xff]
      %v240 = vld [vmem:[%s169 + $0x1f0] sm:$0xff]
      %v241 = vld [vmem:[%s169 + $0x1f8] sm:$0xff]
      %v242 = vld [vmem:[%s169 + $0x200] sm:$0xff]
      %v243 = vld [vmem:[%s169 + $0x208] sm:$0xff]
      %v244 = vld [vmem:[%s169 + $0x210] sm:$0xff]
      %v245 = vld [vmem:[%s169 + $0x218] sm:$0xff]
      %v246 = vld [vmem:[%s169 + $0x220] sm:$0xff]
      %v247 = vld [vmem:[%s169 + $0x228] sm:$0xff]
      %v248 = vld [vmem:[%s169 + $0x230] sm:$0xff]
      %v249 = vld [vmem:[%s169 + $0x238] sm:$0xff]
      %v250 = vld [vmem:[%s169 + $0x240] sm:$0xff]
      %v251 = vld [vmem:[%s169 + $0x248] sm:$0xff]
      %v252 = vld [vmem:[%s169 + $0x250] sm:$0xff]
      %v253 = vld [vmem:[%s169 + $0x258] sm:$0xff]
      %v254 = vld [vmem:[%s169 + $0x260] sm:$0xff]
      %v255 = vld [vmem:[%s169 + $0x268] sm:$0xff]
      %v256 = vld [vmem:[%s169 + $0x270] sm:$0xff]
      %v257 = vld [vmem:[%s169 + $0x278] sm:$0xff]
      %v258 = vld [vmem:[%s169 + $0x280] sm:$0xff]
      %v259 = vld [vmem:[%s169 + $0x288] sm:$0xff]
      %v260 = vld [vmem:[%s169 + $0x290] sm:$0xff]
      %v261 = vld [vmem:[%s169 + $0x298] sm:$0xff]
      %v262 = vld [vmem:[%s169 + $0x2a0] sm:$0xff]
      %v263 = vld [vmem:[%s169 + $0x2a8] sm:$0xff]
      %v264 = vld [vmem:[%s169 + $0x2b0] sm:$0xff]
      %v265 = vld [vmem:[%s169 + $0x2b8] sm:$0xff]
      %v266 = vld [vmem:[%s169 + $0x2c0] sm:$0xff]
      %v267 = vld [vmem:[%s169 + $0x2c8] sm:$0xff]
      %v268 = vld [vmem:[%s169 + $0x2d0] sm:$0xff]
      %v269 = vld [vmem:[%s169 + $0x2d8] sm:$0xff]
      %v270 = vld [vmem:[%s169 + $0x2e0] sm:$0xff]
      %v271 = vld [vmem:[%s169 + $0x2e8] sm:$0xff]
      %v272 = vld [vmem:[%s169 + $0x2f0] sm:$0xff]
      %v273 = vld [vmem:[%s169 + $0x2f8] sm:$0xff]
      %v274 = vld [vmem:[%s169 + $0x300] sm:$0xff]
      %v275 = vld [vmem:[%s169 + $0x308] sm:$0xff]
      %v276 = vld [vmem:[%s169 + $0x310] sm:$0xff]
      %v277 = vld [vmem:[%s169 + $0x318] sm:$0xff]
      %v278 = vld [vmem:[%s169 + $0x320] sm:$0xff]
      %v279 = vld [vmem:[%s169 + $0x328] sm:$0xff]
      %v280 = vld [vmem:[%s169 + $0x330] sm:$0xff]
      %v281 = vld [vmem:[%s169 + $0x338] sm:$0xff]
      %v282 = vld [vmem:[%s169 + $0x340] sm:$0xff]
      %v283 = vld [vmem:[%s169 + $0x348] sm:$0xff]
      %v284 = vld [vmem:[%s169 + $0x350] sm:$0xff]
      %v285 = vld [vmem:[%s169 + $0x358] sm:$0xff]
      %v286 = vld [vmem:[%s169 + $0x360] sm:$0xff]
      %v287 = vld [vmem:[%s169 + $0x368] sm:$0xff]
      %v288 = vld [vmem:[%s169 + $0x370] sm:$0xff]
      %v289 = vld [vmem:[%s169 + $0x378] sm:$0xff]
      %v290 = vld [vmem:[%s169 + $0x380] sm:$0xff]
      %v291 = vld [vmem:[%s169 + $0x388] sm:$0xff]
      %v292 = vld [vmem:[%s169 + $0x390] sm:$0xff]
      %v293 = vld [vmem:[%s169 + $0x398] sm:$0xff]
      %v294 = vld [vmem:[%s169 + $0x3a0] sm:$0xff]
      %v295 = vld [vmem:[%s169 + $0x3a8] sm:$0xff]
      %v296 = vld [vmem:[%s169 + $0x3b0] sm:$0xff]
      %v297 = vld [vmem:[%s169 + $0x3b8] sm:$0xff]
      %v298 = vld [vmem:[%s169 + $0x3c0] sm:$0xff]
      %v299 = vld [vmem:[%s169 + $0x3c8] sm:$0xff]
      %v300 = vld [vmem:[%s169 + $0x3d0] sm:$0xff]
      %v301 = vld [vmem:[%s169 + $0x3d8] sm:$0xff]
      %v302 = vld [vmem:[%s169 + $0x3e0] sm:$0xff]
      %v303 = vld [vmem:[%s169 + $0x3e8] sm:$0xff]
      %v304 = vld [vmem:[%s169 + $0x3f0] sm:$0xff]
      %v305 = vld [vmem:[%s169 + $0x3f8] sm:$0xff]
      %v306 = vld [vmem:[%s1] sm:$0xf]
      %v307 = vld [vmem:[%s1 + $0x4] sm:$0xf]
      %v308 = vld [vmem:[%s1 + $0x8] sm:$0xf]
      %v309 = vld [vmem:[%s1 + $0xc] sm:$0xf]
      %v310 = vld [vmem:[%s1 + $0x10] sm:$0xf]
      %v311 = vld [vmem:[%s1 + $0x14] sm:$0xf]
      %v312 = vld [vmem:[%s1 + $0x18] sm:$0xf]
      %v313 = vld [vmem:[%s1 + $0x1c] sm:$0xf]
      %v314 = vld [vmem:[%s1 + $0x20] sm:$0xf]
      %v315 = vld [vmem:[%s1 + $0x24] sm:$0xf]
      %v316 = vld [vmem:[%s1 + $0x28] sm:$0xf]
      %v317 = vld [vmem:[%s1 + $0x2c] sm:$0xf]
      %v318 = vld [vmem:[%s1 + $0x30] sm:$0xf]
      %v319 = vld [vmem:[%s1 + $0x34] sm:$0xf]
      %v320 = vld [vmem:[%s1 + $0x38] sm:$0xf]
      %v321 = vld [vmem:[%s1 + $0x3c] sm:$0xf]
      %v322 = vld [vmem:[%s1 + $0x40] sm:$0xf]
      %v323 = vld [vmem:[%s1 + $0x44] sm:$0xf]
      %v452 = vunpack.c.l.b16 %v178
      %v453 = vunpack.c.h.b16 %v178
      %v454 = vunpack.c.l.b16 %v179
      %v455 = vunpack.c.h.b16 %v179
      %v456 = vunpack.c.l.b16 %v180
      %v457 = vunpack.c.h.b16 %v180
      %v458 = vunpack.c.l.b16 %v181
      %v459 = vunpack.c.h.b16 %v181
      %v460 = vunpack.c.l.b16 %v182
      %v461 = vunpack.c.h.b16 %v182
      %v462 = vunpack.c.l.b16 %v183
      %v463 = vunpack.c.h.b16 %v183
      %v464 = vunpack.c.l.b16 %v184
      %v465 = vunpack.c.h.b16 %v184
      %v466 = vunpack.c.l.b16 %v185
      %v467 = vunpack.c.h.b16 %v185
      %v468 = vunpack.c.l.b16 %v186
      %v469 = vunpack.c.h.b16 %v186
      %v470 = vunpack.c.l.b16 %v187
      %v471 = vunpack.c.h.b16 %v187
      %v472 = vunpack.c.l.b16 %v188
      %v473 = vunpack.c.h.b16 %v188
      %v474 = vunpack.c.l.b16 %v189
      %v475 = vunpack.c.h.b16 %v189
      %v476 = vunpack.c.l.b16 %v190
      %v477 = vunpack.c.h.b16 %v190
      %v478 = vunpack.c.l.b16 %v191
      %v479 = vunpack.c.h.b16 %v191
      %v480 = vunpack.c.l.b16 %v192
      %v481 = vunpack.c.h.b16 %v192
      %v482 = vunpack.c.l.b16 %v193
      %v483 = vunpack.c.h.b16 %v193
      %v484 = vunpack.c.l.b16 %v194
      %v485 = vunpack.c.h.b16 %v194
      %v486 = vunpack.c.l.b16 %v195
      %v487 = vunpack.c.h.b16 %v195
      %v488 = vunpack.c.l.b16 %v196
      %v489 = vunpack.c.h.b16 %v196
      %v490 = vunpack.c.l.b16 %v197
      %v491 = vunpack.c.h.b16 %v197
      %v492 = vunpack.c.l.b16 %v198
      %v493 = vunpack.c.h.b16 %v198
      %v494 = vunpack.c.l.b16 %v199
      %v495 = vunpack.c.h.b16 %v199
      %v496 = vunpack.c.l.b16 %v200
      %v497 = vunpack.c.h.b16 %v200
      %v498 = vunpack.c.l.b16 %v201
      %v499 = vunpack.c.h.b16 %v201
      %v500 = vunpack.c.l.b16 %v202
      %v501 = vunpack.c.h.b16 %v202
      %v502 = vunpack.c.l.b16 %v203
      %v503 = vunpack.c.h.b16 %v203
      %v504 = vunpack.c.l.b16 %v204
      %v505 = vunpack.c.h.b16 %v204
      %v506 = vunpack.c.l.b16 %v205
      %v507 = vunpack.c.h.b16 %v205
      %v508 = vunpack.c.l.b16 %v206
      %v509 = vunpack.c.h.b16 %v206
      %v510 = vunpack.c.l.b16 %v207
      %v511 = vunpack.c.h.b16 %v207
      %v512 = vunpack.c.l.b16 %v208
      %v513 = vunpack.c.h.b16 %v208
      %v514 = vunpack.c.l.b16 %v209
      %v515 = vunpack.c.h.b16 %v209
      %v516 = vunpack.c.l.b16 %v210
      %v517 = vunpack.c.h.b16 %v210
      %v518 = vunpack.c.l.b16 %v211
      %v519 = vunpack.c.h.b16 %v211
      %v520 = vunpack.c.l.b16 %v212
      %v521 = vunpack.c.h.b16 %v212
      %v522 = vunpack.c.l.b16 %v213
      %v523 = vunpack.c.h.b16 %v213
      %v524 = vunpack.c.l.b16 %v214
      %v525 = vunpack.c.h.b16 %v214
      %v526 = vunpack.c.l.b16 %v215
      %v527 = vunpack.c.h.b16 %v215
      %v528 = vunpack.c.l.b16 %v216
      %v529 = vunpack.c.h.b16 %v216
      %v530 = vunpack.c.l.b16 %v217
      %v531 = vunpack.c.h.b16 %v217
      %v532 = vunpack.c.l.b16 %v218
      %v533 = vunpack.c.h.b16 %v218
      %v534 = vunpack.c.l.b16 %v219
      %v535 = vunpack.c.h.b16 %v219
      %v536 = vunpack.c.l.b16 %v220
      %v537 = vunpack.c.h.b16 %v220
      %v538 = vunpack.c.l.b16 %v221
      %v539 = vunpack.c.h.b16 %v221
      %v540 = vunpack.c.l.b16 %v222
      %v541 = vunpack.c.h.b16 %v222
      %v542 = vunpack.c.l.b16 %v223
      %v543 = vunpack.c.h.b16 %v223
      %v544 = vunpack.c.l.b16 %v224
      %v545 = vunpack.c.h.b16 %v224
      %v546 = vunpack.c.l.b16 %v225
      %v547 = vunpack.c.h.b16 %v225
      %v548 = vunpack.c.l.b16 %v226
      %v549 = vunpack.c.h.b16 %v226
      %v550 = vunpack.c.l.b16 %v227
      %v551 = vunpack.c.h.b16 %v227
      %v552 = vunpack.c.l.b16 %v228
      %v553 = vunpack.c.h.b16 %v228
      %v554 = vunpack.c.l.b16 %v229
      %v555 = vunpack.c.h.b16 %v229
      %v556 = vunpack.c.l.b16 %v230
      %v557 = vunpack.c.h.b16 %v230
      %v558 = vunpack.c.l.b16 %v231
      %v559 = vunpack.c.h.b16 %v231
      %v560 = vunpack.c.l.b16 %v232
      %v561 = vunpack.c.h.b16 %v232
      %v562 = vunpack.c.l.b16 %v233
      %v563 = vunpack.c.h.b16 %v233
      %v564 = vunpack.c.l.b16 %v234
      %v565 = vunpack.c.h.b16 %v234
      %v566 = vunpack.c.l.b16 %v235
      %v567 = vunpack.c.h.b16 %v235
      %v568 = vunpack.c.l.b16 %v236
      %v569 = vunpack.c.h.b16 %v236
      %v570 = vunpack.c.l.b16 %v237
      %v571 = vunpack.c.h.b16 %v237
      %v572 = vunpack.c.l.b16 %v238
      %v573 = vunpack.c.h.b16 %v238
      %v574 = vunpack.c.l.b16 %v239
      %v575 = vunpack.c.h.b16 %v239
      %v576 = vunpack.c.l.b16 %v240
      %v577 = vunpack.c.h.b16 %v240
      %v578 = vunpack.c.l.b16 %v241
      %v579 = vunpack.c.h.b16 %v241
      %v580 = vunpack.c.l.b16 %v242
      %v581 = vunpack.c.h.b16 %v242
      %v582 = vunpack.c.l.b16 %v243
      %v583 = vunpack.c.h.b16 %v243
      %v584 = vunpack.c.l.b16 %v244
      %v585 = vunpack.c.h.b16 %v244
      %v586 = vunpack.c.l.b16 %v245
      %v587 = vunpack.c.h.b16 %v245
      %v588 = vunpack.c.l.b16 %v246
      %v589 = vunpack.c.h.b16 %v246
      %v590 = vunpack.c.l.b16 %v247
      %v591 = vunpack.c.h.b16 %v247
      %v592 = vunpack.c.l.b16 %v248
      %v593 = vunpack.c.h.b16 %v248
      %v594 = vunpack.c.l.b16 %v249
      %v595 = vunpack.c.h.b16 %v249
      %v596 = vunpack.c.l.b16 %v250
      %v597 = vunpack.c.h.b16 %v250
      %v598 = vunpack.c.l.b16 %v251
      %v599 = vunpack.c.h.b16 %v251
      %v600 = vunpack.c.l.b16 %v252
      %v601 = vunpack.c.h.b16 %v252
      %v602 = vunpack.c.l.b16 %v253
      %v603 = vunpack.c.h.b16 %v253
      %v604 = vunpack.c.l.b16 %v254
      %v605 = vunpack.c.h.b16 %v254
      %v606 = vunpack.c.l.b16 %v255
      %v607 = vunpack.c.h.b16 %v255
      %v608 = vunpack.c.l.b16 %v256
      %v609 = vunpack.c.h.b16 %v256
      %v610 = vunpack.c.l.b16 %v257
      %v611 = vunpack.c.h.b16 %v257
      %v612 = vunpack.c.l.b16 %v258
      %v613 = vunpack.c.h.b16 %v258
      %v614 = vunpack.c.l.b16 %v259
      %v615 = vunpack.c.h.b16 %v259
      %v616 = vunpack.c.l.b16 %v260
      %v617 = vunpack.c.h.b16 %v260
      %v618 = vunpack.c.l.b16 %v261
      %v619 = vunpack.c.h.b16 %v261
      %v620 = vunpack.c.l.b16 %v262
      %v621 = vunpack.c.h.b16 %v262
      %v622 = vunpack.c.l.b16 %v263
      %v623 = vunpack.c.h.b16 %v263
      %v624 = vunpack.c.l.b16 %v264
      %v625 = vunpack.c.h.b16 %v264
      %v626 = vunpack.c.l.b16 %v265
      %v627 = vunpack.c.h.b16 %v265
      %v628 = vunpack.c.l.b16 %v266
      %v629 = vunpack.c.h.b16 %v266
      %v630 = vunpack.c.l.b16 %v267
      %v631 = vunpack.c.h.b16 %v267
      %v632 = vunpack.c.l.b16 %v268
      %v633 = vunpack.c.h.b16 %v268
      %v634 = vunpack.c.l.b16 %v269
      %v635 = vunpack.c.h.b16 %v269
      %v636 = vunpack.c.l.b16 %v270
      %v637 = vunpack.c.h.b16 %v270
      %v638 = vunpack.c.l.b16 %v271
      %v639 = vunpack.c.h.b16 %v271
      %v640 = vunpack.c.l.b16 %v272
      %v641 = vunpack.c.h.b16 %v272
      %v642 = vunpack.c.l.b16 %v273
      %v643 = vunpack.c.h.b16 %v273
      %v644 = vunpack.c.l.b16 %v274
      %v645 = vunpack.c.h.b16 %v274
      %v646 = vunpack.c.l.b16 %v275
      %v647 = vunpack.c.h.b16 %v275
      %v648 = vunpack.c.l.b16 %v276
      %v649 = vunpack.c.h.b16 %v276
      %v650 = vunpack.c.l.b16 %v277
      %v651 = vunpack.c.h.b16 %v277
      %v652 = vunpack.c.l.b16 %v278
      %v653 = vunpack.c.h.b16 %v278
      %v654 = vunpack.c.l.b16 %v279
      %v655 = vunpack.c.h.b16 %v279
      %v656 = vunpack.c.l.b16 %v280
      %v657 = vunpack.c.h.b16 %v280
      %v658 = vunpack.c.l.b16 %v281
      %v659 = vunpack.c.h.b16 %v281
      %v660 = vunpack.c.l.b16 %v282
      %v661 = vunpack.c.h.b16 %v282
      %v662 = vunpack.c.l.b16 %v283
      %v663 = vunpack.c.h.b16 %v283
      %v664 = vunpack.c.l.b16 %v284
      %v665 = vunpack.c.h.b16 %v284
      %v666 = vunpack.c.l.b16 %v285
      %v667 = vunpack.c.h.b16 %v285
      %v668 = vunpack.c.l.b16 %v286
      %v669 = vunpack.c.h.b16 %v286
      %v670 = vunpack.c.l.b16 %v287
      %v671 = vunpack.c.h.b16 %v287
      %v672 = vunpack.c.l.b16 %v288
      %v673 = vunpack.c.h.b16 %v288
      %v674 = vunpack.c.l.b16 %v289
      %v675 = vunpack.c.h.b16 %v289
      %v676 = vunpack.c.l.b16 %v290
      %v677 = vunpack.c.h.b16 %v290
      %v678 = vunpack.c.l.b16 %v291
      %v679 = vunpack.c.h.b16 %v291
      %v680 = vunpack.c.l.b16 %v292
      %v681 = vunpack.c.h.b16 %v292
      %v682 = vunpack.c.l.b16 %v293
      %v683 = vunpack.c.h.b16 %v293
      %v684 = vunpack.c.l.b16 %v294
      %v685 = vunpack.c.h.b16 %v294
      %v686 = vunpack.c.l.b16 %v295
      %v687 = vunpack.c.h.b16 %v295
      %v688 = vunpack.c.l.b16 %v296
      %v689 = vunpack.c.h.b16 %v296
      %v690 = vunpack.c.l.b16 %v297
      %v691 = vunpack.c.h.b16 %v297
      %v692 = vunpack.c.l.b16 %v298
      %v693 = vunpack.c.h.b16 %v298
      %v694 = vunpack.c.l.b16 %v299
      %v695 = vunpack.c.h.b16 %v299
      %v696 = vunpack.c.l.b16 %v300
      %v697 = vunpack.c.h.b16 %v300
      %v698 = vunpack.c.l.b16 %v301
      %v699 = vunpack.c.h.b16 %v301
      %v700 = vunpack.c.l.b16 %v302
      %v701 = vunpack.c.h.b16 %v302
      %v702 = vunpack.c.l.b16 %v303
      %v703 = vunpack.c.h.b16 %v303
      %v704 = vunpack.c.l.b16 %v304
      %v705 = vunpack.c.h.b16 %v304
      %v706 = vunpack.c.l.b16 %v305
      %v707 = vunpack.c.h.b16 %v305
      %v708 = vpack.c.b16 %v454, %v452
      %v709 = vpack.c.b16 %v455, %v453
      %v710 = vpack.c.b16 %v458, %v456
      %v711 = vpack.c.b16 %v459, %v457
      %v712 = vpack.c.b16 %v462, %v460
      %v713 = vpack.c.b16 %v463, %v461
      %v714 = vpack.c.b16 %v466, %v464
      %v715 = vpack.c.b16 %v467, %v465
      %v716 = vpack.c.b16 %v470, %v468
      %v717 = vpack.c.b16 %v471, %v469
      %v718 = vpack.c.b16 %v474, %v472
      %v719 = vpack.c.b16 %v475, %v473
      %v720 = vpack.c.b16 %v478, %v476
      %v721 = vpack.c.b16 %v479, %v477
      %v722 = vpack.c.b16 %v482, %v480
      %v723 = vpack.c.b16 %v483, %v481
      %v724 = vpack.c.b16 %v486, %v484
      %v725 = vpack.c.b16 %v487, %v485
      %v726 = vpack.c.b16 %v490, %v488
      %v727 = vpack.c.b16 %v491, %v489
      %v728 = vpack.c.b16 %v494, %v492
      %v729 = vpack.c.b16 %v495, %v493
      %v730 = vpack.c.b16 %v498, %v496
      %v731 = vpack.c.b16 %v499, %v497
      %v732 = vpack.c.b16 %v502, %v500
      %v733 = vpack.c.b16 %v503, %v501
      %v734 = vpack.c.b16 %v506, %v504
      %v735 = vpack.c.b16 %v507, %v505
      %v736 = vpack.c.b16 %v510, %v508
      %v737 = vpack.c.b16 %v511, %v509
      %v738 = vpack.c.b16 %v514, %v512
      %v739 = vpack.c.b16 %v515, %v513
      %v740 = vpack.c.b16 %v518, %v516
      %v741 = vpack.c.b16 %v519, %v517
      %v742 = vpack.c.b16 %v522, %v520
      %v743 = vpack.c.b16 %v523, %v521
      %v744 = vpack.c.b16 %v526, %v524
      %v745 = vpack.c.b16 %v527, %v525
      %v746 = vpack.c.b16 %v530, %v528
      %v747 = vpack.c.b16 %v531, %v529
      %v748 = vpack.c.b16 %v534, %v532
      %v749 = vpack.c.b16 %v535, %v533
      %v750 = vpack.c.b16 %v538, %v536
      %v751 = vpack.c.b16 %v539, %v537
      %v752 = vpack.c.b16 %v542, %v540
      %v753 = vpack.c.b16 %v543, %v541
      %v754 = vpack.c.b16 %v546, %v544
      %v755 = vpack.c.b16 %v547, %v545
      %v756 = vpack.c.b16 %v550, %v548
      %v757 = vpack.c.b16 %v551, %v549
      %v758 = vpack.c.b16 %v554, %v552
      %v759 = vpack.c.b16 %v555, %v553
      %v760 = vpack.c.b16 %v558, %v556
      %v761 = vpack.c.b16 %v559, %v557
      %v762 = vpack.c.b16 %v562, %v560
      %v763 = vpack.c.b16 %v563, %v561
      %v764 = vpack.c.b16 %v566, %v564
      %v765 = vpack.c.b16 %v567, %v565
      %v766 = vpack.c.b16 %v570, %v568
      %v767 = vpack.c.b16 %v571, %v569
      %v768 = vpack.c.b16 %v574, %v572
      %v769 = vpack.c.b16 %v575, %v573
      %v770 = vpack.c.b16 %v578, %v576
      %v771 = vpack.c.b16 %v579, %v577
      %v772 = vpack.c.b16 %v582, %v580
      %v773 = vpack.c.b16 %v583, %v581
      %v774 = vpack.c.b16 %v586, %v584
      %v775 = vpack.c.b16 %v587, %v585
      %v776 = vpack.c.b16 %v590, %v588
      %v777 = vpack.c.b16 %v591, %v589
      %v778 = vpack.c.b16 %v594, %v592
      %v779 = vpack.c.b16 %v595, %v593
      %v780 = vpack.c.b16 %v598, %v596
      %v781 = vpack.c.b16 %v599, %v597
      %v782 = vpack.c.b16 %v602, %v600
      %v783 = vpack.c.b16 %v603, %v601
      %v784 = vpack.c.b16 %v606, %v604
      %v785 = vpack.c.b16 %v607, %v605
      %v786 = vpack.c.b16 %v610, %v608
      %v787 = vpack.c.b16 %v611, %v609
      %v788 = vpack.c.b16 %v614, %v612
      %v789 = vpack.c.b16 %v615, %v613
      %v790 = vpack.c.b16 %v618, %v616
      %v791 = vpack.c.b16 %v619, %v617
      %v792 = vpack.c.b16 %v622, %v620
      %v793 = vpack.c.b16 %v623, %v621
      %v794 = vpack.c.b16 %v626, %v624
      %v795 = vpack.c.b16 %v627, %v625
      %v796 = vpack.c.b16 %v630, %v628
      %v797 = vpack.c.b16 %v631, %v629
      %v798 = vpack.c.b16 %v634, %v632
      %v799 = vpack.c.b16 %v635, %v633
      %v800 = vpack.c.b16 %v638, %v636
      %v801 = vpack.c.b16 %v639, %v637
      %v802 = vpack.c.b16 %v642, %v640
      %v803 = vpack.c.b16 %v643, %v641
      %v804 = vpack.c.b16 %v646, %v644
      %v805 = vpack.c.b16 %v647, %v645
      %v806 = vpack.c.b16 %v650, %v648
      %v807 = vpack.c.b16 %v651, %v649
      %v808 = vpack.c.b16 %v654, %v652
      %v809 = vpack.c.b16 %v655, %v653
      %v810 = vpack.c.b16 %v658, %v656
      %v811 = vpack.c.b16 %v659, %v657
      %v812 = vpack.c.b16 %v662, %v660
      %v813 = vpack.c.b16 %v663, %v661
      %v814 = vpack.c.b16 %v666, %v664
      %v815 = vpack.c.b16 %v667, %v665
      %v816 = vpack.c.b16 %v670, %v668
      %v817 = vpack.c.b16 %v671, %v669
      %v818 = vpack.c.b16 %v674, %v672
      %v819 = vpack.c.b16 %v675, %v673
      %v820 = vpack.c.b16 %v678, %v676
      %v821 = vpack.c.b16 %v679, %v677
      %v822 = vpack.c.b16 %v682, %v680
      %v823 = vpack.c.b16 %v683, %v681
      %v824 = vpack.c.b16 %v686, %v684
      %v825 = vpack.c.b16 %v687, %v685
      %v826 = vpack.c.b16 %v690, %v688
      %v827 = vpack.c.b16 %v691, %v689
      %v828 = vpack.c.b16 %v694, %v692
      %v829 = vpack.c.b16 %v695, %v693
      %v830 = vpack.c.b16 %v698, %v696
      %v831 = vpack.c.b16 %v699, %v697
      %v832 = vpack.c.b16 %v702, %v700
      %v833 = vpack.c.b16 %v703, %v701
      %v834 = vpack.c.b16 %v706, %v704
      %v835 = vpack.c.b16 %v707, %v705
      %v918 = vunpack.c.l.b16 %v306
      %v919 = vunpack.c.l.b16 %v307
      %v920 = vunpack.c.l.b16 %v308
      %v921 = vunpack.c.l.b16 %v309
      %v922 = vunpack.c.l.b16 %v310
      %v923 = vunpack.c.l.b16 %v311
      %v924 = vunpack.c.l.b16 %v312
      %v925 = vunpack.c.l.b16 %v313
      %v926 = vunpack.c.l.b16 %v314
      %v927 = vunpack.c.l.b16 %v315
      %v928 = vunpack.c.l.b16 %v316
      %v929 = vunpack.c.l.b16 %v317
      %v930 = vunpack.c.l.b16 %v318
      %v931 = vunpack.c.l.b16 %v319
      %v932 = vunpack.c.l.b16 %v320
      %v933 = vunpack.c.l.b16 %v321
      %v934 = vunpack.c.l.b16 %v322
      %v935 = vunpack.c.l.b16 %v323
      %v936 = vpack.c.b16 %v919, %v918
      %v937 = vpack.c.b16 %v921, %v920
      %v938 = vpack.c.b16 %v923, %v922
      %v939 = vpack.c.b16 %v925, %v924
      %v940 = vpack.c.b16 %v927, %v926
      %v941 = vpack.c.b16 %v929, %v928
      %v942 = vpack.c.b16 %v931, %v930
      %v943 = vpack.c.b16 %v933, %v932
      %v944 = vpack.c.b16 %v935, %v934
      %vm954 = vcmask 130048
      %v956 = vsel %vm954, %v709, 0
      %v959 = vsel %vm954, %v711, 0
      %v962 = vsel %vm954, %v713, 0
      %v965 = vsel %vm954, %v715, 0
      %v968 = vsel %vm954, %v717, 0
      %v971 = vsel %vm954, %v719, 0
      %v974 = vsel %vm954, %v721, 0
      %v977 = vsel %vm954, %v723, 0
      %v980 = vsel %vm954, %v725, 0
      %v983 = vsel %vm954, %v727, 0
      %v986 = vsel %vm954, %v729, 0
      %v989 = vsel %vm954, %v731, 0
      %v992 = vsel %vm954, %v733, 0
      %v995 = vsel %vm954, %v735, 0
      %v998 = vsel %vm954, %v737, 0
      %v1001 = vsel %vm954, %v739, 0
      %v1004 = vsel %vm954, %v741, 0
      %v1007 = vsel %vm954, %v743, 0
      %v1010 = vsel %vm954, %v745, 0
      %v1013 = vsel %vm954, %v747, 0
      %v1016 = vsel %vm954, %v749, 0
      %v1019 = vsel %vm954, %v751, 0
      %v1022 = vsel %vm954, %v753, 0
      %v1025 = vsel %vm954, %v755, 0
      %v1028 = vsel %vm954, %v757, 0
      %v1031 = vsel %vm954, %v759, 0
      %v1034 = vsel %vm954, %v761, 0
      %v1037 = vsel %vm954, %v763, 0
      %v1040 = vsel %vm954, %v765, 0
      %v1043 = vsel %vm954, %v767, 0
      %v1046 = vsel %vm954, %v769, 0
      %v1049 = vsel %vm954, %v771, 0
      %v1052 = vsel %vm954, %v773, 0
      %v1055 = vsel %vm954, %v775, 0
      %v1058 = vsel %vm954, %v777, 0
      %v1061 = vsel %vm954, %v779, 0
      %v1064 = vsel %vm954, %v781, 0
      %v1067 = vsel %vm954, %v783, 0
      %v1070 = vsel %vm954, %v785, 0
      %v1073 = vsel %vm954, %v787, 0
      %v1076 = vsel %vm954, %v789, 0
      %v1079 = vsel %vm954, %v791, 0
      %v1082 = vsel %vm954, %v793, 0
      %v1085 = vsel %vm954, %v795, 0
      %v1088 = vsel %vm954, %v797, 0
      %v1091 = vsel %vm954, %v799, 0
      %v1094 = vsel %vm954, %v801, 0
      %v1097 = vsel %vm954, %v803, 0
      %v1100 = vsel %vm954, %v805, 0
      %v1103 = vsel %vm954, %v807, 0
      %v1106 = vsel %vm954, %v809, 0
      %v1109 = vsel %vm954, %v811, 0
      %v1112 = vsel %vm954, %v813, 0
      %v1115 = vsel %vm954, %v815, 0
      %v1118 = vsel %vm954, %v817, 0
      %v1121 = vsel %vm954, %v819, 0
      %v1124 = vsel %vm954, %v821, 0
      %v1127 = vsel %vm954, %v823, 0
      %v1130 = vsel %vm954, %v825, 0
      %v1133 = vsel %vm954, %v827, 0
      %v1136 = vsel %vm954, %v829, 0
      %v1139 = vsel %vm954, %v831, 0
      %v1142 = vsel %vm954, %v833, 0
      %v1145 = vsel %vm954, %v835, 0
      %1147 = vmatprep.subr.bf16.mxu0 0
      %1148 = vmatpush1.bf16.msra.mxu0 %v936
      %1149 = vmatprep.subr.bf16.mxu0 0
      %1150 = vmatpush1.bf16.msra.mxu0 %v937
      %1151 = vmatprep.subr.bf16.mxu0 0
      %1152 = vmatpush1.bf16.msra.mxu0 %v938
      %1153 = vmatprep.subr.bf16.mxu0 0
      %1154 = vmatpush1.bf16.msra.mxu0 %v939
      %1155 = vmatprep.subr.bf16.mxu0 0
      %1156 = vmatpush1.bf16.msra.mxu0 %v940
      %1157 = vmatprep.subr.bf16.mxu0 0
      %1158 = vmatpush1.bf16.msra.mxu0 %v941
      %1159 = vmatprep.subr.bf16.mxu0 0
      %1160 = vmatpush1.bf16.msra.mxu0 %v942
      %1161 = vmatprep.subr.bf16.mxu0 0
      %1162 = vmatpush1.bf16.msra.mxu0 %v943
      %1163 = vmatprep.subr.bf16.mxu0 0
      %1164 = vmatpush1.bf16.msra.mxu0 %v944
      %1165 = vmatprep.subr.bf16.mxu0 0
      %1166 = vmatpush1.bf16.msra.mxu0 0
      %1167 = vmatprep.subr.bf16.mxu0 0
      %1168 = vmatpush1.bf16.msra.mxu0 0
      %1169 = vmatprep.subr.bf16.mxu0 0
      %1170 = vmatpush1.bf16.msra.mxu0 0
      %1171 = vmatprep.subr.bf16.mxu0 0
      %1172 = vmatpush1.bf16.msra.mxu0 0
      %1173 = vmatprep.subr.bf16.mxu0 0
      %1174 = vmatpush1.bf16.msra.mxu0 0
      %1175 = vmatprep.subr.bf16.mxu0 0
      %1176 = vmatpush1.bf16.msra.mxu0 0
      %1177 = vmatprep.subr.bf16.mxu0 0
      %1178 = vmatpush1.bf16.msra.mxu0 0
      %1179 = vmatprep.mubr.bf16.mxu0 %v956
      %1180 = vmatmul.mubr.bf16.gmra.mrb[0].mxu0 %v708
      %v1181 = vpop.f32.mrb[0].mxu0
      %v1182 = vadd.f32 0.0, %v1181
      %v1183 = vpop.f32.mrb[0].mxu0
      %v1184 = vpop.f32.mrb[0].mxu0
      %v1185 = vadd.f32 0.0, %v1184
      %v1186 = vpop.f32.mrb[0].mxu0
      %1187 = vmatprep.mubr.bf16.mxu0 %v959
      %1188 = vmatmul.mubr.bf16.gmra.mrb[0].mxu0 %v710
      %v1189 = vpop.f32.mrb[0].mxu0
      %v1190 = vadd.f32 0.0, %v1189
      %v1191 = vpop.f32.mrb[0].mxu0
      %v1192 = vpop.f32.mrb[0].mxu0
      %v1193 = vadd.f32 0.0, %v1192
      %v1194 = vpop.f32.mrb[0].mxu0
      %1195 = vmatprep.mubr.bf16.mxu0 %v962
      %1196 = vmatmul.mubr.bf16.gmra.mrb[0].mxu0 %v712
      %v1197 = vpop.f32.mrb[0].mxu0
      %v1198 = vadd.f32 0.0, %v1197
      %v1199 = vpop.f32.mrb[0].mxu0
      %v1200 = vpop.f32.mrb[0].mxu0
      %v1201 = vadd.f32 0.0, %v1200
      %v1202 = vpop.f32.mrb[0].mxu0
      %1203 = vmatprep.mubr.bf16.mxu0 %v965
      %1204 = vmatmul.mubr.bf16.gmra.mrb[0].mxu0 %v714
      %v1205 = vpop.f32.mrb[0].mxu0
      %v1206 = vadd.f32 0.0, %v1205
      %v1207 = vpop.f32.mrb[0].mxu0
      %v1208 = vpop.f32.mrb[0].mxu0
      %v1209 = vadd.f32 0.0, %v1208
      %v1210 = vpop.f32.mrb[0].mxu0
      %1211 = vmatprep.mubr.bf16.mxu0 %v968
      %1212 = vmatmul.mubr.bf16.gmra.mrb[0].mxu0 %v716
      %v1213 = vpop.f32.mrb[0].mxu0
      %v1214 = vadd.f32 0.0, %v1213
      %v1215 = vpop.f32.mrb[0].mxu0
      %v1216 = vpop.f32.mrb[0].mxu0
      %v1217 = vadd.f32 0.0, %v1216
      %v1218 = vpop.f32.mrb[0].mxu0
      %1219 = vmatprep.mubr.bf16.mxu0 %v971
      %1220 = vmatmul.mubr.bf16.gmra.mrb[0].mxu0 %v718
      %v1221 = vpop.f32.mrb[0].mxu0
      %v1222 = vadd.f32 0.0, %v1221
      %v1223 = vpop.f32.mrb[0].mxu0
      %v1224 = vpop.f32.mrb[0].mxu0
      %v1225 = vadd.f32 0.0, %v1224
      %v1226 = vpop.f32.mrb[0].mxu0
      %1227 = vmatprep.mubr.bf16.mxu0 %v974
      %1228 = vmatmul.mubr.bf16.gmra.mrb[0].mxu0 %v720
      %v1229 = vpop.f32.mrb[0].mxu0
      %v1230 = vadd.f32 0.0, %v1229
      %v1231 = vpop.f32.mrb[0].mxu0
      %v1232 = vpop.f32.mrb[0].mxu0
      %v1233 = vadd.f32 0.0, %v1232
      %v1234 = vpop.f32.mrb[0].mxu0
      %1235 = vmatprep.mubr.bf16.mxu0 %v977
      %1236 = vmatmul.mubr.bf16.gmra.mrb[0].mxu0 %v722
      %v1237 = vpop.f32.mrb[0].mxu0
      %v1238 = vadd.f32 0.0, %v1237
      %v1239 = vpop.f32.mrb[0].mxu0
      %v1240 = vpop.f32.mrb[0].mxu0
      %v1241 = vadd.f32 0.0, %v1240
      %v1242 = vpop.f32.mrb[0].mxu0
      %1243 = vmatprep.mubr.bf16.mxu0 %v980
      %1244 = vmatmul.mubr.bf16.gmra.mrb[0].mxu0 %v724
      %v1245 = vpop.f32.mrb[0].mxu0
      %v1246 = vadd.f32 0.0, %v1245
      %v1247 = vpop.f32.mrb[0].mxu0
      %v1248 = vpop.f32.mrb[0].mxu0
      %v1249 = vadd.f32 0.0, %v1248
      %v1250 = vpop.f32.mrb[0].mxu0
      %1251 = vmatprep.mubr.bf16.mxu0 %v983
      %1252 = vmatmul.mubr.bf16.gmra.mrb[0].mxu0 %v726
      %v1253 = vpop.f32.mrb[0].mxu0
      %v1254 = vadd.f32 0.0, %v1253
      %v1255 = vpop.f32.mrb[0].mxu0
      %v1256 = vpop.f32.mrb[0].mxu0
      %v1257 = vadd.f32 0.0, %v1256
      %v1258 = vpop.f32.mrb[0].mxu0
      %1259 = vmatprep.mubr.bf16.mxu0 %v986
      %1260 = vmatmul.mubr.bf16.gmra.mrb[0].mxu0 %v728
      %v1261 = vpop.f32.mrb[0].mxu0
      %v1262 = vadd.f32 0.0, %v1261
      %v1263 = vpop.f32.mrb[0].mxu0
      %v1264 = vpop.f32.mrb[0].mxu0
      %v1265 = vadd.f32 0.0, %v1264
      %v1266 = vpop.f32.mrb[0].mxu0
      %1267 = vmatprep.mubr.bf16.mxu0 %v989
      %1268 = vmatmul.mubr.bf16.gmra.mrb[0].mxu0 %v730
      %v1269 = vpop.f32.mrb[0].mxu0
      %v1270 = vadd.f32 0.0, %v1269
      %v1271 = vpop.f32.mrb[0].mxu0
      %v1272 = vpop.f32.mrb[0].mxu0
      %v1273 = vadd.f32 0.0, %v1272
      %v1274 = vpop.f32.mrb[0].mxu0
      %1275 = vmatprep.mubr.bf16.mxu0 %v992
      %1276 = vmatmul.mubr.bf16.gmra.mrb[0].mxu0 %v732
      %v1277 = vpop.f32.mrb[0].mxu0
      %v1278 = vadd.f32 0.0, %v1277
      %v1279 = vpop.f32.mrb[0].mxu0
      %v1280 = vpop.f32.mrb[0].mxu0
      %v1281 = vadd.f32 0.0, %v1280
      %v1282 = vpop.f32.mrb[0].mxu0
      %1283 = vmatprep.mubr.bf16.mxu0 %v995
      %1284 = vmatmul.mubr.bf16.gmra.mrb[0].mxu0 %v734
      %v1285 = vpop.f32.mrb[0].mxu0
      %v1286 = vadd.f32 0.0, %v1285
      %v1287 = vpop.f32.mrb[0].mxu0
      %v1288 = vpop.f32.mrb[0].mxu0
      %v1289 = vadd.f32 0.0, %v1288
      %v1290 = vpop.f32.mrb[0].mxu0
      %1291 = vmatprep.mubr.bf16.mxu0 %v998
      %1292 = vmatmul.mubr.bf16.gmra.mrb[0].mxu0 %v736
      %v1293 = vpop.f32.mrb[0].mxu0
      %v1294 = vadd.f32 0.0, %v1293
      %v1295 = vpop.f32.mrb[0].mxu0
      %v1296 = vpop.f32.mrb[0].mxu0
      %v1297 = vadd.f32 0.0, %v1296
      %v1298 = vpop.f32.mrb[0].mxu0
      %1299 = vmatprep.mubr.bf16.mxu0 %v1001
      %1300 = vmatmul.mubr.bf16.gmra.mrb[0].mxu0 %v738
      %v1301 = vpop.f32.mrb[0].mxu0
      %v1302 = vadd.f32 0.0, %v1301
      %v1303 = vpop.f32.mrb[0].mxu0
      %v1304 = vpop.f32.mrb[0].mxu0
      %v1305 = vadd.f32 0.0, %v1304
      %v1306 = vpop.f32.mrb[0].mxu0
      %1307 = vmatprep.mubr.bf16.mxu0 %v1004
      %1308 = vmatmul.mubr.bf16.gmra.mrb[0].mxu0 %v740
      %v1309 = vpop.f32.mrb[0].mxu0
      %v1310 = vadd.f32 0.0, %v1309
      %v1311 = vpop.f32.mrb[0].mxu0
      %v1312 = vpop.f32.mrb[0].mxu0
      %v1313 = vadd.f32 0.0, %v1312
      %v1314 = vpop.f32.mrb[0].mxu0
      %1315 = vmatprep.mubr.bf16.mxu0 %v1007
      %1316 = vmatmul.mubr.bf16.gmra.mrb[0].mxu0 %v742
      %v1317 = vpop.f32.mrb[0].mxu0
      %v1318 = vadd.f32 0.0, %v1317
      %v1319 = vpop.f32.mrb[0].mxu0
      %v1320 = vpop.f32.mrb[0].mxu0
      %v1321 = vadd.f32 0.0, %v1320
      %v1322 = vpop.f32.mrb[0].mxu0
      %1323 = vmatprep.mubr.bf16.mxu0 %v1010
      %1324 = vmatmul.mubr.bf16.gmra.mrb[0].mxu0 %v744
      %v1325 = vpop.f32.mrb[0].mxu0
      %v1326 = vadd.f32 0.0, %v1325
      %v1327 = vpop.f32.mrb[0].mxu0
      %v1328 = vpop.f32.mrb[0].mxu0
      %v1329 = vadd.f32 0.0, %v1328
      %v1330 = vpop.f32.mrb[0].mxu0
      %1331 = vmatprep.mubr.bf16.mxu0 %v1013
      %1332 = vmatmul.mubr.bf16.gmra.mrb[0].mxu0 %v746
      %v1333 = vpop.f32.mrb[0].mxu0
      %v1334 = vadd.f32 0.0, %v1333
      %v1335 = vpop.f32.mrb[0].mxu0
      %v1336 = vpop.f32.mrb[0].mxu0
      %v1337 = vadd.f32 0.0, %v1336
      %v1338 = vpop.f32.mrb[0].mxu0
      %1339 = vmatprep.mubr.bf16.mxu0 %v1016
      %1340 = vmatmul.mubr.bf16.gmra.mrb[0].mxu0 %v748
      %v1341 = vpop.f32.mrb[0].mxu0
      %v1342 = vadd.f32 0.0, %v1341
      %v1343 = vpop.f32.mrb[0].mxu0
      %v1344 = vpop.f32.mrb[0].mxu0
      %v1345 = vadd.f32 0.0, %v1344
      %v1346 = vpop.f32.mrb[0].mxu0
      %1347 = vmatprep.mubr.bf16.mxu0 %v1019
      %1348 = vmatmul.mubr.bf16.gmra.mrb[0].mxu0 %v750
      %v1349 = vpop.f32.mrb[0].mxu0
      %v1350 = vadd.f32 0.0, %v1349
      %v1351 = vpop.f32.mrb[0].mxu0
      %v1352 = vpop.f32.mrb[0].mxu0
      %v1353 = vadd.f32 0.0, %v1352
      %v1354 = vpop.f32.mrb[0].mxu0
      %1355 = vmatprep.mubr.bf16.mxu0 %v1022
      %1356 = vmatmul.mubr.bf16.gmra.mrb[0].mxu0 %v752
      %v1357 = vpop.f32.mrb[0].mxu0
      %v1358 = vadd.f32 0.0, %v1357
      %v1359 = vpop.f32.mrb[0].mxu0
      %v1360 = vpop.f32.mrb[0].mxu0
      %v1361 = vadd.f32 0.0, %v1360
      %v1362 = vpop.f32.mrb[0].mxu0
      %1363 = vmatprep.mubr.bf16.mxu0 %v1025
      %1364 = vmatmul.mubr.bf16.gmra.mrb[0].mxu0 %v754
      %v1365 = vpop.f32.mrb[0].mxu0
      %v1366 = vadd.f32 0.0, %v1365
      %v1367 = vpop.f32.mrb[0].mxu0
      %v1368 = vpop.f32.mrb[0].mxu0
      %v1369 = vadd.f32 0.0, %v1368
      %v1370 = vpop.f32.mrb[0].mxu0
      %1371 = vmatprep.mubr.bf16.mxu0 %v1028
      %1372 = vmatmul.mubr.bf16.gmra.mrb[0].mxu0 %v756
      %v1373 = vpop.f32.mrb[0].mxu0
      %v1374 = vadd.f32 0.0, %v1373
      %v1375 = vpop.f32.mrb[0].mxu0
      %v1376 = vpop.f32.mrb[0].mxu0
      %v1377 = vadd.f32 0.0, %v1376
      %v1378 = vpop.f32.mrb[0].mxu0
      %1379 = vmatprep.mubr.bf16.mxu0 %v1031
      %1380 = vmatmul.mubr.bf16.gmra.mrb[0].mxu0 %v758
      %v1381 = vpop.f32.mrb[0].mxu0
      %v1382 = vadd.f32 0.0, %v1381
      %v1383 = vpop.f32.mrb[0].mxu0
      %v1384 = vpop.f32.mrb[0].mxu0
      %v1385 = vadd.f32 0.0, %v1384
      %v1386 = vpop.f32.mrb[0].mxu0
      %1387 = vmatprep.mubr.bf16.mxu0 %v1034
      %1388 = vmatmul.mubr.bf16.gmra.mrb[0].mxu0 %v760
      %v1389 = vpop.f32.mrb[0].mxu0
      %v1390 = vadd.f32 0.0, %v1389
      %v1391 = vpop.f32.mrb[0].mxu0
      %v1392 = vpop.f32.mrb[0].mxu0
      %v1393 = vadd.f32 0.0, %v1392
      %v1394 = vpop.f32.mrb[0].mxu0
      %1395 = vmatprep.mubr.bf16.mxu0 %v1037
      %1396 = vmatmul.mubr.bf16.gmra.mrb[0].mxu0 %v762
      %v1397 = vpop.f32.mrb[0].mxu0
      %v1398 = vadd.f32 0.0, %v1397
      %v1399 = vpop.f32.mrb[0].mxu0
      %v1400 = vpop.f32.mrb[0].mxu0
      %v1401 = vadd.f32 0.0, %v1400
      %v1402 = vpop.f32.mrb[0].mxu0
      %1403 = vmatprep.mubr.bf16.mxu0 %v1040
      %1404 = vmatmul.mubr.bf16.gmra.mrb[0].mxu0 %v764
      %v1405 = vpop.f32.mrb[0].mxu0
      %v1406 = vadd.f32 0.0, %v1405
      %v1407 = vpop.f32.mrb[0].mxu0
      %v1408 = vpop.f32.mrb[0].mxu0
      %v1409 = vadd.f32 0.0, %v1408
      %v1410 = vpop.f32.mrb[0].mxu0
      %1411 = vmatprep.mubr.bf16.mxu0 %v1043
      %1412 = vmatmul.mubr.bf16.gmra.mrb[0].mxu0 %v766
      %v1413 = vpop.f32.mrb[0].mxu0
      %v1414 = vadd.f32 0.0, %v1413
      %v1415 = vpop.f32.mrb[0].mxu0
      %v1416 = vpop.f32.mrb[0].mxu0
      %v1417 = vadd.f32 0.0, %v1416
      %v1418 = vpop.f32.mrb[0].mxu0
      %1419 = vmatprep.mubr.bf16.mxu0 %v1046
      %1420 = vmatmul.mubr.bf16.gmra.mrb[0].mxu0 %v768
      %v1421 = vpop.f32.mrb[0].mxu0
      %v1422 = vadd.f32 0.0, %v1421
      %v1423 = vpop.f32.mrb[0].mxu0
      %v1424 = vpop.f32.mrb[0].mxu0
      %v1425 = vadd.f32 0.0, %v1424
      %v1426 = vpop.f32.mrb[0].mxu0
      %1427 = vmatprep.mubr.bf16.mxu0 %v1049
      %1428 = vmatmul.mubr.bf16.gmra.mrb[0].mxu0 %v770
      %v1429 = vpop.f32.mrb[0].mxu0
      %v1430 = vadd.f32 0.0, %v1429
      %v1431 = vpop.f32.mrb[0].mxu0
      %v1432 = vpop.f32.mrb[0].mxu0
      %v1433 = vadd.f32 0.0, %v1432
      %v1434 = vpop.f32.mrb[0].mxu0
      %1435 = vmatprep.mubr.bf16.mxu0 %v1052
      %1436 = vmatmul.mubr.bf16.gmra.mrb[0].mxu0 %v772
      %v1437 = vpop.f32.mrb[0].mxu0
      %v1438 = vadd.f32 0.0, %v1437
      %v1439 = vpop.f32.mrb[0].mxu0
      %v1440 = vpop.f32.mrb[0].mxu0
      %v1441 = vadd.f32 0.0, %v1440
      %v1442 = vpop.f32.mrb[0].mxu0
      %1443 = vmatprep.mubr.bf16.mxu0 %v1055
      %1444 = vmatmul.mubr.bf16.gmra.mrb[0].mxu0 %v774
      %v1445 = vpop.f32.mrb[0].mxu0
      %v1446 = vadd.f32 0.0, %v1445
      %v1447 = vpop.f32.mrb[0].mxu0
      %v1448 = vpop.f32.mrb[0].mxu0
      %v1449 = vadd.f32 0.0, %v1448
      %v1450 = vpop.f32.mrb[0].mxu0
      %1451 = vmatprep.mubr.bf16.mxu0 %v1058
      %1452 = vmatmul.mubr.bf16.gmra.mrb[0].mxu0 %v776
      %v1453 = vpop.f32.mrb[0].mxu0
      %v1454 = vadd.f32 0.0, %v1453
      %v1455 = vpop.f32.mrb[0].mxu0
      %v1456 = vpop.f32.mrb[0].mxu0
      %v1457 = vadd.f32 0.0, %v1456
      %v1458 = vpop.f32.mrb[0].mxu0
      %1459 = vmatprep.mubr.bf16.mxu0 %v1061
      %1460 = vmatmul.mubr.bf16.gmra.mrb[0].mxu0 %v778
      %v1461 = vpop.f32.mrb[0].mxu0
      %v1462 = vadd.f32 0.0, %v1461
      %v1463 = vpop.f32.mrb[0].mxu0
      %v1464 = vpop.f32.mrb[0].mxu0
      %v1465 = vadd.f32 0.0, %v1464
      %v1466 = vpop.f32.mrb[0].mxu0
      %1467 = vmatprep.mubr.bf16.mxu0 %v1064
      %1468 = vmatmul.mubr.bf16.gmra.mrb[0].mxu0 %v780
      %v1469 = vpop.f32.mrb[0].mxu0
      %v1470 = vadd.f32 0.0, %v1469
      %v1471 = vpop.f32.mrb[0].mxu0
      %v1472 = vpop.f32.mrb[0].mxu0
      %v1473 = vadd.f32 0.0, %v1472
      %v1474 = vpop.f32.mrb[0].mxu0
      %1475 = vmatprep.mubr.bf16.mxu0 %v1067
      %1476 = vmatmul.mubr.bf16.gmra.mrb[0].mxu0 %v782
      %v1477 = vpop.f32.mrb[0].mxu0
      %v1478 = vadd.f32 0.0, %v1477
      %v1479 = vpop.f32.mrb[0].mxu0
      %v1480 = vpop.f32.mrb[0].mxu0
      %v1481 = vadd.f32 0.0, %v1480
      %v1482 = vpop.f32.mrb[0].mxu0
      %1483 = vmatprep.mubr.bf16.mxu0 %v1070
      %1484 = vmatmul.mubr.bf16.gmra.mrb[0].mxu0 %v784
      %v1485 = vpop.f32.mrb[0].mxu0
      %v1486 = vadd.f32 0.0, %v1485
      %v1487 = vpop.f32.mrb[0].mxu0
      %v1488 = vpop.f32.mrb[0].mxu0
      %v1489 = vadd.f32 0.0, %v1488
      %v1490 = vpop.f32.mrb[0].mxu0
      %1491 = vmatprep.mubr.bf16.mxu0 %v1073
      %1492 = vmatmul.mubr.bf16.gmra.mrb[0].mxu0 %v786
      %v1493 = vpop.f32.mrb[0].mxu0
      %v1494 = vadd.f32 0.0, %v1493
      %v1495 = vpop.f32.mrb[0].mxu0
      %v1496 = vpop.f32.mrb[0].mxu0
      %v1497 = vadd.f32 0.0, %v1496
      %v1498 = vpop.f32.mrb[0].mxu0
      %1499 = vmatprep.mubr.bf16.mxu0 %v1076
      %1500 = vmatmul.mubr.bf16.gmra.mrb[0].mxu0 %v788
      %v1501 = vpop.f32.mrb[0].mxu0
      %v1502 = vadd.f32 0.0, %v1501
      %v1503 = vpop.f32.mrb[0].mxu0
      %v1504 = vpop.f32.mrb[0].mxu0
      %v1505 = vadd.f32 0.0, %v1504
      %v1506 = vpop.f32.mrb[0].mxu0
      %1507 = vmatprep.mubr.bf16.mxu0 %v1079
      %1508 = vmatmul.mubr.bf16.gmra.mrb[0].mxu0 %v790
      %v1509 = vpop.f32.mrb[0].mxu0
      %v1510 = vadd.f32 0.0, %v1509
      %v1511 = vpop.f32.mrb[0].mxu0
      %v1512 = vpop.f32.mrb[0].mxu0
      %v1513 = vadd.f32 0.0, %v1512
      %v1514 = vpop.f32.mrb[0].mxu0
      %1515 = vmatprep.mubr.bf16.mxu0 %v1082
      %1516 = vmatmul.mubr.bf16.gmra.mrb[0].mxu0 %v792
      %v1517 = vpop.f32.mrb[0].mxu0
      %v1518 = vadd.f32 0.0, %v1517
      %v1519 = vpop.f32.mrb[0].mxu0
      %v1520 = vpop.f32.mrb[0].mxu0
      %v1521 = vadd.f32 0.0, %v1520
      %v1522 = vpop.f32.mrb[0].mxu0
      %1523 = vmatprep.mubr.bf16.mxu0 %v1085
      %1524 = vmatmul.mubr.bf16.gmra.mrb[0].mxu0 %v794
      %v1525 = vpop.f32.mrb[0].mxu0
      %v1526 = vadd.f32 0.0, %v1525
      %v1527 = vpop.f32.mrb[0].mxu0
      %v1528 = vpop.f32.mrb[0].mxu0
      %v1529 = vadd.f32 0.0, %v1528
      %v1530 = vpop.f32.mrb[0].mxu0
      %1531 = vmatprep.mubr.bf16.mxu0 %v1088
      %1532 = vmatmul.mubr.bf16.gmra.mrb[0].mxu0 %v796
      %v1533 = vpop.f32.mrb[0].mxu0
      %v1534 = vadd.f32 0.0, %v1533
      %v1535 = vpop.f32.mrb[0].mxu0
      %v1536 = vpop.f32.mrb[0].mxu0
      %v1537 = vadd.f32 0.0, %v1536
      %v1538 = vpop.f32.mrb[0].mxu0
      %1539 = vmatprep.mubr.bf16.mxu0 %v1091
      %1540 = vmatmul.mubr.bf16.gmra.mrb[0].mxu0 %v798
      %v1541 = vpop.f32.mrb[0].mxu0
      %v1542 = vadd.f32 0.0, %v1541
      %v1543 = vpop.f32.mrb[0].mxu0
      %v1544 = vpop.f32.mrb[0].mxu0
      %v1545 = vadd.f32 0.0, %v1544
      %v1546 = vpop.f32.mrb[0].mxu0
      %1547 = vmatprep.mubr.bf16.mxu0 %v1094
      %1548 = vmatmul.mubr.bf16.gmra.mrb[0].mxu0 %v800
      %v1549 = vpop.f32.mrb[0].mxu0
      %v1550 = vadd.f32 0.0, %v1549
      %v1551 = vpop.f32.mrb[0].mxu0
      %v1552 = vpop.f32.mrb[0].mxu0
      %v1553 = vadd.f32 0.0, %v1552
      %v1554 = vpop.f32.mrb[0].mxu0
      %1555 = vmatprep.mubr.bf16.mxu0 %v1097
      %1556 = vmatmul.mubr.bf16.gmra.mrb[0].mxu0 %v802
      %v1557 = vpop.f32.mrb[0].mxu0
      %v1558 = vadd.f32 0.0, %v1557
      %v1559 = vpop.f32.mrb[0].mxu0
      %v1560 = vpop.f32.mrb[0].mxu0
      %v1561 = vadd.f32 0.0, %v1560
      %v1562 = vpop.f32.mrb[0].mxu0
      %1563 = vmatprep.mubr.bf16.mxu0 %v1100
      %1564 = vmatmul.mubr.bf16.gmra.mrb[0].mxu0 %v804
      %v1565 = vpop.f32.mrb[0].mxu0
      %v1566 = vadd.f32 0.0, %v1565
      %v1567 = vpop.f32.mrb[0].mxu0
      %v1568 = vpop.f32.mrb[0].mxu0
      %v1569 = vadd.f32 0.0, %v1568
      %v1570 = vpop.f32.mrb[0].mxu0
      %1571 = vmatprep.mubr.bf16.mxu0 %v1103
      %1572 = vmatmul.mubr.bf16.gmra.mrb[0].mxu0 %v806
      %v1573 = vpop.f32.mrb[0].mxu0
      %v1574 = vadd.f32 0.0, %v1573
      %v1575 = vpop.f32.mrb[0].mxu0
      %v1576 = vpop.f32.mrb[0].mxu0
      %v1577 = vadd.f32 0.0, %v1576
      %v1578 = vpop.f32.mrb[0].mxu0
      %1579 = vmatprep.mubr.bf16.mxu0 %v1106
      %1580 = vmatmul.mubr.bf16.gmra.mrb[0].mxu0 %v808
      %v1581 = vpop.f32.mrb[0].mxu0
      %v1582 = vadd.f32 0.0, %v1581
      %v1583 = vpop.f32.mrb[0].mxu0
      %v1584 = vpop.f32.mrb[0].mxu0
      %v1585 = vadd.f32 0.0, %v1584
      %v1586 = vpop.f32.mrb[0].mxu0
      %1587 = vmatprep.mubr.bf16.mxu0 %v1109
      %1588 = vmatmul.mubr.bf16.gmra.mrb[0].mxu0 %v810
      %v1589 = vpop.f32.mrb[0].mxu0
      %v1590 = vadd.f32 0.0, %v1589
      %v1591 = vpop.f32.mrb[0].mxu0
      %v1592 = vpop.f32.mrb[0].mxu0
      %v1593 = vadd.f32 0.0, %v1592
      %v1594 = vpop.f32.mrb[0].mxu0
      %1595 = vmatprep.mubr.bf16.mxu0 %v1112
      %1596 = vmatmul.mubr.bf16.gmra.mrb[0].mxu0 %v812
      %v1597 = vpop.f32.mrb[0].mxu0
      %v1598 = vadd.f32 0.0, %v1597
      %v1599 = vpop.f32.mrb[0].mxu0
      %v1600 = vpop.f32.mrb[0].mxu0
      %v1601 = vadd.f32 0.0, %v1600
      %v1602 = vpop.f32.mrb[0].mxu0
      %1603 = vmatprep.mubr.bf16.mxu0 %v1115
      %1604 = vmatmul.mubr.bf16.gmra.mrb[0].mxu0 %v814
      %v1605 = vpop.f32.mrb[0].mxu0
      %v1606 = vadd.f32 0.0, %v1605
      %v1607 = vpop.f32.mrb[0].mxu0
      %v1608 = vpop.f32.mrb[0].mxu0
      %v1609 = vadd.f32 0.0, %v1608
      %v1610 = vpop.f32.mrb[0].mxu0
      %1611 = vmatprep.mubr.bf16.mxu0 %v1118
      %1612 = vmatmul.mubr.bf16.gmra.mrb[0].mxu0 %v816
      %v1613 = vpop.f32.mrb[0].mxu0
      %v1614 = vadd.f32 0.0, %v1613
      %v1615 = vpop.f32.mrb[0].mxu0
      %v1616 = vpop.f32.mrb[0].mxu0
      %v1617 = vadd.f32 0.0, %v1616
      %v1618 = vpop.f32.mrb[0].mxu0
      %1619 = vmatprep.mubr.bf16.mxu0 %v1121
      %1620 = vmatmul.mubr.bf16.gmra.mrb[0].mxu0 %v818
      %v1621 = vpop.f32.mrb[0].mxu0
      %v1622 = vadd.f32 0.0, %v1621
      %v1623 = vpop.f32.mrb[0].mxu0
      %v1624 = vpop.f32.mrb[0].mxu0
      %v1625 = vadd.f32 0.0, %v1624
      %v1626 = vpop.f32.mrb[0].mxu0
      %1627 = vmatprep.mubr.bf16.mxu0 %v1124
      %1628 = vmatmul.mubr.bf16.gmra.mrb[0].mxu0 %v820
      %v1629 = vpop.f32.mrb[0].mxu0
      %v1630 = vadd.f32 0.0, %v1629
      %v1631 = vpop.f32.mrb[0].mxu0
      %v1632 = vpop.f32.mrb[0].mxu0
      %v1633 = vadd.f32 0.0, %v1632
      %v1634 = vpop.f32.mrb[0].mxu0
      %1635 = vmatprep.mubr.bf16.mxu0 %v1127
      %1636 = vmatmul.mubr.bf16.gmra.mrb[0].mxu0 %v822
      %v1637 = vpop.f32.mrb[0].mxu0
      %v1638 = vadd.f32 0.0, %v1637
      %v1639 = vpop.f32.mrb[0].mxu0
      %v1640 = vpop.f32.mrb[0].mxu0
      %v1641 = vadd.f32 0.0, %v1640
      %v1642 = vpop.f32.mrb[0].mxu0
      %1643 = vmatprep.mubr.bf16.mxu0 %v1130
      %1644 = vmatmul.mubr.bf16.gmra.mrb[0].mxu0 %v824
      %v1645 = vpop.f32.mrb[0].mxu0
      %v1646 = vadd.f32 0.0, %v1645
      %v1647 = vpop.f32.mrb[0].mxu0
      %v1648 = vpop.f32.mrb[0].mxu0
      %v1649 = vadd.f32 0.0, %v1648
      %v1650 = vpop.f32.mrb[0].mxu0
      %1651 = vmatprep.mubr.bf16.mxu0 %v1133
      %1652 = vmatmul.mubr.bf16.gmra.mrb[0].mxu0 %v826
      %v1653 = vpop.f32.mrb[0].mxu0
      %v1654 = vadd.f32 0.0, %v1653
      %v1655 = vpop.f32.mrb[0].mxu0
      %v1656 = vpop.f32.mrb[0].mxu0
      %v1657 = vadd.f32 0.0, %v1656
      %v1658 = vpop.f32.mrb[0].mxu0
      %1659 = vmatprep.mubr.bf16.mxu0 %v1136
      %1660 = vmatmul.mubr.bf16.gmra.mrb[0].mxu0 %v828
      %v1661 = vpop.f32.mrb[0].mxu0
      %v1662 = vadd.f32 0.0, %v1661
      %v1663 = vpop.f32.mrb[0].mxu0
      %v1664 = vpop.f32.mrb[0].mxu0
      %v1665 = vadd.f32 0.0, %v1664
      %v1666 = vpop.f32.mrb[0].mxu0
      %1667 = vmatprep.mubr.bf16.mxu0 %v1139
      %1668 = vmatmul.mubr.bf16.gmra.mrb[0].mxu0 %v830
      %v1669 = vpop.f32.mrb[0].mxu0
      %v1670 = vadd.f32 0.0, %v1669
      %v1671 = vpop.f32.mrb[0].mxu0
      %v1672 = vpop.f32.mrb[0].mxu0
      %v1673 = vadd.f32 0.0, %v1672
      %v1674 = vpop.f32.mrb[0].mxu0
      %1675 = vmatprep.mubr.bf16.mxu0 %v1142
      %1676 = vmatmul.mubr.bf16.gmra.mrb[0].mxu0 %v832
      %v1677 = vpop.f32.mrb[0].mxu0
      %v1678 = vadd.f32 0.0, %v1677
      %v1679 = vpop.f32.mrb[0].mxu0
      %v1680 = vpop.f32.mrb[0].mxu0
      %v1681 = vadd.f32 0.0, %v1680
      %v1682 = vpop.f32.mrb[0].mxu0
      %1683 = vmatprep.mubr.bf16.mxu0 %v1145
      %1684 = vmatmul.mubr.bf16.gmra.mrb[0].mxu0 %v834
      %v1685 = vpop.f32.mrb[0].mxu0
      %v1686 = vadd.f32 0.0, %v1685
      %v1687 = vpop.f32.mrb[0].mxu0
      %v1688 = vpop.f32.mrb[0].mxu0
      %v1689 = vadd.f32 0.0, %v1688
      %v1690 = vpop.f32.mrb[0].mxu0
      %1691 = vdwg.mxu0
      %v1692 = vld [vmem:[%s2] sm:$0x1]
      %v1693 = vlaneseq
      %v1694 = vshrl.u32 %v1693, 7
      %v1695 = vsub.s32 0, %v1694
      %v1696 = vrot.slane %v1692, %v1695
      %v1697 = vmul.f32 %v1182, %v1696
      %v1698 = vmul.f32 %v1185, %v1696
      %v1699 = vmul.f32 %v1190, %v1696
      %v1700 = vmul.f32 %v1193, %v1696
      %v1701 = vmul.f32 %v1198, %v1696
      %v1702 = vmul.f32 %v1201, %v1696
      %v1703 = vmul.f32 %v1206, %v1696
      %v1704 = vmul.f32 %v1209, %v1696
      %v1705 = vmul.f32 %v1214, %v1696
      %v1706 = vmul.f32 %v1217, %v1696
      %v1707 = vmul.f32 %v1222, %v1696
      %v1708 = vmul.f32 %v1225, %v1696
      %v1709 = vmul.f32 %v1230, %v1696
      %v1710 = vmul.f32 %v1233, %v1696
      %v1711 = vmul.f32 %v1238, %v1696
      %v1712 = vmul.f32 %v1241, %v1696
      %v1713 = vmul.f32 %v1246, %v1696
      %v1714 = vmul.f32 %v1249, %v1696
      %v1715 = vmul.f32 %v1254, %v1696
      %v1716 = vmul.f32 %v1257, %v1696
      %v1717 = vmul.f32 %v1262, %v1696
      %v1718 = vmul.f32 %v1265, %v1696
      %v1719 = vmul.f32 %v1270, %v1696
      %v1720 = vmul.f32 %v1273, %v1696
      %v1721 = vmul.f32 %v1278, %v1696
      %v1722 = vmul.f32 %v1281, %v1696
      %v1723 = vmul.f32 %v1286, %v1696
      %v1724 = vmul.f32 %v1289, %v1696
      %v1725 = vmul.f32 %v1294, %v1696
      %v1726 = vmul.f32 %v1297, %v1696
      %v1727 = vmul.f32 %v1302, %v1696
      %v1728 = vmul.f32 %v1305, %v1696
      %v1729 = vmul.f32 %v1310, %v1696
      %v1730 = vmul.f32 %v1313, %v1696
      %v1731 = vmul.f32 %v1318, %v1696
      %v1732 = vmul.f32 %v1321, %v1696
      %v1733 = vmul.f32 %v1326, %v1696
      %v1734 = vmul.f32 %v1329, %v1696
      %v1735 = vmul.f32 %v1334, %v1696
      %v1736 = vmul.f32 %v1337, %v1696
      %v1737 = vmul.f32 %v1342, %v1696
      %v1738 = vmul.f32 %v1345, %v1696
      %v1739 = vmul.f32 %v1350, %v1696
      %v1740 = vmul.f32 %v1353, %v1696
      %v1741 = vmul.f32 %v1358, %v1696
      %v1742 = vmul.f32 %v1361, %v1696
      %v1743 = vmul.f32 %v1366, %v1696
      %v1744 = vmul.f32 %v1369, %v1696
      %v1745 = vmul.f32 %v1374, %v1696
      %v1746 = vmul.f32 %v1377, %v1696
      %v1747 = vmul.f32 %v1382, %v1696
      %v1748 = vmul.f32 %v1385, %v1696
      %v1749 = vmul.f32 %v1390, %v1696
      %v1750 = vmul.f32 %v1393, %v1696
      %v1751 = vmul.f32 %v1398, %v1696
      %v1752 = vmul.f32 %v1401, %v1696
      %v1753 = vmul.f32 %v1406, %v1696
      %v1754 = vmul.f32 %v1409, %v1696
      %v1755 = vmul.f32 %v1414, %v1696
      %v1756 = vmul.f32 %v1417, %v1696
      %v1757 = vmul.f32 %v1422, %v1696
      %v1758 = vmul.f32 %v1425, %v1696
      %v1759 = vmul.f32 %v1430, %v1696
      %v1760 = vmul.f32 %v1433, %v1696
      %v1761 = vmul.f32 %v1438, %v1696
      %v1762 = vmul.f32 %v1441, %v1696
      %v1763 = vmul.f32 %v1446, %v1696
      %v1764 = vmul.f32 %v1449, %v1696
      %v1765 = vmul.f32 %v1454, %v1696
      %v1766 = vmul.f32 %v1457, %v1696
      %v1767 = vmul.f32 %v1462, %v1696
      %v1768 = vmul.f32 %v1465, %v1696
      %v1769 = vmul.f32 %v1470, %v1696
      %v1770 = vmul.f32 %v1473, %v1696
      %v1771 = vmul.f32 %v1478, %v1696
      %v1772 = vmul.f32 %v1481, %v1696
      %v1773 = vmul.f32 %v1486, %v1696
      %v1774 = vmul.f32 %v1489, %v1696
      %v1775 = vmul.f32 %v1494, %v1696
      %v1776 = vmul.f32 %v1497, %v1696
      %v1777 = vmul.f32 %v1502, %v1696
      %v1778 = vmul.f32 %v1505, %v1696
      %v1779 = vmul.f32 %v1510, %v1696
      %v1780 = vmul.f32 %v1513, %v1696
      %v1781 = vmul.f32 %v1518, %v1696
      %v1782 = vmul.f32 %v1521, %v1696
      %v1783 = vmul.f32 %v1526, %v1696
      %v1784 = vmul.f32 %v1529, %v1696
      %v1785 = vmul.f32 %v1534, %v1696
      %v1786 = vmul.f32 %v1537, %v1696
      %v1787 = vmul.f32 %v1542, %v1696
      %v1788 = vmul.f32 %v1545, %v1696
      %v1789 = vmul.f32 %v1550, %v1696
      %v1790 = vmul.f32 %v1553, %v1696
      %v1791 = vmul.f32 %v1558, %v1696
      %v1792 = vmul.f32 %v1561, %v1696
      %v1793 = vmul.f32 %v1566, %v1696
      %v1794 = vmul.f32 %v1569, %v1696
      %v1795 = vmul.f32 %v1574, %v1696
      %v1796 = vmul.f32 %v1577, %v1696
      %v1797 = vmul.f32 %v1582, %v1696
      %v1798 = vmul.f32 %v1585, %v1696
      %v1799 = vmul.f32 %v1590, %v1696
      %v1800 = vmul.f32 %v1593, %v1696
      %v1801 = vmul.f32 %v1598, %v1696
      %v1802 = vmul.f32 %v1601, %v1696
      %v1803 = vmul.f32 %v1606, %v1696
      %v1804 = vmul.f32 %v1609, %v1696
      %v1805 = vmul.f32 %v1614, %v1696
      %v1806 = vmul.f32 %v1617, %v1696
      %v1807 = vmul.f32 %v1622, %v1696
      %v1808 = vmul.f32 %v1625, %v1696
      %v1809 = vmul.f32 %v1630, %v1696
      %v1810 = vmul.f32 %v1633, %v1696
      %v1811 = vmul.f32 %v1638, %v1696
      %v1812 = vmul.f32 %v1641, %v1696
      %v1813 = vmul.f32 %v1646, %v1696
      %v1814 = vmul.f32 %v1649, %v1696
      %v1815 = vmul.f32 %v1654, %v1696
      %v1816 = vmul.f32 %v1657, %v1696
      %v1817 = vmul.f32 %v1662, %v1696
      %v1818 = vmul.f32 %v1665, %v1696
      %v1819 = vmul.f32 %v1670, %v1696
      %v1820 = vmul.f32 %v1673, %v1696
      %v1821 = vmul.f32 %v1678, %v1696
      %v1822 = vmul.f32 %v1681, %v1696
      %v1823 = vmul.f32 %v1686, %v1696
      %v1824 = vmul.f32 %v1689, %v1696
      %v1825 = vld [vmem:[%s2 + $0x1] sm:$0x1]
      %v1826 = vlaneseq
      %v1827 = vshrl.u32 %v1826, 7
      %v1828 = vsub.s32 0, %v1827
      %v1829 = vrot.slane %v1825, %v1828
      %v1830 = vadd.f32 %v1697, %v1829
      %v1831 = vadd.f32 %v1698, %v1829
      %v1832 = vadd.f32 %v1699, %v1829
      %v1833 = vadd.f32 %v1700, %v1829
      %v1834 = vadd.f32 %v1701, %v1829
      %v1835 = vadd.f32 %v1702, %v1829
      %v1836 = vadd.f32 %v1703, %v1829
      %v1837 = vadd.f32 %v1704, %v1829
      %v1838 = vadd.f32 %v1705, %v1829
      %v1839 = vadd.f32 %v1706, %v1829
      %v1840 = vadd.f32 %v1707, %v1829
      %v1841 = vadd.f32 %v1708, %v1829
      %v1842 = vadd.f32 %v1709, %v1829
      %v1843 = vadd.f32 %v1710, %v1829
      %v1844 = vadd.f32 %v1711, %v1829
      %v1845 = vadd.f32 %v1712, %v1829
      %v1846 = vadd.f32 %v1713, %v1829
      %v1847 = vadd.f32 %v1714, %v1829
      %v1848 = vadd.f32 %v1715, %v1829
      %v1849 = vadd.f32 %v1716, %v1829
      %v1850 = vadd.f32 %v1717, %v1829
      %v1851 = vadd.f32 %v1718, %v1829
      %v1852 = vadd.f32 %v1719, %v1829
      %v1853 = vadd.f32 %v1720, %v1829
      %v1854 = vadd.f32 %v1721, %v1829
      %v1855 = vadd.f32 %v1722, %v1829
      %v1856 = vadd.f32 %v1723, %v1829
      %v1857 = vadd.f32 %v1724, %v1829
      %v1858 = vadd.f32 %v1725, %v1829
      %v1859 = vadd.f32 %v1726, %v1829
      %v1860 = vadd.f32 %v1727, %v1829
      %v1861 = vadd.f32 %v1728, %v1829
      %v1862 = vadd.f32 %v1729, %v1829
      %v1863 = vadd.f32 %v1730, %v1829
      %v1864 = vadd.f32 %v1731, %v1829
      %v1865 = vadd.f32 %v1732, %v1829
      %v1866 = vadd.f32 %v1733, %v1829
      %v1867 = vadd.f32 %v1734, %v1829
      %v1868 = vadd.f32 %v1735, %v1829
      %v1869 = vadd.f32 %v1736, %v1829
      %v1870 = vadd.f32 %v1737, %v1829
      %v1871 = vadd.f32 %v1738, %v1829
      %v1872 = vadd.f32 %v1739, %v1829
      %v1873 = vadd.f32 %v1740, %v1829
      %v1874 = vadd.f32 %v1741, %v1829
      %v1875 = vadd.f32 %v1742, %v1829
      %v1876 = vadd.f32 %v1743, %v1829
      %v1877 = vadd.f32 %v1744, %v1829
      %v1878 = vadd.f32 %v1745, %v1829
      %v1879 = vadd.f32 %v1746, %v1829
      %v1880 = vadd.f32 %v1747, %v1829
      %v1881 = vadd.f32 %v1748, %v1829
      %v1882 = vadd.f32 %v1749, %v1829
      %v1883 = vadd.f32 %v1750, %v1829
      %v1884 = vadd.f32 %v1751, %v1829
      %v1885 = vadd.f32 %v1752, %v1829
      %v1886 = vadd.f32 %v1753, %v1829
      %v1887 = vadd.f32 %v1754, %v1829
      %v1888 = vadd.f32 %v1755, %v1829
      %v1889 = vadd.f32 %v1756, %v1829
      %v1890 = vadd.f32 %v1757, %v1829
      %v1891 = vadd.f32 %v1758, %v1829
      %v1892 = vadd.f32 %v1759, %v1829
      %v1893 = vadd.f32 %v1760, %v1829
      %v1894 = vadd.f32 %v1761, %v1829
      %v1895 = vadd.f32 %v1762, %v1829
      %v1896 = vadd.f32 %v1763, %v1829
      %v1897 = vadd.f32 %v1764, %v1829
      %v1898 = vadd.f32 %v1765, %v1829
      %v1899 = vadd.f32 %v1766, %v1829
      %v1900 = vadd.f32 %v1767, %v1829
      %v1901 = vadd.f32 %v1768, %v1829
      %v1902 = vadd.f32 %v1769, %v1829
      %v1903 = vadd.f32 %v1770, %v1829
      %v1904 = vadd.f32 %v1771, %v1829
      %v1905 = vadd.f32 %v1772, %v1829
      %v1906 = vadd.f32 %v1773, %v1829
      %v1907 = vadd.f32 %v1774, %v1829
      %v1908 = vadd.f32 %v1775, %v1829
      %v1909 = vadd.f32 %v1776, %v1829
      %v1910 = vadd.f32 %v1777, %v1829
      %v1911 = vadd.f32 %v1778, %v1829
      %v1912 = vadd.f32 %v1779, %v1829
      %v1913 = vadd.f32 %v1780, %v1829
      %v1914 = vadd.f32 %v1781, %v1829
      %v1915 = vadd.f32 %v1782, %v1829
      %v1916 = vadd.f32 %v1783, %v1829
      %v1917 = vadd.f32 %v1784, %v1829
      %v1918 = vadd.f32 %v1785, %v1829
      %v1919 = vadd.f32 %v1786, %v1829
      %v1920 = vadd.f32 %v1787, %v1829
      %v1921 = vadd.f32 %v1788, %v1829
      %v1922 = vadd.f32 %v1789, %v1829
      %v1923 = vadd.f32 %v1790, %v1829
      %v1924 = vadd.f32 %v1791, %v1829
      %v1925 = vadd.f32 %v1792, %v1829
      %v1926 = vadd.f32 %v1793, %v1829
      %v1927 = vadd.f32 %v1794, %v1829
      %v1928 = vadd.f32 %v1795, %v1829
      %v1929 = vadd.f32 %v1796, %v1829
      %v1930 = vadd.f32 %v1797, %v1829
      %v1931 = vadd.f32 %v1798, %v1829
      %v1932 = vadd.f32 %v1799, %v1829
      %v1933 = vadd.f32 %v1800, %v1829
      %v1934 = vadd.f32 %v1801, %v1829
      %v1935 = vadd.f32 %v1802, %v1829
      %v1936 = vadd.f32 %v1803, %v1829
      %v1937 = vadd.f32 %v1804, %v1829
      %v1938 = vadd.f32 %v1805, %v1829
      %v1939 = vadd.f32 %v1806, %v1829
      %v1940 = vadd.f32 %v1807, %v1829
      %v1941 = vadd.f32 %v1808, %v1829
      %v1942 = vadd.f32 %v1809, %v1829
      %v1943 = vadd.f32 %v1810, %v1829
      %v1944 = vadd.f32 %v1811, %v1829
      %v1945 = vadd.f32 %v1812, %v1829
      %v1946 = vadd.f32 %v1813, %v1829
      %v1947 = vadd.f32 %v1814, %v1829
      %v1948 = vadd.f32 %v1815, %v1829
      %v1949 = vadd.f32 %v1816, %v1829
      %v1950 = vadd.f32 %v1817, %v1829
      %v1951 = vadd.f32 %v1818, %v1829
      %v1952 = vadd.f32 %v1819, %v1829
      %v1953 = vadd.f32 %v1820, %v1829
      %v1954 = vadd.f32 %v1821, %v1829
      %v1955 = vadd.f32 %v1822, %v1829
      %v1956 = vadd.f32 %v1823, %v1829
      %v1957 = vadd.f32 %v1824, %v1829
      %v1958 = vmax.f32 %v1830, 0.0
      %v1959 = vmax.f32 %v1831, 0.0
      %v1960 = vmax.f32 %v1832, 0.0
      %v1961 = vmax.f32 %v1833, 0.0
      %v1962 = vmax.f32 %v1834, 0.0
      %v1963 = vmax.f32 %v1835, 0.0
      %v1964 = vmax.f32 %v1836, 0.0
      %v1965 = vmax.f32 %v1837, 0.0
      %v1966 = vmax.f32 %v1838, 0.0
      %v1967 = vmax.f32 %v1839, 0.0
      %v1968 = vmax.f32 %v1840, 0.0
      %v1969 = vmax.f32 %v1841, 0.0
      %v1970 = vmax.f32 %v1842, 0.0
      %v1971 = vmax.f32 %v1843, 0.0
      %v1972 = vmax.f32 %v1844, 0.0
      %v1973 = vmax.f32 %v1845, 0.0
      %v1974 = vmax.f32 %v1846, 0.0
      %v1975 = vmax.f32 %v1847, 0.0
      %v1976 = vmax.f32 %v1848, 0.0
      %v1977 = vmax.f32 %v1849, 0.0
      %v1978 = vmax.f32 %v1850, 0.0
      %v1979 = vmax.f32 %v1851, 0.0
      %v1980 = vmax.f32 %v1852, 0.0
      %v1981 = vmax.f32 %v1853, 0.0
      %v1982 = vmax.f32 %v1854, 0.0
      %v1983 = vmax.f32 %v1855, 0.0
      %v1984 = vmax.f32 %v1856, 0.0
      %v1985 = vmax.f32 %v1857, 0.0
      %v1986 = vmax.f32 %v1858, 0.0
      %v1987 = vmax.f32 %v1859, 0.0
      %v1988 = vmax.f32 %v1860, 0.0
      %v1989 = vmax.f32 %v1861, 0.0
      %v1990 = vmax.f32 %v1862, 0.0
      %v1991 = vmax.f32 %v1863, 0.0
      %v1992 = vmax.f32 %v1864, 0.0
      %v1993 = vmax.f32 %v1865, 0.0
      %v1994 = vmax.f32 %v1866, 0.0
      %v1995 = vmax.f32 %v1867, 0.0
      %v1996 = vmax.f32 %v1868, 0.0
      %v1997 = vmax.f32 %v1869, 0.0
      %v1998 = vmax.f32 %v1870, 0.0
      %v1999 = vmax.f32 %v1871, 0.0
      %v2000 = vmax.f32 %v1872, 0.0
      %v2001 = vmax.f32 %v1873, 0.0
      %v2002 = vmax.f32 %v1874, 0.0
      %v2003 = vmax.f32 %v1875, 0.0
      %v2004 = vmax.f32 %v1876, 0.0
      %v2005 = vmax.f32 %v1877, 0.0
      %v2006 = vmax.f32 %v1878, 0.0
      %v2007 = vmax.f32 %v1879, 0.0
      %v2008 = vmax.f32 %v1880, 0.0
      %v2009 = vmax.f32 %v1881, 0.0
      %v2010 = vmax.f32 %v1882, 0.0
      %v2011 = vmax.f32 %v1883, 0.0
      %v2012 = vmax.f32 %v1884, 0.0
      %v2013 = vmax.f32 %v1885, 0.0
      %v2014 = vmax.f32 %v1886, 0.0
      %v2015 = vmax.f32 %v1887, 0.0
      %v2016 = vmax.f32 %v1888, 0.0
      %v2017 = vmax.f32 %v1889, 0.0
      %v2018 = vmax.f32 %v1890, 0.0
      %v2019 = vmax.f32 %v1891, 0.0
      %v2020 = vmax.f32 %v1892, 0.0
      %v2021 = vmax.f32 %v1893, 0.0
      %v2022 = vmax.f32 %v1894, 0.0
      %v2023 = vmax.f32 %v1895, 0.0
      %v2024 = vmax.f32 %v1896, 0.0
      %v2025 = vmax.f32 %v1897, 0.0
      %v2026 = vmax.f32 %v1898, 0.0
      %v2027 = vmax.f32 %v1899, 0.0
      %v2028 = vmax.f32 %v1900, 0.0
      %v2029 = vmax.f32 %v1901, 0.0
      %v2030 = vmax.f32 %v1902, 0.0
      %v2031 = vmax.f32 %v1903, 0.0
      %v2032 = vmax.f32 %v1904, 0.0
      %v2033 = vmax.f32 %v1905, 0.0
      %v2034 = vmax.f32 %v1906, 0.0
      %v2035 = vmax.f32 %v1907, 0.0
      %v2036 = vmax.f32 %v1908, 0.0
      %v2037 = vmax.f32 %v1909, 0.0
      %v2038 = vmax.f32 %v1910, 0.0
      %v2039 = vmax.f32 %v1911, 0.0
      %v2040 = vmax.f32 %v1912, 0.0
      %v2041 = vmax.f32 %v1913, 0.0
      %v2042 = vmax.f32 %v1914, 0.0
      %v2043 = vmax.f32 %v1915, 0.0
      %v2044 = vmax.f32 %v1916, 0.0
      %v2045 = vmax.f32 %v1917, 0.0
      %v2046 = vmax.f32 %v1918, 0.0
      %v2047 = vmax.f32 %v1919, 0.0
      %v2048 = vmax.f32 %v1920, 0.0
      %v2049 = vmax.f32 %v1921, 0.0
      %v2050 = vmax.f32 %v1922, 0.0
      %v2051 = vmax.f32 %v1923, 0.0
      %v2052 = vmax.f32 %v1924, 0.0
      %v2053 = vmax.f32 %v1925, 0.0
      %v2054 = vmax.f32 %v1926, 0.0
      %v2055 = vmax.f32 %v1927, 0.0
      %v2056 = vmax.f32 %v1928, 0.0
      %v2057 = vmax.f32 %v1929, 0.0
      %v2058 = vmax.f32 %v1930, 0.0
      %v2059 = vmax.f32 %v1931, 0.0
      %v2060 = vmax.f32 %v1932, 0.0
      %v2061 = vmax.f32 %v1933, 0.0
      %v2062 = vmax.f32 %v1934, 0.0
      %v2063 = vmax.f32 %v1935, 0.0
      %v2064 = vmax.f32 %v1936, 0.0
      %v2065 = vmax.f32 %v1937, 0.0
      %v2066 = vmax.f32 %v1938, 0.0
      %v2067 = vmax.f32 %v1939, 0.0
      %v2068 = vmax.f32 %v1940, 0.0
      %v2069 = vmax.f32 %v1941, 0.0
      %v2070 = vmax.f32 %v1942, 0.0
      %v2071 = vmax.f32 %v1943, 0.0
      %v2072 = vmax.f32 %v1944, 0.0
      %v2073 = vmax.f32 %v1945, 0.0
      %v2074 = vmax.f32 %v1946, 0.0
      %v2075 = vmax.f32 %v1947, 0.0
      %v2076 = vmax.f32 %v1948, 0.0
      %v2077 = vmax.f32 %v1949, 0.0
      %v2078 = vmax.f32 %v1950, 0.0
      %v2079 = vmax.f32 %v1951, 0.0
      %v2080 = vmax.f32 %v1952, 0.0
      %v2081 = vmax.f32 %v1953, 0.0
      %v2082 = vmax.f32 %v1954, 0.0
      %v2083 = vmax.f32 %v1955, 0.0
      %v2084 = vmax.f32 %v1956, 0.0
      %v2085 = vmax.f32 %v1957, 0.0
      %v2086 = vpack.c.bf16 %v1959, %v1958
      %v2087 = vpack.c.bf16 %v1961, %v1960
      %v2088 = vpack.c.bf16 %v1963, %v1962
      %v2089 = vpack.c.bf16 %v1965, %v1964
      %v2090 = vpack.c.bf16 %v1967, %v1966
      %v2091 = vpack.c.bf16 %v1969, %v1968
      %v2092 = vpack.c.bf16 %v1971, %v1970
      %v2093 = vpack.c.bf16 %v1973, %v1972
      %v2094 = vpack.c.bf16 %v1975, %v1974
      %v2095 = vpack.c.bf16 %v1977, %v1976
      %v2096 = vpack.c.bf16 %v1979, %v1978
      %v2097 = vpack.c.bf16 %v1981, %v1980
      %v2098 = vpack.c.bf16 %v1983, %v1982
      %v2099 = vpack.c.bf16 %v1985, %v1984
      %v2100 = vpack.c.bf16 %v1987, %v1986
      %v2101 = vpack.c.bf16 %v1989, %v1988
      %v2102 = vpack.c.bf16 %v1991, %v1990
      %v2103 = vpack.c.bf16 %v1993, %v1992
      %v2104 = vpack.c.bf16 %v1995, %v1994
      %v2105 = vpack.c.bf16 %v1997, %v1996
      %v2106 = vpack.c.bf16 %v1999, %v1998
      %v2107 = vpack.c.bf16 %v2001, %v2000
      %v2108 = vpack.c.bf16 %v2003, %v2002
      %v2109 = vpack.c.bf16 %v2005, %v2004
      %v2110 = vpack.c.bf16 %v2007, %v2006
      %v2111 = vpack.c.bf16 %v2009, %v2008
      %v2112 = vpack.c.bf16 %v2011, %v2010
      %v2113 = vpack.c.bf16 %v2013, %v2012
      %v2114 = vpack.c.bf16 %v2015, %v2014
      %v2115 = vpack.c.bf16 %v2017, %v2016
      %v2116 = vpack.c.bf16 %v2019, %v2018
      %v2117 = vpack.c.bf16 %v2021, %v2020
      %v2118 = vpack.c.bf16 %v2023, %v2022
      %v2119 = vpack.c.bf16 %v2025, %v2024
      %v2120 = vpack.c.bf16 %v2027, %v2026
      %v2121 = vpack.c.bf16 %v2029, %v2028
      %v2122 = vpack.c.bf16 %v2031, %v2030
      %v2123 = vpack.c.bf16 %v2033, %v2032
      %v2124 = vpack.c.bf16 %v2035, %v2034
      %v2125 = vpack.c.bf16 %v2037, %v2036
      %v2126 = vpack.c.bf16 %v2039, %v2038
      %v2127 = vpack.c.bf16 %v2041, %v2040
      %v2128 = vpack.c.bf16 %v2043, %v2042
      %v2129 = vpack.c.bf16 %v2045, %v2044
      %v2130 = vpack.c.bf16 %v2047, %v2046
      %v2131 = vpack.c.bf16 %v2049, %v2048
      %v2132 = vpack.c.bf16 %v2051, %v2050
      %v2133 = vpack.c.bf16 %v2053, %v2052
      %v2134 = vpack.c.bf16 %v2055, %v2054
      %v2135 = vpack.c.bf16 %v2057, %v2056
      %v2136 = vpack.c.bf16 %v2059, %v2058
      %v2137 = vpack.c.bf16 %v2061, %v2060
      %v2138 = vpack.c.bf16 %v2063, %v2062
      %v2139 = vpack.c.bf16 %v2065, %v2064
      %v2140 = vpack.c.bf16 %v2067, %v2066
      %v2141 = vpack.c.bf16 %v2069, %v2068
      %v2142 = vpack.c.bf16 %v2071, %v2070
      %v2143 = vpack.c.bf16 %v2073, %v2072
      %v2144 = vpack.c.bf16 %v2075, %v2074
      %v2145 = vpack.c.bf16 %v2077, %v2076
      %v2146 = vpack.c.bf16 %v2079, %v2078
      %v2147 = vpack.c.bf16 %v2081, %v2080
      %v2148 = vpack.c.bf16 %v2083, %v2082
      %v2149 = vpack.c.bf16 %v2085, %v2084
      %v2214 = vunpack.c.l.b16 %v2086
      %v2215 = vunpack.c.h.b16 %v2086
      %v2216 = vunpack.c.l.b16 %v2087
      %v2217 = vunpack.c.h.b16 %v2087
      %v2218 = vunpack.c.l.b16 %v2088
      %v2219 = vunpack.c.h.b16 %v2088
      %v2220 = vunpack.c.l.b16 %v2089
      %v2221 = vunpack.c.h.b16 %v2089
      %v2222 = vunpack.c.l.b16 %v2090
      %v2223 = vunpack.c.h.b16 %v2090
      %v2224 = vunpack.c.l.b16 %v2091
      %v2225 = vunpack.c.h.b16 %v2091
      %v2226 = vunpack.c.l.b16 %v2092
      %v2227 = vunpack.c.h.b16 %v2092
      %v2228 = vunpack.c.l.b16 %v2093
      %v2229 = vunpack.c.h.b16 %v2093
      %v2230 = vunpack.c.l.b16 %v2094
      %v2231 = vunpack.c.h.b16 %v2094
      %v2232 = vunpack.c.l.b16 %v2095
      %v2233 = vunpack.c.h.b16 %v2095
      %v2234 = vunpack.c.l.b16 %v2096
      %v2235 = vunpack.c.h.b16 %v2096
      %v2236 = vunpack.c.l.b16 %v2097
      %v2237 = vunpack.c.h.b16 %v2097
      %v2238 = vunpack.c.l.b16 %v2098
      %v2239 = vunpack.c.h.b16 %v2098
      %v2240 = vunpack.c.l.b16 %v2099
      %v2241 = vunpack.c.h.b16 %v2099
      %v2242 = vunpack.c.l.b16 %v2100
      %v2243 = vunpack.c.h.b16 %v2100
      %v2244 = vunpack.c.l.b16 %v2101
      %v2245 = vunpack.c.h.b16 %v2101
      %v2246 = vunpack.c.l.b16 %v2102
      %v2247 = vunpack.c.h.b16 %v2102
      %v2248 = vunpack.c.l.b16 %v2103
      %v2249 = vunpack.c.h.b16 %v2103
      %v2250 = vunpack.c.l.b16 %v2104
      %v2251 = vunpack.c.h.b16 %v2104
      %v2252 = vunpack.c.l.b16 %v2105
      %v2253 = vunpack.c.h.b16 %v2105
      %v2254 = vunpack.c.l.b16 %v2106
      %v2255 = vunpack.c.h.b16 %v2106
      %v2256 = vunpack.c.l.b16 %v2107
      %v2257 = vunpack.c.h.b16 %v2107
      %v2258 = vunpack.c.l.b16 %v2108
      %v2259 = vunpack.c.h.b16 %v2108
      %v2260 = vunpack.c.l.b16 %v2109
      %v2261 = vunpack.c.h.b16 %v2109
      %v2262 = vunpack.c.l.b16 %v2110
      %v2263 = vunpack.c.h.b16 %v2110
      %v2264 = vunpack.c.l.b16 %v2111
      %v2265 = vunpack.c.h.b16 %v2111
      %v2266 = vunpack.c.l.b16 %v2112
      %v2267 = vunpack.c.h.b16 %v2112
      %v2268 = vunpack.c.l.b16 %v2113
      %v2269 = vunpack.c.h.b16 %v2113
      %v2270 = vunpack.c.l.b16 %v2114
      %v2271 = vunpack.c.h.b16 %v2114
      %v2272 = vunpack.c.l.b16 %v2115
      %v2273 = vunpack.c.h.b16 %v2115
      %v2274 = vunpack.c.l.b16 %v2116
      %v2275 = vunpack.c.h.b16 %v2116
      %v2276 = vunpack.c.l.b16 %v2117
      %v2277 = vunpack.c.h.b16 %v2117
      %v2278 = vunpack.c.l.b16 %v2118
      %v2279 = vunpack.c.h.b16 %v2118
      %v2280 = vunpack.c.l.b16 %v2119
      %v2281 = vunpack.c.h.b16 %v2119
      %v2282 = vunpack.c.l.b16 %v2120
      %v2283 = vunpack.c.h.b16 %v2120
      %v2284 = vunpack.c.l.b16 %v2121
      %v2285 = vunpack.c.h.b16 %v2121
      %v2286 = vunpack.c.l.b16 %v2122
      %v2287 = vunpack.c.h.b16 %v2122
      %v2288 = vunpack.c.l.b16 %v2123
      %v2289 = vunpack.c.h.b16 %v2123
      %v2290 = vunpack.c.l.b16 %v2124
      %v2291 = vunpack.c.h.b16 %v2124
      %v2292 = vunpack.c.l.b16 %v2125
      %v2293 = vunpack.c.h.b16 %v2125
      %v2294 = vunpack.c.l.b16 %v2126
      %v2295 = vunpack.c.h.b16 %v2126
      %v2296 = vunpack.c.l.b16 %v2127
      %v2297 = vunpack.c.h.b16 %v2127
      %v2298 = vunpack.c.l.b16 %v2128
      %v2299 = vunpack.c.h.b16 %v2128
      %v2300 = vunpack.c.l.b16 %v2129
      %v2301 = vunpack.c.h.b16 %v2129
      %v2302 = vunpack.c.l.b16 %v2130
      %v2303 = vunpack.c.h.b16 %v2130
      %v2304 = vunpack.c.l.b16 %v2131
      %v2305 = vunpack.c.h.b16 %v2131
      %v2306 = vunpack.c.l.b16 %v2132
      %v2307 = vunpack.c.h.b16 %v2132
      %v2308 = vunpack.c.l.b16 %v2133
      %v2309 = vunpack.c.h.b16 %v2133
      %v2310 = vunpack.c.l.b16 %v2134
      %v2311 = vunpack.c.h.b16 %v2134
      %v2312 = vunpack.c.l.b16 %v2135
      %v2313 = vunpack.c.h.b16 %v2135
      %v2314 = vunpack.c.l.b16 %v2136
      %v2315 = vunpack.c.h.b16 %v2136
      %v2316 = vunpack.c.l.b16 %v2137
      %v2317 = vunpack.c.h.b16 %v2137
      %v2318 = vunpack.c.l.b16 %v2138
      %v2319 = vunpack.c.h.b16 %v2138
      %v2320 = vunpack.c.l.b16 %v2139
      %v2321 = vunpack.c.h.b16 %v2139
      %v2322 = vunpack.c.l.b16 %v2140
      %v2323 = vunpack.c.h.b16 %v2140
      %v2324 = vunpack.c.l.b16 %v2141
      %v2325 = vunpack.c.h.b16 %v2141
      %v2326 = vunpack.c.l.b16 %v2142
      %v2327 = vunpack.c.h.b16 %v2142
      %v2328 = vunpack.c.l.b16 %v2143
      %v2329 = vunpack.c.h.b16 %v2143
      %v2330 = vunpack.c.l.b16 %v2144
      %v2331 = vunpack.c.h.b16 %v2144
      %v2332 = vunpack.c.l.b16 %v2145
      %v2333 = vunpack.c.h.b16 %v2145
      %v2334 = vunpack.c.l.b16 %v2146
      %v2335 = vunpack.c.h.b16 %v2146
      %v2336 = vunpack.c.l.b16 %v2147
      %v2337 = vunpack.c.h.b16 %v2147
      %v2338 = vunpack.c.l.b16 %v2148
      %v2339 = vunpack.c.h.b16 %v2148
      %v2340 = vunpack.c.l.b16 %v2149
      %v2341 = vunpack.c.h.b16 %v2149
      %v2342 = vpack.c.b16 %v2214, %v2214
      %v2343 = vpack.c.b16 %v2215, %v2215
      %v2344 = vpack.c.b16 %v2216, %v2216
      %v2345 = vpack.c.b16 %v2217, %v2217
      %v2346 = vpack.c.b16 %v2218, %v2218
      %v2347 = vpack.c.b16 %v2219, %v2219
      %v2348 = vpack.c.b16 %v2220, %v2220
      %v2349 = vpack.c.b16 %v2221, %v2221
      %v2350 = vpack.c.b16 %v2222, %v2222
      %v2351 = vpack.c.b16 %v2223, %v2223
      %v2352 = vpack.c.b16 %v2224, %v2224
      %v2353 = vpack.c.b16 %v2225, %v2225
      %v2354 = vpack.c.b16 %v2226, %v2226
      %v2355 = vpack.c.b16 %v2227, %v2227
      %v2356 = vpack.c.b16 %v2228, %v2228
      %v2357 = vpack.c.b16 %v2229, %v2229
      %v2358 = vpack.c.b16 %v2230, %v2230
      %v2359 = vpack.c.b16 %v2231, %v2231
      %v2360 = vpack.c.b16 %v2232, %v2232
      %v2361 = vpack.c.b16 %v2233, %v2233
      %v2362 = vpack.c.b16 %v2234, %v2234
      %v2363 = vpack.c.b16 %v2235, %v2235
      %v2364 = vpack.c.b16 %v2236, %v2236
      %v2365 = vpack.c.b16 %v2237, %v2237
      %v2366 = vpack.c.b16 %v2238, %v2238
      %v2367 = vpack.c.b16 %v2239, %v2239
      %v2368 = vpack.c.b16 %v2240, %v2240
      %v2369 = vpack.c.b16 %v2241, %v2241
      %v2370 = vpack.c.b16 %v2242, %v2242
      %v2371 = vpack.c.b16 %v2243, %v2243
      %v2372 = vpack.c.b16 %v2244, %v2244
      %v2373 = vpack.c.b16 %v2245, %v2245
      %v2374 = vpack.c.b16 %v2246, %v2246
      %v2375 = vpack.c.b16 %v2247, %v2247
      %v2376 = vpack.c.b16 %v2248, %v2248
      %v2377 = vpack.c.b16 %v2249, %v2249
      %v2378 = vpack.c.b16 %v2250, %v2250
      %v2379 = vpack.c.b16 %v2251, %v2251
      %v2380 = vpack.c.b16 %v2252, %v2252
      %v2381 = vpack.c.b16 %v2253, %v2253
      %v2382 = vpack.c.b16 %v2254, %v2254
      %v2383 = vpack.c.b16 %v2255, %v2255
      %v2384 = vpack.c.b16 %v2256, %v2256
      %v2385 = vpack.c.b16 %v2257, %v2257
      %v2386 = vpack.c.b16 %v2258, %v2258
      %v2387 = vpack.c.b16 %v2259, %v2259
      %v2388 = vpack.c.b16 %v2260, %v2260
      %v2389 = vpack.c.b16 %v2261, %v2261
      %v2390 = vpack.c.b16 %v2262, %v2262
      %v2391 = vpack.c.b16 %v2263, %v2263
      %v2392 = vpack.c.b16 %v2264, %v2264
      %v2393 = vpack.c.b16 %v2265, %v2265
      %v2394 = vpack.c.b16 %v2266, %v2266
      %v2395 = vpack.c.b16 %v2267, %v2267
      %v2396 = vpack.c.b16 %v2268, %v2268
      %v2397 = vpack.c.b16 %v2269, %v2269
      %v2398 = vpack.c.b16 %v2270, %v2270
      %v2399 = vpack.c.b16 %v2271, %v2271
      %v2400 = vpack.c.b16 %v2272, %v2272
      %v2401 = vpack.c.b16 %v2273, %v2273
      %v2402 = vpack.c.b16 %v2274, %v2274
      %v2403 = vpack.c.b16 %v2275, %v2275
      %v2404 = vpack.c.b16 %v2276, %v2276
      %v2405 = vpack.c.b16 %v2277, %v2277
      %v2406 = vpack.c.b16 %v2278, %v2278
      %v2407 = vpack.c.b16 %v2279, %v2279
      %v2408 = vpack.c.b16 %v2280, %v2280
      %v2409 = vpack.c.b16 %v2281, %v2281
      %v2410 = vpack.c.b16 %v2282, %v2282
      %v2411 = vpack.c.b16 %v2283, %v2283
      %v2412 = vpack.c.b16 %v2284, %v2284
      %v2413 = vpack.c.b16 %v2285, %v2285
      %v2414 = vpack.c.b16 %v2286, %v2286
      %v2415 = vpack.c.b16 %v2287, %v2287
      %v2416 = vpack.c.b16 %v2288, %v2288
      %v2417 = vpack.c.b16 %v2289, %v2289
      %v2418 = vpack.c.b16 %v2290, %v2290
      %v2419 = vpack.c.b16 %v2291, %v2291
      %v2420 = vpack.c.b16 %v2292, %v2292
      %v2421 = vpack.c.b16 %v2293, %v2293
      %v2422 = vpack.c.b16 %v2294, %v2294
      %v2423 = vpack.c.b16 %v2295, %v2295
      %v2424 = vpack.c.b16 %v2296, %v2296
      %v2425 = vpack.c.b16 %v2297, %v2297
      %v2426 = vpack.c.b16 %v2298, %v2298
      %v2427 = vpack.c.b16 %v2299, %v2299
      %v2428 = vpack.c.b16 %v2300, %v2300
      %v2429 = vpack.c.b16 %v2301, %v2301
      %v2430 = vpack.c.b16 %v2302, %v2302
      %v2431 = vpack.c.b16 %v2303, %v2303
      %v2432 = vpack.c.b16 %v2304, %v2304
      %v2433 = vpack.c.b16 %v2305, %v2305
      %v2434 = vpack.c.b16 %v2306, %v2306
      %v2435 = vpack.c.b16 %v2307, %v2307
      %v2436 = vpack.c.b16 %v2308, %v2308
      %v2437 = vpack.c.b16 %v2309, %v2309
      %v2438 = vpack.c.b16 %v2310, %v2310
      %v2439 = vpack.c.b16 %v2311, %v2311
      %v2440 = vpack.c.b16 %v2312, %v2312
      %v2441 = vpack.c.b16 %v2313, %v2313
      %v2442 = vpack.c.b16 %v2314, %v2314
      %v2443 = vpack.c.b16 %v2315, %v2315
      %v2444 = vpack.c.b16 %v2316, %v2316
      %v2445 = vpack.c.b16 %v2317, %v2317
      %v2446 = vpack.c.b16 %v2318, %v2318
      %v2447 = vpack.c.b16 %v2319, %v2319
      %v2448 = vpack.c.b16 %v2320, %v2320
      %v2449 = vpack.c.b16 %v2321, %v2321
      %v2450 = vpack.c.b16 %v2322, %v2322
      %v2451 = vpack.c.b16 %v2323, %v2323
      %v2452 = vpack.c.b16 %v2324, %v2324
      %v2453 = vpack.c.b16 %v2325, %v2325
      %v2454 = vpack.c.b16 %v2326, %v2326
      %v2455 = vpack.c.b16 %v2327, %v2327
      %v2456 = vpack.c.b16 %v2328, %v2328
      %v2457 = vpack.c.b16 %v2329, %v2329
      %v2458 = vpack.c.b16 %v2330, %v2330
      %v2459 = vpack.c.b16 %v2331, %v2331
      %v2460 = vpack.c.b16 %v2332, %v2332
      %v2461 = vpack.c.b16 %v2333, %v2333
      %v2462 = vpack.c.b16 %v2334, %v2334
      %v2463 = vpack.c.b16 %v2335, %v2335
      %v2464 = vpack.c.b16 %v2336, %v2336
      %v2465 = vpack.c.b16 %v2337, %v2337
      %v2466 = vpack.c.b16 %v2338, %v2338
      %v2467 = vpack.c.b16 %v2339, %v2339
      %v2468 = vpack.c.b16 %v2340, %v2340
      %v2469 = vpack.c.b16 %v2341, %v2341
      %vm2598 = vcmask 257024
      %2599 = vst.msk [vmem:[%s175] sm:$0xf] %vm2598, %v2342
      %2600 = vst.msk [vmem:[%s175 + $0x4] sm:$0xf] %vm2598, %v2343
      %2601 = vst.msk [vmem:[%s175 + $0x8] sm:$0xf] %vm2598, %v2344
      %2602 = vst.msk [vmem:[%s175 + $0xc] sm:$0xf] %vm2598, %v2345
      %2603 = vst.msk [vmem:[%s175 + $0x10] sm:$0xf] %vm2598, %v2346
      %2604 = vst.msk [vmem:[%s175 + $0x14] sm:$0xf] %vm2598, %v2347
      %2605 = vst.msk [vmem:[%s175 + $0x18] sm:$0xf] %vm2598, %v2348
      %2606 = vst.msk [vmem:[%s175 + $0x1c] sm:$0xf] %vm2598, %v2349
      %2607 = vst.msk [vmem:[%s175 + $0x20] sm:$0xf] %vm2598, %v2350
      %2608 = vst.msk [vmem:[%s175 + $0x24] sm:$0xf] %vm2598, %v2351
      %2609 = vst.msk [vmem:[%s175 + $0x28] sm:$0xf] %vm2598, %v2352
      %2610 = vst.msk [vmem:[%s175 + $0x2c] sm:$0xf] %vm2598, %v2353
      %2611 = vst.msk [vmem:[%s175 + $0x30] sm:$0xf] %vm2598, %v2354
      %2612 = vst.msk [vmem:[%s175 + $0x34] sm:$0xf] %vm2598, %v2355
      %2613 = vst.msk [vmem:[%s175 + $0x38] sm:$0xf] %vm2598, %v2356
      %2614 = vst.msk [vmem:[%s175 + $0x3c] sm:$0xf] %vm2598, %v2357
      %2615 = vst.msk [vmem:[%s175 + $0x40] sm:$0xf] %vm2598, %v2358
      %2616 = vst.msk [vmem:[%s175 + $0x44] sm:$0xf] %vm2598, %v2359
      %2617 = vst.msk [vmem:[%s175 + $0x48] sm:$0xf] %vm2598, %v2360
      %2618 = vst.msk [vmem:[%s175 + $0x4c] sm:$0xf] %vm2598, %v2361
      %2619 = vst.msk [vmem:[%s175 + $0x50] sm:$0xf] %vm2598, %v2362
      %2620 = vst.msk [vmem:[%s175 + $0x54] sm:$0xf] %vm2598, %v2363
      %2621 = vst.msk [vmem:[%s175 + $0x58] sm:$0xf] %vm2598, %v2364
      %2622 = vst.msk [vmem:[%s175 + $0x5c] sm:$0xf] %vm2598, %v2365
      %2623 = vst.msk [vmem:[%s175 + $0x60] sm:$0xf] %vm2598, %v2366
      %2624 = vst.msk [vmem:[%s175 + $0x64] sm:$0xf] %vm2598, %v2367
      %2625 = vst.msk [vmem:[%s175 + $0x68] sm:$0xf] %vm2598, %v2368
      %2626 = vst.msk [vmem:[%s175 + $0x6c] sm:$0xf] %vm2598, %v2369
      %2627 = vst.msk [vmem:[%s175 + $0x70] sm:$0xf] %vm2598, %v2370
      %2628 = vst.msk [vmem:[%s175 + $0x74] sm:$0xf] %vm2598, %v2371
      %2629 = vst.msk [vmem:[%s175 + $0x78] sm:$0xf] %vm2598, %v2372
      %2630 = vst.msk [vmem:[%s175 + $0x7c] sm:$0xf] %vm2598, %v2373
      %2631 = vst.msk [vmem:[%s175 + $0x80] sm:$0xf] %vm2598, %v2374
      %2632 = vst.msk [vmem:[%s175 + $0x84] sm:$0xf] %vm2598, %v2375
      %2633 = vst.msk [vmem:[%s175 + $0x88] sm:$0xf] %vm2598, %v2376
      %2634 = vst.msk [vmem:[%s175 + $0x8c] sm:$0xf] %vm2598, %v2377
      %2635 = vst.msk [vmem:[%s175 + $0x90] sm:$0xf] %vm2598, %v2378
      %2636 = vst.msk [vmem:[%s175 + $0x94] sm:$0xf] %vm2598, %v2379
      %2637 = vst.msk [vmem:[%s175 + $0x98] sm:$0xf] %vm2598, %v2380
      %2638 = vst.msk [vmem:[%s175 + $0x9c] sm:$0xf] %vm2598, %v2381
      %2639 = vst.msk [vmem:[%s175 + $0xa0] sm:$0xf] %vm2598, %v2382
      %2640 = vst.msk [vmem:[%s175 + $0xa4] sm:$0xf] %vm2598, %v2383
      %2641 = vst.msk [vmem:[%s175 + $0xa8] sm:$0xf] %vm2598, %v2384
      %2642 = vst.msk [vmem:[%s175 + $0xac] sm:$0xf] %vm2598, %v2385
      %2643 = vst.msk [vmem:[%s175 + $0xb0] sm:$0xf] %vm2598, %v2386
      %2644 = vst.msk [vmem:[%s175 + $0xb4] sm:$0xf] %vm2598, %v2387
      %2645 = vst.msk [vmem:[%s175 + $0xb8] sm:$0xf] %vm2598, %v2388
      %2646 = vst.msk [vmem:[%s175 + $0xbc] sm:$0xf] %vm2598, %v2389
      %2647 = vst.msk [vmem:[%s175 + $0xc0] sm:$0xf] %vm2598, %v2390
      %2648 = vst.msk [vmem:[%s175 + $0xc4] sm:$0xf] %vm2598, %v2391
      %2649 = vst.msk [vmem:[%s175 + $0xc8] sm:$0xf] %vm2598, %v2392
      %2650 = vst.msk [vmem:[%s175 + $0xcc] sm:$0xf] %vm2598, %v2393
      %2651 = vst.msk [vmem:[%s175 + $0xd0] sm:$0xf] %vm2598, %v2394
      %2652 = vst.msk [vmem:[%s175 + $0xd4] sm:$0xf] %vm2598, %v2395
      %2653 = vst.msk [vmem:[%s175 + $0xd8] sm:$0xf] %vm2598, %v2396
      %2654 = vst.msk [vmem:[%s175 + $0xdc] sm:$0xf] %vm2598, %v2397
      %2655 = vst.msk [vmem:[%s175 + $0xe0] sm:$0xf] %vm2598, %v2398
      %2656 = vst.msk [vmem:[%s175 + $0xe4] sm:$0xf] %vm2598, %v2399
      %2657 = vst.msk [vmem:[%s175 + $0xe8] sm:$0xf] %vm2598, %v2400
      %2658 = vst.msk [vmem:[%s175 + $0xec] sm:$0xf] %vm2598, %v2401
      %2659 = vst.msk [vmem:[%s175 + $0xf0] sm:$0xf] %vm2598, %v2402
      %2660 = vst.msk [vmem:[%s175 + $0xf4] sm:$0xf] %vm2598, %v2403
      %2661 = vst.msk [vmem:[%s175 + $0xf8] sm:$0xf] %vm2598, %v2404
      %2662 = vst.msk [vmem:[%s175 + $0xfc] sm:$0xf] %vm2598, %v2405
      %2663 = vst.msk [vmem:[%s175 + $0x100] sm:$0xf] %vm2598, %v2406
      %2664 = vst.msk [vmem:[%s175 + $0x104] sm:$0xf] %vm2598, %v2407
      %2665 = vst.msk [vmem:[%s175 + $0x108] sm:$0xf] %vm2598, %v2408
      %2666 = vst.msk [vmem:[%s175 + $0x10c] sm:$0xf] %vm2598, %v2409
      %2667 = vst.msk [vmem:[%s175 + $0x110] sm:$0xf] %vm2598, %v2410
      %2668 = vst.msk [vmem:[%s175 + $0x114] sm:$0xf] %vm2598, %v2411
      %2669 = vst.msk [vmem:[%s175 + $0x118] sm:$0xf] %vm2598, %v2412
      %2670 = vst.msk [vmem:[%s175 + $0x11c] sm:$0xf] %vm2598, %v2413
      %2671 = vst.msk [vmem:[%s175 + $0x120] sm:$0xf] %vm2598, %v2414
      %2672 = vst.msk [vmem:[%s175 + $0x124] sm:$0xf] %vm2598, %v2415
      %2673 = vst.msk [vmem:[%s175 + $0x128] sm:$0xf] %vm2598, %v2416
      %2674 = vst.msk [vmem:[%s175 + $0x12c] sm:$0xf] %vm2598, %v2417
      %2675 = vst.msk [vmem:[%s175 + $0x130] sm:$0xf] %vm2598, %v2418
      %2676 = vst.msk [vmem:[%s175 + $0x134] sm:$0xf] %vm2598, %v2419
      %2677 = vst.msk [vmem:[%s175 + $0x138] sm:$0xf] %vm2598, %v2420
      %2678 = vst.msk [vmem:[%s175 + $0x13c] sm:$0xf] %vm2598, %v2421
      %2679 = vst.msk [vmem:[%s175 + $0x140] sm:$0xf] %vm2598, %v2422
      %2680 = vst.msk [vmem:[%s175 + $0x144] sm:$0xf] %vm2598, %v2423
      %2681 = vst.msk [vmem:[%s175 + $0x148] sm:$0xf] %vm2598, %v2424
      %2682 = vst.msk [vmem:[%s175 + $0x14c] sm:$0xf] %vm2598, %v2425
      %2683 = vst.msk [vmem:[%s175 + $0x150] sm:$0xf] %vm2598, %v2426
      %2684 = vst.msk [vmem:[%s175 + $0x154] sm:$0xf] %vm2598, %v2427
      %2685 = vst.msk [vmem:[%s175 + $0x158] sm:$0xf] %vm2598, %v2428
      %2686 = vst.msk [vmem:[%s175 + $0x15c] sm:$0xf] %vm2598, %v2429
      %2687 = vst.msk [vmem:[%s175 + $0x160] sm:$0xf] %vm2598, %v2430
      %2688 = vst.msk [vmem:[%s175 + $0x164] sm:$0xf] %vm2598, %v2431
      %2689 = vst.msk [vmem:[%s175 + $0x168] sm:$0xf] %vm2598, %v2432
      %2690 = vst.msk [vmem:[%s175 + $0x16c] sm:$0xf] %vm2598, %v2433
      %2691 = vst.msk [vmem:[%s175 + $0x170] sm:$0xf] %vm2598, %v2434
      %2692 = vst.msk [vmem:[%s175 + $0x174] sm:$0xf] %vm2598, %v2435
      %2693 = vst.msk [vmem:[%s175 + $0x178] sm:$0xf] %vm2598, %v2436
      %2694 = vst.msk [vmem:[%s175 + $0x17c] sm:$0xf] %vm2598, %v2437
      %2695 = vst.msk [vmem:[%s175 + $0x180] sm:$0xf] %vm2598, %v2438
      %2696 = vst.msk [vmem:[%s175 + $0x184] sm:$0xf] %vm2598, %v2439
      %2697 = vst.msk [vmem:[%s175 + $0x188] sm:$0xf] %vm2598, %v2440
      %2698 = vst.msk [vmem:[%s175 + $0x18c] sm:$0xf] %vm2598, %v2441
      %2699 = vst.msk [vmem:[%s175 + $0x190] sm:$0xf] %vm2598, %v2442
      %2700 = vst.msk [vmem:[%s175 + $0x194] sm:$0xf] %vm2598, %v2443
      %2701 = vst.msk [vmem:[%s175 + $0x198] sm:$0xf] %vm2598, %v2444
      %2702 = vst.msk [vmem:[%s175 + $0x19c] sm:$0xf] %vm2598, %v2445
      %2703 = vst.msk [vmem:[%s175 + $0x1a0] sm:$0xf] %vm2598, %v2446
      %2704 = vst.msk [vmem:[%s175 + $0x1a4] sm:$0xf] %vm2598, %v2447
      %2705 = vst.msk [vmem:[%s175 + $0x1a8] sm:$0xf] %vm2598, %v2448
      %2706 = vst.msk [vmem:[%s175 + $0x1ac] sm:$0xf] %vm2598, %v2449
      %2707 = vst.msk [vmem:[%s175 + $0x1b0] sm:$0xf] %vm2598, %v2450
      %2708 = vst.msk [vmem:[%s175 + $0x1b4] sm:$0xf] %vm2598, %v2451
      %2709 = vst.msk [vmem:[%s175 + $0x1b8] sm:$0xf] %vm2598, %v2452
      %2710 = vst.msk [vmem:[%s175 + $0x1bc] sm:$0xf] %vm2598, %v2453
      %2711 = vst.msk [vmem:[%s175 + $0x1c0] sm:$0xf] %vm2598, %v2454
      %2712 = vst.msk [vmem:[%s175 + $0x1c4] sm:$0xf] %vm2598, %v2455
      %2713 = vst.msk [vmem:[%s175 + $0x1c8] sm:$0xf] %vm2598, %v2456
      %2714 = vst.msk [vmem:[%s175 + $0x1cc] sm:$0xf] %vm2598, %v2457
      %2715 = vst.msk [vmem:[%s175 + $0x1d0] sm:$0xf] %vm2598, %v2458
      %2716 = vst.msk [vmem:[%s175 + $0x1d4] sm:$0xf] %vm2598, %v2459
      %2717 = vst.msk [vmem:[%s175 + $0x1d8] sm:$0xf] %vm2598, %v2460
      %2718 = vst.msk [vmem:[%s175 + $0x1dc] sm:$0xf] %vm2598, %v2461
      %2719 = vst.msk [vmem:[%s175 + $0x1e0] sm:$0xf] %vm2598, %v2462
      %2720 = vst.msk [vmem:[%s175 + $0x1e4] sm:$0xf] %vm2598, %v2463
      %2721 = vst.msk [vmem:[%s175 + $0x1e8] sm:$0xf] %vm2598, %v2464
      %2722 = vst.msk [vmem:[%s175 + $0x1ec] sm:$0xf] %vm2598, %v2465
      %2723 = vst.msk [vmem:[%s175 + $0x1f0] sm:$0xf] %vm2598, %v2466
      %2724 = vst.msk [vmem:[%s175 + $0x1f4] sm:$0xf] %vm2598, %v2467
      %2725 = vst.msk [vmem:[%s175 + $0x1f8] sm:$0xf] %vm2598, %v2468
      %2726 = vst.msk [vmem:[%s175 + $0x1fc] sm:$0xf] %vm2598, %v2469
      %s2727 = smul.u32 128, %s14
      %p2728 = scmp.lt.s32.totalorder %s2727, 255
      %s2729 = scalar_select %p2728, %s2727, 255
      %s2730 = smul.addr %s2729, 4
      %s2731 = scalar_lea.vmem %s3, %s2730
      // Predicated region
      $region33: #{forward.10} parent=31 // pred_check
        %p2732 = pneg %p100
      $region34: #{forward.10} parent=31 // pred_check_branch
        %2734 = sbr.rel (%p2732) target = $region36
      $region35: #{forward.10} parent=31 // pred_region
        %s2735 = smul.u32 128, %s14
      $region36: #{forward.10} parent=31 // pred_fallthru
        _
    $region32: #{forward.10} parent=5 // pred_fallthru
      _
    %p2736 = scmp.le.s32.totalorder 2, %s9
    // Predicated region
    $region37: #{forward.10} parent=5 // pred_check
      %p2737 = pneg %p2736
    $region38: #{forward.10} parent=5 // pred_check_branch
      %2739 = sbr.rel (%p2737) target = $region40
    $region39: #{forward.10} parent=5 // pred_region
      %s2740 = ssub.s32 %s9, 2
      // Predicated region
      $region41: #{forward.10} parent=39 // pred_check
        %p2741 = pneg %p106
      $region42: #{forward.10} parent=39 // pred_check_branch
        %2743 = sbr.rel (%p2741) target = $region44
      $region43: #{forward.10} parent=39 // pred_region
        %s2744 = smul.u32 128, %s15
        %p2745 = scmp.lt.s32.totalorder %s2744, 255
        %s2746 = scalar_select %p2745, %s2744, 255
        %s2747 = smul.addr %s2746, 4
        %s2748 = scalar_lea.vmem %s3, %s2747
      $region44: #{forward.10} parent=39 // pred_fallthru
        _
    $region40: #{forward.10} parent=5 // pred_fallthru
      _
  $region6: #{forward.10} parent=0 // loop_footer
    %s13 = sadd.s32 1, %s9
  $region7: #{forward.10} parent=0 // loop_footer_branch
    %8 = sbr.rel target = $region3
  $region8: #{forward.10} parent=0 // loop_exit
    _

// kernel: forward.11
$region0: #{forward.11}
  #allocation0 [shape = 'u32[]', space=smem, size = 0x4, offset = 0x4, fixed_abs, tag = 'smem constant byte address 0x4 - core index']
  #allocation1 [shape = 'u32[144,128]{1,0:T(1,128)}', space=vmem, size = 0x12000, scoped, tag = 'internal scratch']
  %s0 = inlined_call_operand.vmem [shape: bf16[8192,72], index: 0, kind: input, shape index: {}]
  %s1 = inlined_call_operand.vmem [shape: bf16[72,4], index: 1, kind: input, shape index: {}]
  %s2 = inlined_call_operand.vmem [shape: f32[2,4], index: 2, kind: input, shape index: {}]
  %s3 = inlined_call_operand.vmem [shape: f32[8192,4], index: 3, kind: output, shape index: {}]
  %s4 = sld [smem:[#allocation0]]
  $region45: #{forward.11} parent=0
    _
  %s6 = ssub.s32 1, %s4
  %s7 = scalar_select 0, %s6, %s4
  loop: start=0, step=1, limit=10
  $region2: #{forward.11} parent=0 // loop_pre_header
    _
  $region3: #{forward.11} parent=0 // loop_header
    %s9 = sphi 0, %s13
    %p10 = scmp.ge.s32.totalorder %s9, 10
    %s19 = sphi 0, %s21
    %s22 = sphi 0, %s19
    %s23 = sphi 0, %s22
    %s39 = sphi 0, %s23
    %s43 = sphi 0, %s43
    %s45 = sphi 0, %s43
    %s46 = sphi 0, %s45
    %s60 = sphi 0, %s46
    %s64 = sphi 0, %s64
    %s66 = sphi 0, %s64
    %s67 = sphi 0, %s66
    %s81 = sphi 0, %s67
    %s87 = sphi 0, %s89
    %s90 = sphi 0, %s87
    %s91 = sphi 0, %s90
    %s107 = sphi 0, %s91
  $region4: #{forward.11} parent=0 // loop_header_branch
    %12 = sbr.rel (%p10) target = $region8
  $region5: #{forward.11} parent=0 // loop_body
    %s14 = ssub.s32 %s9, 1
    %s15 = ssub.s32 %s9, 2
    %s16 = sadd.s32 %s9, 1
    %s17 = ssub.s32 %s9, %s16
    %p18 = scmp.eq.s32.totalorder %s17, 0
    %s20 = sadd.s32 %s19, 1
    %s21 = scalar_select %p18, %s19, %s20
    %p24 = pneg %p18
    %p25 = scmp.eq.s32.totalorder %s9, 7
    %p26 = por %p24, %p25
    %p27 = scmp.ne.s32.totalorder %s19, %s22
    %p28 = scmp.eq.s32.totalorder %s9, 0
    %p29 = por %p27, %p28
    %p30 = scmp.ne.s32.totalorder %s19, %s22
    %p31 = scmp.eq.s32.totalorder %s14, 7
    %p32 = por %p30, %p31
    %p33 = scmp.ne.s32.totalorder %s22, %s23
    %p34 = scmp.eq.s32.totalorder %s14, 0
    %p35 = por %p33, %p34
    %p36 = scmp.ne.s32.totalorder %s22, %s23
    %p37 = scmp.eq.s32.totalorder %s15, 7
    %p38 = por %p36, %p37
    %p40 = scmp.ne.s32.totalorder %s23, %s39
    %p41 = scmp.eq.s32.totalorder %s15, 0
    %p42 = por %p40, %p41
    %s44 = sadd.s32 %s43, 1
    %p47 = scmp.eq.s32.totalorder %s9, 7
    %p48 = scmp.ne.s32.totalorder %s43, %s45
    %p49 = scmp.eq.s32.totalorder %s9, 0
    %p50 = por %p48, %p49
    %p51 = scmp.ne.s32.totalorder %s43, %s45
    %p52 = scmp.eq.s32.totalorder %s14, 7
    %p53 = por %p51, %p52
    %p54 = scmp.ne.s32.totalorder %s45, %s46
    %p55 = scmp.eq.s32.totalorder %s14, 0
    %p56 = por %p54, %p55
    %p57 = scmp.ne.s32.totalorder %s45, %s46
    %p58 = scmp.eq.s32.totalorder %s15, 7
    %p59 = por %p57, %p58
    %p61 = scmp.ne.s32.totalorder %s46, %s60
    %p62 = scmp.eq.s32.totalorder %s15, 0
    %p63 = por %p61, %p62
    %s65 = sadd.s32 %s64, 1
    %p68 = scmp.eq.s32.totalorder %s9, 7
    %p69 = scmp.ne.s32.totalorder %s64, %s66
    %p70 = scmp.eq.s32.totalorder %s9, 0
    %p71 = por %p69, %p70
    %p72 = scmp.ne.s32.totalorder %s64, %s66
    %p73 = scmp.eq.s32.totalorder %s14, 7
    %p74 = por %p72, %p73
    %p75 = scmp.ne.s32.totalorder %s66, %s67
    %p76 = scmp.eq.s32.totalorder %s14, 0
    %p77 = por %p75, %p76
    %p78 = scmp.ne.s32.totalorder %s66, %s67
    %p79 = scmp.eq.s32.totalorder %s15, 7
    %p80 = por %p78, %p79
    %p82 = scmp.ne.s32.totalorder %s67, %s81
    %p83 = scmp.eq.s32.totalorder %s15, 0
    %p84 = por %p82, %p83
    %s85 = ssub.s32 %s9, %s16
    %p86 = scmp.eq.s32.totalorder %s85, 0
    %s88 = sadd.s32 %s87, 1
    %s89 = scalar_select %p86, %s87, %s88
    %p92 = pneg %p86
    %p93 = scmp.eq.s32.totalorder %s9, 7
    %p94 = por %p92, %p93
    %p95 = scmp.ne.s32.totalorder %s87, %s90
    %p96 = scmp.eq.s32.totalorder %s9, 0
    %p97 = por %p95, %p96
    %p98 = scmp.ne.s32.totalorder %s87, %s90
    %p99 = scmp.eq.s32.totalorder %s14, 7
    %p100 = por %p98, %p99
    %p101 = scmp.ne.s32.totalorder %s90, %s91
    %p102 = scmp.eq.s32.totalorder %s14, 0
    %p103 = por %p101, %p102
    %p104 = scmp.ne.s32.totalorder %s90, %s91
    %p105 = scmp.eq.s32.totalorder %s15, 7
    %p106 = por %p104, %p105
    %p108 = scmp.ne.s32.totalorder %s91, %s107
    %p109 = scmp.eq.s32.totalorder %s15, 0
    %p110 = por %p108, %p109
    %p111 = scmp.le.s32.totalorder 1, %s9
    %p112 = scmp.lt.s32.totalorder %s9, 9
    %p113 = pnand %p111, %p112
    %p114 = pneg %p113
    // Predicated region
    $region9: #{forward.11} parent=5 // pred_check
      _
    $region10: #{forward.11} parent=5 // pred_check_branch
      %116 = sbr.rel (%p113) target = $region12
    $region11: #{forward.11} parent=5 // pred_region
      %s117 = ssub.s32 %s9, 1
      // Predicated region
      $region13: #{forward.11} parent=11 // pred_check
        %p118 = pneg %p56
      $region14: #{forward.11} parent=11 // pred_check_branch
        %120 = sbr.rel (%p118) target = $region16
      $region15: #{forward.11} parent=11 // pred_region
        _
      $region16: #{forward.11} parent=11 // pred_fallthru
        _
      // Predicated region
      $region17: #{forward.11} parent=11 // pred_check
        %p121 = pneg %p77
      $region18: #{forward.11} parent=11 // pred_check_branch
        %123 = sbr.rel (%p121) target = $region20
      $region19: #{forward.11} parent=11 // pred_region
        _
      $region20: #{forward.11} parent=11 // pred_fallthru
        _
    $region12: #{forward.11} parent=5 // pred_fallthru
      _
    %p124 = scmp.lt.s32.totalorder %s9, 8
    // Predicated region
    $region21: #{forward.11} parent=5 // pred_check
      %p125 = pneg %p124
    $region22: #{forward.11} parent=5 // pred_check_branch
      %127 = sbr.rel (%p125) target = $region24
    $region23: #{forward.11} parent=5 // pred_region
      // Predicated region
      $region25: #{forward.11} parent=23 // pred_check
        %p128 = pneg %p29
      $region26: #{forward.11} parent=23 // pred_check_branch
        %130 = sbr.rel (%p128) target = $region28
      $region27: #{forward.11} parent=23 // pred_region
        %s131 = smul.u32 128, %s9
        %p132 = scmp.lt.s32.totalorder %s131, 1023
        %s133 = scalar_select %p132, %s131, 1023
        %s134 = smul.addr %s133, 4
        %s135 = scalar_lea.vmem %s0, %s134
        %s136 = smul.u32 128, %s9
      $region28: #{forward.11} parent=23 // pred_fallthru
        _
    $region24: #{forward.11} parent=5 // pred_fallthru
      _
    %p137 = scmp.le.s32.totalorder 1, %s9
    %p138 = scmp.lt.s32.totalorder %s9, 9
    %p139 = pnand %p137, %p138
    %p140 = pneg %p139
    // Predicated region
    $region29: #{forward.11} parent=5 // pred_check
      _
    $region30: #{forward.11} parent=5 // pred_check_branch
      %142 = sbr.rel (%p139) target = $region32
    $region31: #{forward.11} parent=5 // pred_region
      %s143 = ssub.s32 %s9, 1
      %s144 = smul.u32 128, %s14
      %p145 = scmp.lt.s32.totalorder %s144, 1023
      %s146 = scalar_select %p145, %s144, 1023
      %s147 = smul.addr %s146, 4
      %s148 = scalar_lea.vmem %s0, %s147
      %p149 = pneg %p35
      %p150 = pneg %p32
      %p151 = pneg %p56
      %p152 = pneg %p53
      %p153 = pneg %p77
      %p154 = pneg %p74
      %p155 = pneg %p103
      %p156 = pneg %p100
      %s157 = smul.u32 128, %s14
      %p158 = scmp.lt.s32.totalorder %s157, 1023
      %s159 = scalar_select %p158, %s157, 1023
      %s160 = smul.addr %s159, 8
      %s161 = scalar_lea.vmem %s3, %s160
      %s162 = smul.u32 128, %s14
      %p163 = scmp.lt.s32.totalorder %s162, 1023
      %s164 = scalar_select %p163, %s162, 1023
      %s165 = smul.addr %s164, 4
      %s166 = scalar_lea.vmem %s0, %s165
      %s167 = smul.u32 128, %s14
      %s168 = smul.u32 128, %s14
      %p169 = scmp.lt.s32.totalorder %s168, 1023
      %s170 = scalar_select %p169, %s168, 1023
      %s171 = smul.addr %s170, 8
      %s172 = scalar_lea.vmem %s3, %s171
      %s173 = smul.u32 128, %s14
      %v175 = vld [vmem:[%s166] sm:$0xf]
      %v176 = vld [vmem:[%s166 + $0x4] sm:$0xf]
      %v177 = vld [vmem:[%s166 + $0x8] sm:$0xf]
      %v178 = vld [vmem:[%s166 + $0xc] sm:$0xf]
      %v179 = vld [vmem:[%s166 + $0x10] sm:$0xf]
      %v180 = vld [vmem:[%s166 + $0x14] sm:$0xf]
      %v181 = vld [vmem:[%s166 + $0x18] sm:$0xf]
      %v182 = vld [vmem:[%s166 + $0x1c] sm:$0xf]
      %v183 = vld [vmem:[%s166 + $0x20] sm:$0xf]
      %v184 = vld [vmem:[%s166 + $0x24] sm:$0xf]
      %v185 = vld [vmem:[%s166 + $0x28] sm:$0xf]
      %v186 = vld [vmem:[%s166 + $0x2c] sm:$0xf]
      %v187 = vld [vmem:[%s166 + $0x30] sm:$0xf]
      %v188 = vld [vmem:[%s166 + $0x34] sm:$0xf]
      %v189 = vld [vmem:[%s166 + $0x38] sm:$0xf]
      %v190 = vld [vmem:[%s166 + $0x3c] sm:$0xf]
      %v191 = vld [vmem:[%s166 + $0x40] sm:$0xf]
      %v192 = vld [vmem:[%s166 + $0x44] sm:$0xf]
      %v193 = vld [vmem:[%s166 + $0x48] sm:$0xf]
      %v194 = vld [vmem:[%s166 + $0x4c] sm:$0xf]
      %v195 = vld [vmem:[%s166 + $0x50] sm:$0xf]
      %v196 = vld [vmem:[%s166 + $0x54] sm:$0xf]
      %v197 = vld [vmem:[%s166 + $0x58] sm:$0xf]
      %v198 = vld [vmem:[%s166 + $0x5c] sm:$0xf]
      %v199 = vld [vmem:[%s166 + $0x60] sm:$0xf]
      %v200 = vld [vmem:[%s166 + $0x64] sm:$0xf]
      %v201 = vld [vmem:[%s166 + $0x68] sm:$0xf]
      %v202 = vld [vmem:[%s166 + $0x6c] sm:$0xf]
      %v203 = vld [vmem:[%s166 + $0x70] sm:$0xf]
      %v204 = vld [vmem:[%s166 + $0x74] sm:$0xf]
      %v205 = vld [vmem:[%s166 + $0x78] sm:$0xf]
      %v206 = vld [vmem:[%s166 + $0x7c] sm:$0xf]
      %v207 = vld [vmem:[%s166 + $0x80] sm:$0xf]
      %v208 = vld [vmem:[%s166 + $0x84] sm:$0xf]
      %v209 = vld [vmem:[%s166 + $0x88] sm:$0xf]
      %v210 = vld [vmem:[%s166 + $0x8c] sm:$0xf]
      %v211 = vld [vmem:[%s166 + $0x90] sm:$0xf]
      %v212 = vld [vmem:[%s166 + $0x94] sm:$0xf]
      %v213 = vld [vmem:[%s166 + $0x98] sm:$0xf]
      %v214 = vld [vmem:[%s166 + $0x9c] sm:$0xf]
      %v215 = vld [vmem:[%s166 + $0xa0] sm:$0xf]
      %v216 = vld [vmem:[%s166 + $0xa4] sm:$0xf]
      %v217 = vld [vmem:[%s166 + $0xa8] sm:$0xf]
      %v218 = vld [vmem:[%s166 + $0xac] sm:$0xf]
      %v219 = vld [vmem:[%s166 + $0xb0] sm:$0xf]
      %v220 = vld [vmem:[%s166 + $0xb4] sm:$0xf]
      %v221 = vld [vmem:[%s166 + $0xb8] sm:$0xf]
      %v222 = vld [vmem:[%s166 + $0xbc] sm:$0xf]
      %v223 = vld [vmem:[%s166 + $0xc0] sm:$0xf]
      %v224 = vld [vmem:[%s166 + $0xc4] sm:$0xf]
      %v225 = vld [vmem:[%s166 + $0xc8] sm:$0xf]
      %v226 = vld [vmem:[%s166 + $0xcc] sm:$0xf]
      %v227 = vld [vmem:[%s166 + $0xd0] sm:$0xf]
      %v228 = vld [vmem:[%s166 + $0xd4] sm:$0xf]
      %v229 = vld [vmem:[%s166 + $0xd8] sm:$0xf]
      %v230 = vld [vmem:[%s166 + $0xdc] sm:$0xf]
      %v231 = vld [vmem:[%s166 + $0xe0] sm:$0xf]
      %v232 = vld [vmem:[%s166 + $0xe4] sm:$0xf]
      %v233 = vld [vmem:[%s166 + $0xe8] sm:$0xf]
      %v234 = vld [vmem:[%s166 + $0xec] sm:$0xf]
      %v235 = vld [vmem:[%s166 + $0xf0] sm:$0xf]
      %v236 = vld [vmem:[%s166 + $0xf4] sm:$0xf]
      %v237 = vld [vmem:[%s166 + $0xf8] sm:$0xf]
      %v238 = vld [vmem:[%s166 + $0xfc] sm:$0xf]
      %v239 = vld [vmem:[%s166 + $0x100] sm:$0xf]
      %v240 = vld [vmem:[%s166 + $0x104] sm:$0xf]
      %v241 = vld [vmem:[%s166 + $0x108] sm:$0xf]
      %v242 = vld [vmem:[%s166 + $0x10c] sm:$0xf]
      %v243 = vld [vmem:[%s166 + $0x110] sm:$0xf]
      %v244 = vld [vmem:[%s166 + $0x114] sm:$0xf]
      %v245 = vld [vmem:[%s166 + $0x118] sm:$0xf]
      %v246 = vld [vmem:[%s166 + $0x11c] sm:$0xf]
      %v247 = vld [vmem:[%s166 + $0x120] sm:$0xf]
      %v248 = vld [vmem:[%s166 + $0x124] sm:$0xf]
      %v249 = vld [vmem:[%s166 + $0x128] sm:$0xf]
      %v250 = vld [vmem:[%s166 + $0x12c] sm:$0xf]
      %v251 = vld [vmem:[%s166 + $0x130] sm:$0xf]
      %v252 = vld [vmem:[%s166 + $0x134] sm:$0xf]
      %v253 = vld [vmem:[%s166 + $0x138] sm:$0xf]
      %v254 = vld [vmem:[%s166 + $0x13c] sm:$0xf]
      %v255 = vld [vmem:[%s166 + $0x140] sm:$0xf]
      %v256 = vld [vmem:[%s166 + $0x144] sm:$0xf]
      %v257 = vld [vmem:[%s166 + $0x148] sm:$0xf]
      %v258 = vld [vmem:[%s166 + $0x14c] sm:$0xf]
      %v259 = vld [vmem:[%s166 + $0x150] sm:$0xf]
      %v260 = vld [vmem:[%s166 + $0x154] sm:$0xf]
      %v261 = vld [vmem:[%s166 + $0x158] sm:$0xf]
      %v262 = vld [vmem:[%s166 + $0x15c] sm:$0xf]
      %v263 = vld [vmem:[%s166 + $0x160] sm:$0xf]
      %v264 = vld [vmem:[%s166 + $0x164] sm:$0xf]
      %v265 = vld [vmem:[%s166 + $0x168] sm:$0xf]
      %v266 = vld [vmem:[%s166 + $0x16c] sm:$0xf]
      %v267 = vld [vmem:[%s166 + $0x170] sm:$0xf]
      %v268 = vld [vmem:[%s166 + $0x174] sm:$0xf]
      %v269 = vld [vmem:[%s166 + $0x178] sm:$0xf]
      %v270 = vld [vmem:[%s166 + $0x17c] sm:$0xf]
      %v271 = vld [vmem:[%s166 + $0x180] sm:$0xf]
      %v272 = vld [vmem:[%s166 + $0x184] sm:$0xf]
      %v273 = vld [vmem:[%s166 + $0x188] sm:$0xf]
      %v274 = vld [vmem:[%s166 + $0x18c] sm:$0xf]
      %v275 = vld [vmem:[%s166 + $0x190] sm:$0xf]
      %v276 = vld [vmem:[%s166 + $0x194] sm:$0xf]
      %v277 = vld [vmem:[%s166 + $0x198] sm:$0xf]
      %v278 = vld [vmem:[%s166 + $0x19c] sm:$0xf]
      %v279 = vld [vmem:[%s166 + $0x1a0] sm:$0xf]
      %v280 = vld [vmem:[%s166 + $0x1a4] sm:$0xf]
      %v281 = vld [vmem:[%s166 + $0x1a8] sm:$0xf]
      %v282 = vld [vmem:[%s166 + $0x1ac] sm:$0xf]
      %v283 = vld [vmem:[%s166 + $0x1b0] sm:$0xf]
      %v284 = vld [vmem:[%s166 + $0x1b4] sm:$0xf]
      %v285 = vld [vmem:[%s166 + $0x1b8] sm:$0xf]
      %v286 = vld [vmem:[%s166 + $0x1bc] sm:$0xf]
      %v287 = vld [vmem:[%s166 + $0x1c0] sm:$0xf]
      %v288 = vld [vmem:[%s166 + $0x1c4] sm:$0xf]
      %v289 = vld [vmem:[%s166 + $0x1c8] sm:$0xf]
      %v290 = vld [vmem:[%s166 + $0x1cc] sm:$0xf]
      %v291 = vld [vmem:[%s166 + $0x1d0] sm:$0xf]
      %v292 = vld [vmem:[%s166 + $0x1d4] sm:$0xf]
      %v293 = vld [vmem:[%s166 + $0x1d8] sm:$0xf]
      %v294 = vld [vmem:[%s166 + $0x1dc] sm:$0xf]
      %v295 = vld [vmem:[%s166 + $0x1e0] sm:$0xf]
      %v296 = vld [vmem:[%s166 + $0x1e4] sm:$0xf]
      %v297 = vld [vmem:[%s166 + $0x1e8] sm:$0xf]
      %v298 = vld [vmem:[%s166 + $0x1ec] sm:$0xf]
      %v299 = vld [vmem:[%s166 + $0x1f0] sm:$0xf]
      %v300 = vld [vmem:[%s166 + $0x1f4] sm:$0xf]
      %v301 = vld [vmem:[%s166 + $0x1f8] sm:$0xf]
      %v302 = vld [vmem:[%s166 + $0x1fc] sm:$0xf]
      %v303 = vld [vmem:[%s1] sm:$0xf]
      %v304 = vld [vmem:[%s1 + $0x4] sm:$0xf]
      %v305 = vld [vmem:[%s1 + $0x8] sm:$0xf]
      %v306 = vld [vmem:[%s1 + $0xc] sm:$0xf]
      %v307 = vld [vmem:[%s1 + $0x10] sm:$0xf]
      %v308 = vld [vmem:[%s1 + $0x14] sm:$0xf]
      %v309 = vld [vmem:[%s1 + $0x18] sm:$0xf]
      %v310 = vld [vmem:[%s1 + $0x1c] sm:$0xf]
      %v311 = vld [vmem:[%s1 + $0x20] sm:$0xf]
      %v440 = vunpack.c.l.b16 %v175
      %v441 = vunpack.c.l.b16 %v176
      %v442 = vunpack.c.l.b16 %v177
      %v443 = vunpack.c.l.b16 %v178
      %v444 = vunpack.c.l.b16 %v179
      %v445 = vunpack.c.l.b16 %v180
      %v446 = vunpack.c.l.b16 %v181
      %v447 = vunpack.c.l.b16 %v182
      %v448 = vunpack.c.l.b16 %v183
      %v449 = vunpack.c.l.b16 %v184
      %v450 = vunpack.c.l.b16 %v185
      %v451 = vunpack.c.l.b16 %v186
      %v452 = vunpack.c.l.b16 %v187
      %v453 = vunpack.c.l.b16 %v188
      %v454 = vunpack.c.l.b16 %v189
      %v455 = vunpack.c.l.b16 %v190
      %v456 = vunpack.c.l.b16 %v191
      %v457 = vunpack.c.l.b16 %v192
      %v458 = vunpack.c.l.b16 %v193
      %v459 = vunpack.c.l.b16 %v194
      %v460 = vunpack.c.l.b16 %v195
      %v461 = vunpack.c.l.b16 %v196
      %v462 = vunpack.c.l.b16 %v197
      %v463 = vunpack.c.l.b16 %v198
      %v464 = vunpack.c.l.b16 %v199
      %v465 = vunpack.c.l.b16 %v200
      %v466 = vunpack.c.l.b16 %v201
      %v467 = vunpack.c.l.b16 %v202
      %v468 = vunpack.c.l.b16 %v203
      %v469 = vunpack.c.l.b16 %v204
      %v470 = vunpack.c.l.b16 %v205
      %v471 = vunpack.c.l.b16 %v206
      %v472 = vunpack.c.l.b16 %v207
      %v473 = vunpack.c.l.b16 %v208
      %v474 = vunpack.c.l.b16 %v209
      %v475 = vunpack.c.l.b16 %v210
      %v476 = vunpack.c.l.b16 %v211
      %v477 = vunpack.c.l.b16 %v212
      %v478 = vunpack.c.l.b16 %v213
      %v479 = vunpack.c.l.b16 %v214
      %v480 = vunpack.c.l.b16 %v215
      %v481 = vunpack.c.l.b16 %v216
      %v482 = vunpack.c.l.b16 %v217
      %v483 = vunpack.c.l.b16 %v218
      %v484 = vunpack.c.l.b16 %v219
      %v485 = vunpack.c.l.b16 %v220
      %v486 = vunpack.c.l.b16 %v221
      %v487 = vunpack.c.l.b16 %v222
      %v488 = vunpack.c.l.b16 %v223
      %v489 = vunpack.c.l.b16 %v224
      %v490 = vunpack.c.l.b16 %v225
      %v491 = vunpack.c.l.b16 %v226
      %v492 = vunpack.c.l.b16 %v227
      %v493 = vunpack.c.l.b16 %v228
      %v494 = vunpack.c.l.b16 %v229
      %v495 = vunpack.c.l.b16 %v230
      %v496 = vunpack.c.l.b16 %v231
      %v497 = vunpack.c.l.b16 %v232
      %v498 = vunpack.c.l.b16 %v233
      %v499 = vunpack.c.l.b16 %v234
      %v500 = vunpack.c.l.b16 %v235
      %v501 = vunpack.c.l.b16 %v236
      %v502 = vunpack.c.l.b16 %v237
      %v503 = vunpack.c.l.b16 %v238
      %v504 = vunpack.c.l.b16 %v239
      %v505 = vunpack.c.l.b16 %v240
      %v506 = vunpack.c.l.b16 %v241
      %v507 = vunpack.c.l.b16 %v242
      %v508 = vunpack.c.l.b16 %v243
      %v509 = vunpack.c.l.b16 %v244
      %v510 = vunpack.c.l.b16 %v245
      %v511 = vunpack.c.l.b16 %v246
      %v512 = vunpack.c.l.b16 %v247
      %v513 = vunpack.c.l.b16 %v248
      %v514 = vunpack.c.l.b16 %v249
      %v515 = vunpack.c.l.b16 %v250
      %v516 = vunpack.c.l.b16 %v251
      %v517 = vunpack.c.l.b16 %v252
      %v518 = vunpack.c.l.b16 %v253
      %v519 = vunpack.c.l.b16 %v254
      %v520 = vunpack.c.l.b16 %v255
      %v521 = vunpack.c.l.b16 %v256
      %v522 = vunpack.c.l.b16 %v257
      %v523 = vunpack.c.l.b16 %v258
      %v524 = vunpack.c.l.b16 %v259
      %v525 = vunpack.c.l.b16 %v260
      %v526 = vunpack.c.l.b16 %v261
      %v527 = vunpack.c.l.b16 %v262
      %v528 = vunpack.c.l.b16 %v263
      %v529 = vunpack.c.l.b16 %v264
      %v530 = vunpack.c.l.b16 %v265
      %v531 = vunpack.c.l.b16 %v266
      %v532 = vunpack.c.l.b16 %v267
      %v533 = vunpack.c.l.b16 %v268
      %v534 = vunpack.c.l.b16 %v269
      %v535 = vunpack.c.l.b16 %v270
      %v536 = vunpack.c.l.b16 %v271
      %v537 = vunpack.c.l.b16 %v272
      %v538 = vunpack.c.l.b16 %v273
      %v539 = vunpack.c.l.b16 %v274
      %v540 = vunpack.c.l.b16 %v275
      %v541 = vunpack.c.l.b16 %v276
      %v542 = vunpack.c.l.b16 %v277
      %v543 = vunpack.c.l.b16 %v278
      %v544 = vunpack.c.l.b16 %v279
      %v545 = vunpack.c.l.b16 %v280
      %v546 = vunpack.c.l.b16 %v281
      %v547 = vunpack.c.l.b16 %v282
      %v548 = vunpack.c.l.b16 %v283
      %v549 = vunpack.c.l.b16 %v284
      %v550 = vunpack.c.l.b16 %v285
      %v551 = vunpack.c.l.b16 %v286
      %v552 = vunpack.c.l.b16 %v287
      %v553 = vunpack.c.l.b16 %v288
      %v554 = vunpack.c.l.b16 %v289
      %v555 = vunpack.c.l.b16 %v290
      %v556 = vunpack.c.l.b16 %v291
      %v557 = vunpack.c.l.b16 %v292
      %v558 = vunpack.c.l.b16 %v293
      %v559 = vunpack.c.l.b16 %v294
      %v560 = vunpack.c.l.b16 %v295
      %v561 = vunpack.c.l.b16 %v296
      %v562 = vunpack.c.l.b16 %v297
      %v563 = vunpack.c.l.b16 %v298
      %v564 = vunpack.c.l.b16 %v299
      %v565 = vunpack.c.l.b16 %v300
      %v566 = vunpack.c.l.b16 %v301
      %v567 = vunpack.c.l.b16 %v302
      %v568 = vpack.c.b16 %v441, %v440
      %v569 = vpack.c.b16 %v443, %v442
      %v570 = vpack.c.b16 %v445, %v444
      %v571 = vpack.c.b16 %v447, %v446
      %v572 = vpack.c.b16 %v449, %v448
      %v573 = vpack.c.b16 %v451, %v450
      %v574 = vpack.c.b16 %v453, %v452
      %v575 = vpack.c.b16 %v455, %v454
      %v576 = vpack.c.b16 %v457, %v456
      %v577 = vpack.c.b16 %v459, %v458
      %v578 = vpack.c.b16 %v461, %v460
      %v579 = vpack.c.b16 %v463, %v462
      %v580 = vpack.c.b16 %v465, %v464
      %v581 = vpack.c.b16 %v467, %v466
      %v582 = vpack.c.b16 %v469, %v468
      %v583 = vpack.c.b16 %v471, %v470
      %v584 = vpack.c.b16 %v473, %v472
      %v585 = vpack.c.b16 %v475, %v474
      %v586 = vpack.c.b16 %v477, %v476
      %v587 = vpack.c.b16 %v479, %v478
      %v588 = vpack.c.b16 %v481, %v480
      %v589 = vpack.c.b16 %v483, %v482
      %v590 = vpack.c.b16 %v485, %v484
      %v591 = vpack.c.b16 %v487, %v486
      %v592 = vpack.c.b16 %v489, %v488
      %v593 = vpack.c.b16 %v491, %v490
      %v594 = vpack.c.b16 %v493, %v492
      %v595 = vpack.c.b16 %v495, %v494
      %v596 = vpack.c.b16 %v497, %v496
      %v597 = vpack.c.b16 %v499, %v498
      %v598 = vpack.c.b16 %v501, %v500
      %v599 = vpack.c.b16 %v503, %v502
      %v600 = vpack.c.b16 %v505, %v504
      %v601 = vpack.c.b16 %v507, %v506
      %v602 = vpack.c.b16 %v509, %v508
      %v603 = vpack.c.b16 %v511, %v510
      %v604 = vpack.c.b16 %v513, %v512
      %v605 = vpack.c.b16 %v515, %v514
      %v606 = vpack.c.b16 %v517, %v516
      %v607 = vpack.c.b16 %v519, %v518
      %v608 = vpack.c.b16 %v521, %v520
      %v609 = vpack.c.b16 %v523, %v522
      %v610 = vpack.c.b16 %v525, %v524
      %v611 = vpack.c.b16 %v527, %v526
      %v612 = vpack.c.b16 %v529, %v528
      %v613 = vpack.c.b16 %v531, %v530
      %v614 = vpack.c.b16 %v533, %v532
      %v615 = vpack.c.b16 %v535, %v534
      %v616 = vpack.c.b16 %v537, %v536
      %v617 = vpack.c.b16 %v539, %v538
      %v618 = vpack.c.b16 %v541, %v540
      %v619 = vpack.c.b16 %v543, %v542
      %v620 = vpack.c.b16 %v545, %v544
      %v621 = vpack.c.b16 %v547, %v546
      %v622 = vpack.c.b16 %v549, %v548
      %v623 = vpack.c.b16 %v551, %v550
      %v624 = vpack.c.b16 %v553, %v552
      %v625 = vpack.c.b16 %v555, %v554
      %v626 = vpack.c.b16 %v557, %v556
      %v627 = vpack.c.b16 %v559, %v558
      %v628 = vpack.c.b16 %v561, %v560
      %v629 = vpack.c.b16 %v563, %v562
      %v630 = vpack.c.b16 %v565, %v564
      %v631 = vpack.c.b16 %v567, %v566
      %v641 = vunpack.c.l.b16 %v303
      %v642 = vunpack.c.l.b16 %v304
      %v643 = vunpack.c.l.b16 %v305
      %v644 = vunpack.c.l.b16 %v306
      %v645 = vunpack.c.l.b16 %v307
      %v646 = vunpack.c.l.b16 %v308
      %v647 = vunpack.c.l.b16 %v309
      %v648 = vunpack.c.l.b16 %v310
      %v649 = vunpack.c.l.b16 %v311
      %v650 = vpack.c.b16 %v642, %v641
      %v651 = vpack.c.b16 %v644, %v643
      %v652 = vpack.c.b16 %v646, %v645
      %v653 = vpack.c.b16 %v648, %v647
      %v654 = vpack.c.b16 %v649, %v649
      %vm659 = vcmask 588800
      %v661 = vsel %vm659, %v568, 0
      %v664 = vsel %vm659, %v569, 0
      %v667 = vsel %vm659, %v570, 0
      %v670 = vsel %vm659, %v571, 0
      %v673 = vsel %vm659, %v572, 0
      %v676 = vsel %vm659, %v573, 0
      %v679 = vsel %vm659, %v574, 0
      %v682 = vsel %vm659, %v575, 0
      %v685 = vsel %vm659, %v576, 0
      %v688 = vsel %vm659, %v577, 0
      %v691 = vsel %vm659, %v578, 0
      %v694 = vsel %vm659, %v579, 0
      %v697 = vsel %vm659, %v580, 0
      %v700 = vsel %vm659, %v581, 0
      %v703 = vsel %vm659, %v582, 0
      %v706 = vsel %vm659, %v583, 0
      %v709 = vsel %vm659, %v584, 0
      %v712 = vsel %vm659, %v585, 0
      %v715 = vsel %vm659, %v586, 0
      %v718 = vsel %vm659, %v587, 0
      %v721 = vsel %vm659, %v588, 0
      %v724 = vsel %vm659, %v589, 0
      %v727 = vsel %vm659, %v590, 0
      %v730 = vsel %vm659, %v591, 0
      %v733 = vsel %vm659, %v592, 0
      %v736 = vsel %vm659, %v593, 0
      %v739 = vsel %vm659, %v594, 0
      %v742 = vsel %vm659, %v595, 0
      %v745 = vsel %vm659, %v596, 0
      %v748 = vsel %vm659, %v597, 0
      %v751 = vsel %vm659, %v598, 0
      %v754 = vsel %vm659, %v599, 0
      %v757 = vsel %vm659, %v600, 0
      %v760 = vsel %vm659, %v601, 0
      %v763 = vsel %vm659, %v602, 0
      %v766 = vsel %vm659, %v603, 0
      %v769 = vsel %vm659, %v604, 0
      %v772 = vsel %vm659, %v605, 0
      %v775 = vsel %vm659, %v606, 0
      %v778 = vsel %vm659, %v607, 0
      %v781 = vsel %vm659, %v608, 0
      %v784 = vsel %vm659, %v609, 0
      %v787 = vsel %vm659, %v610, 0
      %v790 = vsel %vm659, %v611, 0
      %v793 = vsel %vm659, %v612, 0
      %v796 = vsel %vm659, %v613, 0
      %v799 = vsel %vm659, %v614, 0
      %v802 = vsel %vm659, %v615, 0
      %v805 = vsel %vm659, %v616, 0
      %v808 = vsel %vm659, %v617, 0
      %v811 = vsel %vm659, %v618, 0
      %v814 = vsel %vm659, %v619, 0
      %v817 = vsel %vm659, %v620, 0
      %v820 = vsel %vm659, %v621, 0
      %v823 = vsel %vm659, %v622, 0
      %v826 = vsel %vm659, %v623, 0
      %v829 = vsel %vm659, %v624, 0
      %v832 = vsel %vm659, %v625, 0
      %v835 = vsel %vm659, %v626, 0
      %v838 = vsel %vm659, %v627, 0
      %v841 = vsel %vm659, %v628, 0
      %v844 = vsel %vm659, %v629, 0
      %v847 = vsel %vm659, %v630, 0
      %v850 = vsel %vm659, %v631, 0
      %vm852 = vcmask 1043456
      %v854 = vsel %vm852, %v654, 0
      %856 = vmatprep.subr.bf16.mxu0 0
      %857 = vmatpush1.bf16.msra.mxu0 %v650
      %858 = vmatprep.subr.bf16.mxu0 0
      %859 = vmatpush1.bf16.msra.mxu0 %v651
      %860 = vmatprep.subr.bf16.mxu0 0
      %861 = vmatpush1.bf16.msra.mxu0 %v652
      %862 = vmatprep.subr.bf16.mxu0 0
      %863 = vmatpush1.bf16.msra.mxu0 %v653
      %864 = vmatprep.subr.bf16.mxu0 0
      %865 = vmatpush1.bf16.msra.mxu0 %v854
      %866 = vmatprep.subr.bf16.mxu0 0
      %867 = vmatpush1.bf16.msra.mxu0 0
      %868 = vmatprep.subr.bf16.mxu0 0
      %869 = vmatpush1.bf16.msra.mxu0 0
      %870 = vmatprep.subr.bf16.mxu0 0
      %871 = vmatpush1.bf16.msra.mxu0 0
      %872 = vmatprep.subr.bf16.mxu0 0
      %873 = vmatpush1.bf16.msra.mxu0 0
      %874 = vmatprep.subr.bf16.mxu0 0
      %875 = vmatpush1.bf16.msra.mxu0 0
      %876 = vmatprep.subr.bf16.mxu0 0
      %877 = vmatpush1.bf16.msra.mxu0 0
      %878 = vmatprep.subr.bf16.mxu0 0
      %879 = vmatpush1.bf16.msra.mxu0 0
      %880 = vmatprep.subr.bf16.mxu0 0
      %881 = vmatpush1.bf16.msra.mxu0 0
      %882 = vmatprep.subr.bf16.mxu0 0
      %883 = vmatpush1.bf16.msra.mxu0 0
      %884 = vmatprep.subr.bf16.mxu0 0
      %885 = vmatpush1.bf16.msra.mxu0 0
      %886 = vmatprep.subr.bf16.mxu0 0
      %887 = vmatpush1.bf16.msra.mxu0 0
      %888 = vmatprep.mubr.bf16.mxu0 0
      %889 = vmatmul.mubr.bf16.gmra.mrb[0].mxu0 %v661
      %v890 = vpop.f32.mrb[0].mxu0
      %v891 = vadd.f32 0.0, %v890
      %v892 = vpop.f32.mrb[0].mxu0
      %v893 = vpop.f32.mrb[0].mxu0
      %v894 = vadd.f32 0.0, %v893
      %v895 = vpop.f32.mrb[0].mxu0
      %896 = vmatprep.mubr.bf16.mxu0 0
      %897 = vmatmul.mubr.bf16.gmra.mrb[0].mxu0 %v664
      %v898 = vpop.f32.mrb[0].mxu0
      %v899 = vadd.f32 0.0, %v898
      %v900 = vpop.f32.mrb[0].mxu0
      %v901 = vpop.f32.mrb[0].mxu0
      %v902 = vadd.f32 0.0, %v901
      %v903 = vpop.f32.mrb[0].mxu0
      %904 = vmatprep.mubr.bf16.mxu0 0
      %905 = vmatmul.mubr.bf16.gmra.mrb[0].mxu0 %v667
      %v906 = vpop.f32.mrb[0].mxu0
      %v907 = vadd.f32 0.0, %v906
      %v908 = vpop.f32.mrb[0].mxu0
      %v909 = vpop.f32.mrb[0].mxu0
      %v910 = vadd.f32 0.0, %v909
      %v911 = vpop.f32.mrb[0].mxu0
      %912 = vmatprep.mubr.bf16.mxu0 0
      %913 = vmatmul.mubr.bf16.gmra.mrb[0].mxu0 %v670
      %v914 = vpop.f32.mrb[0].mxu0
      %v915 = vadd.f32 0.0, %v914
      %v916 = vpop.f32.mrb[0].mxu0
      %v917 = vpop.f32.mrb[0].mxu0
      %v918 = vadd.f32 0.0, %v917
      %v919 = vpop.f32.mrb[0].mxu0
      %920 = vmatprep.mubr.bf16.mxu0 0
      %921 = vmatmul.mubr.bf16.gmra.mrb[0].mxu0 %v673
      %v922 = vpop.f32.mrb[0].mxu0
      %v923 = vadd.f32 0.0, %v922
      %v924 = vpop.f32.mrb[0].mxu0
      %v925 = vpop.f32.mrb[0].mxu0
      %v926 = vadd.f32 0.0, %v925
      %v927 = vpop.f32.mrb[0].mxu0
      %928 = vmatprep.mubr.bf16.mxu0 0
      %929 = vmatmul.mubr.bf16.gmra.mrb[0].mxu0 %v676
      %v930 = vpop.f32.mrb[0].mxu0
      %v931 = vadd.f32 0.0, %v930
      %v932 = vpop.f32.mrb[0].mxu0
      %v933 = vpop.f32.mrb[0].mxu0
      %v934 = vadd.f32 0.0, %v933
      %v935 = vpop.f32.mrb[0].mxu0
      %936 = vmatprep.mubr.bf16.mxu0 0
      %937 = vmatmul.mubr.bf16.gmra.mrb[0].mxu0 %v679
      %v938 = vpop.f32.mrb[0].mxu0
      %v939 = vadd.f32 0.0, %v938
      %v940 = vpop.f32.mrb[0].mxu0
      %v941 = vpop.f32.mrb[0].mxu0
      %v942 = vadd.f32 0.0, %v941
      %v943 = vpop.f32.mrb[0].mxu0
      %944 = vmatprep.mubr.bf16.mxu0 0
      %945 = vmatmul.mubr.bf16.gmra.mrb[0].mxu0 %v682
      %v946 = vpop.f32.mrb[0].mxu0
      %v947 = vadd.f32 0.0, %v946
      %v948 = vpop.f32.mrb[0].mxu0
      %v949 = vpop.f32.mrb[0].mxu0
      %v950 = vadd.f32 0.0, %v949
      %v951 = vpop.f32.mrb[0].mxu0
      %952 = vmatprep.mubr.bf16.mxu0 0
      %953 = vmatmul.mubr.bf16.gmra.mrb[0].mxu0 %v685
      %v954 = vpop.f32.mrb[0].mxu0
      %v955 = vadd.f32 0.0, %v954
      %v956 = vpop.f32.mrb[0].mxu0
      %v957 = vpop.f32.mrb[0].mxu0
      %v958 = vadd.f32 0.0, %v957
      %v959 = vpop.f32.mrb[0].mxu0
      %960 = vmatprep.mubr.bf16.mxu0 0
      %961 = vmatmul.mubr.bf16.gmra.mrb[0].mxu0 %v688
      %v962 = vpop.f32.mrb[0].mxu0
      %v963 = vadd.f32 0.0, %v962
      %v964 = vpop.f32.mrb[0].mxu0
      %v965 = vpop.f32.mrb[0].mxu0
      %v966 = vadd.f32 0.0, %v965
      %v967 = vpop.f32.mrb[0].mxu0
      %968 = vmatprep.mubr.bf16.mxu0 0
      %969 = vmatmul.mubr.bf16.gmra.mrb[0].mxu0 %v691
      %v970 = vpop.f32.mrb[0].mxu0
      %v971 = vadd.f32 0.0, %v970
      %v972 = vpop.f32.mrb[0].mxu0
      %v973 = vpop.f32.mrb[0].mxu0
      %v974 = vadd.f32 0.0, %v973
      %v975 = vpop.f32.mrb[0].mxu0
      %976 = vmatprep.mubr.bf16.mxu0 0
      %977 = vmatmul.mubr.bf16.gmra.mrb[0].mxu0 %v694
      %v978 = vpop.f32.mrb[0].mxu0
      %v979 = vadd.f32 0.0, %v978
      %v980 = vpop.f32.mrb[0].mxu0
      %v981 = vpop.f32.mrb[0].mxu0
      %v982 = vadd.f32 0.0, %v981
      %v983 = vpop.f32.mrb[0].mxu0
      %984 = vmatprep.mubr.bf16.mxu0 0
      %985 = vmatmul.mubr.bf16.gmra.mrb[0].mxu0 %v697
      %v986 = vpop.f32.mrb[0].mxu0
      %v987 = vadd.f32 0.0, %v986
      %v988 = vpop.f32.mrb[0].mxu0
      %v989 = vpop.f32.mrb[0].mxu0
      %v990 = vadd.f32 0.0, %v989
      %v991 = vpop.f32.mrb[0].mxu0
      %992 = vmatprep.mubr.bf16.mxu0 0
      %993 = vmatmul.mubr.bf16.gmra.mrb[0].mxu0 %v700
      %v994 = vpop.f32.mrb[0].mxu0
      %v995 = vadd.f32 0.0, %v994
      %v996 = vpop.f32.mrb[0].mxu0
      %v997 = vpop.f32.mrb[0].mxu0
      %v998 = vadd.f32 0.0, %v997
      %v999 = vpop.f32.mrb[0].mxu0
      %1000 = vmatprep.mubr.bf16.mxu0 0
      %1001 = vmatmul.mubr.bf16.gmra.mrb[0].mxu0 %v703
      %v1002 = vpop.f32.mrb[0].mxu0
      %v1003 = vadd.f32 0.0, %v1002
      %v1004 = vpop.f32.mrb[0].mxu0
      %v1005 = vpop.f32.mrb[0].mxu0
      %v1006 = vadd.f32 0.0, %v1005
      %v1007 = vpop.f32.mrb[0].mxu0
      %1008 = vmatprep.mubr.bf16.mxu0 0
      %1009 = vmatmul.mubr.bf16.gmra.mrb[0].mxu0 %v706
      %v1010 = vpop.f32.mrb[0].mxu0
      %v1011 = vadd.f32 0.0, %v1010
      %v1012 = vpop.f32.mrb[0].mxu0
      %v1013 = vpop.f32.mrb[0].mxu0
      %v1014 = vadd.f32 0.0, %v1013
      %v1015 = vpop.f32.mrb[0].mxu0
      %1016 = vmatprep.mubr.bf16.mxu0 0
      %1017 = vmatmul.mubr.bf16.gmra.mrb[0].mxu0 %v709
      %v1018 = vpop.f32.mrb[0].mxu0
      %v1019 = vadd.f32 0.0, %v1018
      %v1020 = vpop.f32.mrb[0].mxu0
      %v1021 = vpop.f32.mrb[0].mxu0
      %v1022 = vadd.f32 0.0, %v1021
      %v1023 = vpop.f32.mrb[0].mxu0
      %1024 = vmatprep.mubr.bf16.mxu0 0
      %1025 = vmatmul.mubr.bf16.gmra.mrb[0].mxu0 %v712
      %v1026 = vpop.f32.mrb[0].mxu0
      %v1027 = vadd.f32 0.0, %v1026
      %v1028 = vpop.f32.mrb[0].mxu0
      %v1029 = vpop.f32.mrb[0].mxu0
      %v1030 = vadd.f32 0.0, %v1029
      %v1031 = vpop.f32.mrb[0].mxu0
      %1032 = vmatprep.mubr.bf16.mxu0 0
      %1033 = vmatmul.mubr.bf16.gmra.mrb[0].mxu0 %v715
      %v1034 = vpop.f32.mrb[0].mxu0
      %v1035 = vadd.f32 0.0, %v1034
      %v1036 = vpop.f32.mrb[0].mxu0
      %v1037 = vpop.f32.mrb[0].mxu0
      %v1038 = vadd.f32 0.0, %v1037
      %v1039 = vpop.f32.mrb[0].mxu0
      %1040 = vmatprep.mubr.bf16.mxu0 0
      %1041 = vmatmul.mubr.bf16.gmra.mrb[0].mxu0 %v718
      %v1042 = vpop.f32.mrb[0].mxu0
      %v1043 = vadd.f32 0.0, %v1042
      %v1044 = vpop.f32.mrb[0].mxu0
      %v1045 = vpop.f32.mrb[0].mxu0
      %v1046 = vadd.f32 0.0, %v1045
      %v1047 = vpop.f32.mrb[0].mxu0
      %1048 = vmatprep.mubr.bf16.mxu0 0
      %1049 = vmatmul.mubr.bf16.gmra.mrb[0].mxu0 %v721
      %v1050 = vpop.f32.mrb[0].mxu0
      %v1051 = vadd.f32 0.0, %v1050
      %v1052 = vpop.f32.mrb[0].mxu0
      %v1053 = vpop.f32.mrb[0].mxu0
      %v1054 = vadd.f32 0.0, %v1053
      %v1055 = vpop.f32.mrb[0].mxu0
      %1056 = vmatprep.mubr.bf16.mxu0 0
      %1057 = vmatmul.mubr.bf16.gmra.mrb[0].mxu0 %v724
      %v1058 = vpop.f32.mrb[0].mxu0
      %v1059 = vadd.f32 0.0, %v1058
      %v1060 = vpop.f32.mrb[0].mxu0
      %v1061 = vpop.f32.mrb[0].mxu0
      %v1062 = vadd.f32 0.0, %v1061
      %v1063 = vpop.f32.mrb[0].mxu0
      %1064 = vmatprep.mubr.bf16.mxu0 0
      %1065 = vmatmul.mubr.bf16.gmra.mrb[0].mxu0 %v727
      %v1066 = vpop.f32.mrb[0].mxu0
      %v1067 = vadd.f32 0.0, %v1066
      %v1068 = vpop.f32.mrb[0].mxu0
      %v1069 = vpop.f32.mrb[0].mxu0
      %v1070 = vadd.f32 0.0, %v1069
      %v1071 = vpop.f32.mrb[0].mxu0
      %1072 = vmatprep.mubr.bf16.mxu0 0
      %1073 = vmatmul.mubr.bf16.gmra.mrb[0].mxu0 %v730
      %v1074 = vpop.f32.mrb[0].mxu0
      %v1075 = vadd.f32 0.0, %v1074
      %v1076 = vpop.f32.mrb[0].mxu0
      %v1077 = vpop.f32.mrb[0].mxu0
      %v1078 = vadd.f32 0.0, %v1077
      %v1079 = vpop.f32.mrb[0].mxu0
      %1080 = vmatprep.mubr.bf16.mxu0 0
      %1081 = vmatmul.mubr.bf16.gmra.mrb[0].mxu0 %v733
      %v1082 = vpop.f32.mrb[0].mxu0
      %v1083 = vadd.f32 0.0, %v1082
      %v1084 = vpop.f32.mrb[0].mxu0
      %v1085 = vpop.f32.mrb[0].mxu0
      %v1086 = vadd.f32 0.0, %v1085
      %v1087 = vpop.f32.mrb[0].mxu0
      %1088 = vmatprep.mubr.bf16.mxu0 0
      %1089 = vmatmul.mubr.bf16.gmra.mrb[0].mxu0 %v736
      %v1090 = vpop.f32.mrb[0].mxu0
      %v1091 = vadd.f32 0.0, %v1090
      %v1092 = vpop.f32.mrb[0].mxu0
      %v1093 = vpop.f32.mrb[0].mxu0
      %v1094 = vadd.f32 0.0, %v1093
      %v1095 = vpop.f32.mrb[0].mxu0
      %1096 = vmatprep.mubr.bf16.mxu0 0
      %1097 = vmatmul.mubr.bf16.gmra.mrb[0].mxu0 %v739
      %v1098 = vpop.f32.mrb[0].mxu0
      %v1099 = vadd.f32 0.0, %v1098
      %v1100 = vpop.f32.mrb[0].mxu0
      %v1101 = vpop.f32.mrb[0].mxu0
      %v1102 = vadd.f32 0.0, %v1101
      %v1103 = vpop.f32.mrb[0].mxu0
      %1104 = vmatprep.mubr.bf16.mxu0 0
      %1105 = vmatmul.mubr.bf16.gmra.mrb[0].mxu0 %v742
      %v1106 = vpop.f32.mrb[0].mxu0
      %v1107 = vadd.f32 0.0, %v1106
      %v1108 = vpop.f32.mrb[0].mxu0
      %v1109 = vpop.f32.mrb[0].mxu0
      %v1110 = vadd.f32 0.0, %v1109
      %v1111 = vpop.f32.mrb[0].mxu0
      %1112 = vmatprep.mubr.bf16.mxu0 0
      %1113 = vmatmul.mubr.bf16.gmra.mrb[0].mxu0 %v745
      %v1114 = vpop.f32.mrb[0].mxu0
      %v1115 = vadd.f32 0.0, %v1114
      %v1116 = vpop.f32.mrb[0].mxu0
      %v1117 = vpop.f32.mrb[0].mxu0
      %v1118 = vadd.f32 0.0, %v1117
      %v1119 = vpop.f32.mrb[0].mxu0
      %1120 = vmatprep.mubr.bf16.mxu0 0
      %1121 = vmatmul.mubr.bf16.gmra.mrb[0].mxu0 %v748
      %v1122 = vpop.f32.mrb[0].mxu0
      %v1123 = vadd.f32 0.0, %v1122
      %v1124 = vpop.f32.mrb[0].mxu0
      %v1125 = vpop.f32.mrb[0].mxu0
      %v1126 = vadd.f32 0.0, %v1125
      %v1127 = vpop.f32.mrb[0].mxu0
      %1128 = vmatprep.mubr.bf16.mxu0 0
      %1129 = vmatmul.mubr.bf16.gmra.mrb[0].mxu0 %v751
      %v1130 = vpop.f32.mrb[0].mxu0
      %v1131 = vadd.f32 0.0, %v1130
      %v1132 = vpop.f32.mrb[0].mxu0
      %v1133 = vpop.f32.mrb[0].mxu0
      %v1134 = vadd.f32 0.0, %v1133
      %v1135 = vpop.f32.mrb[0].mxu0
      %1136 = vmatprep.mubr.bf16.mxu0 0
      %1137 = vmatmul.mubr.bf16.gmra.mrb[0].mxu0 %v754
      %v1138 = vpop.f32.mrb[0].mxu0
      %v1139 = vadd.f32 0.0, %v1138
      %v1140 = vpop.f32.mrb[0].mxu0
      %v1141 = vpop.f32.mrb[0].mxu0
      %v1142 = vadd.f32 0.0, %v1141
      %v1143 = vpop.f32.mrb[0].mxu0
      %1144 = vmatprep.mubr.bf16.mxu0 0
      %1145 = vmatmul.mubr.bf16.gmra.mrb[0].mxu0 %v757
      %v1146 = vpop.f32.mrb[0].mxu0
      %v1147 = vadd.f32 0.0, %v1146
      %v1148 = vpop.f32.mrb[0].mxu0
      %v1149 = vpop.f32.mrb[0].mxu0
      %v1150 = vadd.f32 0.0, %v1149
      %v1151 = vpop.f32.mrb[0].mxu0
      %1152 = vmatprep.mubr.bf16.mxu0 0
      %1153 = vmatmul.mubr.bf16.gmra.mrb[0].mxu0 %v760
      %v1154 = vpop.f32.mrb[0].mxu0
      %v1155 = vadd.f32 0.0, %v1154
      %v1156 = vpop.f32.mrb[0].mxu0
      %v1157 = vpop.f32.mrb[0].mxu0
      %v1158 = vadd.f32 0.0, %v1157
      %v1159 = vpop.f32.mrb[0].mxu0
      %1160 = vmatprep.mubr.bf16.mxu0 0
      %1161 = vmatmul.mubr.bf16.gmra.mrb[0].mxu0 %v763
      %v1162 = vpop.f32.mrb[0].mxu0
      %v1163 = vadd.f32 0.0, %v1162
      %v1164 = vpop.f32.mrb[0].mxu0
      %v1165 = vpop.f32.mrb[0].mxu0
      %v1166 = vadd.f32 0.0, %v1165
      %v1167 = vpop.f32.mrb[0].mxu0
      %1168 = vmatprep.mubr.bf16.mxu0 0
      %1169 = vmatmul.mubr.bf16.gmra.mrb[0].mxu0 %v766
      %v1170 = vpop.f32.mrb[0].mxu0
      %v1171 = vadd.f32 0.0, %v1170
      %v1172 = vpop.f32.mrb[0].mxu0
      %v1173 = vpop.f32.mrb[0].mxu0
      %v1174 = vadd.f32 0.0, %v1173
      %v1175 = vpop.f32.mrb[0].mxu0
      %1176 = vmatprep.mubr.bf16.mxu0 0
      %1177 = vmatmul.mubr.bf16.gmra.mrb[0].mxu0 %v769
      %v1178 = vpop.f32.mrb[0].mxu0
      %v1179 = vadd.f32 0.0, %v1178
      %v1180 = vpop.f32.mrb[0].mxu0
      %v1181 = vpop.f32.mrb[0].mxu0
      %v1182 = vadd.f32 0.0, %v1181
      %v1183 = vpop.f32.mrb[0].mxu0
      %1184 = vmatprep.mubr.bf16.mxu0 0
      %1185 = vmatmul.mubr.bf16.gmra.mrb[0].mxu0 %v772
      %v1186 = vpop.f32.mrb[0].mxu0
      %v1187 = vadd.f32 0.0, %v1186
      %v1188 = vpop.f32.mrb[0].mxu0
      %v1189 = vpop.f32.mrb[0].mxu0
      %v1190 = vadd.f32 0.0, %v1189
      %v1191 = vpop.f32.mrb[0].mxu0
      %1192 = vmatprep.mubr.bf16.mxu0 0
      %1193 = vmatmul.mubr.bf16.gmra.mrb[0].mxu0 %v775
      %v1194 = vpop.f32.mrb[0].mxu0
      %v1195 = vadd.f32 0.0, %v1194
      %v1196 = vpop.f32.mrb[0].mxu0
      %v1197 = vpop.f32.mrb[0].mxu0
      %v1198 = vadd.f32 0.0, %v1197
      %v1199 = vpop.f32.mrb[0].mxu0
      %1200 = vmatprep.mubr.bf16.mxu0 0
      %1201 = vmatmul.mubr.bf16.gmra.mrb[0].mxu0 %v778
      %v1202 = vpop.f32.mrb[0].mxu0
      %v1203 = vadd.f32 0.0, %v1202
      %v1204 = vpop.f32.mrb[0].mxu0
      %v1205 = vpop.f32.mrb[0].mxu0
      %v1206 = vadd.f32 0.0, %v1205
      %v1207 = vpop.f32.mrb[0].mxu0
      %1208 = vmatprep.mubr.bf16.mxu0 0
      %1209 = vmatmul.mubr.bf16.gmra.mrb[0].mxu0 %v781
      %v1210 = vpop.f32.mrb[0].mxu0
      %v1211 = vadd.f32 0.0, %v1210
      %v1212 = vpop.f32.mrb[0].mxu0
      %v1213 = vpop.f32.mrb[0].mxu0
      %v1214 = vadd.f32 0.0, %v1213
      %v1215 = vpop.f32.mrb[0].mxu0
      %1216 = vmatprep.mubr.bf16.mxu0 0
      %1217 = vmatmul.mubr.bf16.gmra.mrb[0].mxu0 %v784
      %v1218 = vpop.f32.mrb[0].mxu0
      %v1219 = vadd.f32 0.0, %v1218
      %v1220 = vpop.f32.mrb[0].mxu0
      %v1221 = vpop.f32.mrb[0].mxu0
      %v1222 = vadd.f32 0.0, %v1221
      %v1223 = vpop.f32.mrb[0].mxu0
      %1224 = vmatprep.mubr.bf16.mxu0 0
      %1225 = vmatmul.mubr.bf16.gmra.mrb[0].mxu0 %v787
      %v1226 = vpop.f32.mrb[0].mxu0
      %v1227 = vadd.f32 0.0, %v1226
      %v1228 = vpop.f32.mrb[0].mxu0
      %v1229 = vpop.f32.mrb[0].mxu0
      %v1230 = vadd.f32 0.0, %v1229
      %v1231 = vpop.f32.mrb[0].mxu0
      %1232 = vmatprep.mubr.bf16.mxu0 0
      %1233 = vmatmul.mubr.bf16.gmra.mrb[0].mxu0 %v790
      %v1234 = vpop.f32.mrb[0].mxu0
      %v1235 = vadd.f32 0.0, %v1234
      %v1236 = vpop.f32.mrb[0].mxu0
      %v1237 = vpop.f32.mrb[0].mxu0
      %v1238 = vadd.f32 0.0, %v1237
      %v1239 = vpop.f32.mrb[0].mxu0
      %1240 = vmatprep.mubr.bf16.mxu0 0
      %1241 = vmatmul.mubr.bf16.gmra.mrb[0].mxu0 %v793
      %v1242 = vpop.f32.mrb[0].mxu0
      %v1243 = vadd.f32 0.0, %v1242
      %v1244 = vpop.f32.mrb[0].mxu0
      %v1245 = vpop.f32.mrb[0].mxu0
      %v1246 = vadd.f32 0.0, %v1245
      %v1247 = vpop.f32.mrb[0].mxu0
      %1248 = vmatprep.mubr.bf16.mxu0 0
      %1249 = vmatmul.mubr.bf16.gmra.mrb[0].mxu0 %v796
      %v1250 = vpop.f32.mrb[0].mxu0
      %v1251 = vadd.f32 0.0, %v1250
      %v1252 = vpop.f32.mrb[0].mxu0
      %v1253 = vpop.f32.mrb[0].mxu0
      %v1254 = vadd.f32 0.0, %v1253
      %v1255 = vpop.f32.mrb[0].mxu0
      %1256 = vmatprep.mubr.bf16.mxu0 0
      %1257 = vmatmul.mubr.bf16.gmra.mrb[0].mxu0 %v799
      %v1258 = vpop.f32.mrb[0].mxu0
      %v1259 = vadd.f32 0.0, %v1258
      %v1260 = vpop.f32.mrb[0].mxu0
      %v1261 = vpop.f32.mrb[0].mxu0
      %v1262 = vadd.f32 0.0, %v1261
      %v1263 = vpop.f32.mrb[0].mxu0
      %1264 = vmatprep.mubr.bf16.mxu0 0
      %1265 = vmatmul.mubr.bf16.gmra.mrb[0].mxu0 %v802
      %v1266 = vpop.f32.mrb[0].mxu0
      %v1267 = vadd.f32 0.0, %v1266
      %v1268 = vpop.f32.mrb[0].mxu0
      %v1269 = vpop.f32.mrb[0].mxu0
      %v1270 = vadd.f32 0.0, %v1269
      %v1271 = vpop.f32.mrb[0].mxu0
      %1272 = vmatprep.mubr.bf16.mxu0 0
      %1273 = vmatmul.mubr.bf16.gmra.mrb[0].mxu0 %v805
      %v1274 = vpop.f32.mrb[0].mxu0
      %v1275 = vadd.f32 0.0, %v1274
      %v1276 = vpop.f32.mrb[0].mxu0
      %v1277 = vpop.f32.mrb[0].mxu0
      %v1278 = vadd.f32 0.0, %v1277
      %v1279 = vpop.f32.mrb[0].mxu0
      %1280 = vmatprep.mubr.bf16.mxu0 0
      %1281 = vmatmul.mubr.bf16.gmra.mrb[0].mxu0 %v808
      %v1282 = vpop.f32.mrb[0].mxu0
      %v1283 = vadd.f32 0.0, %v1282
      %v1284 = vpop.f32.mrb[0].mxu0
      %v1285 = vpop.f32.mrb[0].mxu0
      %v1286 = vadd.f32 0.0, %v1285
      %v1287 = vpop.f32.mrb[0].mxu0
      %1288 = vmatprep.mubr.bf16.mxu0 0
      %1289 = vmatmul.mubr.bf16.gmra.mrb[0].mxu0 %v811
      %v1290 = vpop.f32.mrb[0].mxu0
      %v1291 = vadd.f32 0.0, %v1290
      %v1292 = vpop.f32.mrb[0].mxu0
      %v1293 = vpop.f32.mrb[0].mxu0
      %v1294 = vadd.f32 0.0, %v1293
      %v1295 = vpop.f32.mrb[0].mxu0
      %1296 = vmatprep.mubr.bf16.mxu0 0
      %1297 = vmatmul.mubr.bf16.gmra.mrb[0].mxu0 %v814
      %v1298 = vpop.f32.mrb[0].mxu0
      %v1299 = vadd.f32 0.0, %v1298
      %v1300 = vpop.f32.mrb[0].mxu0
      %v1301 = vpop.f32.mrb[0].mxu0
      %v1302 = vadd.f32 0.0, %v1301
      %v1303 = vpop.f32.mrb[0].mxu0
      %1304 = vmatprep.mubr.bf16.mxu0 0
      %1305 = vmatmul.mubr.bf16.gmra.mrb[0].mxu0 %v817
      %v1306 = vpop.f32.mrb[0].mxu0
      %v1307 = vadd.f32 0.0, %v1306
      %v1308 = vpop.f32.mrb[0].mxu0
      %v1309 = vpop.f32.mrb[0].mxu0
      %v1310 = vadd.f32 0.0, %v1309
      %v1311 = vpop.f32.mrb[0].mxu0
      %1312 = vmatprep.mubr.bf16.mxu0 0
      %1313 = vmatmul.mubr.bf16.gmra.mrb[0].mxu0 %v820
      %v1314 = vpop.f32.mrb[0].mxu0
      %v1315 = vadd.f32 0.0, %v1314
      %v1316 = vpop.f32.mrb[0].mxu0
      %v1317 = vpop.f32.mrb[0].mxu0
      %v1318 = vadd.f32 0.0, %v1317
      %v1319 = vpop.f32.mrb[0].mxu0
      %1320 = vmatprep.mubr.bf16.mxu0 0
      %1321 = vmatmul.mubr.bf16.gmra.mrb[0].mxu0 %v823
      %v1322 = vpop.f32.mrb[0].mxu0
      %v1323 = vadd.f32 0.0, %v1322
      %v1324 = vpop.f32.mrb[0].mxu0
      %v1325 = vpop.f32.mrb[0].mxu0
      %v1326 = vadd.f32 0.0, %v1325
      %v1327 = vpop.f32.mrb[0].mxu0
      %1328 = vmatprep.mubr.bf16.mxu0 0
      %1329 = vmatmul.mubr.bf16.gmra.mrb[0].mxu0 %v826
      %v1330 = vpop.f32.mrb[0].mxu0
      %v1331 = vadd.f32 0.0, %v1330
      %v1332 = vpop.f32.mrb[0].mxu0
      %v1333 = vpop.f32.mrb[0].mxu0
      %v1334 = vadd.f32 0.0, %v1333
      %v1335 = vpop.f32.mrb[0].mxu0
      %1336 = vmatprep.mubr.bf16.mxu0 0
      %1337 = vmatmul.mubr.bf16.gmra.mrb[0].mxu0 %v829
      %v1338 = vpop.f32.mrb[0].mxu0
      %v1339 = vadd.f32 0.0, %v1338
      %v1340 = vpop.f32.mrb[0].mxu0
      %v1341 = vpop.f32.mrb[0].mxu0
      %v1342 = vadd.f32 0.0, %v1341
      %v1343 = vpop.f32.mrb[0].mxu0
      %1344 = vmatprep.mubr.bf16.mxu0 0
      %1345 = vmatmul.mubr.bf16.gmra.mrb[0].mxu0 %v832
      %v1346 = vpop.f32.mrb[0].mxu0
      %v1347 = vadd.f32 0.0, %v1346
      %v1348 = vpop.f32.mrb[0].mxu0
      %v1349 = vpop.f32.mrb[0].mxu0
      %v1350 = vadd.f32 0.0, %v1349
      %v1351 = vpop.f32.mrb[0].mxu0
      %1352 = vmatprep.mubr.bf16.mxu0 0
      %1353 = vmatmul.mubr.bf16.gmra.mrb[0].mxu0 %v835
      %v1354 = vpop.f32.mrb[0].mxu0
      %v1355 = vadd.f32 0.0, %v1354
      %v1356 = vpop.f32.mrb[0].mxu0
      %v1357 = vpop.f32.mrb[0].mxu0
      %v1358 = vadd.f32 0.0, %v1357
      %v1359 = vpop.f32.mrb[0].mxu0
      %1360 = vmatprep.mubr.bf16.mxu0 0
      %1361 = vmatmul.mubr.bf16.gmra.mrb[0].mxu0 %v838
      %v1362 = vpop.f32.mrb[0].mxu0
      %v1363 = vadd.f32 0.0, %v1362
      %v1364 = vpop.f32.mrb[0].mxu0
      %v1365 = vpop.f32.mrb[0].mxu0
      %v1366 = vadd.f32 0.0, %v1365
      %v1367 = vpop.f32.mrb[0].mxu0
      %1368 = vmatprep.mubr.bf16.mxu0 0
      %1369 = vmatmul.mubr.bf16.gmra.mrb[0].mxu0 %v841
      %v1370 = vpop.f32.mrb[0].mxu0
      %v1371 = vadd.f32 0.0, %v1370
      %v1372 = vpop.f32.mrb[0].mxu0
      %v1373 = vpop.f32.mrb[0].mxu0
      %v1374 = vadd.f32 0.0, %v1373
      %v1375 = vpop.f32.mrb[0].mxu0
      %1376 = vmatprep.mubr.bf16.mxu0 0
      %1377 = vmatmul.mubr.bf16.gmra.mrb[0].mxu0 %v844
      %v1378 = vpop.f32.mrb[0].mxu0
      %v1379 = vadd.f32 0.0, %v1378
      %v1380 = vpop.f32.mrb[0].mxu0
      %v1381 = vpop.f32.mrb[0].mxu0
      %v1382 = vadd.f32 0.0, %v1381
      %v1383 = vpop.f32.mrb[0].mxu0
      %1384 = vmatprep.mubr.bf16.mxu0 0
      %1385 = vmatmul.mubr.bf16.gmra.mrb[0].mxu0 %v847
      %v1386 = vpop.f32.mrb[0].mxu0
      %v1387 = vadd.f32 0.0, %v1386
      %v1388 = vpop.f32.mrb[0].mxu0
      %v1389 = vpop.f32.mrb[0].mxu0
      %v1390 = vadd.f32 0.0, %v1389
      %v1391 = vpop.f32.mrb[0].mxu0
      %1392 = vmatprep.mubr.bf16.mxu0 0
      %1393 = vmatmul.mubr.bf16.gmra.mrb[0].mxu0 %v850
      %v1394 = vpop.f32.mrb[0].mxu0
      %v1395 = vadd.f32 0.0, %v1394
      %v1396 = vpop.f32.mrb[0].mxu0
      %v1397 = vpop.f32.mrb[0].mxu0
      %v1398 = vadd.f32 0.0, %v1397
      %v1399 = vpop.f32.mrb[0].mxu0
      %1400 = vdwg.mxu0
      %v1401 = vld [vmem:[%s2] sm:$0x1]
      %v1402 = vlaneseq
      %v1403 = vshrl.u32 %v1402, 7
      %v1404 = vsub.s32 0, %v1403
      %v1405 = vrot.slane %v1401, %v1404
      %v1406 = vmul.f32 %v891, %v1405
      %v1407 = vmul.f32 %v894, %v1405
      %v1408 = vmul.f32 %v899, %v1405
      %v1409 = vmul.f32 %v902, %v1405
      %v1410 = vmul.f32 %v907, %v1405
      %v1411 = vmul.f32 %v910, %v1405
      %v1412 = vmul.f32 %v915, %v1405
      %v1413 = vmul.f32 %v918, %v1405
      %v1414 = vmul.f32 %v923, %v1405
      %v1415 = vmul.f32 %v926, %v1405
      %v1416 = vmul.f32 %v931, %v1405
      %v1417 = vmul.f32 %v934, %v1405
      %v1418 = vmul.f32 %v939, %v1405
      %v1419 = vmul.f32 %v942, %v1405
      %v1420 = vmul.f32 %v947, %v1405
      %v1421 = vmul.f32 %v950, %v1405
      %v1422 = vmul.f32 %v955, %v1405
      %v1423 = vmul.f32 %v958, %v1405
      %v1424 = vmul.f32 %v963, %v1405
      %v1425 = vmul.f32 %v966, %v1405
      %v1426 = vmul.f32 %v971, %v1405
      %v1427 = vmul.f32 %v974, %v1405
      %v1428 = vmul.f32 %v979, %v1405
      %v1429 = vmul.f32 %v982, %v1405
      %v1430 = vmul.f32 %v987, %v1405
      %v1431 = vmul.f32 %v990, %v1405
      %v1432 = vmul.f32 %v995, %v1405
      %v1433 = vmul.f32 %v998, %v1405
      %v1434 = vmul.f32 %v1003, %v1405
      %v1435 = vmul.f32 %v1006, %v1405
      %v1436 = vmul.f32 %v1011, %v1405
      %v1437 = vmul.f32 %v1014, %v1405
      %v1438 = vmul.f32 %v1019, %v1405
      %v1439 = vmul.f32 %v1022, %v1405
      %v1440 = vmul.f32 %v1027, %v1405
      %v1441 = vmul.f32 %v1030, %v1405
      %v1442 = vmul.f32 %v1035, %v1405
      %v1443 = vmul.f32 %v1038, %v1405
      %v1444 = vmul.f32 %v1043, %v1405
      %v1445 = vmul.f32 %v1046, %v1405
      %v1446 = vmul.f32 %v1051, %v1405
      %v1447 = vmul.f32 %v1054, %v1405
      %v1448 = vmul.f32 %v1059, %v1405
      %v1449 = vmul.f32 %v1062, %v1405
      %v1450 = vmul.f32 %v1067, %v1405
      %v1451 = vmul.f32 %v1070, %v1405
      %v1452 = vmul.f32 %v1075, %v1405
      %v1453 = vmul.f32 %v1078, %v1405
      %v1454 = vmul.f32 %v1083, %v1405
      %v1455 = vmul.f32 %v1086, %v1405
      %v1456 = vmul.f32 %v1091, %v1405
      %v1457 = vmul.f32 %v1094, %v1405
      %v1458 = vmul.f32 %v1099, %v1405
      %v1459 = vmul.f32 %v1102, %v1405
      %v1460 = vmul.f32 %v1107, %v1405
      %v1461 = vmul.f32 %v1110, %v1405
      %v1462 = vmul.f32 %v1115, %v1405
      %v1463 = vmul.f32 %v1118, %v1405
      %v1464 = vmul.f32 %v1123, %v1405
      %v1465 = vmul.f32 %v1126, %v1405
      %v1466 = vmul.f32 %v1131, %v1405
      %v1467 = vmul.f32 %v1134, %v1405
      %v1468 = vmul.f32 %v1139, %v1405
      %v1469 = vmul.f32 %v1142, %v1405
      %v1470 = vmul.f32 %v1147, %v1405
      %v1471 = vmul.f32 %v1150, %v1405
      %v1472 = vmul.f32 %v1155, %v1405
      %v1473 = vmul.f32 %v1158, %v1405
      %v1474 = vmul.f32 %v1163, %v1405
      %v1475 = vmul.f32 %v1166, %v1405
      %v1476 = vmul.f32 %v1171, %v1405
      %v1477 = vmul.f32 %v1174, %v1405
      %v1478 = vmul.f32 %v1179, %v1405
      %v1479 = vmul.f32 %v1182, %v1405
      %v1480 = vmul.f32 %v1187, %v1405
      %v1481 = vmul.f32 %v1190, %v1405
      %v1482 = vmul.f32 %v1195, %v1405
      %v1483 = vmul.f32 %v1198, %v1405
      %v1484 = vmul.f32 %v1203, %v1405
      %v1485 = vmul.f32 %v1206, %v1405
      %v1486 = vmul.f32 %v1211, %v1405
      %v1487 = vmul.f32 %v1214, %v1405
      %v1488 = vmul.f32 %v1219, %v1405
      %v1489 = vmul.f32 %v1222, %v1405
      %v1490 = vmul.f32 %v1227, %v1405
      %v1491 = vmul.f32 %v1230, %v1405
      %v1492 = vmul.f32 %v1235, %v1405
      %v1493 = vmul.f32 %v1238, %v1405
      %v1494 = vmul.f32 %v1243, %v1405
      %v1495 = vmul.f32 %v1246, %v1405
      %v1496 = vmul.f32 %v1251, %v1405
      %v1497 = vmul.f32 %v1254, %v1405
      %v1498 = vmul.f32 %v1259, %v1405
      %v1499 = vmul.f32 %v1262, %v1405
      %v1500 = vmul.f32 %v1267, %v1405
      %v1501 = vmul.f32 %v1270, %v1405
      %v1502 = vmul.f32 %v1275, %v1405
      %v1503 = vmul.f32 %v1278, %v1405
      %v1504 = vmul.f32 %v1283, %v1405
      %v1505 = vmul.f32 %v1286, %v1405
      %v1506 = vmul.f32 %v1291, %v1405
      %v1507 = vmul.f32 %v1294, %v1405
      %v1508 = vmul.f32 %v1299, %v1405
      %v1509 = vmul.f32 %v1302, %v1405
      %v1510 = vmul.f32 %v1307, %v1405
      %v1511 = vmul.f32 %v1310, %v1405
      %v1512 = vmul.f32 %v1315, %v1405
      %v1513 = vmul.f32 %v1318, %v1405
      %v1514 = vmul.f32 %v1323, %v1405
      %v1515 = vmul.f32 %v1326, %v1405
      %v1516 = vmul.f32 %v1331, %v1405
      %v1517 = vmul.f32 %v1334, %v1405
      %v1518 = vmul.f32 %v1339, %v1405
      %v1519 = vmul.f32 %v1342, %v1405
      %v1520 = vmul.f32 %v1347, %v1405
      %v1521 = vmul.f32 %v1350, %v1405
      %v1522 = vmul.f32 %v1355, %v1405
      %v1523 = vmul.f32 %v1358, %v1405
      %v1524 = vmul.f32 %v1363, %v1405
      %v1525 = vmul.f32 %v1366, %v1405
      %v1526 = vmul.f32 %v1371, %v1405
      %v1527 = vmul.f32 %v1374, %v1405
      %v1528 = vmul.f32 %v1379, %v1405
      %v1529 = vmul.f32 %v1382, %v1405
      %v1530 = vmul.f32 %v1387, %v1405
      %v1531 = vmul.f32 %v1390, %v1405
      %v1532 = vmul.f32 %v1395, %v1405
      %v1533 = vmul.f32 %v1398, %v1405
      %v1534 = vld [vmem:[%s2 + $0x1] sm:$0x1]
      %v1535 = vlaneseq
      %v1536 = vshrl.u32 %v1535, 7
      %v1537 = vsub.s32 0, %v1536
      %v1538 = vrot.slane %v1534, %v1537
      %v1539 = vadd.f32 %v1406, %v1538
      %v1540 = vadd.f32 %v1407, %v1538
      %v1541 = vadd.f32 %v1408, %v1538
      %v1542 = vadd.f32 %v1409, %v1538
      %v1543 = vadd.f32 %v1410, %v1538
      %v1544 = vadd.f32 %v1411, %v1538
      %v1545 = vadd.f32 %v1412, %v1538
      %v1546 = vadd.f32 %v1413, %v1538
      %v1547 = vadd.f32 %v1414, %v1538
      %v1548 = vadd.f32 %v1415, %v1538
      %v1549 = vadd.f32 %v1416, %v1538
      %v1550 = vadd.f32 %v1417, %v1538
      %v1551 = vadd.f32 %v1418, %v1538
      %v1552 = vadd.f32 %v1419, %v1538
      %v1553 = vadd.f32 %v1420, %v1538
      %v1554 = vadd.f32 %v1421, %v1538
      %v1555 = vadd.f32 %v1422, %v1538
      %v1556 = vadd.f32 %v1423, %v1538
      %v1557 = vadd.f32 %v1424, %v1538
      %v1558 = vadd.f32 %v1425, %v1538
      %v1559 = vadd.f32 %v1426, %v1538
      %v1560 = vadd.f32 %v1427, %v1538
      %v1561 = vadd.f32 %v1428, %v1538
      %v1562 = vadd.f32 %v1429, %v1538
      %v1563 = vadd.f32 %v1430, %v1538
      %v1564 = vadd.f32 %v1431, %v1538
      %v1565 = vadd.f32 %v1432, %v1538
      %v1566 = vadd.f32 %v1433, %v1538
      %v1567 = vadd.f32 %v1434, %v1538
      %v1568 = vadd.f32 %v1435, %v1538
      %v1569 = vadd.f32 %v1436, %v1538
      %v1570 = vadd.f32 %v1437, %v1538
      %v1571 = vadd.f32 %v1438, %v1538
      %v1572 = vadd.f32 %v1439, %v1538
      %v1573 = vadd.f32 %v1440, %v1538
      %v1574 = vadd.f32 %v1441, %v1538
      %v1575 = vadd.f32 %v1442, %v1538
      %v1576 = vadd.f32 %v1443, %v1538
      %v1577 = vadd.f32 %v1444, %v1538
      %v1578 = vadd.f32 %v1445, %v1538
      %v1579 = vadd.f32 %v1446, %v1538
      %v1580 = vadd.f32 %v1447, %v1538
      %v1581 = vadd.f32 %v1448, %v1538
      %v1582 = vadd.f32 %v1449, %v1538
      %v1583 = vadd.f32 %v1450, %v1538
      %v1584 = vadd.f32 %v1451, %v1538
      %v1585 = vadd.f32 %v1452, %v1538
      %v1586 = vadd.f32 %v1453, %v1538
      %v1587 = vadd.f32 %v1454, %v1538
      %v1588 = vadd.f32 %v1455, %v1538
      %v1589 = vadd.f32 %v1456, %v1538
      %v1590 = vadd.f32 %v1457, %v1538
      %v1591 = vadd.f32 %v1458, %v1538
      %v1592 = vadd.f32 %v1459, %v1538
      %v1593 = vadd.f32 %v1460, %v1538
      %v1594 = vadd.f32 %v1461, %v1538
      %v1595 = vadd.f32 %v1462, %v1538
      %v1596 = vadd.f32 %v1463, %v1538
      %v1597 = vadd.f32 %v1464, %v1538
      %v1598 = vadd.f32 %v1465, %v1538
      %v1599 = vadd.f32 %v1466, %v1538
      %v1600 = vadd.f32 %v1467, %v1538
      %v1601 = vadd.f32 %v1468, %v1538
      %v1602 = vadd.f32 %v1469, %v1538
      %v1603 = vadd.f32 %v1470, %v1538
      %v1604 = vadd.f32 %v1471, %v1538
      %v1605 = vadd.f32 %v1472, %v1538
      %v1606 = vadd.f32 %v1473, %v1538
      %v1607 = vadd.f32 %v1474, %v1538
      %v1608 = vadd.f32 %v1475, %v1538
      %v1609 = vadd.f32 %v1476, %v1538
      %v1610 = vadd.f32 %v1477, %v1538
      %v1611 = vadd.f32 %v1478, %v1538
      %v1612 = vadd.f32 %v1479, %v1538
      %v1613 = vadd.f32 %v1480, %v1538
      %v1614 = vadd.f32 %v1481, %v1538
      %v1615 = vadd.f32 %v1482, %v1538
      %v1616 = vadd.f32 %v1483, %v1538
      %v1617 = vadd.f32 %v1484, %v1538
      %v1618 = vadd.f32 %v1485, %v1538
      %v1619 = vadd.f32 %v1486, %v1538
      %v1620 = vadd.f32 %v1487, %v1538
      %v1621 = vadd.f32 %v1488, %v1538
      %v1622 = vadd.f32 %v1489, %v1538
      %v1623 = vadd.f32 %v1490, %v1538
      %v1624 = vadd.f32 %v1491, %v1538
      %v1625 = vadd.f32 %v1492, %v1538
      %v1626 = vadd.f32 %v1493, %v1538
      %v1627 = vadd.f32 %v1494, %v1538
      %v1628 = vadd.f32 %v1495, %v1538
      %v1629 = vadd.f32 %v1496, %v1538
      %v1630 = vadd.f32 %v1497, %v1538
      %v1631 = vadd.f32 %v1498, %v1538
      %v1632 = vadd.f32 %v1499, %v1538
      %v1633 = vadd.f32 %v1500, %v1538
      %v1634 = vadd.f32 %v1501, %v1538
      %v1635 = vadd.f32 %v1502, %v1538
      %v1636 = vadd.f32 %v1503, %v1538
      %v1637 = vadd.f32 %v1504, %v1538
      %v1638 = vadd.f32 %v1505, %v1538
      %v1639 = vadd.f32 %v1506, %v1538
      %v1640 = vadd.f32 %v1507, %v1538
      %v1641 = vadd.f32 %v1508, %v1538
      %v1642 = vadd.f32 %v1509, %v1538
      %v1643 = vadd.f32 %v1510, %v1538
      %v1644 = vadd.f32 %v1511, %v1538
      %v1645 = vadd.f32 %v1512, %v1538
      %v1646 = vadd.f32 %v1513, %v1538
      %v1647 = vadd.f32 %v1514, %v1538
      %v1648 = vadd.f32 %v1515, %v1538
      %v1649 = vadd.f32 %v1516, %v1538
      %v1650 = vadd.f32 %v1517, %v1538
      %v1651 = vadd.f32 %v1518, %v1538
      %v1652 = vadd.f32 %v1519, %v1538
      %v1653 = vadd.f32 %v1520, %v1538
      %v1654 = vadd.f32 %v1521, %v1538
      %v1655 = vadd.f32 %v1522, %v1538
      %v1656 = vadd.f32 %v1523, %v1538
      %v1657 = vadd.f32 %v1524, %v1538
      %v1658 = vadd.f32 %v1525, %v1538
      %v1659 = vadd.f32 %v1526, %v1538
      %v1660 = vadd.f32 %v1527, %v1538
      %v1661 = vadd.f32 %v1528, %v1538
      %v1662 = vadd.f32 %v1529, %v1538
      %v1663 = vadd.f32 %v1530, %v1538
      %v1664 = vadd.f32 %v1531, %v1538
      %v1665 = vadd.f32 %v1532, %v1538
      %v1666 = vadd.f32 %v1533, %v1538
      %v1667 = vtanh.pop %v1539
      %v1668 = vtanh.pop %v1540
      %v1669 = vtanh.pop %v1541
      %v1670 = vtanh.pop %v1542
      %v1671 = vtanh.pop %v1543
      %v1672 = vtanh.pop %v1544
      %v1673 = vtanh.pop %v1545
      %v1674 = vtanh.pop %v1546
      %v1675 = vtanh.pop %v1547
      %v1676 = vtanh.pop %v1548
      %v1677 = vtanh.pop %v1549
      %v1678 = vtanh.pop %v1550
      %v1679 = vtanh.pop %v1551
      %v1680 = vtanh.pop %v1552
      %v1681 = vtanh.pop %v1553
      %v1682 = vtanh.pop %v1554
      %v1683 = vtanh.pop %v1555
      %v1684 = vtanh.pop %v1556
      %v1685 = vtanh.pop %v1557
      %v1686 = vtanh.pop %v1558
      %v1687 = vtanh.pop %v1559
      %v1688 = vtanh.pop %v1560
      %v1689 = vtanh.pop %v1561
      %v1690 = vtanh.pop %v1562
      %v1691 = vtanh.pop %v1563
      %v1692 = vtanh.pop %v1564
      %v1693 = vtanh.pop %v1565
      %v1694 = vtanh.pop %v1566
      %v1695 = vtanh.pop %v1567
      %v1696 = vtanh.pop %v1568
      %v1697 = vtanh.pop %v1569
      %v1698 = vtanh.pop %v1570
      %v1699 = vtanh.pop %v1571
      %v1700 = vtanh.pop %v1572
      %v1701 = vtanh.pop %v1573
      %v1702 = vtanh.pop %v1574
      %v1703 = vtanh.pop %v1575
      %v1704 = vtanh.pop %v1576
      %v1705 = vtanh.pop %v1577
      %v1706 = vtanh.pop %v1578
      %v1707 = vtanh.pop %v1579
      %v1708 = vtanh.pop %v1580
      %v1709 = vtanh.pop %v1581
      %v1710 = vtanh.pop %v1582
      %v1711 = vtanh.pop %v1583
      %v1712 = vtanh.pop %v1584
      %v1713 = vtanh.pop %v1585
      %v1714 = vtanh.pop %v1586
      %v1715 = vtanh.pop %v1587
      %v1716 = vtanh.pop %v1588
      %v1717 = vtanh.pop %v1589
      %v1718 = vtanh.pop %v1590
      %v1719 = vtanh.pop %v1591
      %v1720 = vtanh.pop %v1592
      %v1721 = vtanh.pop %v1593
      %v1722 = vtanh.pop %v1594
      %v1723 = vtanh.pop %v1595
      %v1724 = vtanh.pop %v1596
      %v1725 = vtanh.pop %v1597
      %v1726 = vtanh.pop %v1598
      %v1727 = vtanh.pop %v1599
      %v1728 = vtanh.pop %v1600
      %v1729 = vtanh.pop %v1601
      %v1730 = vtanh.pop %v1602
      %v1731 = vtanh.pop %v1603
      %v1732 = vtanh.pop %v1604
      %v1733 = vtanh.pop %v1605
      %v1734 = vtanh.pop %v1606
      %v1735 = vtanh.pop %v1607
      %v1736 = vtanh.pop %v1608
      %v1737 = vtanh.pop %v1609
      %v1738 = vtanh.pop %v1610
      %v1739 = vtanh.pop %v1611
      %v1740 = vtanh.pop %v1612
      %v1741 = vtanh.pop %v1613
      %v1742 = vtanh.pop %v1614
      %v1743 = vtanh.pop %v1615
      %v1744 = vtanh.pop %v1616
      %v1745 = vtanh.pop %v1617
      %v1746 = vtanh.pop %v1618
      %v1747 = vtanh.pop %v1619
      %v1748 = vtanh.pop %v1620
      %v1749 = vtanh.pop %v1621
      %v1750 = vtanh.pop %v1622
      %v1751 = vtanh.pop %v1623
      %v1752 = vtanh.pop %v1624
      %v1753 = vtanh.pop %v1625
      %v1754 = vtanh.pop %v1626
      %v1755 = vtanh.pop %v1627
      %v1756 = vtanh.pop %v1628
      %v1757 = vtanh.pop %v1629
      %v1758 = vtanh.pop %v1630
      %v1759 = vtanh.pop %v1631
      %v1760 = vtanh.pop %v1632
      %v1761 = vtanh.pop %v1633
      %v1762 = vtanh.pop %v1634
      %v1763 = vtanh.pop %v1635
      %v1764 = vtanh.pop %v1636
      %v1765 = vtanh.pop %v1637
      %v1766 = vtanh.pop %v1638
      %v1767 = vtanh.pop %v1639
      %v1768 = vtanh.pop %v1640
      %v1769 = vtanh.pop %v1641
      %v1770 = vtanh.pop %v1642
      %v1771 = vtanh.pop %v1643
      %v1772 = vtanh.pop %v1644
      %v1773 = vtanh.pop %v1645
      %v1774 = vtanh.pop %v1646
      %v1775 = vtanh.pop %v1647
      %v1776 = vtanh.pop %v1648
      %v1777 = vtanh.pop %v1649
      %v1778 = vtanh.pop %v1650
      %v1779 = vtanh.pop %v1651
      %v1780 = vtanh.pop %v1652
      %v1781 = vtanh.pop %v1653
      %v1782 = vtanh.pop %v1654
      %v1783 = vtanh.pop %v1655
      %v1784 = vtanh.pop %v1656
      %v1785 = vtanh.pop %v1657
      %v1786 = vtanh.pop %v1658
      %v1787 = vtanh.pop %v1659
      %v1788 = vtanh.pop %v1660
      %v1789 = vtanh.pop %v1661
      %v1790 = vtanh.pop %v1662
      %v1791 = vtanh.pop %v1663
      %v1792 = vtanh.pop %v1664
      %v1793 = vtanh.pop %v1665
      %v1794 = vtanh.pop %v1666
      %vm1795 = vcmask 31744
      %1796 = vst.msk [vmem:[%s172] sm:$0xff] %vm1795, %v1667
      %1797 = vst.msk [vmem:[%s172 + $0x8] sm:$0xff] %vm1795, %v1668
      %1798 = vst.msk [vmem:[%s172 + $0x10] sm:$0xff] %vm1795, %v1669
      %1799 = vst.msk [vmem:[%s172 + $0x18] sm:$0xff] %vm1795, %v1670
      %1800 = vst.msk [vmem:[%s172 + $0x20] sm:$0xff] %vm1795, %v1671
      %1801 = vst.msk [vmem:[%s172 + $0x28] sm:$0xff] %vm1795, %v1672
      %1802 = vst.msk [vmem:[%s172 + $0x30] sm:$0xff] %vm1795, %v1673
      %1803 = vst.msk [vmem:[%s172 + $0x38] sm:$0xff] %vm1795, %v1674
      %1804 = vst.msk [vmem:[%s172 + $0x40] sm:$0xff] %vm1795, %v1675
      %1805 = vst.msk [vmem:[%s172 + $0x48] sm:$0xff] %vm1795, %v1676
      %1806 = vst.msk [vmem:[%s172 + $0x50] sm:$0xff] %vm1795, %v1677
      %1807 = vst.msk [vmem:[%s172 + $0x58] sm:$0xff] %vm1795, %v1678
      %1808 = vst.msk [vmem:[%s172 + $0x60] sm:$0xff] %vm1795, %v1679
      %1809 = vst.msk [vmem:[%s172 + $0x68] sm:$0xff] %vm1795, %v1680
      %1810 = vst.msk [vmem:[%s172 + $0x70] sm:$0xff] %vm1795, %v1681
      %1811 = vst.msk [vmem:[%s172 + $0x78] sm:$0xff] %vm1795, %v1682
      %1812 = vst.msk [vmem:[%s172 + $0x80] sm:$0xff] %vm1795, %v1683
      %1813 = vst.msk [vmem:[%s172 + $0x88] sm:$0xff] %vm1795, %v1684
      %1814 = vst.msk [vmem:[%s172 + $0x90] sm:$0xff] %vm1795, %v1685
      %1815 = vst.msk [vmem:[%s172 + $0x98] sm:$0xff] %vm1795, %v1686
      %1816 = vst.msk [vmem:[%s172 + $0xa0] sm:$0xff] %vm1795, %v1687
      %1817 = vst.msk [vmem:[%s172 + $0xa8] sm:$0xff] %vm1795, %v1688
      %1818 = vst.msk [vmem:[%s172 + $0xb0] sm:$0xff] %vm1795, %v1689
      %1819 = vst.msk [vmem:[%s172 + $0xb8] sm:$0xff] %vm1795, %v1690
      %1820 = vst.msk [vmem:[%s172 + $0xc0] sm:$0xff] %vm1795, %v1691
      %1821 = vst.msk [vmem:[%s172 + $0xc8] sm:$0xff] %vm1795, %v1692
      %1822 = vst.msk [vmem:[%s172 + $0xd0] sm:$0xff] %vm1795, %v1693
      %1823 = vst.msk [vmem:[%s172 + $0xd8] sm:$0xff] %vm1795, %v1694
      %1824 = vst.msk [vmem:[%s172 + $0xe0] sm:$0xff] %vm1795, %v1695
      %1825 = vst.msk [vmem:[%s172 + $0xe8] sm:$0xff] %vm1795, %v1696
      %1826 = vst.msk [vmem:[%s172 + $0xf0] sm:$0xff] %vm1795, %v1697
      %1827 = vst.msk [vmem:[%s172 + $0xf8] sm:$0xff] %vm1795, %v1698
      %1828 = vst.msk [vmem:[%s172 + $0x100] sm:$0xff] %vm1795, %v1699
      %1829 = vst.msk [vmem:[%s172 + $0x108] sm:$0xff] %vm1795, %v1700
      %1830 = vst.msk [vmem:[%s172 + $0x110] sm:$0xff] %vm1795, %v1701
      %1831 = vst.msk [vmem:[%s172 + $0x118] sm:$0xff] %vm1795, %v1702
      %1832 = vst.msk [vmem:[%s172 + $0x120] sm:$0xff] %vm1795, %v1703
      %1833 = vst.msk [vmem:[%s172 + $0x128] sm:$0xff] %vm1795, %v1704
      %1834 = vst.msk [vmem:[%s172 + $0x130] sm:$0xff] %vm1795, %v1705
      %1835 = vst.msk [vmem:[%s172 + $0x138] sm:$0xff] %vm1795, %v1706
      %1836 = vst.msk [vmem:[%s172 + $0x140] sm:$0xff] %vm1795, %v1707
      %1837 = vst.msk [vmem:[%s172 + $0x148] sm:$0xff] %vm1795, %v1708
      %1838 = vst.msk [vmem:[%s172 + $0x150] sm:$0xff] %vm1795, %v1709
      %1839 = vst.msk [vmem:[%s172 + $0x158] sm:$0xff] %vm1795, %v1710
      %1840 = vst.msk [vmem:[%s172 + $0x160] sm:$0xff] %vm1795, %v1711
      %1841 = vst.msk [vmem:[%s172 + $0x168] sm:$0xff] %vm1795, %v1712
      %1842 = vst.msk [vmem:[%s172 + $0x170] sm:$0xff] %vm1795, %v1713
      %1843 = vst.msk [vmem:[%s172 + $0x178] sm:$0xff] %vm1795, %v1714
      %1844 = vst.msk [vmem:[%s172 + $0x180] sm:$0xff] %vm1795, %v1715
      %1845 = vst.msk [vmem:[%s172 + $0x188] sm:$0xff] %vm1795, %v1716
      %1846 = vst.msk [vmem:[%s172 + $0x190] sm:$0xff] %vm1795, %v1717
      %1847 = vst.msk [vmem:[%s172 + $0x198] sm:$0xff] %vm1795, %v1718
      %1848 = vst.msk [vmem:[%s172 + $0x1a0] sm:$0xff] %vm1795, %v1719
      %1849 = vst.msk [vmem:[%s172 + $0x1a8] sm:$0xff] %vm1795, %v1720
      %1850 = vst.msk [vmem:[%s172 + $0x1b0] sm:$0xff] %vm1795, %v1721
      %1851 = vst.msk [vmem:[%s172 + $0x1b8] sm:$0xff] %vm1795, %v1722
      %1852 = vst.msk [vmem:[%s172 + $0x1c0] sm:$0xff] %vm1795, %v1723
      %1853 = vst.msk [vmem:[%s172 + $0x1c8] sm:$0xff] %vm1795, %v1724
      %1854 = vst.msk [vmem:[%s172 + $0x1d0] sm:$0xff] %vm1795, %v1725
      %1855 = vst.msk [vmem:[%s172 + $0x1d8] sm:$0xff] %vm1795, %v1726
      %1856 = vst.msk [vmem:[%s172 + $0x1e0] sm:$0xff] %vm1795, %v1727
      %1857 = vst.msk [vmem:[%s172 + $0x1e8] sm:$0xff] %vm1795, %v1728
      %1858 = vst.msk [vmem:[%s172 + $0x1f0] sm:$0xff] %vm1795, %v1729
      %1859 = vst.msk [vmem:[%s172 + $0x1f8] sm:$0xff] %vm1795, %v1730
      %1860 = vst.msk [vmem:[%s172 + $0x200] sm:$0xff] %vm1795, %v1731
      %1861 = vst.msk [vmem:[%s172 + $0x208] sm:$0xff] %vm1795, %v1732
      %1862 = vst.msk [vmem:[%s172 + $0x210] sm:$0xff] %vm1795, %v1733
      %1863 = vst.msk [vmem:[%s172 + $0x218] sm:$0xff] %vm1795, %v1734
      %1864 = vst.msk [vmem:[%s172 + $0x220] sm:$0xff] %vm1795, %v1735
      %1865 = vst.msk [vmem:[%s172 + $0x228] sm:$0xff] %vm1795, %v1736
      %1866 = vst.msk [vmem:[%s172 + $0x230] sm:$0xff] %vm1795, %v1737
      %1867 = vst.msk [vmem:[%s172 + $0x238] sm:$0xff] %vm1795, %v1738
      %1868 = vst.msk [vmem:[%s172 + $0x240] sm:$0xff] %vm1795, %v1739
      %1869 = vst.msk [vmem:[%s172 + $0x248] sm:$0xff] %vm1795, %v1740
      %1870 = vst.msk [vmem:[%s172 + $0x250] sm:$0xff] %vm1795, %v1741
      %1871 = vst.msk [vmem:[%s172 + $0x258] sm:$0xff] %vm1795, %v1742
      %1872 = vst.msk [vmem:[%s172 + $0x260] sm:$0xff] %vm1795, %v1743
      %1873 = vst.msk [vmem:[%s172 + $0x268] sm:$0xff] %vm1795, %v1744
      %1874 = vst.msk [vmem:[%s172 + $0x270] sm:$0xff] %vm1795, %v1745
      %1875 = vst.msk [vmem:[%s172 + $0x278] sm:$0xff] %vm1795, %v1746
      %1876 = vst.msk [vmem:[%s172 + $0x280] sm:$0xff] %vm1795, %v1747
      %1877 = vst.msk [vmem:[%s172 + $0x288] sm:$0xff] %vm1795, %v1748
      %1878 = vst.msk [vmem:[%s172 + $0x290] sm:$0xff] %vm1795, %v1749
      %1879 = vst.msk [vmem:[%s172 + $0x298] sm:$0xff] %vm1795, %v1750
      %1880 = vst.msk [vmem:[%s172 + $0x2a0] sm:$0xff] %vm1795, %v1751
      %1881 = vst.msk [vmem:[%s172 + $0x2a8] sm:$0xff] %vm1795, %v1752
      %1882 = vst.msk [vmem:[%s172 + $0x2b0] sm:$0xff] %vm1795, %v1753
      %1883 = vst.msk [vmem:[%s172 + $0x2b8] sm:$0xff] %vm1795, %v1754
      %1884 = vst.msk [vmem:[%s172 + $0x2c0] sm:$0xff] %vm1795, %v1755
      %1885 = vst.msk [vmem:[%s172 + $0x2c8] sm:$0xff] %vm1795, %v1756
      %1886 = vst.msk [vmem:[%s172 + $0x2d0] sm:$0xff] %vm1795, %v1757
      %1887 = vst.msk [vmem:[%s172 + $0x2d8] sm:$0xff] %vm1795, %v1758
      %1888 = vst.msk [vmem:[%s172 + $0x2e0] sm:$0xff] %vm1795, %v1759
      %1889 = vst.msk [vmem:[%s172 + $0x2e8] sm:$0xff] %vm1795, %v1760
      %1890 = vst.msk [vmem:[%s172 + $0x2f0] sm:$0xff] %vm1795, %v1761
      %1891 = vst.msk [vmem:[%s172 + $0x2f8] sm:$0xff] %vm1795, %v1762
      %1892 = vst.msk [vmem:[%s172 + $0x300] sm:$0xff] %vm1795, %v1763
      %1893 = vst.msk [vmem:[%s172 + $0x308] sm:$0xff] %vm1795, %v1764
      %1894 = vst.msk [vmem:[%s172 + $0x310] sm:$0xff] %vm1795, %v1765
      %1895 = vst.msk [vmem:[%s172 + $0x318] sm:$0xff] %vm1795, %v1766
      %1896 = vst.msk [vmem:[%s172 + $0x320] sm:$0xff] %vm1795, %v1767
      %1897 = vst.msk [vmem:[%s172 + $0x328] sm:$0xff] %vm1795, %v1768
      %1898 = vst.msk [vmem:[%s172 + $0x330] sm:$0xff] %vm1795, %v1769
      %1899 = vst.msk [vmem:[%s172 + $0x338] sm:$0xff] %vm1795, %v1770
      %1900 = vst.msk [vmem:[%s172 + $0x340] sm:$0xff] %vm1795, %v1771
      %1901 = vst.msk [vmem:[%s172 + $0x348] sm:$0xff] %vm1795, %v1772
      %1902 = vst.msk [vmem:[%s172 + $0x350] sm:$0xff] %vm1795, %v1773
      %1903 = vst.msk [vmem:[%s172 + $0x358] sm:$0xff] %vm1795, %v1774
      %1904 = vst.msk [vmem:[%s172 + $0x360] sm:$0xff] %vm1795, %v1775
      %1905 = vst.msk [vmem:[%s172 + $0x368] sm:$0xff] %vm1795, %v1776
      %1906 = vst.msk [vmem:[%s172 + $0x370] sm:$0xff] %vm1795, %v1777
      %1907 = vst.msk [vmem:[%s172 + $0x378] sm:$0xff] %vm1795, %v1778
      %1908 = vst.msk [vmem:[%s172 + $0x380] sm:$0xff] %vm1795, %v1779
      %1909 = vst.msk [vmem:[%s172 + $0x388] sm:$0xff] %vm1795, %v1780
      %1910 = vst.msk [vmem:[%s172 + $0x390] sm:$0xff] %vm1795, %v1781
      %1911 = vst.msk [vmem:[%s172 + $0x398] sm:$0xff] %vm1795, %v1782
      %1912 = vst.msk [vmem:[%s172 + $0x3a0] sm:$0xff] %vm1795, %v1783
      %1913 = vst.msk [vmem:[%s172 + $0x3a8] sm:$0xff] %vm1795, %v1784
      %1914 = vst.msk [vmem:[%s172 + $0x3b0] sm:$0xff] %vm1795, %v1785
      %1915 = vst.msk [vmem:[%s172 + $0x3b8] sm:$0xff] %vm1795, %v1786
      %1916 = vst.msk [vmem:[%s172 + $0x3c0] sm:$0xff] %vm1795, %v1787
      %1917 = vst.msk [vmem:[%s172 + $0x3c8] sm:$0xff] %vm1795, %v1788
      %1918 = vst.msk [vmem:[%s172 + $0x3d0] sm:$0xff] %vm1795, %v1789
      %1919 = vst.msk [vmem:[%s172 + $0x3d8] sm:$0xff] %vm1795, %v1790
      %1920 = vst.msk [vmem:[%s172 + $0x3e0] sm:$0xff] %vm1795, %v1791
      %1921 = vst.msk [vmem:[%s172 + $0x3e8] sm:$0xff] %vm1795, %v1792
      %1922 = vst.msk [vmem:[%s172 + $0x3f0] sm:$0xff] %vm1795, %v1793
      %1923 = vst.msk [vmem:[%s172 + $0x3f8] sm:$0xff] %vm1795, %v1794
      %s1924 = smul.u32 128, %s14
      %p1925 = scmp.lt.s32.totalorder %s1924, 1023
      %s1926 = scalar_select %p1925, %s1924, 1023
      %s1927 = smul.addr %s1926, 8
      %s1928 = scalar_lea.vmem %s3, %s1927
      // Predicated region
      $region33: #{forward.11} parent=31 // pred_check
        %p1929 = pneg %p100
      $region34: #{forward.11} parent=31 // pred_check_branch
        %1931 = sbr.rel (%p1929) target = $region36
      $region35: #{forward.11} parent=31 // pred_region
        %s1932 = smul.u32 128, %s14
      $region36: #{forward.11} parent=31 // pred_fallthru
        _
    $region32: #{forward.11} parent=5 // pred_fallthru
      _
    %p1933 = scmp.le.s32.totalorder 2, %s9
    // Predicated region
    $region37: #{forward.11} parent=5 // pred_check
      %p1934 = pneg %p1933
    $region38: #{forward.11} parent=5 // pred_check_branch
      %1936 = sbr.rel (%p1934) target = $region40
    $region39: #{forward.11} parent=5 // pred_region
      %s1937 = ssub.s32 %s9, 2
      // Predicated region
      $region41: #{forward.11} parent=39 // pred_check
        %p1938 = pneg %p106
      $region42: #{forward.11} parent=39 // pred_check_branch
        %1940 = sbr.rel (%p1938) target = $region44
      $region43: #{forward.11} parent=39 // pred_region
        %s1941 = smul.u32 128, %s15
        %p1942 = scmp.lt.s32.totalorder %s1941, 1023
        %s1943 = scalar_select %p1942, %s1941, 1023
        %s1944 = smul.addr %s1943, 8
        %s1945 = scalar_lea.vmem %s3, %s1944
      $region44: #{forward.11} parent=39 // pred_fallthru
        _
    $region40: #{forward.11} parent=5 // pred_fallthru
      _
  $region6: #{forward.11} parent=0 // loop_footer
    %s13 = sadd.s32 1, %s9
  $region7: #{forward.11} parent=0 // loop_footer_branch
    %8 = sbr.rel target = $region3
  $region8: #{forward.11} parent=0 // loop_exit
    _

</llo_original>
